<compile_context>
chip_gen: v7x
topology: tpu7x:2x2x1
jax: 0.10.0
libtpu: 0.0.40
codegen_flags: <defaults>
</compile_context>

<pallas_src>
import functools

import jax
import jax.numpy as jnp
from jax.experimental import pallas as pl
from jax.experimental.pallas import tpu as pltpu

# ----------------------------------------------------------------------------
# Config (stands in for CM() lookups) -- small, self-consistent shapes.
# ----------------------------------------------------------------------------
INPUT_DIM = 2                       # encoder input feature dim
MAT_EMB_DIM = 3
TARGET_DIM = MAT_EMB_DIM + 1        # 4  (decoder in/out feature dim)
D_MODEL = 32                        # transformer.model_dim
NHEAD = 4                           # transformer.num_heads
HEAD_DIM = D_MODEL // NHEAD         # 8
NUM_LAYERS = 2                      # shared layer applied NUM_LAYERS times
D_FF = 64                           # transformer.d_ff
MAX_LEN_SRC = 16                    # len(wavelengths)
MAX_LEN_TGT = 6 + 2                 # layers.max + 2
LN_EPS = 1e-5
BATCH = 2

W_PACK = 96                         # lane width of the packed parameter slabs

_VMEM = pl.BlockSpec(memory_space=pltpu.MemorySpace.VMEM)


# ----------------------------------------------------------------------------
# Host-side parameter packing (few lane-dense operands instead of ~40 tiny ones)
# ----------------------------------------------------------------------------
class _Packer:
    """Stack 2D parameter chunks along rows, zero-padded to a fixed lane width."""

    def __init__(self, width):
        self._width = width
        self._chunks = []
        self._off = {}          # name -> (row_offset, n_rows, n_cols)
        self._rows = 0

    def add(self, name, arr):
        arr = jnp.asarray(arr, jnp.float32)
        r, c = arr.shape
        if c < self._width:
            arr = jnp.pad(arr, ((0, 0), (0, self._width - c)))
        self._off[name] = (self._rows, r, c)
        self._chunks.append(arr)
        self._rows += r

    def pack(self, dtype):
        return jnp.concatenate(self._chunks, axis=0).astype(dtype), self._off


def _slab(ref, off, name):
    """Point-of-use load of one parameter chunk from a packed slab ref."""
    r, n, c = off[name]
    return ref[r:r + n, :c]


# ----------------------------------------------------------------------------
# In-kernel math helpers
# ----------------------------------------------------------------------------
def _ln(x, g, b):
    mean = jnp.mean(x, axis=-1, keepdims=True)
    var = jnp.mean((x - mean) ** 2, axis=-1, keepdims=True)
    return (x - mean) * jax.lax.rsqrt(var + LN_EPS) * g + b


def _dot_bf16(x, w):
    """MXU matmul: bf16 operands, f32 accumulation."""
    return jnp.dot(x.astype(jnp.bfloat16), w.astype(jnp.bfloat16),
                   preferred_element_type=jnp.float32)


def _small_linear(x, w, b):
    """y = x @ w + b for tiny contraction dims (K=2/4): VPU broadcast FMAs."""
    rows = x.shape[0]
    acc = jnp.broadcast_to(b, (rows, D_MODEL))
    for k in range(x.shape[1]):
        acc = acc + x[:, k:k + 1] * w[k:k + 1, :]
    return acc


def _attn_core(q, k, v, batch, sq, sk):
    """Softmax attention core on batch-row-stacked Q/K/V.

    q: (batch*sq, D)   k, v: (batch*sk, D)   -> (batch*sq, D)
    Heads live in contiguous lane groups of HEAD_DIM.
    """
    scale = 1.0 / float(HEAD_DIM) ** 0.5
    qb = (q * scale).astype(jnp.bfloat16)
    kb = k.astype(jnp.bfloat16)
    vb = v.astype(jnp.bfloat16)
    rows = []
    for b in range(batch):
        qs = qb[b * sq:(b + 1) * sq]
        ks = kb[b * sk:(b + 1) * sk]
        vs = vb[b * sk:(b + 1) * sk]
        heads = []
        for h in range(NHEAD):
            lo, hi = h * HEAD_DIM, (h + 1) * HEAD_DIM
            s = jax.lax.dot_general(qs[:, lo:hi], ks[:, lo:hi],
                                    (((1,), (1,)), ((), ())),
                                    preferred_element_type=jnp.float32)
            s = s - jnp.max(s, axis=-1, keepdims=True)
            p = jnp.exp(s)
            p = p * pl.reciprocal(jnp.sum(p, axis=-1, keepdims=True),
                                  approx=True)
            heads.append(jnp.dot(p.astype(jnp.bfloat16), vs[:, lo:hi],
                                 preferred_element_type=jnp.float32))
        rows.append(jnp.concatenate(heads, axis=-1))        # (sq, D)
    return jnp.concatenate(rows, axis=0)                    # (batch*sq, D)


# ----------------------------------------------------------------------------
# Fused whole-forward kernel
# ----------------------------------------------------------------------------
def _transformer_kernel(*refs, w_off, v_off, guided, batch, tgt_len):
    src_ref = refs[0]
    i = 1
    tgt_ref = None
    if guided:
        tgt_ref = refs[i]
        i += 1
    wm = refs[i]          # bf16 matmul-weight slab
    vc = refs[i + 1]      # f32 vector / small-weight slab
    out_ref = refs[i + 2]

    W = lambda name: _slab(wm, w_off, name)    # point-of-use weight loads
    V = lambda name: _slab(vc, v_off, name)

    n_tgt = batch * tgt_len

    # ---------------- encoder (batch rows stacked) ----------------
    x = _small_linear(src_ref[...], V("enc_in_w"), V("enc_in_b"))   # (B*S, D)
    x = x + jnp.concatenate([V("pos_enc")] * batch, axis=0)
    for _ in range(NUM_LAYERS):                                     # shared weights
        qkv = _dot_bf16(x, W("enc_wqkv")) + V("enc_bqkv")           # (B*S, 3D)
        ctx = _attn_core(qkv[:, :D_MODEL], qkv[:, D_MODEL:2 * D_MODEL],
                         qkv[:, 2 * D_MODEL:], batch, MAX_LEN_SRC, MAX_LEN_SRC)
        attn = _dot_bf16(ctx, W("enc_wo")) + V("enc_bo")
        x = _ln(x + attn, V("enc_ln1_g"), V("enc_ln1_b"))
        h = jnp.maximum(_dot_bf16(x, W("enc_w1")) + V("enc_b1"), 0.0)
        ffn = _dot_bf16(h, W("enc_w2")) + V("enc_b2")
        x = _ln(x + ffn, V("enc_ln2_g"), V("enc_ln2_b"))
    memory = _ln(x, V("enc_norm_g"), V("enc_norm_b"))               # (B*S, D)

    # ---------------- decoder input ----------------
    if guided:
        t = _small_linear(tgt_ref[...], V("dec_in_w"), V("dec_in_b"))
    else:
        # decoder_input_proj(zeros) == bias (constant-folded)
        t = jnp.broadcast_to(V("dec_in_b"), (n_tgt, D_MODEL))
    t = t + jnp.concatenate([V("pos_dec")[:tgt_len, :]] * batch, axis=0)

    # Cross-attention K/V of memory: weights shared across layers and memory
    # is fixed -> compute ONCE and reuse in every decoder layer.
    kv_mem = (_dot_bf16(memory, W("dec_c_wqkv")[:, D_MODEL:])
              + V("dec_c_bqkv")[:, D_MODEL:])
    k_mem = kv_mem[:, :D_MODEL].astype(jnp.bfloat16)
    v_mem = kv_mem[:, D_MODEL:].astype(jnp.bfloat16)

    # ---------------- decoder ----------------
    for _ in range(NUM_LAYERS):                                     # shared weights
        qkv = _dot_bf16(t, W("dec_s_wqkv")) + V("dec_s_bqkv")
        ctx = _attn_core(qkv[:, :D_MODEL], qkv[:, D_MODEL:2 * D_MODEL],
                         qkv[:, 2 * D_MODEL:], batch, tgt_len, tgt_len)
        sa = _dot_bf16(ctx, W("dec_s_wo")) + V("dec_s_bo")
        t = _ln(t + sa, V("dec_ln1_g"), V("dec_ln1_b"))

        q = (_dot_bf16(t, W("dec_c_wqkv")[:, :D_MODEL])
             + V("dec_c_bqkv")[:, :D_MODEL])
        ctx = _attn_core(q, k_mem, v_mem, batch, tgt_len, MAX_LEN_SRC)
        ca = _dot_bf16(ctx, W("dec_c_wo")) + V("dec_c_bo")
        t = _ln(t + ca, V("dec_ln2_g"), V("dec_ln2_b"))

        h = jnp.maximum(_dot_bf16(t, W("dec_w1")) + V("dec_b1"), 0.0)
        ffn = _dot_bf16(h, W("dec_w2")) + V("dec_b2")
        t = _ln(t + ffn, V("dec_ln3_g"), V("dec_ln3_b"))
    t = _ln(t, V("dec_norm_g"), V("dec_norm_b"))

    # ---------------- output projection: single lane-dense store ----------
    out = _dot_bf16(t, W("out_w")) + V("out_b")                     # (B*T, 4)
    out_ref[...] = out.astype(out_ref.dtype)


# ----------------------------------------------------------------------------
# Wrapper
# ----------------------------------------------------------------------------
def transformer_forward(wmat, vecs, src, tgt=None, *, w_off, v_off, mode="free"):
    B = src.shape[0]
    src = src.reshape(B, MAX_LEN_SRC, -1).astype(jnp.float32)
    src2d = src.reshape(B * MAX_LEN_SRC, INPUT_DIM)

    guided = (mode == "guided") and (tgt is not None)
    if guided:
        # TODO(synk): reference uses tgt.shape[1] unmasked; padding to
        # MAX_LEN_TGT would change outputs, so each tgt length retraces.
        tgt = tgt.astype(jnp.float32)
        tgt_len = tgt.shape[1]
        inputs = [src2d, tgt.reshape(B * tgt_len, TARGET_DIM), wmat, vecs]
    else:
        tgt_len = MAX_LEN_TGT
        inputs = [src2d, wmat, vecs]

    kernel = functools.partial(_transformer_kernel, w_off=w_off, v_off=v_off,
                               guided=guided, batch=B, tgt_len=tgt_len)
    out = pl.pallas_call(
        kernel,
        out_shape=jax.ShapeDtypeStruct((B * tgt_len, TARGET_DIM), jnp.float32),
        in_specs=[_VMEM] * len(inputs),
        out_specs=_VMEM,
    )(*inputs)
    return out.reshape(B, tgt_len, TARGET_DIM)


# ----------------------------------------------------------------------------
# Deterministic parameter init (fused 2D attention layout) + packing
# ----------------------------------------------------------------------------
def init_params(key):
    keys = iter(jax.random.split(key, 64))

    def w(shape, scale=0.05):
        return jax.random.normal(next(keys), shape, jnp.float32) * scale

    def mha():
        return dict(wqkv=w((D_MODEL, 3 * D_MODEL)),
                    bqkv=w((1, 3 * D_MODEL), 0.01),
                    wo=w((D_MODEL, D_MODEL)),
                    bo=w((1, D_MODEL), 0.01))

    def ffn():
        return dict(w1=w((D_MODEL, D_FF)), b1=w((1, D_FF), 0.01),
                    w2=w((D_FF, D_MODEL)), b2=w((1, D_MODEL), 0.01))

    ones = lambda: jnp.ones((1, D_MODEL), jnp.float32)
    zeros = lambda: jnp.zeros((1, D_MODEL), jnp.float32)

    return dict(
        enc_in_w=w((INPUT_DIM, D_MODEL)), enc_in_b=w((1, D_MODEL), 0.01),
        dec_in_w=w((TARGET_DIM, D_MODEL)), dec_in_b=w((1, D_MODEL), 0.01),
        out_w=w((D_MODEL, TARGET_DIM)), out_b=w((1, TARGET_DIM), 0.01),
        pos_enc=w((MAX_LEN_SRC, D_MODEL), 1.0),     # nn.Parameter(randn(1,L,D))
        pos_dec=w((MAX_LEN_TGT, D_MODEL), 1.0),
        enc=dict(attn=mha(), **ffn(),
                 ln1_g=ones(), ln1_b=zeros(), ln2_g=ones(), ln2_b=zeros()),
        enc_norm_g=ones(), enc_norm_b=zeros(),
        dec=dict(self_attn=mha(), cross_attn=mha(), **ffn(),
                 ln1_g=ones(), ln1_b=zeros(), ln2_g=ones(), ln2_b=zeros(),
                 ln3_g=ones(), ln3_b=zeros()),
        dec_norm_g=ones(), dec_norm_b=zeros(),
    )


def pack_params(p):
    wm = _Packer(W_PACK)                     # bf16 MXU-weight slab
    wm.add("enc_wqkv", p["enc"]["attn"]["wqkv"])
    wm.add("enc_wo", p["enc"]["attn"]["wo"])
    wm.add("enc_w1", p["enc"]["w1"])
    wm.add("enc_w2", p["enc"]["w2"])
    wm.add("dec_s_wqkv", p["dec"]["self_attn"]["wqkv"])
    wm.add("dec_s_wo", p["dec"]["self_attn"]["wo"])
    wm.add("dec_c_wqkv", p["dec"]["cross_attn"]["wqkv"])
    wm.add("dec_c_wo", p["dec"]["cross_attn"]["wo"])
    wm.add("dec_w1", p["dec"]["w1"])
    wm.add("dec_w2", p["dec"]["w2"])
    wm.add("out_w", p["out_w"])
    wmat, w_off = wm.pack(jnp.bfloat16)

    vc = _Packer(W_PACK)                     # f32 bias/LN/pos/small-proj slab
    vc.add("pos_enc", p["pos_enc"])
    vc.add("pos_dec", p["pos_dec"])
    vc.add("enc_in_w", p["enc_in_w"])
    vc.add("dec_in_w", p["dec_in_w"])
    vc.add("enc_in_b", p["enc_in_b"])
    vc.add("dec_in_b", p["dec_in_b"])
    vc.add("out_b", p["out_b"])
    vc.add("enc_bqkv", p["enc"]["attn"]["bqkv"])
    vc.add("enc_bo", p["enc"]["attn"]["bo"])
    vc.add("enc_b1", p["enc"]["b1"])
    vc.add("enc_b2", p["enc"]["b2"])
    vc.add("enc_ln1_g", p["enc"]["ln1_g"]); vc.add("enc_ln1_b", p["enc"]["ln1_b"])
    vc.add("enc_ln2_g", p["enc"]["ln2_g"]); vc.add("enc_ln2_b", p["enc"]["ln2_b"])
    vc.add("enc_norm_g", p["enc_norm_g"]); vc.add("enc_norm_b", p["enc_norm_b"])
    vc.add("dec_s_bqkv", p["dec"]["self_attn"]["bqkv"])
    vc.add("dec_s_bo", p["dec"]["self_attn"]["bo"])
    vc.add("dec_c_bqkv", p["dec"]["cross_attn"]["bqkv"])
    vc.add("dec_c_bo", p["dec"]["cross_attn"]["bo"])
    vc.add("dec_b1", p["dec"]["b1"]); vc.add("dec_b2", p["dec"]["b2"])
    vc.add("dec_ln1_g", p["dec"]["ln1_g"]); vc.add("dec_ln1_b", p["dec"]["ln1_b"])
    vc.add("dec_ln2_g", p["dec"]["ln2_g"]); vc.add("dec_ln2_b", p["dec"]["ln2_b"])
    vc.add("dec_ln3_g", p["dec"]["ln3_g"]); vc.add("dec_ln3_b", p["dec"]["ln3_b"])
    vc.add("dec_norm_g", p["dec_norm_g"]); vc.add("dec_norm_b", p["dec_norm_b"])
    vecs, v_off = vc.pack(jnp.float32)
    return wmat, w_off, vecs, v_off


# ----------------------------------------------------------------------------
if __name__ == "__main__":
    key = jax.random.PRNGKey(0)
    pkey, xkey = jax.random.split(key)
    params = init_params(pkey)
    wmat, w_off, vecs, v_off = pack_params(params)

    # src: (B, n_wavelengths, input_dim) — reshape inside forward is identity.
    src = jax.random.normal(xkey, (BATCH, MAX_LEN_SRC, INPUT_DIM), jnp.float32)

    fwd = jax.jit(functools.partial(transformer_forward,
                                    w_off=w_off, v_off=v_off, mode="free"))
    out = jax.block_until_ready(fwd(wmat, vecs, src))

    assert out.shape == (BATCH, MAX_LEN_TGT, TARGET_DIM), out.shape
    assert bool(jnp.all(jnp.isfinite(out)))
    print("KERNEL_OK")
</pallas_src>

<mosaic_0001>
module attributes {stable_mosaic.version = 11 : i64} {
  func.func @_transformer_kernel(%arg0: memref<32x2xf32, #tpu.memory_space<vmem>>, %arg1: memref<416x96xbf16, #tpu.memory_space<vmem>>, %arg2: memref<57x96xf32, #tpu.memory_space<vmem>>, %arg3: memref<16x4xf32, #tpu.memory_space<vmem>>) attributes {dimension_semantics = [], scalar_prefetch = 0 : i64, scratch_operands = 0 : i64, tpu.core_type = #tpu.core_type<tc>} {
    %c0 = arith.constant 0 : index
    %c0_0 = arith.constant 0 : index
    %0 = vector.load %arg0[%c0, %c0_0] : memref<32x2xf32, #tpu.memory_space<vmem>>, vector<32x2xf32>
    %c24 = arith.constant 24 : index
    %c0_1 = arith.constant 0 : index
    %1 = vector.load %arg2[%c24, %c0_1] : memref<57x96xf32, #tpu.memory_space<vmem>>, vector<2x32xf32>
    %c30 = arith.constant 30 : index
    %c0_2 = arith.constant 0 : index
    %2 = vector.load %arg2[%c30, %c0_2] : memref<57x96xf32, #tpu.memory_space<vmem>>, vector<1x32xf32>
    %3 = vector.shape_cast %2 : vector<1x32xf32> to vector<1x32xf32>
    %4 = vector.broadcast %3 : vector<1x32xf32> to vector<32x32xf32>
    %5 = vector.extract_strided_slice %0 {offsets = [0, 0], sizes = [32, 1], strides = [1, 1]} : vector<32x2xf32> to vector<32x1xf32>
    %6 = vector.extract_strided_slice %1 {offsets = [0, 0], sizes = [1, 32], strides = [1, 1]} : vector<2x32xf32> to vector<1x32xf32>
    %7 = vector.broadcast %5 : vector<32x1xf32> to vector<32x32xf32>
    %8 = vector.broadcast %6 : vector<1x32xf32> to vector<32x32xf32>
    %9 = arith.mulf %7, %8 : vector<32x32xf32>
    %10 = arith.addf %4, %9 : vector<32x32xf32>
    %11 = vector.extract_strided_slice %0 {offsets = [0, 1], sizes = [32, 1], strides = [1, 1]} : vector<32x2xf32> to vector<32x1xf32>
    %12 = vector.extract_strided_slice %1 {offsets = [1, 0], sizes = [1, 32], strides = [1, 1]} : vector<2x32xf32> to vector<1x32xf32>
    %13 = vector.broadcast %11 : vector<32x1xf32> to vector<32x32xf32>
    %14 = vector.broadcast %12 : vector<1x32xf32> to vector<32x32xf32>
    %15 = arith.mulf %13, %14 : vector<32x32xf32>
    %16 = arith.addf %10, %15 : vector<32x32xf32>
    %c0_3 = arith.constant 0 : index
    %c0_4 = arith.constant 0 : index
    %17 = vector.load %arg2[%c0_3, %c0_4] : memref<57x96xf32, #tpu.memory_space<vmem>>, vector<16x32xf32>
    %18 = tpu.concatenate %17, %17 in 0 : vector<16x32xf32>, vector<16x32xf32> -> vector<32x32xf32>
    %19 = arith.addf %16, %18 : vector<32x32xf32>
    %c0_5 = arith.constant 0 : index
    %c0_6 = arith.constant 0 : index
    %20 = vector.load %arg1[%c0_5, %c0_6] : memref<416x96xbf16, #tpu.memory_space<vmem>>, vector<32x96xbf16>
    %21 = arith.truncf %19 : vector<32x32xf32> to vector<32x32xbf16>
    %cst = arith.constant dense<0.000000e+00> : vector<32x96xf32>
    %22 = tpu.matmul %21, %20, %cst {dimension_numbers = #tpu.dot_dimension_numbers<[1], [0], [0], [1], [0, 0, 1, 1], [], []>} : vector<32x32xbf16>, vector<32x96xbf16>, vector<32x96xf32> -> vector<32x96xf32>
    %c33 = arith.constant 33 : index
    %c0_7 = arith.constant 0 : index
    %23 = vector.load %arg2[%c33, %c0_7] : memref<57x96xf32, #tpu.memory_space<vmem>>, vector<1x96xf32>
    %24 = vector.broadcast %23 : vector<1x96xf32> to vector<32x96xf32>
    %25 = arith.addf %22, %24 : vector<32x96xf32>
    %26 = vector.extract_strided_slice %25 {offsets = [0, 0], sizes = [32, 32], strides = [1, 1]} : vector<32x96xf32> to vector<32x32xf32>
    %27 = vector.extract_strided_slice %25 {offsets = [0, 32], sizes = [32, 32], strides = [1, 1]} : vector<32x96xf32> to vector<32x32xf32>
    %28 = vector.extract_strided_slice %25 {offsets = [0, 64], sizes = [32, 32], strides = [1, 1]} : vector<32x96xf32> to vector<32x32xf32>
    %cst_8 = arith.constant 0.353553385 : f32
    %29 = vector.broadcast %cst_8 : f32 to vector<32x32xf32>
    %30 = arith.mulf %26, %29 : vector<32x32xf32>
    %31 = arith.truncf %30 : vector<32x32xf32> to vector<32x32xbf16>
    %32 = arith.truncf %27 : vector<32x32xf32> to vector<32x32xbf16>
    %33 = arith.truncf %28 : vector<32x32xf32> to vector<32x32xbf16>
    %34 = vector.extract_strided_slice %31 {offsets = [0, 0], sizes = [16, 32], strides = [1, 1]} : vector<32x32xbf16> to vector<16x32xbf16>
    %35 = vector.extract_strided_slice %32 {offsets = [0, 0], sizes = [16, 32], strides = [1, 1]} : vector<32x32xbf16> to vector<16x32xbf16>
    %36 = vector.extract_strided_slice %33 {offsets = [0, 0], sizes = [16, 32], strides = [1, 1]} : vector<32x32xbf16> to vector<16x32xbf16>
    %37 = vector.extract_strided_slice %34 {offsets = [0, 0], sizes = [16, 8], strides = [1, 1]} : vector<16x32xbf16> to vector<16x8xbf16>
    %38 = vector.extract_strided_slice %35 {offsets = [0, 0], sizes = [16, 8], strides = [1, 1]} : vector<16x32xbf16> to vector<16x8xbf16>
    %cst_9 = arith.constant dense<0.000000e+00> : vector<16x16xf32>
    %39 = tpu.matmul %37, %38, %cst_9 {dimension_numbers = #tpu.dot_dimension_numbers<[1], [1], [0], [0], [0, 0, 1, 0], [], []>} : vector<16x8xbf16>, vector<16x8xbf16>, vector<16x16xf32> -> vector<16x16xf32>
    %cst_10 = arith.constant dense<0xFF800000> : vector<16xf32>
    %40 = vector.multi_reduction <maximumf>, %39, %cst_10 [1] : vector<16x16xf32> to vector<16xf32>
    %41 = vector.shape_cast %40 : vector<16xf32> to vector<16x1xf32>
    %42 = vector.broadcast %41 : vector<16x1xf32> to vector<16x16xf32>
    %43 = arith.subf %39, %42 : vector<16x16xf32>
    %44 = math.exp %43 : vector<16x16xf32>
    %cst_11 = arith.constant dense<0.000000e+00> : vector<16xf32>
    %45 = vector.multi_reduction <add>, %44, %cst_11 [1] : vector<16x16xf32> to vector<16xf32>
    %46 = vector.shape_cast %45 : vector<16xf32> to vector<16x1xf32>
    %47 = tpu.reciprocal %46 {approx = true} : vector<16x1xf32> -> vector<16x1xf32>
    %48 = vector.broadcast %47 : vector<16x1xf32> to vector<16x16xf32>
    %49 = arith.mulf %44, %48 : vector<16x16xf32>
    %50 = arith.truncf %49 : vector<16x16xf32> to vector<16x16xbf16>
    %51 = vector.extract_strided_slice %36 {offsets = [0, 0], sizes = [16, 8], strides = [1, 1]} : vector<16x32xbf16> to vector<16x8xbf16>
    %cst_12 = arith.constant dense<0.000000e+00> : vector<16x8xf32>
    %52 = tpu.matmul %50, %51, %cst_12 {dimension_numbers = #tpu.dot_dimension_numbers<[1], [0], [0], [1], [0, 0, 1, 1], [], []>} : vector<16x16xbf16>, vector<16x8xbf16>, vector<16x8xf32> -> vector<16x8xf32>
    %53 = vector.extract_strided_slice %34 {offsets = [0, 8], sizes = [16, 8], strides = [1, 1]} : vector<16x32xbf16> to vector<16x8xbf16>
    %54 = vector.extract_strided_slice %35 {offsets = [0, 8], sizes = [16, 8], strides = [1, 1]} : vector<16x32xbf16> to vector<16x8xbf16>
    %cst_13 = arith.constant dense<0.000000e+00> : vector<16x16xf32>
    %55 = tpu.matmul %53, %54, %cst_13 {dimension_numbers = #tpu.dot_dimension_numbers<[1], [1], [0], [0], [0, 0, 1, 0], [], []>} : vector<16x8xbf16>, vector<16x8xbf16>, vector<16x16xf32> -> vector<16x16xf32>
    %cst_14 = arith.constant dense<0xFF800000> : vector<16xf32>
    %56 = vector.multi_reduction <maximumf>, %55, %cst_14 [1] : vector<16x16xf32> to vector<16xf32>
    %57 = vector.shape_cast %56 : vector<16xf32> to vector<16x1xf32>
    %58 = vector.broadcast %57 : vector<16x1xf32> to vector<16x16xf32>
    %59 = arith.subf %55, %58 : vector<16x16xf32>
    %60 = math.exp %59 : vector<16x16xf32>
    %cst_15 = arith.constant dense<0.000000e+00> : vector<16xf32>
    %61 = vector.multi_reduction <add>, %60, %cst_15 [1] : vector<16x16xf32> to vector<16xf32>
    %62 = vector.shape_cast %61 : vector<16xf32> to vector<16x1xf32>
    %63 = tpu.reciprocal %62 {approx = true} : vector<16x1xf32> -> vector<16x1xf32>
    %64 = vector.broadcast %63 : vector<16x1xf32> to vector<16x16xf32>
    %65 = arith.mulf %60, %64 : vector<16x16xf32>
    %66 = arith.truncf %65 : vector<16x16xf32> to vector<16x16xbf16>
    %67 = vector.extract_strided_slice %36 {offsets = [0, 8], sizes = [16, 8], strides = [1, 1]} : vector<16x32xbf16> to vector<16x8xbf16>
    %cst_16 = arith.constant dense<0.000000e+00> : vector<16x8xf32>
    %68 = tpu.matmul %66, %67, %cst_16 {dimension_numbers = #tpu.dot_dimension_numbers<[1], [0], [0], [1], [0, 0, 1, 1], [], []>} : vector<16x16xbf16>, vector<16x8xbf16>, vector<16x8xf32> -> vector<16x8xf32>
    %69 = vector.extract_strided_slice %34 {offsets = [0, 16], sizes = [16, 8], strides = [1, 1]} : vector<16x32xbf16> to vector<16x8xbf16>
    %70 = vector.extract_strided_slice %35 {offsets = [0, 16], sizes = [16, 8], strides = [1, 1]} : vector<16x32xbf16> to vector<16x8xbf16>
    %cst_17 = arith.constant dense<0.000000e+00> : vector<16x16xf32>
    %71 = tpu.matmul %69, %70, %cst_17 {dimension_numbers = #tpu.dot_dimension_numbers<[1], [1], [0], [0], [0, 0, 1, 0], [], []>} : vector<16x8xbf16>, vector<16x8xbf16>, vector<16x16xf32> -> vector<16x16xf32>
    %cst_18 = arith.constant dense<0xFF800000> : vector<16xf32>
    %72 = vector.multi_reduction <maximumf>, %71, %cst_18 [1] : vector<16x16xf32> to vector<16xf32>
    %73 = vector.shape_cast %72 : vector<16xf32> to vector<16x1xf32>
    %74 = vector.broadcast %73 : vector<16x1xf32> to vector<16x16xf32>
    %75 = arith.subf %71, %74 : vector<16x16xf32>
    %76 = math.exp %75 : vector<16x16xf32>
    %cst_19 = arith.constant dense<0.000000e+00> : vector<16xf32>
    %77 = vector.multi_reduction <add>, %76, %cst_19 [1] : vector<16x16xf32> to vector<16xf32>
    %78 = vector.shape_cast %77 : vector<16xf32> to vector<16x1xf32>
    %79 = tpu.reciprocal %78 {approx = true} : vector<16x1xf32> -> vector<16x1xf32>
    %80 = vector.broadcast %79 : vector<16x1xf32> to vector<16x16xf32>
    %81 = arith.mulf %76, %80 : vector<16x16xf32>
    %82 = arith.truncf %81 : vector<16x16xf32> to vector<16x16xbf16>
    %83 = vector.extract_strided_slice %36 {offsets = [0, 16], sizes = [16, 8], strides = [1, 1]} : vector<16x32xbf16> to vector<16x8xbf16>
    %cst_20 = arith.constant dense<0.000000e+00> : vector<16x8xf32>
    %84 = tpu.matmul %82, %83, %cst_20 {dimension_numbers = #tpu.dot_dimension_numbers<[1], [0], [0], [1], [0, 0, 1, 1], [], []>} : vector<16x16xbf16>, vector<16x8xbf16>, vector<16x8xf32> -> vector<16x8xf32>
    %85 = vector.extract_strided_slice %34 {offsets = [0, 24], sizes = [16, 8], strides = [1, 1]} : vector<16x32xbf16> to vector<16x8xbf16>
    %86 = vector.extract_strided_slice %35 {offsets = [0, 24], sizes = [16, 8], strides = [1, 1]} : vector<16x32xbf16> to vector<16x8xbf16>
    %cst_21 = arith.constant dense<0.000000e+00> : vector<16x16xf32>
    %87 = tpu.matmul %85, %86, %cst_21 {dimension_numbers = #tpu.dot_dimension_numbers<[1], [1], [0], [0], [0, 0, 1, 0], [], []>} : vector<16x8xbf16>, vector<16x8xbf16>, vector<16x16xf32> -> vector<16x16xf32>
    %cst_22 = arith.constant dense<0xFF800000> : vector<16xf32>
    %88 = vector.multi_reduction <maximumf>, %87, %cst_22 [1] : vector<16x16xf32> to vector<16xf32>
    %89 = vector.shape_cast %88 : vector<16xf32> to vector<16x1xf32>
    %90 = vector.broadcast %89 : vector<16x1xf32> to vector<16x16xf32>
    %91 = arith.subf %87, %90 : vector<16x16xf32>
    %92 = math.exp %91 : vector<16x16xf32>
    %cst_23 = arith.constant dense<0.000000e+00> : vector<16xf32>
    %93 = vector.multi_reduction <add>, %92, %cst_23 [1] : vector<16x16xf32> to vector<16xf32>
    %94 = vector.shape_cast %93 : vector<16xf32> to vector<16x1xf32>
    %95 = tpu.reciprocal %94 {approx = true} : vector<16x1xf32> -> vector<16x1xf32>
    %96 = vector.broadcast %95 : vector<16x1xf32> to vector<16x16xf32>
    %97 = arith.mulf %92, %96 : vector<16x16xf32>
    %98 = arith.truncf %97 : vector<16x16xf32> to vector<16x16xbf16>
    %99 = vector.extract_strided_slice %36 {offsets = [0, 24], sizes = [16, 8], strides = [1, 1]} : vector<16x32xbf16> to vector<16x8xbf16>
    %cst_24 = arith.constant dense<0.000000e+00> : vector<16x8xf32>
    %100 = tpu.matmul %98, %99, %cst_24 {dimension_numbers = #tpu.dot_dimension_numbers<[1], [0], [0], [1], [0, 0, 1, 1], [], []>} : vector<16x16xbf16>, vector<16x8xbf16>, vector<16x8xf32> -> vector<16x8xf32>
    %101 = tpu.concatenate %52, %68, %84, %100 in 1 : vector<16x8xf32>, vector<16x8xf32>, vector<16x8xf32>, vector<16x8xf32> -> vector<16x32xf32>
    %102 = vector.extract_strided_slice %31 {offsets = [16, 0], sizes = [16, 32], strides = [1, 1]} : vector<32x32xbf16> to vector<16x32xbf16>
    %103 = vector.extract_strided_slice %32 {offsets = [16, 0], sizes = [16, 32], strides = [1, 1]} : vector<32x32xbf16> to vector<16x32xbf16>
    %104 = vector.extract_strided_slice %33 {offsets = [16, 0], sizes = [16, 32], strides = [1, 1]} : vector<32x32xbf16> to vector<16x32xbf16>
    %105 = vector.extract_strided_slice %102 {offsets = [0, 0], sizes = [16, 8], strides = [1, 1]} : vector<16x32xbf16> to vector<16x8xbf16>
    %106 = vector.extract_strided_slice %103 {offsets = [0, 0], sizes = [16, 8], strides = [1, 1]} : vector<16x32xbf16> to vector<16x8xbf16>
    %cst_25 = arith.constant dense<0.000000e+00> : vector<16x16xf32>
    %107 = tpu.matmul %105, %106, %cst_25 {dimension_numbers = #tpu.dot_dimension_numbers<[1], [1], [0], [0], [0, 0, 1, 0], [], []>} : vector<16x8xbf16>, vector<16x8xbf16>, vector<16x16xf32> -> vector<16x16xf32>
    %cst_26 = arith.constant dense<0xFF800000> : vector<16xf32>
    %108 = vector.multi_reduction <maximumf>, %107, %cst_26 [1] : vector<16x16xf32> to vector<16xf32>
    %109 = vector.shape_cast %108 : vector<16xf32> to vector<16x1xf32>
    %110 = vector.broadcast %109 : vector<16x1xf32> to vector<16x16xf32>
    %111 = arith.subf %107, %110 : vector<16x16xf32>
    %112 = math.exp %111 : vector<16x16xf32>
    %cst_27 = arith.constant dense<0.000000e+00> : vector<16xf32>
    %113 = vector.multi_reduction <add>, %112, %cst_27 [1] : vector<16x16xf32> to vector<16xf32>
    %114 = vector.shape_cast %113 : vector<16xf32> to vector<16x1xf32>
    %115 = tpu.reciprocal %114 {approx = true} : vector<16x1xf32> -> vector<16x1xf32>
    %116 = vector.broadcast %115 : vector<16x1xf32> to vector<16x16xf32>
    %117 = arith.mulf %112, %116 : vector<16x16xf32>
    %118 = arith.truncf %117 : vector<16x16xf32> to vector<16x16xbf16>
    %119 = vector.extract_strided_slice %104 {offsets = [0, 0], sizes = [16, 8], strides = [1, 1]} : vector<16x32xbf16> to vector<16x8xbf16>
    %cst_28 = arith.constant dense<0.000000e+00> : vector<16x8xf32>
    %120 = tpu.matmul %118, %119, %cst_28 {dimension_numbers = #tpu.dot_dimension_numbers<[1], [0], [0], [1], [0, 0, 1, 1], [], []>} : vector<16x16xbf16>, vector<16x8xbf16>, vector<16x8xf32> -> vector<16x8xf32>
    %121 = vector.extract_strided_slice %102 {offsets = [0, 8], sizes = [16, 8], strides = [1, 1]} : vector<16x32xbf16> to vector<16x8xbf16>
    %122 = vector.extract_strided_slice %103 {offsets = [0, 8], sizes = [16, 8], strides = [1, 1]} : vector<16x32xbf16> to vector<16x8xbf16>
    %cst_29 = arith.constant dense<0.000000e+00> : vector<16x16xf32>
    %123 = tpu.matmul %121, %122, %cst_29 {dimension_numbers = #tpu.dot_dimension_numbers<[1], [1], [0], [0], [0, 0, 1, 0], [], []>} : vector<16x8xbf16>, vector<16x8xbf16>, vector<16x16xf32> -> vector<16x16xf32>
    %cst_30 = arith.constant dense<0xFF800000> : vector<16xf32>
    %124 = vector.multi_reduction <maximumf>, %123, %cst_30 [1] : vector<16x16xf32> to vector<16xf32>
    %125 = vector.shape_cast %124 : vector<16xf32> to vector<16x1xf32>
    %126 = vector.broadcast %125 : vector<16x1xf32> to vector<16x16xf32>
    %127 = arith.subf %123, %126 : vector<16x16xf32>
    %128 = math.exp %127 : vector<16x16xf32>
    %cst_31 = arith.constant dense<0.000000e+00> : vector<16xf32>
    %129 = vector.multi_reduction <add>, %128, %cst_31 [1] : vector<16x16xf32> to vector<16xf32>
    %130 = vector.shape_cast %129 : vector<16xf32> to vector<16x1xf32>
    %131 = tpu.reciprocal %130 {approx = true} : vector<16x1xf32> -> vector<16x1xf32>
    %132 = vector.broadcast %131 : vector<16x1xf32> to vector<16x16xf32>
    %133 = arith.mulf %128, %132 : vector<16x16xf32>
    %134 = arith.truncf %133 : vector<16x16xf32> to vector<16x16xbf16>
    %135 = vector.extract_strided_slice %104 {offsets = [0, 8], sizes = [16, 8], strides = [1, 1]} : vector<16x32xbf16> to vector<16x8xbf16>
    %cst_32 = arith.constant dense<0.000000e+00> : vector<16x8xf32>
    %136 = tpu.matmul %134, %135, %cst_32 {dimension_numbers = #tpu.dot_dimension_numbers<[1], [0], [0], [1], [0, 0, 1, 1], [], []>} : vector<16x16xbf16>, vector<16x8xbf16>, vector<16x8xf32> -> vector<16x8xf32>
    %137 = vector.extract_strided_slice %102 {offsets = [0, 16], sizes = [16, 8], strides = [1, 1]} : vector<16x32xbf16> to vector<16x8xbf16>
    %138 = vector.extract_strided_slice %103 {offsets = [0, 16], sizes = [16, 8], strides = [1, 1]} : vector<16x32xbf16> to vector<16x8xbf16>
    %cst_33 = arith.constant dense<0.000000e+00> : vector<16x16xf32>
    %139 = tpu.matmul %137, %138, %cst_33 {dimension_numbers = #tpu.dot_dimension_numbers<[1], [1], [0], [0], [0, 0, 1, 0], [], []>} : vector<16x8xbf16>, vector<16x8xbf16>, vector<16x16xf32> -> vector<16x16xf32>
    %cst_34 = arith.constant dense<0xFF800000> : vector<16xf32>
    %140 = vector.multi_reduction <maximumf>, %139, %cst_34 [1] : vector<16x16xf32> to vector<16xf32>
    %141 = vector.shape_cast %140 : vector<16xf32> to vector<16x1xf32>
    %142 = vector.broadcast %141 : vector<16x1xf32> to vector<16x16xf32>
    %143 = arith.subf %139, %142 : vector<16x16xf32>
    %144 = math.exp %143 : vector<16x16xf32>
    %cst_35 = arith.constant dense<0.000000e+00> : vector<16xf32>
    %145 = vector.multi_reduction <add>, %144, %cst_35 [1] : vector<16x16xf32> to vector<16xf32>
    %146 = vector.shape_cast %145 : vector<16xf32> to vector<16x1xf32>
    %147 = tpu.reciprocal %146 {approx = true} : vector<16x1xf32> -> vector<16x1xf32>
    %148 = vector.broadcast %147 : vector<16x1xf32> to vector<16x16xf32>
    %149 = arith.mulf %144, %148 : vector<16x16xf32>
    %150 = arith.truncf %149 : vector<16x16xf32> to vector<16x16xbf16>
    %151 = vector.extract_strided_slice %104 {offsets = [0, 16], sizes = [16, 8], strides = [1, 1]} : vector<16x32xbf16> to vector<16x8xbf16>
    %cst_36 = arith.constant dense<0.000000e+00> : vector<16x8xf32>
    %152 = tpu.matmul %150, %151, %cst_36 {dimension_numbers = #tpu.dot_dimension_numbers<[1], [0], [0], [1], [0, 0, 1, 1], [], []>} : vector<16x16xbf16>, vector<16x8xbf16>, vector<16x8xf32> -> vector<16x8xf32>
    %153 = vector.extract_strided_slice %102 {offsets = [0, 24], sizes = [16, 8], strides = [1, 1]} : vector<16x32xbf16> to vector<16x8xbf16>
    %154 = vector.extract_strided_slice %103 {offsets = [0, 24], sizes = [16, 8], strides = [1, 1]} : vector<16x32xbf16> to vector<16x8xbf16>
    %cst_37 = arith.constant dense<0.000000e+00> : vector<16x16xf32>
    %155 = tpu.matmul %153, %154, %cst_37 {dimension_numbers = #tpu.dot_dimension_numbers<[1], [1], [0], [0], [0, 0, 1, 0], [], []>} : vector<16x8xbf16>, vector<16x8xbf16>, vector<16x16xf32> -> vector<16x16xf32>
    %cst_38 = arith.constant dense<0xFF800000> : vector<16xf32>
    %156 = vector.multi_reduction <maximumf>, %155, %cst_38 [1] : vector<16x16xf32> to vector<16xf32>
    %157 = vector.shape_cast %156 : vector<16xf32> to vector<16x1xf32>
    %158 = vector.broadcast %157 : vector<16x1xf32> to vector<16x16xf32>
    %159 = arith.subf %155, %158 : vector<16x16xf32>
    %160 = math.exp %159 : vector<16x16xf32>
    %cst_39 = arith.constant dense<0.000000e+00> : vector<16xf32>
    %161 = vector.multi_reduction <add>, %160, %cst_39 [1] : vector<16x16xf32> to vector<16xf32>
    %162 = vector.shape_cast %161 : vector<16xf32> to vector<16x1xf32>
    %163 = tpu.reciprocal %162 {approx = true} : vector<16x1xf32> -> vector<16x1xf32>
    %164 = vector.broadcast %163 : vector<16x1xf32> to vector<16x16xf32>
    %165 = arith.mulf %160, %164 : vector<16x16xf32>
    %166 = arith.truncf %165 : vector<16x16xf32> to vector<16x16xbf16>
    %167 = vector.extract_strided_slice %104 {offsets = [0, 24], sizes = [16, 8], strides = [1, 1]} : vector<16x32xbf16> to vector<16x8xbf16>
    %cst_40 = arith.constant dense<0.000000e+00> : vector<16x8xf32>
    %168 = tpu.matmul %166, %167, %cst_40 {dimension_numbers = #tpu.dot_dimension_numbers<[1], [0], [0], [1], [0, 0, 1, 1], [], []>} : vector<16x16xbf16>, vector<16x8xbf16>, vector<16x8xf32> -> vector<16x8xf32>
    %169 = tpu.concatenate %120, %136, %152, %168 in 1 : vector<16x8xf32>, vector<16x8xf32>, vector<16x8xf32>, vector<16x8xf32> -> vector<16x32xf32>
    %170 = tpu.concatenate %101, %169 in 0 : vector<16x32xf32>, vector<16x32xf32> -> vector<32x32xf32>
    %c32 = arith.constant 32 : index
    %c0_41 = arith.constant 0 : index
    %171 = vector.load %arg1[%c32, %c0_41] : memref<416x96xbf16, #tpu.memory_space<vmem>>, vector<32x32xbf16>
    %172 = arith.truncf %170 : vector<32x32xf32> to vector<32x32xbf16>
    %cst_42 = arith.constant dense<0.000000e+00> : vector<32x32xf32>
    %173 = tpu.matmul %172, %171, %cst_42 {dimension_numbers = #tpu.dot_dimension_numbers<[1], [0], [0], [1], [0, 0, 1, 1], [], []>} : vector<32x32xbf16>, vector<32x32xbf16>, vector<32x32xf32> -> vector<32x32xf32>
    %c34 = arith.constant 34 : index
    %c0_43 = arith.constant 0 : index
    %174 = vector.load %arg2[%c34, %c0_43] : memref<57x96xf32, #tpu.memory_space<vmem>>, vector<1x32xf32>
    %175 = vector.broadcast %174 : vector<1x32xf32> to vector<32x32xf32>
    %176 = arith.addf %173, %175 : vector<32x32xf32>
    %177 = arith.addf %19, %176 : vector<32x32xf32>
    %c37 = arith.constant 37 : index
    %c0_44 = arith.constant 0 : index
    %178 = vector.load %arg2[%c37, %c0_44] : memref<57x96xf32, #tpu.memory_space<vmem>>, vector<1x32xf32>
    %c38 = arith.constant 38 : index
    %c0_45 = arith.constant 0 : index
    %179 = vector.load %arg2[%c38, %c0_45] : memref<57x96xf32, #tpu.memory_space<vmem>>, vector<1x32xf32>
    %cst_46 = arith.constant dense<0.000000e+00> : vector<32xf32>
    %180 = vector.multi_reduction <add>, %177, %cst_46 [1] : vector<32x32xf32> to vector<32xf32>
    %181 = vector.shape_cast %180 : vector<32xf32> to vector<32x1xf32>
    %cst_47 = arith.constant 3.200000e+01 : f32
    %182 = vector.broadcast %cst_47 : f32 to vector<32x1xf32>
    %183 = arith.divf %181, %182 : vector<32x1xf32>
    %184 = vector.broadcast %183 : vector<32x1xf32> to vector<32x32xf32>
    %185 = arith.subf %177, %184 : vector<32x32xf32>
    %186 = arith.mulf %185, %185 : vector<32x32xf32>
    %cst_48 = arith.constant dense<0.000000e+00> : vector<32xf32>
    %187 = vector.multi_reduction <add>, %186, %cst_48 [1] : vector<32x32xf32> to vector<32xf32>
    %188 = vector.shape_cast %187 : vector<32xf32> to vector<32x1xf32>
    %cst_49 = arith.constant 3.200000e+01 : f32
    %189 = vector.broadcast %cst_49 : f32 to vector<32x1xf32>
    %190 = arith.divf %188, %189 : vector<32x1xf32>
    %191 = vector.broadcast %183 : vector<32x1xf32> to vector<32x32xf32>
    %192 = arith.subf %177, %191 : vector<32x32xf32>
    %cst_50 = arith.constant 9.99999974E-6 : f32
    %193 = vector.broadcast %cst_50 : f32 to vector<32x1xf32>
    %194 = arith.addf %190, %193 : vector<32x1xf32>
    %195 = math.rsqrt %194 : vector<32x1xf32>
    %196 = vector.broadcast %195 : vector<32x1xf32> to vector<32x32xf32>
    %197 = arith.mulf %192, %196 : vector<32x32xf32>
    %198 = vector.broadcast %178 : vector<1x32xf32> to vector<32x32xf32>
    %199 = arith.mulf %197, %198 : vector<32x32xf32>
    %200 = vector.broadcast %179 : vector<1x32xf32> to vector<32x32xf32>
    %201 = arith.addf %199, %200 : vector<32x32xf32>
    %c64 = arith.constant 64 : index
    %c0_51 = arith.constant 0 : index
    %202 = vector.load %arg1[%c64, %c0_51] : memref<416x96xbf16, #tpu.memory_space<vmem>>, vector<32x64xbf16>
    %203 = arith.truncf %201 : vector<32x32xf32> to vector<32x32xbf16>
    %cst_52 = arith.constant dense<0.000000e+00> : vector<32x64xf32>
    %204 = tpu.matmul %203, %202, %cst_52 {dimension_numbers = #tpu.dot_dimension_numbers<[1], [0], [0], [1], [0, 0, 1, 1], [], []>} : vector<32x32xbf16>, vector<32x64xbf16>, vector<32x64xf32> -> vector<32x64xf32>
    %c35 = arith.constant 35 : index
    %c0_53 = arith.constant 0 : index
    %205 = vector.load %arg2[%c35, %c0_53] : memref<57x96xf32, #tpu.memory_space<vmem>>, vector<1x64xf32>
    %206 = vector.broadcast %205 : vector<1x64xf32> to vector<32x64xf32>
    %207 = arith.addf %204, %206 : vector<32x64xf32>
    %cst_54 = arith.constant 0.000000e+00 : f32
    %208 = vector.broadcast %cst_54 : f32 to vector<32x64xf32>
    %209 = arith.maximumf %207, %208 : vector<32x64xf32>
    %c96 = arith.constant 96 : index
    %c0_55 = arith.constant 0 : index
    %210 = vector.load %arg1[%c96, %c0_55] : memref<416x96xbf16, #tpu.memory_space<vmem>>, vector<64x32xbf16>
    %211 = arith.truncf %209 : vector<32x64xf32> to vector<32x64xbf16>
    %cst_56 = arith.constant dense<0.000000e+00> : vector<32x32xf32>
    %212 = tpu.matmul %211, %210, %cst_56 {dimension_numbers = #tpu.dot_dimension_numbers<[1], [0], [0], [1], [0, 0, 1, 1], [], []>} : vector<32x64xbf16>, vector<64x32xbf16>, vector<32x32xf32> -> vector<32x32xf32>
    %c36 = arith.constant 36 : index
    %c0_57 = arith.constant 0 : index
    %213 = vector.load %arg2[%c36, %c0_57] : memref<57x96xf32, #tpu.memory_space<vmem>>, vector<1x32xf32>
    %214 = vector.broadcast %213 : vector<1x32xf32> to vector<32x32xf32>
    %215 = arith.addf %212, %214 : vector<32x32xf32>
    %216 = arith.addf %201, %215 : vector<32x32xf32>
    %c39 = arith.constant 39 : index
    %c0_58 = arith.constant 0 : index
    %217 = vector.load %arg2[%c39, %c0_58] : memref<57x96xf32, #tpu.memory_space<vmem>>, vector<1x32xf32>
    %c40 = arith.constant 40 : index
    %c0_59 = arith.constant 0 : index
    %218 = vector.load %arg2[%c40, %c0_59] : memref<57x96xf32, #tpu.memory_space<vmem>>, vector<1x32xf32>
    %cst_60 = arith.constant dense<0.000000e+00> : vector<32xf32>
    %219 = vector.multi_reduction <add>, %216, %cst_60 [1] : vector<32x32xf32> to vector<32xf32>
    %220 = vector.shape_cast %219 : vector<32xf32> to vector<32x1xf32>
    %cst_61 = arith.constant 3.200000e+01 : f32
    %221 = vector.broadcast %cst_61 : f32 to vector<32x1xf32>
    %222 = arith.divf %220, %221 : vector<32x1xf32>
    %223 = vector.broadcast %222 : vector<32x1xf32> to vector<32x32xf32>
    %224 = arith.subf %216, %223 : vector<32x32xf32>
    %225 = arith.mulf %224, %224 : vector<32x32xf32>
    %cst_62 = arith.constant dense<0.000000e+00> : vector<32xf32>
    %226 = vector.multi_reduction <add>, %225, %cst_62 [1] : vector<32x32xf32> to vector<32xf32>
    %227 = vector.shape_cast %226 : vector<32xf32> to vector<32x1xf32>
    %cst_63 = arith.constant 3.200000e+01 : f32
    %228 = vector.broadcast %cst_63 : f32 to vector<32x1xf32>
    %229 = arith.divf %227, %228 : vector<32x1xf32>
    %230 = vector.broadcast %222 : vector<32x1xf32> to vector<32x32xf32>
    %231 = arith.subf %216, %230 : vector<32x32xf32>
    %cst_64 = arith.constant 9.99999974E-6 : f32
    %232 = vector.broadcast %cst_64 : f32 to vector<32x1xf32>
    %233 = arith.addf %229, %232 : vector<32x1xf32>
    %234 = math.rsqrt %233 : vector<32x1xf32>
    %235 = vector.broadcast %234 : vector<32x1xf32> to vector<32x32xf32>
    %236 = arith.mulf %231, %235 : vector<32x32xf32>
    %237 = vector.broadcast %217 : vector<1x32xf32> to vector<32x32xf32>
    %238 = arith.mulf %236, %237 : vector<32x32xf32>
    %239 = vector.broadcast %218 : vector<1x32xf32> to vector<32x32xf32>
    %240 = arith.addf %238, %239 : vector<32x32xf32>
    %c0_65 = arith.constant 0 : index
    %c0_66 = arith.constant 0 : index
    %241 = vector.load %arg1[%c0_65, %c0_66] : memref<416x96xbf16, #tpu.memory_space<vmem>>, vector<32x96xbf16>
    %242 = arith.truncf %240 : vector<32x32xf32> to vector<32x32xbf16>
    %cst_67 = arith.constant dense<0.000000e+00> : vector<32x96xf32>
    %243 = tpu.matmul %242, %241, %cst_67 {dimension_numbers = #tpu.dot_dimension_numbers<[1], [0], [0], [1], [0, 0, 1, 1], [], []>} : vector<32x32xbf16>, vector<32x96xbf16>, vector<32x96xf32> -> vector<32x96xf32>
    %c33_68 = arith.constant 33 : index
    %c0_69 = arith.constant 0 : index
    %244 = vector.load %arg2[%c33_68, %c0_69] : memref<57x96xf32, #tpu.memory_space<vmem>>, vector<1x96xf32>
    %245 = vector.broadcast %244 : vector<1x96xf32> to vector<32x96xf32>
    %246 = arith.addf %243, %245 : vector<32x96xf32>
    %247 = vector.extract_strided_slice %246 {offsets = [0, 0], sizes = [32, 32], strides = [1, 1]} : vector<32x96xf32> to vector<32x32xf32>
    %248 = vector.extract_strided_slice %246 {offsets = [0, 32], sizes = [32, 32], strides = [1, 1]} : vector<32x96xf32> to vector<32x32xf32>
    %249 = vector.extract_strided_slice %246 {offsets = [0, 64], sizes = [32, 32], strides = [1, 1]} : vector<32x96xf32> to vector<32x32xf32>
    %cst_70 = arith.constant 0.353553385 : f32
    %250 = vector.broadcast %cst_70 : f32 to vector<32x32xf32>
    %251 = arith.mulf %247, %250 : vector<32x32xf32>
    %252 = arith.truncf %251 : vector<32x32xf32> to vector<32x32xbf16>
    %253 = arith.truncf %248 : vector<32x32xf32> to vector<32x32xbf16>
    %254 = arith.truncf %249 : vector<32x32xf32> to vector<32x32xbf16>
    %255 = vector.extract_strided_slice %252 {offsets = [0, 0], sizes = [16, 32], strides = [1, 1]} : vector<32x32xbf16> to vector<16x32xbf16>
    %256 = vector.extract_strided_slice %253 {offsets = [0, 0], sizes = [16, 32], strides = [1, 1]} : vector<32x32xbf16> to vector<16x32xbf16>
    %257 = vector.extract_strided_slice %254 {offsets = [0, 0], sizes = [16, 32], strides = [1, 1]} : vector<32x32xbf16> to vector<16x32xbf16>
    %258 = vector.extract_strided_slice %255 {offsets = [0, 0], sizes = [16, 8], strides = [1, 1]} : vector<16x32xbf16> to vector<16x8xbf16>
    %259 = vector.extract_strided_slice %256 {offsets = [0, 0], sizes = [16, 8], strides = [1, 1]} : vector<16x32xbf16> to vector<16x8xbf16>
    %cst_71 = arith.constant dense<0.000000e+00> : vector<16x16xf32>
    %260 = tpu.matmul %258, %259, %cst_71 {dimension_numbers = #tpu.dot_dimension_numbers<[1], [1], [0], [0], [0, 0, 1, 0], [], []>} : vector<16x8xbf16>, vector<16x8xbf16>, vector<16x16xf32> -> vector<16x16xf32>
    %cst_72 = arith.constant dense<0xFF800000> : vector<16xf32>
    %261 = vector.multi_reduction <maximumf>, %260, %cst_72 [1] : vector<16x16xf32> to vector<16xf32>
    %262 = vector.shape_cast %261 : vector<16xf32> to vector<16x1xf32>
    %263 = vector.broadcast %262 : vector<16x1xf32> to vector<16x16xf32>
    %264 = arith.subf %260, %263 : vector<16x16xf32>
    %265 = math.exp %264 : vector<16x16xf32>
    %cst_73 = arith.constant dense<0.000000e+00> : vector<16xf32>
    %266 = vector.multi_reduction <add>, %265, %cst_73 [1] : vector<16x16xf32> to vector<16xf32>
    %267 = vector.shape_cast %266 : vector<16xf32> to vector<16x1xf32>
    %268 = tpu.reciprocal %267 {approx = true} : vector<16x1xf32> -> vector<16x1xf32>
    %269 = vector.broadcast %268 : vector<16x1xf32> to vector<16x16xf32>
    %270 = arith.mulf %265, %269 : vector<16x16xf32>
    %271 = arith.truncf %270 : vector<16x16xf32> to vector<16x16xbf16>
    %272 = vector.extract_strided_slice %257 {offsets = [0, 0], sizes = [16, 8], strides = [1, 1]} : vector<16x32xbf16> to vector<16x8xbf16>
    %cst_74 = arith.constant dense<0.000000e+00> : vector<16x8xf32>
    %273 = tpu.matmul %271, %272, %cst_74 {dimension_numbers = #tpu.dot_dimension_numbers<[1], [0], [0], [1], [0, 0, 1, 1], [], []>} : vector<16x16xbf16>, vector<16x8xbf16>, vector<16x8xf32> -> vector<16x8xf32>
    %274 = vector.extract_strided_slice %255 {offsets = [0, 8], sizes = [16, 8], strides = [1, 1]} : vector<16x32xbf16> to vector<16x8xbf16>
    %275 = vector.extract_strided_slice %256 {offsets = [0, 8], sizes = [16, 8], strides = [1, 1]} : vector<16x32xbf16> to vector<16x8xbf16>
    %cst_75 = arith.constant dense<0.000000e+00> : vector<16x16xf32>
    %276 = tpu.matmul %274, %275, %cst_75 {dimension_numbers = #tpu.dot_dimension_numbers<[1], [1], [0], [0], [0, 0, 1, 0], [], []>} : vector<16x8xbf16>, vector<16x8xbf16>, vector<16x16xf32> -> vector<16x16xf32>
    %cst_76 = arith.constant dense<0xFF800000> : vector<16xf32>
    %277 = vector.multi_reduction <maximumf>, %276, %cst_76 [1] : vector<16x16xf32> to vector<16xf32>
    %278 = vector.shape_cast %277 : vector<16xf32> to vector<16x1xf32>
    %279 = vector.broadcast %278 : vector<16x1xf32> to vector<16x16xf32>
    %280 = arith.subf %276, %279 : vector<16x16xf32>
    %281 = math.exp %280 : vector<16x16xf32>
    %cst_77 = arith.constant dense<0.000000e+00> : vector<16xf32>
    %282 = vector.multi_reduction <add>, %281, %cst_77 [1] : vector<16x16xf32> to vector<16xf32>
    %283 = vector.shape_cast %282 : vector<16xf32> to vector<16x1xf32>
    %284 = tpu.reciprocal %283 {approx = true} : vector<16x1xf32> -> vector<16x1xf32>
    %285 = vector.broadcast %284 : vector<16x1xf32> to vector<16x16xf32>
    %286 = arith.mulf %281, %285 : vector<16x16xf32>
    %287 = arith.truncf %286 : vector<16x16xf32> to vector<16x16xbf16>
    %288 = vector.extract_strided_slice %257 {offsets = [0, 8], sizes = [16, 8], strides = [1, 1]} : vector<16x32xbf16> to vector<16x8xbf16>
    %cst_78 = arith.constant dense<0.000000e+00> : vector<16x8xf32>
    %289 = tpu.matmul %287, %288, %cst_78 {dimension_numbers = #tpu.dot_dimension_numbers<[1], [0], [0], [1], [0, 0, 1, 1], [], []>} : vector<16x16xbf16>, vector<16x8xbf16>, vector<16x8xf32> -> vector<16x8xf32>
    %290 = vector.extract_strided_slice %255 {offsets = [0, 16], sizes = [16, 8], strides = [1, 1]} : vector<16x32xbf16> to vector<16x8xbf16>
    %291 = vector.extract_strided_slice %256 {offsets = [0, 16], sizes = [16, 8], strides = [1, 1]} : vector<16x32xbf16> to vector<16x8xbf16>
    %cst_79 = arith.constant dense<0.000000e+00> : vector<16x16xf32>
    %292 = tpu.matmul %290, %291, %cst_79 {dimension_numbers = #tpu.dot_dimension_numbers<[1], [1], [0], [0], [0, 0, 1, 0], [], []>} : vector<16x8xbf16>, vector<16x8xbf16>, vector<16x16xf32> -> vector<16x16xf32>
    %cst_80 = arith.constant dense<0xFF800000> : vector<16xf32>
    %293 = vector.multi_reduction <maximumf>, %292, %cst_80 [1] : vector<16x16xf32> to vector<16xf32>
    %294 = vector.shape_cast %293 : vector<16xf32> to vector<16x1xf32>
    %295 = vector.broadcast %294 : vector<16x1xf32> to vector<16x16xf32>
    %296 = arith.subf %292, %295 : vector<16x16xf32>
    %297 = math.exp %296 : vector<16x16xf32>
    %cst_81 = arith.constant dense<0.000000e+00> : vector<16xf32>
    %298 = vector.multi_reduction <add>, %297, %cst_81 [1] : vector<16x16xf32> to vector<16xf32>
    %299 = vector.shape_cast %298 : vector<16xf32> to vector<16x1xf32>
    %300 = tpu.reciprocal %299 {approx = true} : vector<16x1xf32> -> vector<16x1xf32>
    %301 = vector.broadcast %300 : vector<16x1xf32> to vector<16x16xf32>
    %302 = arith.mulf %297, %301 : vector<16x16xf32>
    %303 = arith.truncf %302 : vector<16x16xf32> to vector<16x16xbf16>
    %304 = vector.extract_strided_slice %257 {offsets = [0, 16], sizes = [16, 8], strides = [1, 1]} : vector<16x32xbf16> to vector<16x8xbf16>
    %cst_82 = arith.constant dense<0.000000e+00> : vector<16x8xf32>
    %305 = tpu.matmul %303, %304, %cst_82 {dimension_numbers = #tpu.dot_dimension_numbers<[1], [0], [0], [1], [0, 0, 1, 1], [], []>} : vector<16x16xbf16>, vector<16x8xbf16>, vector<16x8xf32> -> vector<16x8xf32>
    %306 = vector.extract_strided_slice %255 {offsets = [0, 24], sizes = [16, 8], strides = [1, 1]} : vector<16x32xbf16> to vector<16x8xbf16>
    %307 = vector.extract_strided_slice %256 {offsets = [0, 24], sizes = [16, 8], strides = [1, 1]} : vector<16x32xbf16> to vector<16x8xbf16>
    %cst_83 = arith.constant dense<0.000000e+00> : vector<16x16xf32>
    %308 = tpu.matmul %306, %307, %cst_83 {dimension_numbers = #tpu.dot_dimension_numbers<[1], [1], [0], [0], [0, 0, 1, 0], [], []>} : vector<16x8xbf16>, vector<16x8xbf16>, vector<16x16xf32> -> vector<16x16xf32>
    %cst_84 = arith.constant dense<0xFF800000> : vector<16xf32>
    %309 = vector.multi_reduction <maximumf>, %308, %cst_84 [1] : vector<16x16xf32> to vector<16xf32>
    %310 = vector.shape_cast %309 : vector<16xf32> to vector<16x1xf32>
    %311 = vector.broadcast %310 : vector<16x1xf32> to vector<16x16xf32>
    %312 = arith.subf %308, %311 : vector<16x16xf32>
    %313 = math.exp %312 : vector<16x16xf32>
    %cst_85 = arith.constant dense<0.000000e+00> : vector<16xf32>
    %314 = vector.multi_reduction <add>, %313, %cst_85 [1] : vector<16x16xf32> to vector<16xf32>
    %315 = vector.shape_cast %314 : vector<16xf32> to vector<16x1xf32>
    %316 = tpu.reciprocal %315 {approx = true} : vector<16x1xf32> -> vector<16x1xf32>
    %317 = vector.broadcast %316 : vector<16x1xf32> to vector<16x16xf32>
    %318 = arith.mulf %313, %317 : vector<16x16xf32>
    %319 = arith.truncf %318 : vector<16x16xf32> to vector<16x16xbf16>
    %320 = vector.extract_strided_slice %257 {offsets = [0, 24], sizes = [16, 8], strides = [1, 1]} : vector<16x32xbf16> to vector<16x8xbf16>
    %cst_86 = arith.constant dense<0.000000e+00> : vector<16x8xf32>
    %321 = tpu.matmul %319, %320, %cst_86 {dimension_numbers = #tpu.dot_dimension_numbers<[1], [0], [0], [1], [0, 0, 1, 1], [], []>} : vector<16x16xbf16>, vector<16x8xbf16>, vector<16x8xf32> -> vector<16x8xf32>
    %322 = tpu.concatenate %273, %289, %305, %321 in 1 : vector<16x8xf32>, vector<16x8xf32>, vector<16x8xf32>, vector<16x8xf32> -> vector<16x32xf32>
    %323 = vector.extract_strided_slice %252 {offsets = [16, 0], sizes = [16, 32], strides = [1, 1]} : vector<32x32xbf16> to vector<16x32xbf16>
    %324 = vector.extract_strided_slice %253 {offsets = [16, 0], sizes = [16, 32], strides = [1, 1]} : vector<32x32xbf16> to vector<16x32xbf16>
    %325 = vector.extract_strided_slice %254 {offsets = [16, 0], sizes = [16, 32], strides = [1, 1]} : vector<32x32xbf16> to vector<16x32xbf16>
    %326 = vector.extract_strided_slice %323 {offsets = [0, 0], sizes = [16, 8], strides = [1, 1]} : vector<16x32xbf16> to vector<16x8xbf16>
    %327 = vector.extract_strided_slice %324 {offsets = [0, 0], sizes = [16, 8], strides = [1, 1]} : vector<16x32xbf16> to vector<16x8xbf16>
    %cst_87 = arith.constant dense<0.000000e+00> : vector<16x16xf32>
    %328 = tpu.matmul %326, %327, %cst_87 {dimension_numbers = #tpu.dot_dimension_numbers<[1], [1], [0], [0], [0, 0, 1, 0], [], []>} : vector<16x8xbf16>, vector<16x8xbf16>, vector<16x16xf32> -> vector<16x16xf32>
    %cst_88 = arith.constant dense<0xFF800000> : vector<16xf32>
    %329 = vector.multi_reduction <maximumf>, %328, %cst_88 [1] : vector<16x16xf32> to vector<16xf32>
    %330 = vector.shape_cast %329 : vector<16xf32> to vector<16x1xf32>
    %331 = vector.broadcast %330 : vector<16x1xf32> to vector<16x16xf32>
    %332 = arith.subf %328, %331 : vector<16x16xf32>
    %333 = math.exp %332 : vector<16x16xf32>
    %cst_89 = arith.constant dense<0.000000e+00> : vector<16xf32>
    %334 = vector.multi_reduction <add>, %333, %cst_89 [1] : vector<16x16xf32> to vector<16xf32>
    %335 = vector.shape_cast %334 : vector<16xf32> to vector<16x1xf32>
    %336 = tpu.reciprocal %335 {approx = true} : vector<16x1xf32> -> vector<16x1xf32>
    %337 = vector.broadcast %336 : vector<16x1xf32> to vector<16x16xf32>
    %338 = arith.mulf %333, %337 : vector<16x16xf32>
    %339 = arith.truncf %338 : vector<16x16xf32> to vector<16x16xbf16>
    %340 = vector.extract_strided_slice %325 {offsets = [0, 0], sizes = [16, 8], strides = [1, 1]} : vector<16x32xbf16> to vector<16x8xbf16>
    %cst_90 = arith.constant dense<0.000000e+00> : vector<16x8xf32>
    %341 = tpu.matmul %339, %340, %cst_90 {dimension_numbers = #tpu.dot_dimension_numbers<[1], [0], [0], [1], [0, 0, 1, 1], [], []>} : vector<16x16xbf16>, vector<16x8xbf16>, vector<16x8xf32> -> vector<16x8xf32>
    %342 = vector.extract_strided_slice %323 {offsets = [0, 8], sizes = [16, 8], strides = [1, 1]} : vector<16x32xbf16> to vector<16x8xbf16>
    %343 = vector.extract_strided_slice %324 {offsets = [0, 8], sizes = [16, 8], strides = [1, 1]} : vector<16x32xbf16> to vector<16x8xbf16>
    %cst_91 = arith.constant dense<0.000000e+00> : vector<16x16xf32>
    %344 = tpu.matmul %342, %343, %cst_91 {dimension_numbers = #tpu.dot_dimension_numbers<[1], [1], [0], [0], [0, 0, 1, 0], [], []>} : vector<16x8xbf16>, vector<16x8xbf16>, vector<16x16xf32> -> vector<16x16xf32>
    %cst_92 = arith.constant dense<0xFF800000> : vector<16xf32>
    %345 = vector.multi_reduction <maximumf>, %344, %cst_92 [1] : vector<16x16xf32> to vector<16xf32>
    %346 = vector.shape_cast %345 : vector<16xf32> to vector<16x1xf32>
    %347 = vector.broadcast %346 : vector<16x1xf32> to vector<16x16xf32>
    %348 = arith.subf %344, %347 : vector<16x16xf32>
    %349 = math.exp %348 : vector<16x16xf32>
    %cst_93 = arith.constant dense<0.000000e+00> : vector<16xf32>
    %350 = vector.multi_reduction <add>, %349, %cst_93 [1] : vector<16x16xf32> to vector<16xf32>
    %351 = vector.shape_cast %350 : vector<16xf32> to vector<16x1xf32>
    %352 = tpu.reciprocal %351 {approx = true} : vector<16x1xf32> -> vector<16x1xf32>
    %353 = vector.broadcast %352 : vector<16x1xf32> to vector<16x16xf32>
    %354 = arith.mulf %349, %353 : vector<16x16xf32>
    %355 = arith.truncf %354 : vector<16x16xf32> to vector<16x16xbf16>
    %356 = vector.extract_strided_slice %325 {offsets = [0, 8], sizes = [16, 8], strides = [1, 1]} : vector<16x32xbf16> to vector<16x8xbf16>
    %cst_94 = arith.constant dense<0.000000e+00> : vector<16x8xf32>
    %357 = tpu.matmul %355, %356, %cst_94 {dimension_numbers = #tpu.dot_dimension_numbers<[1], [0], [0], [1], [0, 0, 1, 1], [], []>} : vector<16x16xbf16>, vector<16x8xbf16>, vector<16x8xf32> -> vector<16x8xf32>
    %358 = vector.extract_strided_slice %323 {offsets = [0, 16], sizes = [16, 8], strides = [1, 1]} : vector<16x32xbf16> to vector<16x8xbf16>
    %359 = vector.extract_strided_slice %324 {offsets = [0, 16], sizes = [16, 8], strides = [1, 1]} : vector<16x32xbf16> to vector<16x8xbf16>
    %cst_95 = arith.constant dense<0.000000e+00> : vector<16x16xf32>
    %360 = tpu.matmul %358, %359, %cst_95 {dimension_numbers = #tpu.dot_dimension_numbers<[1], [1], [0], [0], [0, 0, 1, 0], [], []>} : vector<16x8xbf16>, vector<16x8xbf16>, vector<16x16xf32> -> vector<16x16xf32>
    %cst_96 = arith.constant dense<0xFF800000> : vector<16xf32>
    %361 = vector.multi_reduction <maximumf>, %360, %cst_96 [1] : vector<16x16xf32> to vector<16xf32>
    %362 = vector.shape_cast %361 : vector<16xf32> to vector<16x1xf32>
    %363 = vector.broadcast %362 : vector<16x1xf32> to vector<16x16xf32>
    %364 = arith.subf %360, %363 : vector<16x16xf32>
    %365 = math.exp %364 : vector<16x16xf32>
    %cst_97 = arith.constant dense<0.000000e+00> : vector<16xf32>
    %366 = vector.multi_reduction <add>, %365, %cst_97 [1] : vector<16x16xf32> to vector<16xf32>
    %367 = vector.shape_cast %366 : vector<16xf32> to vector<16x1xf32>
    %368 = tpu.reciprocal %367 {approx = true} : vector<16x1xf32> -> vector<16x1xf32>
    %369 = vector.broadcast %368 : vector<16x1xf32> to vector<16x16xf32>
    %370 = arith.mulf %365, %369 : vector<16x16xf32>
    %371 = arith.truncf %370 : vector<16x16xf32> to vector<16x16xbf16>
    %372 = vector.extract_strided_slice %325 {offsets = [0, 16], sizes = [16, 8], strides = [1, 1]} : vector<16x32xbf16> to vector<16x8xbf16>
    %cst_98 = arith.constant dense<0.000000e+00> : vector<16x8xf32>
    %373 = tpu.matmul %371, %372, %cst_98 {dimension_numbers = #tpu.dot_dimension_numbers<[1], [0], [0], [1], [0, 0, 1, 1], [], []>} : vector<16x16xbf16>, vector<16x8xbf16>, vector<16x8xf32> -> vector<16x8xf32>
    %374 = vector.extract_strided_slice %323 {offsets = [0, 24], sizes = [16, 8], strides = [1, 1]} : vector<16x32xbf16> to vector<16x8xbf16>
    %375 = vector.extract_strided_slice %324 {offsets = [0, 24], sizes = [16, 8], strides = [1, 1]} : vector<16x32xbf16> to vector<16x8xbf16>
    %cst_99 = arith.constant dense<0.000000e+00> : vector<16x16xf32>
    %376 = tpu.matmul %374, %375, %cst_99 {dimension_numbers = #tpu.dot_dimension_numbers<[1], [1], [0], [0], [0, 0, 1, 0], [], []>} : vector<16x8xbf16>, vector<16x8xbf16>, vector<16x16xf32> -> vector<16x16xf32>
    %cst_100 = arith.constant dense<0xFF800000> : vector<16xf32>
    %377 = vector.multi_reduction <maximumf>, %376, %cst_100 [1] : vector<16x16xf32> to vector<16xf32>
    %378 = vector.shape_cast %377 : vector<16xf32> to vector<16x1xf32>
    %379 = vector.broadcast %378 : vector<16x1xf32> to vector<16x16xf32>
    %380 = arith.subf %376, %379 : vector<16x16xf32>
    %381 = math.exp %380 : vector<16x16xf32>
    %cst_101 = arith.constant dense<0.000000e+00> : vector<16xf32>
    %382 = vector.multi_reduction <add>, %381, %cst_101 [1] : vector<16x16xf32> to vector<16xf32>
    %383 = vector.shape_cast %382 : vector<16xf32> to vector<16x1xf32>
    %384 = tpu.reciprocal %383 {approx = true} : vector<16x1xf32> -> vector<16x1xf32>
    %385 = vector.broadcast %384 : vector<16x1xf32> to vector<16x16xf32>
    %386 = arith.mulf %381, %385 : vector<16x16xf32>
    %387 = arith.truncf %386 : vector<16x16xf32> to vector<16x16xbf16>
    %388 = vector.extract_strided_slice %325 {offsets = [0, 24], sizes = [16, 8], strides = [1, 1]} : vector<16x32xbf16> to vector<16x8xbf16>
    %cst_102 = arith.constant dense<0.000000e+00> : vector<16x8xf32>
    %389 = tpu.matmul %387, %388, %cst_102 {dimension_numbers = #tpu.dot_dimension_numbers<[1], [0], [0], [1], [0, 0, 1, 1], [], []>} : vector<16x16xbf16>, vector<16x8xbf16>, vector<16x8xf32> -> vector<16x8xf32>
    %390 = tpu.concatenate %341, %357, %373, %389 in 1 : vector<16x8xf32>, vector<16x8xf32>, vector<16x8xf32>, vector<16x8xf32> -> vector<16x32xf32>
    %391 = tpu.concatenate %322, %390 in 0 : vector<16x32xf32>, vector<16x32xf32> -> vector<32x32xf32>
    %c32_103 = arith.constant 32 : index
    %c0_104 = arith.constant 0 : index
    %392 = vector.load %arg1[%c32_103, %c0_104] : memref<416x96xbf16, #tpu.memory_space<vmem>>, vector<32x32xbf16>
    %393 = arith.truncf %391 : vector<32x32xf32> to vector<32x32xbf16>
    %cst_105 = arith.constant dense<0.000000e+00> : vector<32x32xf32>
    %394 = tpu.matmul %393, %392, %cst_105 {dimension_numbers = #tpu.dot_dimension_numbers<[1], [0], [0], [1], [0, 0, 1, 1], [], []>} : vector<32x32xbf16>, vector<32x32xbf16>, vector<32x32xf32> -> vector<32x32xf32>
    %c34_106 = arith.constant 34 : index
    %c0_107 = arith.constant 0 : index
    %395 = vector.load %arg2[%c34_106, %c0_107] : memref<57x96xf32, #tpu.memory_space<vmem>>, vector<1x32xf32>
    %396 = vector.broadcast %395 : vector<1x32xf32> to vector<32x32xf32>
    %397 = arith.addf %394, %396 : vector<32x32xf32>
    %398 = arith.addf %240, %397 : vector<32x32xf32>
    %c37_108 = arith.constant 37 : index
    %c0_109 = arith.constant 0 : index
    %399 = vector.load %arg2[%c37_108, %c0_109] : memref<57x96xf32, #tpu.memory_space<vmem>>, vector<1x32xf32>
    %c38_110 = arith.constant 38 : index
    %c0_111 = arith.constant 0 : index
    %400 = vector.load %arg2[%c38_110, %c0_111] : memref<57x96xf32, #tpu.memory_space<vmem>>, vector<1x32xf32>
    %cst_112 = arith.constant dense<0.000000e+00> : vector<32xf32>
    %401 = vector.multi_reduction <add>, %398, %cst_112 [1] : vector<32x32xf32> to vector<32xf32>
    %402 = vector.shape_cast %401 : vector<32xf32> to vector<32x1xf32>
    %cst_113 = arith.constant 3.200000e+01 : f32
    %403 = vector.broadcast %cst_113 : f32 to vector<32x1xf32>
    %404 = arith.divf %402, %403 : vector<32x1xf32>
    %405 = vector.broadcast %404 : vector<32x1xf32> to vector<32x32xf32>
    %406 = arith.subf %398, %405 : vector<32x32xf32>
    %407 = arith.mulf %406, %406 : vector<32x32xf32>
    %cst_114 = arith.constant dense<0.000000e+00> : vector<32xf32>
    %408 = vector.multi_reduction <add>, %407, %cst_114 [1] : vector<32x32xf32> to vector<32xf32>
    %409 = vector.shape_cast %408 : vector<32xf32> to vector<32x1xf32>
    %cst_115 = arith.constant 3.200000e+01 : f32
    %410 = vector.broadcast %cst_115 : f32 to vector<32x1xf32>
    %411 = arith.divf %409, %410 : vector<32x1xf32>
    %412 = vector.broadcast %404 : vector<32x1xf32> to vector<32x32xf32>
    %413 = arith.subf %398, %412 : vector<32x32xf32>
    %cst_116 = arith.constant 9.99999974E-6 : f32
    %414 = vector.broadcast %cst_116 : f32 to vector<32x1xf32>
    %415 = arith.addf %411, %414 : vector<32x1xf32>
    %416 = math.rsqrt %415 : vector<32x1xf32>
    %417 = vector.broadcast %416 : vector<32x1xf32> to vector<32x32xf32>
    %418 = arith.mulf %413, %417 : vector<32x32xf32>
    %419 = vector.broadcast %399 : vector<1x32xf32> to vector<32x32xf32>
    %420 = arith.mulf %418, %419 : vector<32x32xf32>
    %421 = vector.broadcast %400 : vector<1x32xf32> to vector<32x32xf32>
    %422 = arith.addf %420, %421 : vector<32x32xf32>
    %c64_117 = arith.constant 64 : index
    %c0_118 = arith.constant 0 : index
    %423 = vector.load %arg1[%c64_117, %c0_118] : memref<416x96xbf16, #tpu.memory_space<vmem>>, vector<32x64xbf16>
    %424 = arith.truncf %422 : vector<32x32xf32> to vector<32x32xbf16>
    %cst_119 = arith.constant dense<0.000000e+00> : vector<32x64xf32>
    %425 = tpu.matmul %424, %423, %cst_119 {dimension_numbers = #tpu.dot_dimension_numbers<[1], [0], [0], [1], [0, 0, 1, 1], [], []>} : vector<32x32xbf16>, vector<32x64xbf16>, vector<32x64xf32> -> vector<32x64xf32>
    %c35_120 = arith.constant 35 : index
    %c0_121 = arith.constant 0 : index
    %426 = vector.load %arg2[%c35_120, %c0_121] : memref<57x96xf32, #tpu.memory_space<vmem>>, vector<1x64xf32>
    %427 = vector.broadcast %426 : vector<1x64xf32> to vector<32x64xf32>
    %428 = arith.addf %425, %427 : vector<32x64xf32>
    %cst_122 = arith.constant 0.000000e+00 : f32
    %429 = vector.broadcast %cst_122 : f32 to vector<32x64xf32>
    %430 = arith.maximumf %428, %429 : vector<32x64xf32>
    %c96_123 = arith.constant 96 : index
    %c0_124 = arith.constant 0 : index
    %431 = vector.load %arg1[%c96_123, %c0_124] : memref<416x96xbf16, #tpu.memory_space<vmem>>, vector<64x32xbf16>
    %432 = arith.truncf %430 : vector<32x64xf32> to vector<32x64xbf16>
    %cst_125 = arith.constant dense<0.000000e+00> : vector<32x32xf32>
    %433 = tpu.matmul %432, %431, %cst_125 {dimension_numbers = #tpu.dot_dimension_numbers<[1], [0], [0], [1], [0, 0, 1, 1], [], []>} : vector<32x64xbf16>, vector<64x32xbf16>, vector<32x32xf32> -> vector<32x32xf32>
    %c36_126 = arith.constant 36 : index
    %c0_127 = arith.constant 0 : index
    %434 = vector.load %arg2[%c36_126, %c0_127] : memref<57x96xf32, #tpu.memory_space<vmem>>, vector<1x32xf32>
    %435 = vector.broadcast %434 : vector<1x32xf32> to vector<32x32xf32>
    %436 = arith.addf %433, %435 : vector<32x32xf32>
    %437 = arith.addf %422, %436 : vector<32x32xf32>
    %c39_128 = arith.constant 39 : index
    %c0_129 = arith.constant 0 : index
    %438 = vector.load %arg2[%c39_128, %c0_129] : memref<57x96xf32, #tpu.memory_space<vmem>>, vector<1x32xf32>
    %c40_130 = arith.constant 40 : index
    %c0_131 = arith.constant 0 : index
    %439 = vector.load %arg2[%c40_130, %c0_131] : memref<57x96xf32, #tpu.memory_space<vmem>>, vector<1x32xf32>
    %cst_132 = arith.constant dense<0.000000e+00> : vector<32xf32>
    %440 = vector.multi_reduction <add>, %437, %cst_132 [1] : vector<32x32xf32> to vector<32xf32>
    %441 = vector.shape_cast %440 : vector<32xf32> to vector<32x1xf32>
    %cst_133 = arith.constant 3.200000e+01 : f32
    %442 = vector.broadcast %cst_133 : f32 to vector<32x1xf32>
    %443 = arith.divf %441, %442 : vector<32x1xf32>
    %444 = vector.broadcast %443 : vector<32x1xf32> to vector<32x32xf32>
    %445 = arith.subf %437, %444 : vector<32x32xf32>
    %446 = arith.mulf %445, %445 : vector<32x32xf32>
    %cst_134 = arith.constant dense<0.000000e+00> : vector<32xf32>
    %447 = vector.multi_reduction <add>, %446, %cst_134 [1] : vector<32x32xf32> to vector<32xf32>
    %448 = vector.shape_cast %447 : vector<32xf32> to vector<32x1xf32>
    %cst_135 = arith.constant 3.200000e+01 : f32
    %449 = vector.broadcast %cst_135 : f32 to vector<32x1xf32>
    %450 = arith.divf %448, %449 : vector<32x1xf32>
    %451 = vector.broadcast %443 : vector<32x1xf32> to vector<32x32xf32>
    %452 = arith.subf %437, %451 : vector<32x32xf32>
    %cst_136 = arith.constant 9.99999974E-6 : f32
    %453 = vector.broadcast %cst_136 : f32 to vector<32x1xf32>
    %454 = arith.addf %450, %453 : vector<32x1xf32>
    %455 = math.rsqrt %454 : vector<32x1xf32>
    %456 = vector.broadcast %455 : vector<32x1xf32> to vector<32x32xf32>
    %457 = arith.mulf %452, %456 : vector<32x32xf32>
    %458 = vector.broadcast %438 : vector<1x32xf32> to vector<32x32xf32>
    %459 = arith.mulf %457, %458 : vector<32x32xf32>
    %460 = vector.broadcast %439 : vector<1x32xf32> to vector<32x32xf32>
    %461 = arith.addf %459, %460 : vector<32x32xf32>
    %c41 = arith.constant 41 : index
    %c0_137 = arith.constant 0 : index
    %462 = vector.load %arg2[%c41, %c0_137] : memref<57x96xf32, #tpu.memory_space<vmem>>, vector<1x32xf32>
    %c42 = arith.constant 42 : index
    %c0_138 = arith.constant 0 : index
    %463 = vector.load %arg2[%c42, %c0_138] : memref<57x96xf32, #tpu.memory_space<vmem>>, vector<1x32xf32>
    %cst_139 = arith.constant dense<0.000000e+00> : vector<32xf32>
    %464 = vector.multi_reduction <add>, %461, %cst_139 [1] : vector<32x32xf32> to vector<32xf32>
    %465 = vector.shape_cast %464 : vector<32xf32> to vector<32x1xf32>
    %cst_140 = arith.constant 3.200000e+01 : f32
    %466 = vector.broadcast %cst_140 : f32 to vector<32x1xf32>
    %467 = arith.divf %465, %466 : vector<32x1xf32>
    %468 = vector.broadcast %467 : vector<32x1xf32> to vector<32x32xf32>
    %469 = arith.subf %461, %468 : vector<32x32xf32>
    %470 = arith.mulf %469, %469 : vector<32x32xf32>
    %cst_141 = arith.constant dense<0.000000e+00> : vector<32xf32>
    %471 = vector.multi_reduction <add>, %470, %cst_141 [1] : vector<32x32xf32> to vector<32xf32>
    %472 = vector.shape_cast %471 : vector<32xf32> to vector<32x1xf32>
    %cst_142 = arith.constant 3.200000e+01 : f32
    %473 = vector.broadcast %cst_142 : f32 to vector<32x1xf32>
    %474 = arith.divf %472, %473 : vector<32x1xf32>
    %475 = vector.broadcast %467 : vector<32x1xf32> to vector<32x32xf32>
    %476 = arith.subf %461, %475 : vector<32x32xf32>
    %cst_143 = arith.constant 9.99999974E-6 : f32
    %477 = vector.broadcast %cst_143 : f32 to vector<32x1xf32>
    %478 = arith.addf %474, %477 : vector<32x1xf32>
    %479 = math.rsqrt %478 : vector<32x1xf32>
    %480 = vector.broadcast %479 : vector<32x1xf32> to vector<32x32xf32>
    %481 = arith.mulf %476, %480 : vector<32x32xf32>
    %482 = vector.broadcast %462 : vector<1x32xf32> to vector<32x32xf32>
    %483 = arith.mulf %481, %482 : vector<32x32xf32>
    %484 = vector.broadcast %463 : vector<1x32xf32> to vector<32x32xf32>
    %485 = arith.addf %483, %484 : vector<32x32xf32>
    %c31 = arith.constant 31 : index
    %c0_144 = arith.constant 0 : index
    %486 = vector.load %arg2[%c31, %c0_144] : memref<57x96xf32, #tpu.memory_space<vmem>>, vector<1x32xf32>
    %487 = vector.shape_cast %486 : vector<1x32xf32> to vector<1x32xf32>
    %488 = vector.broadcast %487 : vector<1x32xf32> to vector<16x32xf32>
    %c16 = arith.constant 16 : index
    %c0_145 = arith.constant 0 : index
    %489 = vector.load %arg2[%c16, %c0_145] : memref<57x96xf32, #tpu.memory_space<vmem>>, vector<8x32xf32>
    %490 = tpu.concatenate %489, %489 in 0 : vector<8x32xf32>, vector<8x32xf32> -> vector<16x32xf32>
    %491 = arith.addf %488, %490 : vector<16x32xf32>
    %c224 = arith.constant 224 : index
    %c0_146 = arith.constant 0 : index
    %492 = vector.load %arg1[%c224, %c0_146] : memref<416x96xbf16, #tpu.memory_space<vmem>>, vector<32x96xbf16>
    %493 = vector.extract_strided_slice %492 {offsets = [0, 32], sizes = [32, 64], strides = [1, 1]} : vector<32x96xbf16> to vector<32x64xbf16>
    %494 = arith.truncf %485 : vector<32x32xf32> to vector<32x32xbf16>
    %cst_147 = arith.constant dense<0.000000e+00> : vector<32x64xf32>
    %495 = tpu.matmul %494, %493, %cst_147 {dimension_numbers = #tpu.dot_dimension_numbers<[1], [0], [0], [1], [0, 0, 1, 1], [], []>} : vector<32x32xbf16>, vector<32x64xbf16>, vector<32x64xf32> -> vector<32x64xf32>
    %c45 = arith.constant 45 : index
    %c0_148 = arith.constant 0 : index
    %496 = vector.load %arg2[%c45, %c0_148] : memref<57x96xf32, #tpu.memory_space<vmem>>, vector<1x96xf32>
    %497 = vector.extract_strided_slice %496 {offsets = [0, 32], sizes = [1, 64], strides = [1, 1]} : vector<1x96xf32> to vector<1x64xf32>
    %498 = vector.broadcast %497 : vector<1x64xf32> to vector<32x64xf32>
    %499 = arith.addf %495, %498 : vector<32x64xf32>
    %500 = vector.extract_strided_slice %499 {offsets = [0, 0], sizes = [32, 32], strides = [1, 1]} : vector<32x64xf32> to vector<32x32xf32>
    %501 = arith.truncf %500 : vector<32x32xf32> to vector<32x32xbf16>
    %502 = vector.extract_strided_slice %499 {offsets = [0, 32], sizes = [32, 32], strides = [1, 1]} : vector<32x64xf32> to vector<32x32xf32>
    %503 = arith.truncf %502 : vector<32x32xf32> to vector<32x32xbf16>
    %c160 = arith.constant 160 : index
    %c0_149 = arith.constant 0 : index
    %504 = vector.load %arg1[%c160, %c0_149] : memref<416x96xbf16, #tpu.memory_space<vmem>>, vector<32x96xbf16>
    %505 = arith.truncf %491 : vector<16x32xf32> to vector<16x32xbf16>
    %cst_150 = arith.constant dense<0.000000e+00> : vector<16x96xf32>
    %506 = tpu.matmul %505, %504, %cst_150 {dimension_numbers = #tpu.dot_dimension_numbers<[1], [0], [0], [1], [0, 0, 1, 1], [], []>} : vector<16x32xbf16>, vector<32x96xbf16>, vector<16x96xf32> -> vector<16x96xf32>
    %c43 = arith.constant 43 : index
    %c0_151 = arith.constant 0 : index
    %507 = vector.load %arg2[%c43, %c0_151] : memref<57x96xf32, #tpu.memory_space<vmem>>, vector<1x96xf32>
    %508 = vector.broadcast %507 : vector<1x96xf32> to vector<16x96xf32>
    %509 = arith.addf %506, %508 : vector<16x96xf32>
    %510 = vector.extract_strided_slice %509 {offsets = [0, 0], sizes = [16, 32], strides = [1, 1]} : vector<16x96xf32> to vector<16x32xf32>
    %511 = vector.extract_strided_slice %509 {offsets = [0, 32], sizes = [16, 32], strides = [1, 1]} : vector<16x96xf32> to vector<16x32xf32>
    %512 = vector.extract_strided_slice %509 {offsets = [0, 64], sizes = [16, 32], strides = [1, 1]} : vector<16x96xf32> to vector<16x32xf32>
    %cst_152 = arith.constant 0.353553385 : f32
    %513 = vector.broadcast %cst_152 : f32 to vector<16x32xf32>
    %514 = arith.mulf %510, %513 : vector<16x32xf32>
    %515 = arith.truncf %514 : vector<16x32xf32> to vector<16x32xbf16>
    %516 = arith.truncf %511 : vector<16x32xf32> to vector<16x32xbf16>
    %517 = arith.truncf %512 : vector<16x32xf32> to vector<16x32xbf16>
    %518 = vector.extract_strided_slice %515 {offsets = [0, 0], sizes = [8, 32], strides = [1, 1]} : vector<16x32xbf16> to vector<8x32xbf16>
    %519 = vector.extract_strided_slice %516 {offsets = [0, 0], sizes = [8, 32], strides = [1, 1]} : vector<16x32xbf16> to vector<8x32xbf16>
    %520 = vector.extract_strided_slice %517 {offsets = [0, 0], sizes = [8, 32], strides = [1, 1]} : vector<16x32xbf16> to vector<8x32xbf16>
    %521 = vector.extract_strided_slice %518 {offsets = [0, 0], sizes = [8, 8], strides = [1, 1]} : vector<8x32xbf16> to vector<8x8xbf16>
    %522 = vector.extract_strided_slice %519 {offsets = [0, 0], sizes = [8, 8], strides = [1, 1]} : vector<8x32xbf16> to vector<8x8xbf16>
    %cst_153 = arith.constant dense<0.000000e+00> : vector<8x8xf32>
    %523 = tpu.matmul %521, %522, %cst_153 {dimension_numbers = #tpu.dot_dimension_numbers<[1], [1], [0], [0], [0, 0, 1, 0], [], []>} : vector<8x8xbf16>, vector<8x8xbf16>, vector<8x8xf32> -> vector<8x8xf32>
    %cst_154 = arith.constant dense<0xFF800000> : vector<8xf32>
    %524 = vector.multi_reduction <maximumf>, %523, %cst_154 [1] : vector<8x8xf32> to vector<8xf32>
    %525 = vector.shape_cast %524 : vector<8xf32> to vector<8x1xf32>
    %526 = vector.broadcast %525 : vector<8x1xf32> to vector<8x8xf32>
    %527 = arith.subf %523, %526 : vector<8x8xf32>
    %528 = math.exp %527 : vector<8x8xf32>
    %cst_155 = arith.constant dense<0.000000e+00> : vector<8xf32>
    %529 = vector.multi_reduction <add>, %528, %cst_155 [1] : vector<8x8xf32> to vector<8xf32>
    %530 = vector.shape_cast %529 : vector<8xf32> to vector<8x1xf32>
    %531 = tpu.reciprocal %530 {approx = true} : vector<8x1xf32> -> vector<8x1xf32>
    %532 = vector.broadcast %531 : vector<8x1xf32> to vector<8x8xf32>
    %533 = arith.mulf %528, %532 : vector<8x8xf32>
    %534 = arith.truncf %533 : vector<8x8xf32> to vector<8x8xbf16>
    %535 = vector.extract_strided_slice %520 {offsets = [0, 0], sizes = [8, 8], strides = [1, 1]} : vector<8x32xbf16> to vector<8x8xbf16>
    %cst_156 = arith.constant dense<0.000000e+00> : vector<8x8xf32>
    %536 = tpu.matmul %534, %535, %cst_156 {dimension_numbers = #tpu.dot_dimension_numbers<[1], [0], [0], [1], [0, 0, 1, 1], [], []>} : vector<8x8xbf16>, vector<8x8xbf16>, vector<8x8xf32> -> vector<8x8xf32>
    %537 = vector.extract_strided_slice %518 {offsets = [0, 8], sizes = [8, 8], strides = [1, 1]} : vector<8x32xbf16> to vector<8x8xbf16>
    %538 = vector.extract_strided_slice %519 {offsets = [0, 8], sizes = [8, 8], strides = [1, 1]} : vector<8x32xbf16> to vector<8x8xbf16>
    %cst_157 = arith.constant dense<0.000000e+00> : vector<8x8xf32>
    %539 = tpu.matmul %537, %538, %cst_157 {dimension_numbers = #tpu.dot_dimension_numbers<[1], [1], [0], [0], [0, 0, 1, 0], [], []>} : vector<8x8xbf16>, vector<8x8xbf16>, vector<8x8xf32> -> vector<8x8xf32>
    %cst_158 = arith.constant dense<0xFF800000> : vector<8xf32>
    %540 = vector.multi_reduction <maximumf>, %539, %cst_158 [1] : vector<8x8xf32> to vector<8xf32>
    %541 = vector.shape_cast %540 : vector<8xf32> to vector<8x1xf32>
    %542 = vector.broadcast %541 : vector<8x1xf32> to vector<8x8xf32>
    %543 = arith.subf %539, %542 : vector<8x8xf32>
    %544 = math.exp %543 : vector<8x8xf32>
    %cst_159 = arith.constant dense<0.000000e+00> : vector<8xf32>
    %545 = vector.multi_reduction <add>, %544, %cst_159 [1] : vector<8x8xf32> to vector<8xf32>
    %546 = vector.shape_cast %545 : vector<8xf32> to vector<8x1xf32>
    %547 = tpu.reciprocal %546 {approx = true} : vector<8x1xf32> -> vector<8x1xf32>
    %548 = vector.broadcast %547 : vector<8x1xf32> to vector<8x8xf32>
    %549 = arith.mulf %544, %548 : vector<8x8xf32>
    %550 = arith.truncf %549 : vector<8x8xf32> to vector<8x8xbf16>
    %551 = vector.extract_strided_slice %520 {offsets = [0, 8], sizes = [8, 8], strides = [1, 1]} : vector<8x32xbf16> to vector<8x8xbf16>
    %cst_160 = arith.constant dense<0.000000e+00> : vector<8x8xf32>
    %552 = tpu.matmul %550, %551, %cst_160 {dimension_numbers = #tpu.dot_dimension_numbers<[1], [0], [0], [1], [0, 0, 1, 1], [], []>} : vector<8x8xbf16>, vector<8x8xbf16>, vector<8x8xf32> -> vector<8x8xf32>
    %553 = vector.extract_strided_slice %518 {offsets = [0, 16], sizes = [8, 8], strides = [1, 1]} : vector<8x32xbf16> to vector<8x8xbf16>
    %554 = vector.extract_strided_slice %519 {offsets = [0, 16], sizes = [8, 8], strides = [1, 1]} : vector<8x32xbf16> to vector<8x8xbf16>
    %cst_161 = arith.constant dense<0.000000e+00> : vector<8x8xf32>
    %555 = tpu.matmul %553, %554, %cst_161 {dimension_numbers = #tpu.dot_dimension_numbers<[1], [1], [0], [0], [0, 0, 1, 0], [], []>} : vector<8x8xbf16>, vector<8x8xbf16>, vector<8x8xf32> -> vector<8x8xf32>
    %cst_162 = arith.constant dense<0xFF800000> : vector<8xf32>
    %556 = vector.multi_reduction <maximumf>, %555, %cst_162 [1] : vector<8x8xf32> to vector<8xf32>
    %557 = vector.shape_cast %556 : vector<8xf32> to vector<8x1xf32>
    %558 = vector.broadcast %557 : vector<8x1xf32> to vector<8x8xf32>
    %559 = arith.subf %555, %558 : vector<8x8xf32>
    %560 = math.exp %559 : vector<8x8xf32>
    %cst_163 = arith.constant dense<0.000000e+00> : vector<8xf32>
    %561 = vector.multi_reduction <add>, %560, %cst_163 [1] : vector<8x8xf32> to vector<8xf32>
    %562 = vector.shape_cast %561 : vector<8xf32> to vector<8x1xf32>
    %563 = tpu.reciprocal %562 {approx = true} : vector<8x1xf32> -> vector<8x1xf32>
    %564 = vector.broadcast %563 : vector<8x1xf32> to vector<8x8xf32>
    %565 = arith.mulf %560, %564 : vector<8x8xf32>
    %566 = arith.truncf %565 : vector<8x8xf32> to vector<8x8xbf16>
    %567 = vector.extract_strided_slice %520 {offsets = [0, 16], sizes = [8, 8], strides = [1, 1]} : vector<8x32xbf16> to vector<8x8xbf16>
    %cst_164 = arith.constant dense<0.000000e+00> : vector<8x8xf32>
    %568 = tpu.matmul %566, %567, %cst_164 {dimension_numbers = #tpu.dot_dimension_numbers<[1], [0], [0], [1], [0, 0, 1, 1], [], []>} : vector<8x8xbf16>, vector<8x8xbf16>, vector<8x8xf32> -> vector<8x8xf32>
    %569 = vector.extract_strided_slice %518 {offsets = [0, 24], sizes = [8, 8], strides = [1, 1]} : vector<8x32xbf16> to vector<8x8xbf16>
    %570 = vector.extract_strided_slice %519 {offsets = [0, 24], sizes = [8, 8], strides = [1, 1]} : vector<8x32xbf16> to vector<8x8xbf16>
    %cst_165 = arith.constant dense<0.000000e+00> : vector<8x8xf32>
    %571 = tpu.matmul %569, %570, %cst_165 {dimension_numbers = #tpu.dot_dimension_numbers<[1], [1], [0], [0], [0, 0, 1, 0], [], []>} : vector<8x8xbf16>, vector<8x8xbf16>, vector<8x8xf32> -> vector<8x8xf32>
    %cst_166 = arith.constant dense<0xFF800000> : vector<8xf32>
    %572 = vector.multi_reduction <maximumf>, %571, %cst_166 [1] : vector<8x8xf32> to vector<8xf32>
    %573 = vector.shape_cast %572 : vector<8xf32> to vector<8x1xf32>
    %574 = vector.broadcast %573 : vector<8x1xf32> to vector<8x8xf32>
    %575 = arith.subf %571, %574 : vector<8x8xf32>
    %576 = math.exp %575 : vector<8x8xf32>
    %cst_167 = arith.constant dense<0.000000e+00> : vector<8xf32>
    %577 = vector.multi_reduction <add>, %576, %cst_167 [1] : vector<8x8xf32> to vector<8xf32>
    %578 = vector.shape_cast %577 : vector<8xf32> to vector<8x1xf32>
    %579 = tpu.reciprocal %578 {approx = true} : vector<8x1xf32> -> vector<8x1xf32>
    %580 = vector.broadcast %579 : vector<8x1xf32> to vector<8x8xf32>
    %581 = arith.mulf %576, %580 : vector<8x8xf32>
    %582 = arith.truncf %581 : vector<8x8xf32> to vector<8x8xbf16>
    %583 = vector.extract_strided_slice %520 {offsets = [0, 24], sizes = [8, 8], strides = [1, 1]} : vector<8x32xbf16> to vector<8x8xbf16>
    %cst_168 = arith.constant dense<0.000000e+00> : vector<8x8xf32>
    %584 = tpu.matmul %582, %583, %cst_168 {dimension_numbers = #tpu.dot_dimension_numbers<[1], [0], [0], [1], [0, 0, 1, 1], [], []>} : vector<8x8xbf16>, vector<8x8xbf16>, vector<8x8xf32> -> vector<8x8xf32>
    %585 = tpu.concatenate %536, %552, %568, %584 in 1 : vector<8x8xf32>, vector<8x8xf32>, vector<8x8xf32>, vector<8x8xf32> -> vector<8x32xf32>
    %586 = vector.extract_strided_slice %515 {offsets = [8, 0], sizes = [8, 32], strides = [1, 1]} : vector<16x32xbf16> to vector<8x32xbf16>
    %587 = vector.extract_strided_slice %516 {offsets = [8, 0], sizes = [8, 32], strides = [1, 1]} : vector<16x32xbf16> to vector<8x32xbf16>
    %588 = vector.extract_strided_slice %517 {offsets = [8, 0], sizes = [8, 32], strides = [1, 1]} : vector<16x32xbf16> to vector<8x32xbf16>
    %589 = vector.extract_strided_slice %586 {offsets = [0, 0], sizes = [8, 8], strides = [1, 1]} : vector<8x32xbf16> to vector<8x8xbf16>
    %590 = vector.extract_strided_slice %587 {offsets = [0, 0], sizes = [8, 8], strides = [1, 1]} : vector<8x32xbf16> to vector<8x8xbf16>
    %cst_169 = arith.constant dense<0.000000e+00> : vector<8x8xf32>
    %591 = tpu.matmul %589, %590, %cst_169 {dimension_numbers = #tpu.dot_dimension_numbers<[1], [1], [0], [0], [0, 0, 1, 0], [], []>} : vector<8x8xbf16>, vector<8x8xbf16>, vector<8x8xf32> -> vector<8x8xf32>
    %cst_170 = arith.constant dense<0xFF800000> : vector<8xf32>
    %592 = vector.multi_reduction <maximumf>, %591, %cst_170 [1] : vector<8x8xf32> to vector<8xf32>
    %593 = vector.shape_cast %592 : vector<8xf32> to vector<8x1xf32>
    %594 = vector.broadcast %593 : vector<8x1xf32> to vector<8x8xf32>
    %595 = arith.subf %591, %594 : vector<8x8xf32>
    %596 = math.exp %595 : vector<8x8xf32>
    %cst_171 = arith.constant dense<0.000000e+00> : vector<8xf32>
    %597 = vector.multi_reduction <add>, %596, %cst_171 [1] : vector<8x8xf32> to vector<8xf32>
    %598 = vector.shape_cast %597 : vector<8xf32> to vector<8x1xf32>
    %599 = tpu.reciprocal %598 {approx = true} : vector<8x1xf32> -> vector<8x1xf32>
    %600 = vector.broadcast %599 : vector<8x1xf32> to vector<8x8xf32>
    %601 = arith.mulf %596, %600 : vector<8x8xf32>
    %602 = arith.truncf %601 : vector<8x8xf32> to vector<8x8xbf16>
    %603 = vector.extract_strided_slice %588 {offsets = [0, 0], sizes = [8, 8], strides = [1, 1]} : vector<8x32xbf16> to vector<8x8xbf16>
    %cst_172 = arith.constant dense<0.000000e+00> : vector<8x8xf32>
    %604 = tpu.matmul %602, %603, %cst_172 {dimension_numbers = #tpu.dot_dimension_numbers<[1], [0], [0], [1], [0, 0, 1, 1], [], []>} : vector<8x8xbf16>, vector<8x8xbf16>, vector<8x8xf32> -> vector<8x8xf32>
    %605 = vector.extract_strided_slice %586 {offsets = [0, 8], sizes = [8, 8], strides = [1, 1]} : vector<8x32xbf16> to vector<8x8xbf16>
    %606 = vector.extract_strided_slice %587 {offsets = [0, 8], sizes = [8, 8], strides = [1, 1]} : vector<8x32xbf16> to vector<8x8xbf16>
    %cst_173 = arith.constant dense<0.000000e+00> : vector<8x8xf32>
    %607 = tpu.matmul %605, %606, %cst_173 {dimension_numbers = #tpu.dot_dimension_numbers<[1], [1], [0], [0], [0, 0, 1, 0], [], []>} : vector<8x8xbf16>, vector<8x8xbf16>, vector<8x8xf32> -> vector<8x8xf32>
    %cst_174 = arith.constant dense<0xFF800000> : vector<8xf32>
    %608 = vector.multi_reduction <maximumf>, %607, %cst_174 [1] : vector<8x8xf32> to vector<8xf32>
    %609 = vector.shape_cast %608 : vector<8xf32> to vector<8x1xf32>
    %610 = vector.broadcast %609 : vector<8x1xf32> to vector<8x8xf32>
    %611 = arith.subf %607, %610 : vector<8x8xf32>
    %612 = math.exp %611 : vector<8x8xf32>
    %cst_175 = arith.constant dense<0.000000e+00> : vector<8xf32>
    %613 = vector.multi_reduction <add>, %612, %cst_175 [1] : vector<8x8xf32> to vector<8xf32>
    %614 = vector.shape_cast %613 : vector<8xf32> to vector<8x1xf32>
    %615 = tpu.reciprocal %614 {approx = true} : vector<8x1xf32> -> vector<8x1xf32>
    %616 = vector.broadcast %615 : vector<8x1xf32> to vector<8x8xf32>
    %617 = arith.mulf %612, %616 : vector<8x8xf32>
    %618 = arith.truncf %617 : vector<8x8xf32> to vector<8x8xbf16>
    %619 = vector.extract_strided_slice %588 {offsets = [0, 8], sizes = [8, 8], strides = [1, 1]} : vector<8x32xbf16> to vector<8x8xbf16>
    %cst_176 = arith.constant dense<0.000000e+00> : vector<8x8xf32>
    %620 = tpu.matmul %618, %619, %cst_176 {dimension_numbers = #tpu.dot_dimension_numbers<[1], [0], [0], [1], [0, 0, 1, 1], [], []>} : vector<8x8xbf16>, vector<8x8xbf16>, vector<8x8xf32> -> vector<8x8xf32>
    %621 = vector.extract_strided_slice %586 {offsets = [0, 16], sizes = [8, 8], strides = [1, 1]} : vector<8x32xbf16> to vector<8x8xbf16>
    %622 = vector.extract_strided_slice %587 {offsets = [0, 16], sizes = [8, 8], strides = [1, 1]} : vector<8x32xbf16> to vector<8x8xbf16>
    %cst_177 = arith.constant dense<0.000000e+00> : vector<8x8xf32>
    %623 = tpu.matmul %621, %622, %cst_177 {dimension_numbers = #tpu.dot_dimension_numbers<[1], [1], [0], [0], [0, 0, 1, 0], [], []>} : vector<8x8xbf16>, vector<8x8xbf16>, vector<8x8xf32> -> vector<8x8xf32>
    %cst_178 = arith.constant dense<0xFF800000> : vector<8xf32>
    %624 = vector.multi_reduction <maximumf>, %623, %cst_178 [1] : vector<8x8xf32> to vector<8xf32>
    %625 = vector.shape_cast %624 : vector<8xf32> to vector<8x1xf32>
    %626 = vector.broadcast %625 : vector<8x1xf32> to vector<8x8xf32>
    %627 = arith.subf %623, %626 : vector<8x8xf32>
    %628 = math.exp %627 : vector<8x8xf32>
    %cst_179 = arith.constant dense<0.000000e+00> : vector<8xf32>
    %629 = vector.multi_reduction <add>, %628, %cst_179 [1] : vector<8x8xf32> to vector<8xf32>
    %630 = vector.shape_cast %629 : vector<8xf32> to vector<8x1xf32>
    %631 = tpu.reciprocal %630 {approx = true} : vector<8x1xf32> -> vector<8x1xf32>
    %632 = vector.broadcast %631 : vector<8x1xf32> to vector<8x8xf32>
    %633 = arith.mulf %628, %632 : vector<8x8xf32>
    %634 = arith.truncf %633 : vector<8x8xf32> to vector<8x8xbf16>
    %635 = vector.extract_strided_slice %588 {offsets = [0, 16], sizes = [8, 8], strides = [1, 1]} : vector<8x32xbf16> to vector<8x8xbf16>
    %cst_180 = arith.constant dense<0.000000e+00> : vector<8x8xf32>
    %636 = tpu.matmul %634, %635, %cst_180 {dimension_numbers = #tpu.dot_dimension_numbers<[1], [0], [0], [1], [0, 0, 1, 1], [], []>} : vector<8x8xbf16>, vector<8x8xbf16>, vector<8x8xf32> -> vector<8x8xf32>
    %637 = vector.extract_strided_slice %586 {offsets = [0, 24], sizes = [8, 8], strides = [1, 1]} : vector<8x32xbf16> to vector<8x8xbf16>
    %638 = vector.extract_strided_slice %587 {offsets = [0, 24], sizes = [8, 8], strides = [1, 1]} : vector<8x32xbf16> to vector<8x8xbf16>
    %cst_181 = arith.constant dense<0.000000e+00> : vector<8x8xf32>
    %639 = tpu.matmul %637, %638, %cst_181 {dimension_numbers = #tpu.dot_dimension_numbers<[1], [1], [0], [0], [0, 0, 1, 0], [], []>} : vector<8x8xbf16>, vector<8x8xbf16>, vector<8x8xf32> -> vector<8x8xf32>
    %cst_182 = arith.constant dense<0xFF800000> : vector<8xf32>
    %640 = vector.multi_reduction <maximumf>, %639, %cst_182 [1] : vector<8x8xf32> to vector<8xf32>
    %641 = vector.shape_cast %640 : vector<8xf32> to vector<8x1xf32>
    %642 = vector.broadcast %641 : vector<8x1xf32> to vector<8x8xf32>
    %643 = arith.subf %639, %642 : vector<8x8xf32>
    %644 = math.exp %643 : vector<8x8xf32>
    %cst_183 = arith.constant dense<0.000000e+00> : vector<8xf32>
    %645 = vector.multi_reduction <add>, %644, %cst_183 [1] : vector<8x8xf32> to vector<8xf32>
    %646 = vector.shape_cast %645 : vector<8xf32> to vector<8x1xf32>
    %647 = tpu.reciprocal %646 {approx = true} : vector<8x1xf32> -> vector<8x1xf32>
    %648 = vector.broadcast %647 : vector<8x1xf32> to vector<8x8xf32>
    %649 = arith.mulf %644, %648 : vector<8x8xf32>
    %650 = arith.truncf %649 : vector<8x8xf32> to vector<8x8xbf16>
    %651 = vector.extract_strided_slice %588 {offsets = [0, 24], sizes = [8, 8], strides = [1, 1]} : vector<8x32xbf16> to vector<8x8xbf16>
    %cst_184 = arith.constant dense<0.000000e+00> : vector<8x8xf32>
    %652 = tpu.matmul %650, %651, %cst_184 {dimension_numbers = #tpu.dot_dimension_numbers<[1], [0], [0], [1], [0, 0, 1, 1], [], []>} : vector<8x8xbf16>, vector<8x8xbf16>, vector<8x8xf32> -> vector<8x8xf32>
    %653 = tpu.concatenate %604, %620, %636, %652 in 1 : vector<8x8xf32>, vector<8x8xf32>, vector<8x8xf32>, vector<8x8xf32> -> vector<8x32xf32>
    %654 = tpu.concatenate %585, %653 in 0 : vector<8x32xf32>, vector<8x32xf32> -> vector<16x32xf32>
    %c192 = arith.constant 192 : index
    %c0_185 = arith.constant 0 : index
    %655 = vector.load %arg1[%c192, %c0_185] : memref<416x96xbf16, #tpu.memory_space<vmem>>, vector<32x32xbf16>
    %656 = arith.truncf %654 : vector<16x32xf32> to vector<16x32xbf16>
    %cst_186 = arith.constant dense<0.000000e+00> : vector<16x32xf32>
    %657 = tpu.matmul %656, %655, %cst_186 {dimension_numbers = #tpu.dot_dimension_numbers<[1], [0], [0], [1], [0, 0, 1, 1], [], []>} : vector<16x32xbf16>, vector<32x32xbf16>, vector<16x32xf32> -> vector<16x32xf32>
    %c44 = arith.constant 44 : index
    %c0_187 = arith.constant 0 : index
    %658 = vector.load %arg2[%c44, %c0_187] : memref<57x96xf32, #tpu.memory_space<vmem>>, vector<1x32xf32>
    %659 = vector.broadcast %658 : vector<1x32xf32> to vector<16x32xf32>
    %660 = arith.addf %657, %659 : vector<16x32xf32>
    %661 = arith.addf %491, %660 : vector<16x32xf32>
    %c49 = arith.constant 49 : index
    %c0_188 = arith.constant 0 : index
    %662 = vector.load %arg2[%c49, %c0_188] : memref<57x96xf32, #tpu.memory_space<vmem>>, vector<1x32xf32>
    %c50 = arith.constant 50 : index
    %c0_189 = arith.constant 0 : index
    %663 = vector.load %arg2[%c50, %c0_189] : memref<57x96xf32, #tpu.memory_space<vmem>>, vector<1x32xf32>
    %cst_190 = arith.constant dense<0.000000e+00> : vector<16xf32>
    %664 = vector.multi_reduction <add>, %661, %cst_190 [1] : vector<16x32xf32> to vector<16xf32>
    %665 = vector.shape_cast %664 : vector<16xf32> to vector<16x1xf32>
    %cst_191 = arith.constant 3.200000e+01 : f32
    %666 = vector.broadcast %cst_191 : f32 to vector<16x1xf32>
    %667 = arith.divf %665, %666 : vector<16x1xf32>
    %668 = vector.broadcast %667 : vector<16x1xf32> to vector<16x32xf32>
    %669 = arith.subf %661, %668 : vector<16x32xf32>
    %670 = arith.mulf %669, %669 : vector<16x32xf32>
    %cst_192 = arith.constant dense<0.000000e+00> : vector<16xf32>
    %671 = vector.multi_reduction <add>, %670, %cst_192 [1] : vector<16x32xf32> to vector<16xf32>
    %672 = vector.shape_cast %671 : vector<16xf32> to vector<16x1xf32>
    %cst_193 = arith.constant 3.200000e+01 : f32
    %673 = vector.broadcast %cst_193 : f32 to vector<16x1xf32>
    %674 = arith.divf %672, %673 : vector<16x1xf32>
    %675 = vector.broadcast %667 : vector<16x1xf32> to vector<16x32xf32>
    %676 = arith.subf %661, %675 : vector<16x32xf32>
    %cst_194 = arith.constant 9.99999974E-6 : f32
    %677 = vector.broadcast %cst_194 : f32 to vector<16x1xf32>
    %678 = arith.addf %674, %677 : vector<16x1xf32>
    %679 = math.rsqrt %678 : vector<16x1xf32>
    %680 = vector.broadcast %679 : vector<16x1xf32> to vector<16x32xf32>
    %681 = arith.mulf %676, %680 : vector<16x32xf32>
    %682 = vector.broadcast %662 : vector<1x32xf32> to vector<16x32xf32>
    %683 = arith.mulf %681, %682 : vector<16x32xf32>
    %684 = vector.broadcast %663 : vector<1x32xf32> to vector<16x32xf32>
    %685 = arith.addf %683, %684 : vector<16x32xf32>
    %c224_195 = arith.constant 224 : index
    %c0_196 = arith.constant 0 : index
    %686 = vector.load %arg1[%c224_195, %c0_196] : memref<416x96xbf16, #tpu.memory_space<vmem>>, vector<32x96xbf16>
    %687 = vector.extract_strided_slice %686 {offsets = [0, 0], sizes = [32, 32], strides = [1, 1]} : vector<32x96xbf16> to vector<32x32xbf16>
    %688 = arith.truncf %685 : vector<16x32xf32> to vector<16x32xbf16>
    %cst_197 = arith.constant dense<0.000000e+00> : vector<16x32xf32>
    %689 = tpu.matmul %688, %687, %cst_197 {dimension_numbers = #tpu.dot_dimension_numbers<[1], [0], [0], [1], [0, 0, 1, 1], [], []>} : vector<16x32xbf16>, vector<32x32xbf16>, vector<16x32xf32> -> vector<16x32xf32>
    %c45_198 = arith.constant 45 : index
    %c0_199 = arith.constant 0 : index
    %690 = vector.load %arg2[%c45_198, %c0_199] : memref<57x96xf32, #tpu.memory_space<vmem>>, vector<1x96xf32>
    %691 = vector.extract_strided_slice %690 {offsets = [0, 0], sizes = [1, 32], strides = [1, 1]} : vector<1x96xf32> to vector<1x32xf32>
    %692 = vector.broadcast %691 : vector<1x32xf32> to vector<16x32xf32>
    %693 = arith.addf %689, %692 : vector<16x32xf32>
    %cst_200 = arith.constant 0.353553385 : f32
    %694 = vector.broadcast %cst_200 : f32 to vector<16x32xf32>
    %695 = arith.mulf %693, %694 : vector<16x32xf32>
    %696 = arith.truncf %695 : vector<16x32xf32> to vector<16x32xbf16>
    %697 = vector.extract_strided_slice %696 {offsets = [0, 0], sizes = [8, 32], strides = [1, 1]} : vector<16x32xbf16> to vector<8x32xbf16>
    %698 = vector.extract_strided_slice %501 {offsets = [0, 0], sizes = [16, 32], strides = [1, 1]} : vector<32x32xbf16> to vector<16x32xbf16>
    %699 = vector.extract_strided_slice %503 {offsets = [0, 0], sizes = [16, 32], strides = [1, 1]} : vector<32x32xbf16> to vector<16x32xbf16>
    %700 = vector.extract_strided_slice %697 {offsets = [0, 0], sizes = [8, 8], strides = [1, 1]} : vector<8x32xbf16> to vector<8x8xbf16>
    %701 = vector.extract_strided_slice %698 {offsets = [0, 0], sizes = [16, 8], strides = [1, 1]} : vector<16x32xbf16> to vector<16x8xbf16>
    %cst_201 = arith.constant dense<0.000000e+00> : vector<8x16xf32>
    %702 = tpu.matmul %700, %701, %cst_201 {dimension_numbers = #tpu.dot_dimension_numbers<[1], [1], [0], [0], [0, 0, 1, 0], [], []>} : vector<8x8xbf16>, vector<16x8xbf16>, vector<8x16xf32> -> vector<8x16xf32>
    %cst_202 = arith.constant dense<0xFF800000> : vector<8xf32>
    %703 = vector.multi_reduction <maximumf>, %702, %cst_202 [1] : vector<8x16xf32> to vector<8xf32>
    %704 = vector.shape_cast %703 : vector<8xf32> to vector<8x1xf32>
    %705 = vector.broadcast %704 : vector<8x1xf32> to vector<8x16xf32>
    %706 = arith.subf %702, %705 : vector<8x16xf32>
    %707 = math.exp %706 : vector<8x16xf32>
    %cst_203 = arith.constant dense<0.000000e+00> : vector<8xf32>
    %708 = vector.multi_reduction <add>, %707, %cst_203 [1] : vector<8x16xf32> to vector<8xf32>
    %709 = vector.shape_cast %708 : vector<8xf32> to vector<8x1xf32>
    %710 = tpu.reciprocal %709 {approx = true} : vector<8x1xf32> -> vector<8x1xf32>
    %711 = vector.broadcast %710 : vector<8x1xf32> to vector<8x16xf32>
    %712 = arith.mulf %707, %711 : vector<8x16xf32>
    %713 = arith.truncf %712 : vector<8x16xf32> to vector<8x16xbf16>
    %714 = vector.extract_strided_slice %699 {offsets = [0, 0], sizes = [16, 8], strides = [1, 1]} : vector<16x32xbf16> to vector<16x8xbf16>
    %cst_204 = arith.constant dense<0.000000e+00> : vector<8x8xf32>
    %715 = tpu.matmul %713, %714, %cst_204 {dimension_numbers = #tpu.dot_dimension_numbers<[1], [0], [0], [1], [0, 0, 1, 1], [], []>} : vector<8x16xbf16>, vector<16x8xbf16>, vector<8x8xf32> -> vector<8x8xf32>
    %716 = vector.extract_strided_slice %697 {offsets = [0, 8], sizes = [8, 8], strides = [1, 1]} : vector<8x32xbf16> to vector<8x8xbf16>
    %717 = vector.extract_strided_slice %698 {offsets = [0, 8], sizes = [16, 8], strides = [1, 1]} : vector<16x32xbf16> to vector<16x8xbf16>
    %cst_205 = arith.constant dense<0.000000e+00> : vector<8x16xf32>
    %718 = tpu.matmul %716, %717, %cst_205 {dimension_numbers = #tpu.dot_dimension_numbers<[1], [1], [0], [0], [0, 0, 1, 0], [], []>} : vector<8x8xbf16>, vector<16x8xbf16>, vector<8x16xf32> -> vector<8x16xf32>
    %cst_206 = arith.constant dense<0xFF800000> : vector<8xf32>
    %719 = vector.multi_reduction <maximumf>, %718, %cst_206 [1] : vector<8x16xf32> to vector<8xf32>
    %720 = vector.shape_cast %719 : vector<8xf32> to vector<8x1xf32>
    %721 = vector.broadcast %720 : vector<8x1xf32> to vector<8x16xf32>
    %722 = arith.subf %718, %721 : vector<8x16xf32>
    %723 = math.exp %722 : vector<8x16xf32>
    %cst_207 = arith.constant dense<0.000000e+00> : vector<8xf32>
    %724 = vector.multi_reduction <add>, %723, %cst_207 [1] : vector<8x16xf32> to vector<8xf32>
    %725 = vector.shape_cast %724 : vector<8xf32> to vector<8x1xf32>
    %726 = tpu.reciprocal %725 {approx = true} : vector<8x1xf32> -> vector<8x1xf32>
    %727 = vector.broadcast %726 : vector<8x1xf32> to vector<8x16xf32>
    %728 = arith.mulf %723, %727 : vector<8x16xf32>
    %729 = arith.truncf %728 : vector<8x16xf32> to vector<8x16xbf16>
    %730 = vector.extract_strided_slice %699 {offsets = [0, 8], sizes = [16, 8], strides = [1, 1]} : vector<16x32xbf16> to vector<16x8xbf16>
    %cst_208 = arith.constant dense<0.000000e+00> : vector<8x8xf32>
    %731 = tpu.matmul %729, %730, %cst_208 {dimension_numbers = #tpu.dot_dimension_numbers<[1], [0], [0], [1], [0, 0, 1, 1], [], []>} : vector<8x16xbf16>, vector<16x8xbf16>, vector<8x8xf32> -> vector<8x8xf32>
    %732 = vector.extract_strided_slice %697 {offsets = [0, 16], sizes = [8, 8], strides = [1, 1]} : vector<8x32xbf16> to vector<8x8xbf16>
    %733 = vector.extract_strided_slice %698 {offsets = [0, 16], sizes = [16, 8], strides = [1, 1]} : vector<16x32xbf16> to vector<16x8xbf16>
    %cst_209 = arith.constant dense<0.000000e+00> : vector<8x16xf32>
    %734 = tpu.matmul %732, %733, %cst_209 {dimension_numbers = #tpu.dot_dimension_numbers<[1], [1], [0], [0], [0, 0, 1, 0], [], []>} : vector<8x8xbf16>, vector<16x8xbf16>, vector<8x16xf32> -> vector<8x16xf32>
    %cst_210 = arith.constant dense<0xFF800000> : vector<8xf32>
    %735 = vector.multi_reduction <maximumf>, %734, %cst_210 [1] : vector<8x16xf32> to vector<8xf32>
    %736 = vector.shape_cast %735 : vector<8xf32> to vector<8x1xf32>
    %737 = vector.broadcast %736 : vector<8x1xf32> to vector<8x16xf32>
    %738 = arith.subf %734, %737 : vector<8x16xf32>
    %739 = math.exp %738 : vector<8x16xf32>
    %cst_211 = arith.constant dense<0.000000e+00> : vector<8xf32>
    %740 = vector.multi_reduction <add>, %739, %cst_211 [1] : vector<8x16xf32> to vector<8xf32>
    %741 = vector.shape_cast %740 : vector<8xf32> to vector<8x1xf32>
    %742 = tpu.reciprocal %741 {approx = true} : vector<8x1xf32> -> vector<8x1xf32>
    %743 = vector.broadcast %742 : vector<8x1xf32> to vector<8x16xf32>
    %744 = arith.mulf %739, %743 : vector<8x16xf32>
    %745 = arith.truncf %744 : vector<8x16xf32> to vector<8x16xbf16>
    %746 = vector.extract_strided_slice %699 {offsets = [0, 16], sizes = [16, 8], strides = [1, 1]} : vector<16x32xbf16> to vector<16x8xbf16>
    %cst_212 = arith.constant dense<0.000000e+00> : vector<8x8xf32>
    %747 = tpu.matmul %745, %746, %cst_212 {dimension_numbers = #tpu.dot_dimension_numbers<[1], [0], [0], [1], [0, 0, 1, 1], [], []>} : vector<8x16xbf16>, vector<16x8xbf16>, vector<8x8xf32> -> vector<8x8xf32>
    %748 = vector.extract_strided_slice %697 {offsets = [0, 24], sizes = [8, 8], strides = [1, 1]} : vector<8x32xbf16> to vector<8x8xbf16>
    %749 = vector.extract_strided_slice %698 {offsets = [0, 24], sizes = [16, 8], strides = [1, 1]} : vector<16x32xbf16> to vector<16x8xbf16>
    %cst_213 = arith.constant dense<0.000000e+00> : vector<8x16xf32>
    %750 = tpu.matmul %748, %749, %cst_213 {dimension_numbers = #tpu.dot_dimension_numbers<[1], [1], [0], [0], [0, 0, 1, 0], [], []>} : vector<8x8xbf16>, vector<16x8xbf16>, vector<8x16xf32> -> vector<8x16xf32>
    %cst_214 = arith.constant dense<0xFF800000> : vector<8xf32>
    %751 = vector.multi_reduction <maximumf>, %750, %cst_214 [1] : vector<8x16xf32> to vector<8xf32>
    %752 = vector.shape_cast %751 : vector<8xf32> to vector<8x1xf32>
    %753 = vector.broadcast %752 : vector<8x1xf32> to vector<8x16xf32>
    %754 = arith.subf %750, %753 : vector<8x16xf32>
    %755 = math.exp %754 : vector<8x16xf32>
    %cst_215 = arith.constant dense<0.000000e+00> : vector<8xf32>
    %756 = vector.multi_reduction <add>, %755, %cst_215 [1] : vector<8x16xf32> to vector<8xf32>
    %757 = vector.shape_cast %756 : vector<8xf32> to vector<8x1xf32>
    %758 = tpu.reciprocal %757 {approx = true} : vector<8x1xf32> -> vector<8x1xf32>
    %759 = vector.broadcast %758 : vector<8x1xf32> to vector<8x16xf32>
    %760 = arith.mulf %755, %759 : vector<8x16xf32>
    %761 = arith.truncf %760 : vector<8x16xf32> to vector<8x16xbf16>
    %762 = vector.extract_strided_slice %699 {offsets = [0, 24], sizes = [16, 8], strides = [1, 1]} : vector<16x32xbf16> to vector<16x8xbf16>
    %cst_216 = arith.constant dense<0.000000e+00> : vector<8x8xf32>
    %763 = tpu.matmul %761, %762, %cst_216 {dimension_numbers = #tpu.dot_dimension_numbers<[1], [0], [0], [1], [0, 0, 1, 1], [], []>} : vector<8x16xbf16>, vector<16x8xbf16>, vector<8x8xf32> -> vector<8x8xf32>
    %764 = tpu.concatenate %715, %731, %747, %763 in 1 : vector<8x8xf32>, vector<8x8xf32>, vector<8x8xf32>, vector<8x8xf32> -> vector<8x32xf32>
    %765 = vector.extract_strided_slice %696 {offsets = [8, 0], sizes = [8, 32], strides = [1, 1]} : vector<16x32xbf16> to vector<8x32xbf16>
    %766 = vector.extract_strided_slice %501 {offsets = [16, 0], sizes = [16, 32], strides = [1, 1]} : vector<32x32xbf16> to vector<16x32xbf16>
    %767 = vector.extract_strided_slice %503 {offsets = [16, 0], sizes = [16, 32], strides = [1, 1]} : vector<32x32xbf16> to vector<16x32xbf16>
    %768 = vector.extract_strided_slice %765 {offsets = [0, 0], sizes = [8, 8], strides = [1, 1]} : vector<8x32xbf16> to vector<8x8xbf16>
    %769 = vector.extract_strided_slice %766 {offsets = [0, 0], sizes = [16, 8], strides = [1, 1]} : vector<16x32xbf16> to vector<16x8xbf16>
    %cst_217 = arith.constant dense<0.000000e+00> : vector<8x16xf32>
    %770 = tpu.matmul %768, %769, %cst_217 {dimension_numbers = #tpu.dot_dimension_numbers<[1], [1], [0], [0], [0, 0, 1, 0], [], []>} : vector<8x8xbf16>, vector<16x8xbf16>, vector<8x16xf32> -> vector<8x16xf32>
    %cst_218 = arith.constant dense<0xFF800000> : vector<8xf32>
    %771 = vector.multi_reduction <maximumf>, %770, %cst_218 [1] : vector<8x16xf32> to vector<8xf32>
    %772 = vector.shape_cast %771 : vector<8xf32> to vector<8x1xf32>
    %773 = vector.broadcast %772 : vector<8x1xf32> to vector<8x16xf32>
    %774 = arith.subf %770, %773 : vector<8x16xf32>
    %775 = math.exp %774 : vector<8x16xf32>
    %cst_219 = arith.constant dense<0.000000e+00> : vector<8xf32>
    %776 = vector.multi_reduction <add>, %775, %cst_219 [1] : vector<8x16xf32> to vector<8xf32>
    %777 = vector.shape_cast %776 : vector<8xf32> to vector<8x1xf32>
    %778 = tpu.reciprocal %777 {approx = true} : vector<8x1xf32> -> vector<8x1xf32>
    %779 = vector.broadcast %778 : vector<8x1xf32> to vector<8x16xf32>
    %780 = arith.mulf %775, %779 : vector<8x16xf32>
    %781 = arith.truncf %780 : vector<8x16xf32> to vector<8x16xbf16>
    %782 = vector.extract_strided_slice %767 {offsets = [0, 0], sizes = [16, 8], strides = [1, 1]} : vector<16x32xbf16> to vector<16x8xbf16>
    %cst_220 = arith.constant dense<0.000000e+00> : vector<8x8xf32>
    %783 = tpu.matmul %781, %782, %cst_220 {dimension_numbers = #tpu.dot_dimension_numbers<[1], [0], [0], [1], [0, 0, 1, 1], [], []>} : vector<8x16xbf16>, vector<16x8xbf16>, vector<8x8xf32> -> vector<8x8xf32>
    %784 = vector.extract_strided_slice %765 {offsets = [0, 8], sizes = [8, 8], strides = [1, 1]} : vector<8x32xbf16> to vector<8x8xbf16>
    %785 = vector.extract_strided_slice %766 {offsets = [0, 8], sizes = [16, 8], strides = [1, 1]} : vector<16x32xbf16> to vector<16x8xbf16>
    %cst_221 = arith.constant dense<0.000000e+00> : vector<8x16xf32>
    %786 = tpu.matmul %784, %785, %cst_221 {dimension_numbers = #tpu.dot_dimension_numbers<[1], [1], [0], [0], [0, 0, 1, 0], [], []>} : vector<8x8xbf16>, vector<16x8xbf16>, vector<8x16xf32> -> vector<8x16xf32>
    %cst_222 = arith.constant dense<0xFF800000> : vector<8xf32>
    %787 = vector.multi_reduction <maximumf>, %786, %cst_222 [1] : vector<8x16xf32> to vector<8xf32>
    %788 = vector.shape_cast %787 : vector<8xf32> to vector<8x1xf32>
    %789 = vector.broadcast %788 : vector<8x1xf32> to vector<8x16xf32>
    %790 = arith.subf %786, %789 : vector<8x16xf32>
    %791 = math.exp %790 : vector<8x16xf32>
    %cst_223 = arith.constant dense<0.000000e+00> : vector<8xf32>
    %792 = vector.multi_reduction <add>, %791, %cst_223 [1] : vector<8x16xf32> to vector<8xf32>
    %793 = vector.shape_cast %792 : vector<8xf32> to vector<8x1xf32>
    %794 = tpu.reciprocal %793 {approx = true} : vector<8x1xf32> -> vector<8x1xf32>
    %795 = vector.broadcast %794 : vector<8x1xf32> to vector<8x16xf32>
    %796 = arith.mulf %791, %795 : vector<8x16xf32>
    %797 = arith.truncf %796 : vector<8x16xf32> to vector<8x16xbf16>
    %798 = vector.extract_strided_slice %767 {offsets = [0, 8], sizes = [16, 8], strides = [1, 1]} : vector<16x32xbf16> to vector<16x8xbf16>
    %cst_224 = arith.constant dense<0.000000e+00> : vector<8x8xf32>
    %799 = tpu.matmul %797, %798, %cst_224 {dimension_numbers = #tpu.dot_dimension_numbers<[1], [0], [0], [1], [0, 0, 1, 1], [], []>} : vector<8x16xbf16>, vector<16x8xbf16>, vector<8x8xf32> -> vector<8x8xf32>
    %800 = vector.extract_strided_slice %765 {offsets = [0, 16], sizes = [8, 8], strides = [1, 1]} : vector<8x32xbf16> to vector<8x8xbf16>
    %801 = vector.extract_strided_slice %766 {offsets = [0, 16], sizes = [16, 8], strides = [1, 1]} : vector<16x32xbf16> to vector<16x8xbf16>
    %cst_225 = arith.constant dense<0.000000e+00> : vector<8x16xf32>
    %802 = tpu.matmul %800, %801, %cst_225 {dimension_numbers = #tpu.dot_dimension_numbers<[1], [1], [0], [0], [0, 0, 1, 0], [], []>} : vector<8x8xbf16>, vector<16x8xbf16>, vector<8x16xf32> -> vector<8x16xf32>
    %cst_226 = arith.constant dense<0xFF800000> : vector<8xf32>
    %803 = vector.multi_reduction <maximumf>, %802, %cst_226 [1] : vector<8x16xf32> to vector<8xf32>
    %804 = vector.shape_cast %803 : vector<8xf32> to vector<8x1xf32>
    %805 = vector.broadcast %804 : vector<8x1xf32> to vector<8x16xf32>
    %806 = arith.subf %802, %805 : vector<8x16xf32>
    %807 = math.exp %806 : vector<8x16xf32>
    %cst_227 = arith.constant dense<0.000000e+00> : vector<8xf32>
    %808 = vector.multi_reduction <add>, %807, %cst_227 [1] : vector<8x16xf32> to vector<8xf32>
    %809 = vector.shape_cast %808 : vector<8xf32> to vector<8x1xf32>
    %810 = tpu.reciprocal %809 {approx = true} : vector<8x1xf32> -> vector<8x1xf32>
    %811 = vector.broadcast %810 : vector<8x1xf32> to vector<8x16xf32>
    %812 = arith.mulf %807, %811 : vector<8x16xf32>
    %813 = arith.truncf %812 : vector<8x16xf32> to vector<8x16xbf16>
    %814 = vector.extract_strided_slice %767 {offsets = [0, 16], sizes = [16, 8], strides = [1, 1]} : vector<16x32xbf16> to vector<16x8xbf16>
    %cst_228 = arith.constant dense<0.000000e+00> : vector<8x8xf32>
    %815 = tpu.matmul %813, %814, %cst_228 {dimension_numbers = #tpu.dot_dimension_numbers<[1], [0], [0], [1], [0, 0, 1, 1], [], []>} : vector<8x16xbf16>, vector<16x8xbf16>, vector<8x8xf32> -> vector<8x8xf32>
    %816 = vector.extract_strided_slice %765 {offsets = [0, 24], sizes = [8, 8], strides = [1, 1]} : vector<8x32xbf16> to vector<8x8xbf16>
    %817 = vector.extract_strided_slice %766 {offsets = [0, 24], sizes = [16, 8], strides = [1, 1]} : vector<16x32xbf16> to vector<16x8xbf16>
    %cst_229 = arith.constant dense<0.000000e+00> : vector<8x16xf32>
    %818 = tpu.matmul %816, %817, %cst_229 {dimension_numbers = #tpu.dot_dimension_numbers<[1], [1], [0], [0], [0, 0, 1, 0], [], []>} : vector<8x8xbf16>, vector<16x8xbf16>, vector<8x16xf32> -> vector<8x16xf32>
    %cst_230 = arith.constant dense<0xFF800000> : vector<8xf32>
    %819 = vector.multi_reduction <maximumf>, %818, %cst_230 [1] : vector<8x16xf32> to vector<8xf32>
    %820 = vector.shape_cast %819 : vector<8xf32> to vector<8x1xf32>
    %821 = vector.broadcast %820 : vector<8x1xf32> to vector<8x16xf32>
    %822 = arith.subf %818, %821 : vector<8x16xf32>
    %823 = math.exp %822 : vector<8x16xf32>
    %cst_231 = arith.constant dense<0.000000e+00> : vector<8xf32>
    %824 = vector.multi_reduction <add>, %823, %cst_231 [1] : vector<8x16xf32> to vector<8xf32>
    %825 = vector.shape_cast %824 : vector<8xf32> to vector<8x1xf32>
    %826 = tpu.reciprocal %825 {approx = true} : vector<8x1xf32> -> vector<8x1xf32>
    %827 = vector.broadcast %826 : vector<8x1xf32> to vector<8x16xf32>
    %828 = arith.mulf %823, %827 : vector<8x16xf32>
    %829 = arith.truncf %828 : vector<8x16xf32> to vector<8x16xbf16>
    %830 = vector.extract_strided_slice %767 {offsets = [0, 24], sizes = [16, 8], strides = [1, 1]} : vector<16x32xbf16> to vector<16x8xbf16>
    %cst_232 = arith.constant dense<0.000000e+00> : vector<8x8xf32>
    %831 = tpu.matmul %829, %830, %cst_232 {dimension_numbers = #tpu.dot_dimension_numbers<[1], [0], [0], [1], [0, 0, 1, 1], [], []>} : vector<8x16xbf16>, vector<16x8xbf16>, vector<8x8xf32> -> vector<8x8xf32>
    %832 = tpu.concatenate %783, %799, %815, %831 in 1 : vector<8x8xf32>, vector<8x8xf32>, vector<8x8xf32>, vector<8x8xf32> -> vector<8x32xf32>
    %833 = tpu.concatenate %764, %832 in 0 : vector<8x32xf32>, vector<8x32xf32> -> vector<16x32xf32>
    %c256 = arith.constant 256 : index
    %c0_233 = arith.constant 0 : index
    %834 = vector.load %arg1[%c256, %c0_233] : memref<416x96xbf16, #tpu.memory_space<vmem>>, vector<32x32xbf16>
    %835 = arith.truncf %833 : vector<16x32xf32> to vector<16x32xbf16>
    %cst_234 = arith.constant dense<0.000000e+00> : vector<16x32xf32>
    %836 = tpu.matmul %835, %834, %cst_234 {dimension_numbers = #tpu.dot_dimension_numbers<[1], [0], [0], [1], [0, 0, 1, 1], [], []>} : vector<16x32xbf16>, vector<32x32xbf16>, vector<16x32xf32> -> vector<16x32xf32>
    %c46 = arith.constant 46 : index
    %c0_235 = arith.constant 0 : index
    %837 = vector.load %arg2[%c46, %c0_235] : memref<57x96xf32, #tpu.memory_space<vmem>>, vector<1x32xf32>
    %838 = vector.broadcast %837 : vector<1x32xf32> to vector<16x32xf32>
    %839 = arith.addf %836, %838 : vector<16x32xf32>
    %840 = arith.addf %685, %839 : vector<16x32xf32>
    %c51 = arith.constant 51 : index
    %c0_236 = arith.constant 0 : index
    %841 = vector.load %arg2[%c51, %c0_236] : memref<57x96xf32, #tpu.memory_space<vmem>>, vector<1x32xf32>
    %c52 = arith.constant 52 : index
    %c0_237 = arith.constant 0 : index
    %842 = vector.load %arg2[%c52, %c0_237] : memref<57x96xf32, #tpu.memory_space<vmem>>, vector<1x32xf32>
    %cst_238 = arith.constant dense<0.000000e+00> : vector<16xf32>
    %843 = vector.multi_reduction <add>, %840, %cst_238 [1] : vector<16x32xf32> to vector<16xf32>
    %844 = vector.shape_cast %843 : vector<16xf32> to vector<16x1xf32>
    %cst_239 = arith.constant 3.200000e+01 : f32
    %845 = vector.broadcast %cst_239 : f32 to vector<16x1xf32>
    %846 = arith.divf %844, %845 : vector<16x1xf32>
    %847 = vector.broadcast %846 : vector<16x1xf32> to vector<16x32xf32>
    %848 = arith.subf %840, %847 : vector<16x32xf32>
    %849 = arith.mulf %848, %848 : vector<16x32xf32>
    %cst_240 = arith.constant dense<0.000000e+00> : vector<16xf32>
    %850 = vector.multi_reduction <add>, %849, %cst_240 [1] : vector<16x32xf32> to vector<16xf32>
    %851 = vector.shape_cast %850 : vector<16xf32> to vector<16x1xf32>
    %cst_241 = arith.constant 3.200000e+01 : f32
    %852 = vector.broadcast %cst_241 : f32 to vector<16x1xf32>
    %853 = arith.divf %851, %852 : vector<16x1xf32>
    %854 = vector.broadcast %846 : vector<16x1xf32> to vector<16x32xf32>
    %855 = arith.subf %840, %854 : vector<16x32xf32>
    %cst_242 = arith.constant 9.99999974E-6 : f32
    %856 = vector.broadcast %cst_242 : f32 to vector<16x1xf32>
    %857 = arith.addf %853, %856 : vector<16x1xf32>
    %858 = math.rsqrt %857 : vector<16x1xf32>
    %859 = vector.broadcast %858 : vector<16x1xf32> to vector<16x32xf32>
    %860 = arith.mulf %855, %859 : vector<16x32xf32>
    %861 = vector.broadcast %841 : vector<1x32xf32> to vector<16x32xf32>
    %862 = arith.mulf %860, %861 : vector<16x32xf32>
    %863 = vector.broadcast %842 : vector<1x32xf32> to vector<16x32xf32>
    %864 = arith.addf %862, %863 : vector<16x32xf32>
    %c288 = arith.constant 288 : index
    %c0_243 = arith.constant 0 : index
    %865 = vector.load %arg1[%c288, %c0_243] : memref<416x96xbf16, #tpu.memory_space<vmem>>, vector<32x64xbf16>
    %866 = arith.truncf %864 : vector<16x32xf32> to vector<16x32xbf16>
    %cst_244 = arith.constant dense<0.000000e+00> : vector<16x64xf32>
    %867 = tpu.matmul %866, %865, %cst_244 {dimension_numbers = #tpu.dot_dimension_numbers<[1], [0], [0], [1], [0, 0, 1, 1], [], []>} : vector<16x32xbf16>, vector<32x64xbf16>, vector<16x64xf32> -> vector<16x64xf32>
    %c47 = arith.constant 47 : index
    %c0_245 = arith.constant 0 : index
    %868 = vector.load %arg2[%c47, %c0_245] : memref<57x96xf32, #tpu.memory_space<vmem>>, vector<1x64xf32>
    %869 = vector.broadcast %868 : vector<1x64xf32> to vector<16x64xf32>
    %870 = arith.addf %867, %869 : vector<16x64xf32>
    %cst_246 = arith.constant 0.000000e+00 : f32
    %871 = vector.broadcast %cst_246 : f32 to vector<16x64xf32>
    %872 = arith.maximumf %870, %871 : vector<16x64xf32>
    %c320 = arith.constant 320 : index
    %c0_247 = arith.constant 0 : index
    %873 = vector.load %arg1[%c320, %c0_247] : memref<416x96xbf16, #tpu.memory_space<vmem>>, vector<64x32xbf16>
    %874 = arith.truncf %872 : vector<16x64xf32> to vector<16x64xbf16>
    %cst_248 = arith.constant dense<0.000000e+00> : vector<16x32xf32>
    %875 = tpu.matmul %874, %873, %cst_248 {dimension_numbers = #tpu.dot_dimension_numbers<[1], [0], [0], [1], [0, 0, 1, 1], [], []>} : vector<16x64xbf16>, vector<64x32xbf16>, vector<16x32xf32> -> vector<16x32xf32>
    %c48 = arith.constant 48 : index
    %c0_249 = arith.constant 0 : index
    %876 = vector.load %arg2[%c48, %c0_249] : memref<57x96xf32, #tpu.memory_space<vmem>>, vector<1x32xf32>
    %877 = vector.broadcast %876 : vector<1x32xf32> to vector<16x32xf32>
    %878 = arith.addf %875, %877 : vector<16x32xf32>
    %879 = arith.addf %864, %878 : vector<16x32xf32>
    %c53 = arith.constant 53 : index
    %c0_250 = arith.constant 0 : index
    %880 = vector.load %arg2[%c53, %c0_250] : memref<57x96xf32, #tpu.memory_space<vmem>>, vector<1x32xf32>
    %c54 = arith.constant 54 : index
    %c0_251 = arith.constant 0 : index
    %881 = vector.load %arg2[%c54, %c0_251] : memref<57x96xf32, #tpu.memory_space<vmem>>, vector<1x32xf32>
    %cst_252 = arith.constant dense<0.000000e+00> : vector<16xf32>
    %882 = vector.multi_reduction <add>, %879, %cst_252 [1] : vector<16x32xf32> to vector<16xf32>
    %883 = vector.shape_cast %882 : vector<16xf32> to vector<16x1xf32>
    %cst_253 = arith.constant 3.200000e+01 : f32
    %884 = vector.broadcast %cst_253 : f32 to vector<16x1xf32>
    %885 = arith.divf %883, %884 : vector<16x1xf32>
    %886 = vector.broadcast %885 : vector<16x1xf32> to vector<16x32xf32>
    %887 = arith.subf %879, %886 : vector<16x32xf32>
    %888 = arith.mulf %887, %887 : vector<16x32xf32>
    %cst_254 = arith.constant dense<0.000000e+00> : vector<16xf32>
    %889 = vector.multi_reduction <add>, %888, %cst_254 [1] : vector<16x32xf32> to vector<16xf32>
    %890 = vector.shape_cast %889 : vector<16xf32> to vector<16x1xf32>
    %cst_255 = arith.constant 3.200000e+01 : f32
    %891 = vector.broadcast %cst_255 : f32 to vector<16x1xf32>
    %892 = arith.divf %890, %891 : vector<16x1xf32>
    %893 = vector.broadcast %885 : vector<16x1xf32> to vector<16x32xf32>
    %894 = arith.subf %879, %893 : vector<16x32xf32>
    %cst_256 = arith.constant 9.99999974E-6 : f32
    %895 = vector.broadcast %cst_256 : f32 to vector<16x1xf32>
    %896 = arith.addf %892, %895 : vector<16x1xf32>
    %897 = math.rsqrt %896 : vector<16x1xf32>
    %898 = vector.broadcast %897 : vector<16x1xf32> to vector<16x32xf32>
    %899 = arith.mulf %894, %898 : vector<16x32xf32>
    %900 = vector.broadcast %880 : vector<1x32xf32> to vector<16x32xf32>
    %901 = arith.mulf %899, %900 : vector<16x32xf32>
    %902 = vector.broadcast %881 : vector<1x32xf32> to vector<16x32xf32>
    %903 = arith.addf %901, %902 : vector<16x32xf32>
    %c160_257 = arith.constant 160 : index
    %c0_258 = arith.constant 0 : index
    %904 = vector.load %arg1[%c160_257, %c0_258] : memref<416x96xbf16, #tpu.memory_space<vmem>>, vector<32x96xbf16>
    %905 = arith.truncf %903 : vector<16x32xf32> to vector<16x32xbf16>
    %cst_259 = arith.constant dense<0.000000e+00> : vector<16x96xf32>
    %906 = tpu.matmul %905, %904, %cst_259 {dimension_numbers = #tpu.dot_dimension_numbers<[1], [0], [0], [1], [0, 0, 1, 1], [], []>} : vector<16x32xbf16>, vector<32x96xbf16>, vector<16x96xf32> -> vector<16x96xf32>
    %c43_260 = arith.constant 43 : index
    %c0_261 = arith.constant 0 : index
    %907 = vector.load %arg2[%c43_260, %c0_261] : memref<57x96xf32, #tpu.memory_space<vmem>>, vector<1x96xf32>
    %908 = vector.broadcast %907 : vector<1x96xf32> to vector<16x96xf32>
    %909 = arith.addf %906, %908 : vector<16x96xf32>
    %910 = vector.extract_strided_slice %909 {offsets = [0, 0], sizes = [16, 32], strides = [1, 1]} : vector<16x96xf32> to vector<16x32xf32>
    %911 = vector.extract_strided_slice %909 {offsets = [0, 32], sizes = [16, 32], strides = [1, 1]} : vector<16x96xf32> to vector<16x32xf32>
    %912 = vector.extract_strided_slice %909 {offsets = [0, 64], sizes = [16, 32], strides = [1, 1]} : vector<16x96xf32> to vector<16x32xf32>
    %cst_262 = arith.constant 0.353553385 : f32
    %913 = vector.broadcast %cst_262 : f32 to vector<16x32xf32>
    %914 = arith.mulf %910, %913 : vector<16x32xf32>
    %915 = arith.truncf %914 : vector<16x32xf32> to vector<16x32xbf16>
    %916 = arith.truncf %911 : vector<16x32xf32> to vector<16x32xbf16>
    %917 = arith.truncf %912 : vector<16x32xf32> to vector<16x32xbf16>
    %918 = vector.extract_strided_slice %915 {offsets = [0, 0], sizes = [8, 32], strides = [1, 1]} : vector<16x32xbf16> to vector<8x32xbf16>
    %919 = vector.extract_strided_slice %916 {offsets = [0, 0], sizes = [8, 32], strides = [1, 1]} : vector<16x32xbf16> to vector<8x32xbf16>
    %920 = vector.extract_strided_slice %917 {offsets = [0, 0], sizes = [8, 32], strides = [1, 1]} : vector<16x32xbf16> to vector<8x32xbf16>
    %921 = vector.extract_strided_slice %918 {offsets = [0, 0], sizes = [8, 8], strides = [1, 1]} : vector<8x32xbf16> to vector<8x8xbf16>
    %922 = vector.extract_strided_slice %919 {offsets = [0, 0], sizes = [8, 8], strides = [1, 1]} : vector<8x32xbf16> to vector<8x8xbf16>
    %cst_263 = arith.constant dense<0.000000e+00> : vector<8x8xf32>
    %923 = tpu.matmul %921, %922, %cst_263 {dimension_numbers = #tpu.dot_dimension_numbers<[1], [1], [0], [0], [0, 0, 1, 0], [], []>} : vector<8x8xbf16>, vector<8x8xbf16>, vector<8x8xf32> -> vector<8x8xf32>
    %cst_264 = arith.constant dense<0xFF800000> : vector<8xf32>
    %924 = vector.multi_reduction <maximumf>, %923, %cst_264 [1] : vector<8x8xf32> to vector<8xf32>
    %925 = vector.shape_cast %924 : vector<8xf32> to vector<8x1xf32>
    %926 = vector.broadcast %925 : vector<8x1xf32> to vector<8x8xf32>
    %927 = arith.subf %923, %926 : vector<8x8xf32>
    %928 = math.exp %927 : vector<8x8xf32>
    %cst_265 = arith.constant dense<0.000000e+00> : vector<8xf32>
    %929 = vector.multi_reduction <add>, %928, %cst_265 [1] : vector<8x8xf32> to vector<8xf32>
    %930 = vector.shape_cast %929 : vector<8xf32> to vector<8x1xf32>
    %931 = tpu.reciprocal %930 {approx = true} : vector<8x1xf32> -> vector<8x1xf32>
    %932 = vector.broadcast %931 : vector<8x1xf32> to vector<8x8xf32>
    %933 = arith.mulf %928, %932 : vector<8x8xf32>
    %934 = arith.truncf %933 : vector<8x8xf32> to vector<8x8xbf16>
    %935 = vector.extract_strided_slice %920 {offsets = [0, 0], sizes = [8, 8], strides = [1, 1]} : vector<8x32xbf16> to vector<8x8xbf16>
    %cst_266 = arith.constant dense<0.000000e+00> : vector<8x8xf32>
    %936 = tpu.matmul %934, %935, %cst_266 {dimension_numbers = #tpu.dot_dimension_numbers<[1], [0], [0], [1], [0, 0, 1, 1], [], []>} : vector<8x8xbf16>, vector<8x8xbf16>, vector<8x8xf32> -> vector<8x8xf32>
    %937 = vector.extract_strided_slice %918 {offsets = [0, 8], sizes = [8, 8], strides = [1, 1]} : vector<8x32xbf16> to vector<8x8xbf16>
    %938 = vector.extract_strided_slice %919 {offsets = [0, 8], sizes = [8, 8], strides = [1, 1]} : vector<8x32xbf16> to vector<8x8xbf16>
    %cst_267 = arith.constant dense<0.000000e+00> : vector<8x8xf32>
    %939 = tpu.matmul %937, %938, %cst_267 {dimension_numbers = #tpu.dot_dimension_numbers<[1], [1], [0], [0], [0, 0, 1, 0], [], []>} : vector<8x8xbf16>, vector<8x8xbf16>, vector<8x8xf32> -> vector<8x8xf32>
    %cst_268 = arith.constant dense<0xFF800000> : vector<8xf32>
    %940 = vector.multi_reduction <maximumf>, %939, %cst_268 [1] : vector<8x8xf32> to vector<8xf32>
    %941 = vector.shape_cast %940 : vector<8xf32> to vector<8x1xf32>
    %942 = vector.broadcast %941 : vector<8x1xf32> to vector<8x8xf32>
    %943 = arith.subf %939, %942 : vector<8x8xf32>
    %944 = math.exp %943 : vector<8x8xf32>
    %cst_269 = arith.constant dense<0.000000e+00> : vector<8xf32>
    %945 = vector.multi_reduction <add>, %944, %cst_269 [1] : vector<8x8xf32> to vector<8xf32>
    %946 = vector.shape_cast %945 : vector<8xf32> to vector<8x1xf32>
    %947 = tpu.reciprocal %946 {approx = true} : vector<8x1xf32> -> vector<8x1xf32>
    %948 = vector.broadcast %947 : vector<8x1xf32> to vector<8x8xf32>
    %949 = arith.mulf %944, %948 : vector<8x8xf32>
    %950 = arith.truncf %949 : vector<8x8xf32> to vector<8x8xbf16>
    %951 = vector.extract_strided_slice %920 {offsets = [0, 8], sizes = [8, 8], strides = [1, 1]} : vector<8x32xbf16> to vector<8x8xbf16>
    %cst_270 = arith.constant dense<0.000000e+00> : vector<8x8xf32>
    %952 = tpu.matmul %950, %951, %cst_270 {dimension_numbers = #tpu.dot_dimension_numbers<[1], [0], [0], [1], [0, 0, 1, 1], [], []>} : vector<8x8xbf16>, vector<8x8xbf16>, vector<8x8xf32> -> vector<8x8xf32>
    %953 = vector.extract_strided_slice %918 {offsets = [0, 16], sizes = [8, 8], strides = [1, 1]} : vector<8x32xbf16> to vector<8x8xbf16>
    %954 = vector.extract_strided_slice %919 {offsets = [0, 16], sizes = [8, 8], strides = [1, 1]} : vector<8x32xbf16> to vector<8x8xbf16>
    %cst_271 = arith.constant dense<0.000000e+00> : vector<8x8xf32>
    %955 = tpu.matmul %953, %954, %cst_271 {dimension_numbers = #tpu.dot_dimension_numbers<[1], [1], [0], [0], [0, 0, 1, 0], [], []>} : vector<8x8xbf16>, vector<8x8xbf16>, vector<8x8xf32> -> vector<8x8xf32>
    %cst_272 = arith.constant dense<0xFF800000> : vector<8xf32>
    %956 = vector.multi_reduction <maximumf>, %955, %cst_272 [1] : vector<8x8xf32> to vector<8xf32>
    %957 = vector.shape_cast %956 : vector<8xf32> to vector<8x1xf32>
    %958 = vector.broadcast %957 : vector<8x1xf32> to vector<8x8xf32>
    %959 = arith.subf %955, %958 : vector<8x8xf32>
    %960 = math.exp %959 : vector<8x8xf32>
    %cst_273 = arith.constant dense<0.000000e+00> : vector<8xf32>
    %961 = vector.multi_reduction <add>, %960, %cst_273 [1] : vector<8x8xf32> to vector<8xf32>
    %962 = vector.shape_cast %961 : vector<8xf32> to vector<8x1xf32>
    %963 = tpu.reciprocal %962 {approx = true} : vector<8x1xf32> -> vector<8x1xf32>
    %964 = vector.broadcast %963 : vector<8x1xf32> to vector<8x8xf32>
    %965 = arith.mulf %960, %964 : vector<8x8xf32>
    %966 = arith.truncf %965 : vector<8x8xf32> to vector<8x8xbf16>
    %967 = vector.extract_strided_slice %920 {offsets = [0, 16], sizes = [8, 8], strides = [1, 1]} : vector<8x32xbf16> to vector<8x8xbf16>
    %cst_274 = arith.constant dense<0.000000e+00> : vector<8x8xf32>
    %968 = tpu.matmul %966, %967, %cst_274 {dimension_numbers = #tpu.dot_dimension_numbers<[1], [0], [0], [1], [0, 0, 1, 1], [], []>} : vector<8x8xbf16>, vector<8x8xbf16>, vector<8x8xf32> -> vector<8x8xf32>
    %969 = vector.extract_strided_slice %918 {offsets = [0, 24], sizes = [8, 8], strides = [1, 1]} : vector<8x32xbf16> to vector<8x8xbf16>
    %970 = vector.extract_strided_slice %919 {offsets = [0, 24], sizes = [8, 8], strides = [1, 1]} : vector<8x32xbf16> to vector<8x8xbf16>
    %cst_275 = arith.constant dense<0.000000e+00> : vector<8x8xf32>
    %971 = tpu.matmul %969, %970, %cst_275 {dimension_numbers = #tpu.dot_dimension_numbers<[1], [1], [0], [0], [0, 0, 1, 0], [], []>} : vector<8x8xbf16>, vector<8x8xbf16>, vector<8x8xf32> -> vector<8x8xf32>
    %cst_276 = arith.constant dense<0xFF800000> : vector<8xf32>
    %972 = vector.multi_reduction <maximumf>, %971, %cst_276 [1] : vector<8x8xf32> to vector<8xf32>
    %973 = vector.shape_cast %972 : vector<8xf32> to vector<8x1xf32>
    %974 = vector.broadcast %973 : vector<8x1xf32> to vector<8x8xf32>
    %975 = arith.subf %971, %974 : vector<8x8xf32>
    %976 = math.exp %975 : vector<8x8xf32>
    %cst_277 = arith.constant dense<0.000000e+00> : vector<8xf32>
    %977 = vector.multi_reduction <add>, %976, %cst_277 [1] : vector<8x8xf32> to vector<8xf32>
    %978 = vector.shape_cast %977 : vector<8xf32> to vector<8x1xf32>
    %979 = tpu.reciprocal %978 {approx = true} : vector<8x1xf32> -> vector<8x1xf32>
    %980 = vector.broadcast %979 : vector<8x1xf32> to vector<8x8xf32>
    %981 = arith.mulf %976, %980 : vector<8x8xf32>
    %982 = arith.truncf %981 : vector<8x8xf32> to vector<8x8xbf16>
    %983 = vector.extract_strided_slice %920 {offsets = [0, 24], sizes = [8, 8], strides = [1, 1]} : vector<8x32xbf16> to vector<8x8xbf16>
    %cst_278 = arith.constant dense<0.000000e+00> : vector<8x8xf32>
    %984 = tpu.matmul %982, %983, %cst_278 {dimension_numbers = #tpu.dot_dimension_numbers<[1], [0], [0], [1], [0, 0, 1, 1], [], []>} : vector<8x8xbf16>, vector<8x8xbf16>, vector<8x8xf32> -> vector<8x8xf32>
    %985 = tpu.concatenate %936, %952, %968, %984 in 1 : vector<8x8xf32>, vector<8x8xf32>, vector<8x8xf32>, vector<8x8xf32> -> vector<8x32xf32>
    %986 = vector.extract_strided_slice %915 {offsets = [8, 0], sizes = [8, 32], strides = [1, 1]} : vector<16x32xbf16> to vector<8x32xbf16>
    %987 = vector.extract_strided_slice %916 {offsets = [8, 0], sizes = [8, 32], strides = [1, 1]} : vector<16x32xbf16> to vector<8x32xbf16>
    %988 = vector.extract_strided_slice %917 {offsets = [8, 0], sizes = [8, 32], strides = [1, 1]} : vector<16x32xbf16> to vector<8x32xbf16>
    %989 = vector.extract_strided_slice %986 {offsets = [0, 0], sizes = [8, 8], strides = [1, 1]} : vector<8x32xbf16> to vector<8x8xbf16>
    %990 = vector.extract_strided_slice %987 {offsets = [0, 0], sizes = [8, 8], strides = [1, 1]} : vector<8x32xbf16> to vector<8x8xbf16>
    %cst_279 = arith.constant dense<0.000000e+00> : vector<8x8xf32>
    %991 = tpu.matmul %989, %990, %cst_279 {dimension_numbers = #tpu.dot_dimension_numbers<[1], [1], [0], [0], [0, 0, 1, 0], [], []>} : vector<8x8xbf16>, vector<8x8xbf16>, vector<8x8xf32> -> vector<8x8xf32>
    %cst_280 = arith.constant dense<0xFF800000> : vector<8xf32>
    %992 = vector.multi_reduction <maximumf>, %991, %cst_280 [1] : vector<8x8xf32> to vector<8xf32>
    %993 = vector.shape_cast %992 : vector<8xf32> to vector<8x1xf32>
    %994 = vector.broadcast %993 : vector<8x1xf32> to vector<8x8xf32>
    %995 = arith.subf %991, %994 : vector<8x8xf32>
    %996 = math.exp %995 : vector<8x8xf32>
    %cst_281 = arith.constant dense<0.000000e+00> : vector<8xf32>
    %997 = vector.multi_reduction <add>, %996, %cst_281 [1] : vector<8x8xf32> to vector<8xf32>
    %998 = vector.shape_cast %997 : vector<8xf32> to vector<8x1xf32>
    %999 = tpu.reciprocal %998 {approx = true} : vector<8x1xf32> -> vector<8x1xf32>
    %1000 = vector.broadcast %999 : vector<8x1xf32> to vector<8x8xf32>
    %1001 = arith.mulf %996, %1000 : vector<8x8xf32>
    %1002 = arith.truncf %1001 : vector<8x8xf32> to vector<8x8xbf16>
    %1003 = vector.extract_strided_slice %988 {offsets = [0, 0], sizes = [8, 8], strides = [1, 1]} : vector<8x32xbf16> to vector<8x8xbf16>
    %cst_282 = arith.constant dense<0.000000e+00> : vector<8x8xf32>
    %1004 = tpu.matmul %1002, %1003, %cst_282 {dimension_numbers = #tpu.dot_dimension_numbers<[1], [0], [0], [1], [0, 0, 1, 1], [], []>} : vector<8x8xbf16>, vector<8x8xbf16>, vector<8x8xf32> -> vector<8x8xf32>
    %1005 = vector.extract_strided_slice %986 {offsets = [0, 8], sizes = [8, 8], strides = [1, 1]} : vector<8x32xbf16> to vector<8x8xbf16>
    %1006 = vector.extract_strided_slice %987 {offsets = [0, 8], sizes = [8, 8], strides = [1, 1]} : vector<8x32xbf16> to vector<8x8xbf16>
    %cst_283 = arith.constant dense<0.000000e+00> : vector<8x8xf32>
    %1007 = tpu.matmul %1005, %1006, %cst_283 {dimension_numbers = #tpu.dot_dimension_numbers<[1], [1], [0], [0], [0, 0, 1, 0], [], []>} : vector<8x8xbf16>, vector<8x8xbf16>, vector<8x8xf32> -> vector<8x8xf32>
    %cst_284 = arith.constant dense<0xFF800000> : vector<8xf32>
    %1008 = vector.multi_reduction <maximumf>, %1007, %cst_284 [1] : vector<8x8xf32> to vector<8xf32>
    %1009 = vector.shape_cast %1008 : vector<8xf32> to vector<8x1xf32>
    %1010 = vector.broadcast %1009 : vector<8x1xf32> to vector<8x8xf32>
    %1011 = arith.subf %1007, %1010 : vector<8x8xf32>
    %1012 = math.exp %1011 : vector<8x8xf32>
    %cst_285 = arith.constant dense<0.000000e+00> : vector<8xf32>
    %1013 = vector.multi_reduction <add>, %1012, %cst_285 [1] : vector<8x8xf32> to vector<8xf32>
    %1014 = vector.shape_cast %1013 : vector<8xf32> to vector<8x1xf32>
    %1015 = tpu.reciprocal %1014 {approx = true} : vector<8x1xf32> -> vector<8x1xf32>
    %1016 = vector.broadcast %1015 : vector<8x1xf32> to vector<8x8xf32>
    %1017 = arith.mulf %1012, %1016 : vector<8x8xf32>
    %1018 = arith.truncf %1017 : vector<8x8xf32> to vector<8x8xbf16>
    %1019 = vector.extract_strided_slice %988 {offsets = [0, 8], sizes = [8, 8], strides = [1, 1]} : vector<8x32xbf16> to vector<8x8xbf16>
    %cst_286 = arith.constant dense<0.000000e+00> : vector<8x8xf32>
    %1020 = tpu.matmul %1018, %1019, %cst_286 {dimension_numbers = #tpu.dot_dimension_numbers<[1], [0], [0], [1], [0, 0, 1, 1], [], []>} : vector<8x8xbf16>, vector<8x8xbf16>, vector<8x8xf32> -> vector<8x8xf32>
    %1021 = vector.extract_strided_slice %986 {offsets = [0, 16], sizes = [8, 8], strides = [1, 1]} : vector<8x32xbf16> to vector<8x8xbf16>
    %1022 = vector.extract_strided_slice %987 {offsets = [0, 16], sizes = [8, 8], strides = [1, 1]} : vector<8x32xbf16> to vector<8x8xbf16>
    %cst_287 = arith.constant dense<0.000000e+00> : vector<8x8xf32>
    %1023 = tpu.matmul %1021, %1022, %cst_287 {dimension_numbers = #tpu.dot_dimension_numbers<[1], [1], [0], [0], [0, 0, 1, 0], [], []>} : vector<8x8xbf16>, vector<8x8xbf16>, vector<8x8xf32> -> vector<8x8xf32>
    %cst_288 = arith.constant dense<0xFF800000> : vector<8xf32>
    %1024 = vector.multi_reduction <maximumf>, %1023, %cst_288 [1] : vector<8x8xf32> to vector<8xf32>
    %1025 = vector.shape_cast %1024 : vector<8xf32> to vector<8x1xf32>
    %1026 = vector.broadcast %1025 : vector<8x1xf32> to vector<8x8xf32>
    %1027 = arith.subf %1023, %1026 : vector<8x8xf32>
    %1028 = math.exp %1027 : vector<8x8xf32>
    %cst_289 = arith.constant dense<0.000000e+00> : vector<8xf32>
    %1029 = vector.multi_reduction <add>, %1028, %cst_289 [1] : vector<8x8xf32> to vector<8xf32>
    %1030 = vector.shape_cast %1029 : vector<8xf32> to vector<8x1xf32>
    %1031 = tpu.reciprocal %1030 {approx = true} : vector<8x1xf32> -> vector<8x1xf32>
    %1032 = vector.broadcast %1031 : vector<8x1xf32> to vector<8x8xf32>
    %1033 = arith.mulf %1028, %1032 : vector<8x8xf32>
    %1034 = arith.truncf %1033 : vector<8x8xf32> to vector<8x8xbf16>
    %1035 = vector.extract_strided_slice %988 {offsets = [0, 16], sizes = [8, 8], strides = [1, 1]} : vector<8x32xbf16> to vector<8x8xbf16>
    %cst_290 = arith.constant dense<0.000000e+00> : vector<8x8xf32>
    %1036 = tpu.matmul %1034, %1035, %cst_290 {dimension_numbers = #tpu.dot_dimension_numbers<[1], [0], [0], [1], [0, 0, 1, 1], [], []>} : vector<8x8xbf16>, vector<8x8xbf16>, vector<8x8xf32> -> vector<8x8xf32>
    %1037 = vector.extract_strided_slice %986 {offsets = [0, 24], sizes = [8, 8], strides = [1, 1]} : vector<8x32xbf16> to vector<8x8xbf16>
    %1038 = vector.extract_strided_slice %987 {offsets = [0, 24], sizes = [8, 8], strides = [1, 1]} : vector<8x32xbf16> to vector<8x8xbf16>
    %cst_291 = arith.constant dense<0.000000e+00> : vector<8x8xf32>
    %1039 = tpu.matmul %1037, %1038, %cst_291 {dimension_numbers = #tpu.dot_dimension_numbers<[1], [1], [0], [0], [0, 0, 1, 0], [], []>} : vector<8x8xbf16>, vector<8x8xbf16>, vector<8x8xf32> -> vector<8x8xf32>
    %cst_292 = arith.constant dense<0xFF800000> : vector<8xf32>
    %1040 = vector.multi_reduction <maximumf>, %1039, %cst_292 [1] : vector<8x8xf32> to vector<8xf32>
    %1041 = vector.shape_cast %1040 : vector<8xf32> to vector<8x1xf32>
    %1042 = vector.broadcast %1041 : vector<8x1xf32> to vector<8x8xf32>
    %1043 = arith.subf %1039, %1042 : vector<8x8xf32>
    %1044 = math.exp %1043 : vector<8x8xf32>
    %cst_293 = arith.constant dense<0.000000e+00> : vector<8xf32>
    %1045 = vector.multi_reduction <add>, %1044, %cst_293 [1] : vector<8x8xf32> to vector<8xf32>
    %1046 = vector.shape_cast %1045 : vector<8xf32> to vector<8x1xf32>
    %1047 = tpu.reciprocal %1046 {approx = true} : vector<8x1xf32> -> vector<8x1xf32>
    %1048 = vector.broadcast %1047 : vector<8x1xf32> to vector<8x8xf32>
    %1049 = arith.mulf %1044, %1048 : vector<8x8xf32>
    %1050 = arith.truncf %1049 : vector<8x8xf32> to vector<8x8xbf16>
    %1051 = vector.extract_strided_slice %988 {offsets = [0, 24], sizes = [8, 8], strides = [1, 1]} : vector<8x32xbf16> to vector<8x8xbf16>
    %cst_294 = arith.constant dense<0.000000e+00> : vector<8x8xf32>
    %1052 = tpu.matmul %1050, %1051, %cst_294 {dimension_numbers = #tpu.dot_dimension_numbers<[1], [0], [0], [1], [0, 0, 1, 1], [], []>} : vector<8x8xbf16>, vector<8x8xbf16>, vector<8x8xf32> -> vector<8x8xf32>
    %1053 = tpu.concatenate %1004, %1020, %1036, %1052 in 1 : vector<8x8xf32>, vector<8x8xf32>, vector<8x8xf32>, vector<8x8xf32> -> vector<8x32xf32>
    %1054 = tpu.concatenate %985, %1053 in 0 : vector<8x32xf32>, vector<8x32xf32> -> vector<16x32xf32>
    %c192_295 = arith.constant 192 : index
    %c0_296 = arith.constant 0 : index
    %1055 = vector.load %arg1[%c192_295, %c0_296] : memref<416x96xbf16, #tpu.memory_space<vmem>>, vector<32x32xbf16>
    %1056 = arith.truncf %1054 : vector<16x32xf32> to vector<16x32xbf16>
    %cst_297 = arith.constant dense<0.000000e+00> : vector<16x32xf32>
    %1057 = tpu.matmul %1056, %1055, %cst_297 {dimension_numbers = #tpu.dot_dimension_numbers<[1], [0], [0], [1], [0, 0, 1, 1], [], []>} : vector<16x32xbf16>, vector<32x32xbf16>, vector<16x32xf32> -> vector<16x32xf32>
    %c44_298 = arith.constant 44 : index
    %c0_299 = arith.constant 0 : index
    %1058 = vector.load %arg2[%c44_298, %c0_299] : memref<57x96xf32, #tpu.memory_space<vmem>>, vector<1x32xf32>
    %1059 = vector.broadcast %1058 : vector<1x32xf32> to vector<16x32xf32>
    %1060 = arith.addf %1057, %1059 : vector<16x32xf32>
    %1061 = arith.addf %903, %1060 : vector<16x32xf32>
    %c49_300 = arith.constant 49 : index
    %c0_301 = arith.constant 0 : index
    %1062 = vector.load %arg2[%c49_300, %c0_301] : memref<57x96xf32, #tpu.memory_space<vmem>>, vector<1x32xf32>
    %c50_302 = arith.constant 50 : index
    %c0_303 = arith.constant 0 : index
    %1063 = vector.load %arg2[%c50_302, %c0_303] : memref<57x96xf32, #tpu.memory_space<vmem>>, vector<1x32xf32>
    %cst_304 = arith.constant dense<0.000000e+00> : vector<16xf32>
    %1064 = vector.multi_reduction <add>, %1061, %cst_304 [1] : vector<16x32xf32> to vector<16xf32>
    %1065 = vector.shape_cast %1064 : vector<16xf32> to vector<16x1xf32>
    %cst_305 = arith.constant 3.200000e+01 : f32
    %1066 = vector.broadcast %cst_305 : f32 to vector<16x1xf32>
    %1067 = arith.divf %1065, %1066 : vector<16x1xf32>
    %1068 = vector.broadcast %1067 : vector<16x1xf32> to vector<16x32xf32>
    %1069 = arith.subf %1061, %1068 : vector<16x32xf32>
    %1070 = arith.mulf %1069, %1069 : vector<16x32xf32>
    %cst_306 = arith.constant dense<0.000000e+00> : vector<16xf32>
    %1071 = vector.multi_reduction <add>, %1070, %cst_306 [1] : vector<16x32xf32> to vector<16xf32>
    %1072 = vector.shape_cast %1071 : vector<16xf32> to vector<16x1xf32>
    %cst_307 = arith.constant 3.200000e+01 : f32
    %1073 = vector.broadcast %cst_307 : f32 to vector<16x1xf32>
    %1074 = arith.divf %1072, %1073 : vector<16x1xf32>
    %1075 = vector.broadcast %1067 : vector<16x1xf32> to vector<16x32xf32>
    %1076 = arith.subf %1061, %1075 : vector<16x32xf32>
    %cst_308 = arith.constant 9.99999974E-6 : f32
    %1077 = vector.broadcast %cst_308 : f32 to vector<16x1xf32>
    %1078 = arith.addf %1074, %1077 : vector<16x1xf32>
    %1079 = math.rsqrt %1078 : vector<16x1xf32>
    %1080 = vector.broadcast %1079 : vector<16x1xf32> to vector<16x32xf32>
    %1081 = arith.mulf %1076, %1080 : vector<16x32xf32>
    %1082 = vector.broadcast %1062 : vector<1x32xf32> to vector<16x32xf32>
    %1083 = arith.mulf %1081, %1082 : vector<16x32xf32>
    %1084 = vector.broadcast %1063 : vector<1x32xf32> to vector<16x32xf32>
    %1085 = arith.addf %1083, %1084 : vector<16x32xf32>
    %c224_309 = arith.constant 224 : index
    %c0_310 = arith.constant 0 : index
    %1086 = vector.load %arg1[%c224_309, %c0_310] : memref<416x96xbf16, #tpu.memory_space<vmem>>, vector<32x96xbf16>
    %1087 = vector.extract_strided_slice %1086 {offsets = [0, 0], sizes = [32, 32], strides = [1, 1]} : vector<32x96xbf16> to vector<32x32xbf16>
    %1088 = arith.truncf %1085 : vector<16x32xf32> to vector<16x32xbf16>
    %cst_311 = arith.constant dense<0.000000e+00> : vector<16x32xf32>
    %1089 = tpu.matmul %1088, %1087, %cst_311 {dimension_numbers = #tpu.dot_dimension_numbers<[1], [0], [0], [1], [0, 0, 1, 1], [], []>} : vector<16x32xbf16>, vector<32x32xbf16>, vector<16x32xf32> -> vector<16x32xf32>
    %c45_312 = arith.constant 45 : index
    %c0_313 = arith.constant 0 : index
    %1090 = vector.load %arg2[%c45_312, %c0_313] : memref<57x96xf32, #tpu.memory_space<vmem>>, vector<1x96xf32>
    %1091 = vector.extract_strided_slice %1090 {offsets = [0, 0], sizes = [1, 32], strides = [1, 1]} : vector<1x96xf32> to vector<1x32xf32>
    %1092 = vector.broadcast %1091 : vector<1x32xf32> to vector<16x32xf32>
    %1093 = arith.addf %1089, %1092 : vector<16x32xf32>
    %cst_314 = arith.constant 0.353553385 : f32
    %1094 = vector.broadcast %cst_314 : f32 to vector<16x32xf32>
    %1095 = arith.mulf %1093, %1094 : vector<16x32xf32>
    %1096 = arith.truncf %1095 : vector<16x32xf32> to vector<16x32xbf16>
    %1097 = vector.extract_strided_slice %1096 {offsets = [0, 0], sizes = [8, 32], strides = [1, 1]} : vector<16x32xbf16> to vector<8x32xbf16>
    %1098 = vector.extract_strided_slice %501 {offsets = [0, 0], sizes = [16, 32], strides = [1, 1]} : vector<32x32xbf16> to vector<16x32xbf16>
    %1099 = vector.extract_strided_slice %503 {offsets = [0, 0], sizes = [16, 32], strides = [1, 1]} : vector<32x32xbf16> to vector<16x32xbf16>
    %1100 = vector.extract_strided_slice %1097 {offsets = [0, 0], sizes = [8, 8], strides = [1, 1]} : vector<8x32xbf16> to vector<8x8xbf16>
    %1101 = vector.extract_strided_slice %1098 {offsets = [0, 0], sizes = [16, 8], strides = [1, 1]} : vector<16x32xbf16> to vector<16x8xbf16>
    %cst_315 = arith.constant dense<0.000000e+00> : vector<8x16xf32>
    %1102 = tpu.matmul %1100, %1101, %cst_315 {dimension_numbers = #tpu.dot_dimension_numbers<[1], [1], [0], [0], [0, 0, 1, 0], [], []>} : vector<8x8xbf16>, vector<16x8xbf16>, vector<8x16xf32> -> vector<8x16xf32>
    %cst_316 = arith.constant dense<0xFF800000> : vector<8xf32>
    %1103 = vector.multi_reduction <maximumf>, %1102, %cst_316 [1] : vector<8x16xf32> to vector<8xf32>
    %1104 = vector.shape_cast %1103 : vector<8xf32> to vector<8x1xf32>
    %1105 = vector.broadcast %1104 : vector<8x1xf32> to vector<8x16xf32>
    %1106 = arith.subf %1102, %1105 : vector<8x16xf32>
    %1107 = math.exp %1106 : vector<8x16xf32>
    %cst_317 = arith.constant dense<0.000000e+00> : vector<8xf32>
    %1108 = vector.multi_reduction <add>, %1107, %cst_317 [1] : vector<8x16xf32> to vector<8xf32>
    %1109 = vector.shape_cast %1108 : vector<8xf32> to vector<8x1xf32>
    %1110 = tpu.reciprocal %1109 {approx = true} : vector<8x1xf32> -> vector<8x1xf32>
    %1111 = vector.broadcast %1110 : vector<8x1xf32> to vector<8x16xf32>
    %1112 = arith.mulf %1107, %1111 : vector<8x16xf32>
    %1113 = arith.truncf %1112 : vector<8x16xf32> to vector<8x16xbf16>
    %1114 = vector.extract_strided_slice %1099 {offsets = [0, 0], sizes = [16, 8], strides = [1, 1]} : vector<16x32xbf16> to vector<16x8xbf16>
    %cst_318 = arith.constant dense<0.000000e+00> : vector<8x8xf32>
    %1115 = tpu.matmul %1113, %1114, %cst_318 {dimension_numbers = #tpu.dot_dimension_numbers<[1], [0], [0], [1], [0, 0, 1, 1], [], []>} : vector<8x16xbf16>, vector<16x8xbf16>, vector<8x8xf32> -> vector<8x8xf32>
    %1116 = vector.extract_strided_slice %1097 {offsets = [0, 8], sizes = [8, 8], strides = [1, 1]} : vector<8x32xbf16> to vector<8x8xbf16>
    %1117 = vector.extract_strided_slice %1098 {offsets = [0, 8], sizes = [16, 8], strides = [1, 1]} : vector<16x32xbf16> to vector<16x8xbf16>
    %cst_319 = arith.constant dense<0.000000e+00> : vector<8x16xf32>
    %1118 = tpu.matmul %1116, %1117, %cst_319 {dimension_numbers = #tpu.dot_dimension_numbers<[1], [1], [0], [0], [0, 0, 1, 0], [], []>} : vector<8x8xbf16>, vector<16x8xbf16>, vector<8x16xf32> -> vector<8x16xf32>
    %cst_320 = arith.constant dense<0xFF800000> : vector<8xf32>
    %1119 = vector.multi_reduction <maximumf>, %1118, %cst_320 [1] : vector<8x16xf32> to vector<8xf32>
    %1120 = vector.shape_cast %1119 : vector<8xf32> to vector<8x1xf32>
    %1121 = vector.broadcast %1120 : vector<8x1xf32> to vector<8x16xf32>
    %1122 = arith.subf %1118, %1121 : vector<8x16xf32>
    %1123 = math.exp %1122 : vector<8x16xf32>
    %cst_321 = arith.constant dense<0.000000e+00> : vector<8xf32>
    %1124 = vector.multi_reduction <add>, %1123, %cst_321 [1] : vector<8x16xf32> to vector<8xf32>
    %1125 = vector.shape_cast %1124 : vector<8xf32> to vector<8x1xf32>
    %1126 = tpu.reciprocal %1125 {approx = true} : vector<8x1xf32> -> vector<8x1xf32>
    %1127 = vector.broadcast %1126 : vector<8x1xf32> to vector<8x16xf32>
    %1128 = arith.mulf %1123, %1127 : vector<8x16xf32>
    %1129 = arith.truncf %1128 : vector<8x16xf32> to vector<8x16xbf16>
    %1130 = vector.extract_strided_slice %1099 {offsets = [0, 8], sizes = [16, 8], strides = [1, 1]} : vector<16x32xbf16> to vector<16x8xbf16>
    %cst_322 = arith.constant dense<0.000000e+00> : vector<8x8xf32>
    %1131 = tpu.matmul %1129, %1130, %cst_322 {dimension_numbers = #tpu.dot_dimension_numbers<[1], [0], [0], [1], [0, 0, 1, 1], [], []>} : vector<8x16xbf16>, vector<16x8xbf16>, vector<8x8xf32> -> vector<8x8xf32>
    %1132 = vector.extract_strided_slice %1097 {offsets = [0, 16], sizes = [8, 8], strides = [1, 1]} : vector<8x32xbf16> to vector<8x8xbf16>
    %1133 = vector.extract_strided_slice %1098 {offsets = [0, 16], sizes = [16, 8], strides = [1, 1]} : vector<16x32xbf16> to vector<16x8xbf16>
    %cst_323 = arith.constant dense<0.000000e+00> : vector<8x16xf32>
    %1134 = tpu.matmul %1132, %1133, %cst_323 {dimension_numbers = #tpu.dot_dimension_numbers<[1], [1], [0], [0], [0, 0, 1, 0], [], []>} : vector<8x8xbf16>, vector<16x8xbf16>, vector<8x16xf32> -> vector<8x16xf32>
    %cst_324 = arith.constant dense<0xFF800000> : vector<8xf32>
    %1135 = vector.multi_reduction <maximumf>, %1134, %cst_324 [1] : vector<8x16xf32> to vector<8xf32>
    %1136 = vector.shape_cast %1135 : vector<8xf32> to vector<8x1xf32>
    %1137 = vector.broadcast %1136 : vector<8x1xf32> to vector<8x16xf32>
    %1138 = arith.subf %1134, %1137 : vector<8x16xf32>
    %1139 = math.exp %1138 : vector<8x16xf32>
    %cst_325 = arith.constant dense<0.000000e+00> : vector<8xf32>
    %1140 = vector.multi_reduction <add>, %1139, %cst_325 [1] : vector<8x16xf32> to vector<8xf32>
    %1141 = vector.shape_cast %1140 : vector<8xf32> to vector<8x1xf32>
    %1142 = tpu.reciprocal %1141 {approx = true} : vector<8x1xf32> -> vector<8x1xf32>
    %1143 = vector.broadcast %1142 : vector<8x1xf32> to vector<8x16xf32>
    %1144 = arith.mulf %1139, %1143 : vector<8x16xf32>
    %1145 = arith.truncf %1144 : vector<8x16xf32> to vector<8x16xbf16>
    %1146 = vector.extract_strided_slice %1099 {offsets = [0, 16], sizes = [16, 8], strides = [1, 1]} : vector<16x32xbf16> to vector<16x8xbf16>
    %cst_326 = arith.constant dense<0.000000e+00> : vector<8x8xf32>
    %1147 = tpu.matmul %1145, %1146, %cst_326 {dimension_numbers = #tpu.dot_dimension_numbers<[1], [0], [0], [1], [0, 0, 1, 1], [], []>} : vector<8x16xbf16>, vector<16x8xbf16>, vector<8x8xf32> -> vector<8x8xf32>
    %1148 = vector.extract_strided_slice %1097 {offsets = [0, 24], sizes = [8, 8], strides = [1, 1]} : vector<8x32xbf16> to vector<8x8xbf16>
    %1149 = vector.extract_strided_slice %1098 {offsets = [0, 24], sizes = [16, 8], strides = [1, 1]} : vector<16x32xbf16> to vector<16x8xbf16>
    %cst_327 = arith.constant dense<0.000000e+00> : vector<8x16xf32>
    %1150 = tpu.matmul %1148, %1149, %cst_327 {dimension_numbers = #tpu.dot_dimension_numbers<[1], [1], [0], [0], [0, 0, 1, 0], [], []>} : vector<8x8xbf16>, vector<16x8xbf16>, vector<8x16xf32> -> vector<8x16xf32>
    %cst_328 = arith.constant dense<0xFF800000> : vector<8xf32>
    %1151 = vector.multi_reduction <maximumf>, %1150, %cst_328 [1] : vector<8x16xf32> to vector<8xf32>
    %1152 = vector.shape_cast %1151 : vector<8xf32> to vector<8x1xf32>
    %1153 = vector.broadcast %1152 : vector<8x1xf32> to vector<8x16xf32>
    %1154 = arith.subf %1150, %1153 : vector<8x16xf32>
    %1155 = math.exp %1154 : vector<8x16xf32>
    %cst_329 = arith.constant dense<0.000000e+00> : vector<8xf32>
    %1156 = vector.multi_reduction <add>, %1155, %cst_329 [1] : vector<8x16xf32> to vector<8xf32>
    %1157 = vector.shape_cast %1156 : vector<8xf32> to vector<8x1xf32>
    %1158 = tpu.reciprocal %1157 {approx = true} : vector<8x1xf32> -> vector<8x1xf32>
    %1159 = vector.broadcast %1158 : vector<8x1xf32> to vector<8x16xf32>
    %1160 = arith.mulf %1155, %1159 : vector<8x16xf32>
    %1161 = arith.truncf %1160 : vector<8x16xf32> to vector<8x16xbf16>
    %1162 = vector.extract_strided_slice %1099 {offsets = [0, 24], sizes = [16, 8], strides = [1, 1]} : vector<16x32xbf16> to vector<16x8xbf16>
    %cst_330 = arith.constant dense<0.000000e+00> : vector<8x8xf32>
    %1163 = tpu.matmul %1161, %1162, %cst_330 {dimension_numbers = #tpu.dot_dimension_numbers<[1], [0], [0], [1], [0, 0, 1, 1], [], []>} : vector<8x16xbf16>, vector<16x8xbf16>, vector<8x8xf32> -> vector<8x8xf32>
    %1164 = tpu.concatenate %1115, %1131, %1147, %1163 in 1 : vector<8x8xf32>, vector<8x8xf32>, vector<8x8xf32>, vector<8x8xf32> -> vector<8x32xf32>
    %1165 = vector.extract_strided_slice %1096 {offsets = [8, 0], sizes = [8, 32], strides = [1, 1]} : vector<16x32xbf16> to vector<8x32xbf16>
    %1166 = vector.extract_strided_slice %501 {offsets = [16, 0], sizes = [16, 32], strides = [1, 1]} : vector<32x32xbf16> to vector<16x32xbf16>
    %1167 = vector.extract_strided_slice %503 {offsets = [16, 0], sizes = [16, 32], strides = [1, 1]} : vector<32x32xbf16> to vector<16x32xbf16>
    %1168 = vector.extract_strided_slice %1165 {offsets = [0, 0], sizes = [8, 8], strides = [1, 1]} : vector<8x32xbf16> to vector<8x8xbf16>
    %1169 = vector.extract_strided_slice %1166 {offsets = [0, 0], sizes = [16, 8], strides = [1, 1]} : vector<16x32xbf16> to vector<16x8xbf16>
    %cst_331 = arith.constant dense<0.000000e+00> : vector<8x16xf32>
    %1170 = tpu.matmul %1168, %1169, %cst_331 {dimension_numbers = #tpu.dot_dimension_numbers<[1], [1], [0], [0], [0, 0, 1, 0], [], []>} : vector<8x8xbf16>, vector<16x8xbf16>, vector<8x16xf32> -> vector<8x16xf32>
    %cst_332 = arith.constant dense<0xFF800000> : vector<8xf32>
    %1171 = vector.multi_reduction <maximumf>, %1170, %cst_332 [1] : vector<8x16xf32> to vector<8xf32>
    %1172 = vector.shape_cast %1171 : vector<8xf32> to vector<8x1xf32>
    %1173 = vector.broadcast %1172 : vector<8x1xf32> to vector<8x16xf32>
    %1174 = arith.subf %1170, %1173 : vector<8x16xf32>
    %1175 = math.exp %1174 : vector<8x16xf32>
    %cst_333 = arith.constant dense<0.000000e+00> : vector<8xf32>
    %1176 = vector.multi_reduction <add>, %1175, %cst_333 [1] : vector<8x16xf32> to vector<8xf32>
    %1177 = vector.shape_cast %1176 : vector<8xf32> to vector<8x1xf32>
    %1178 = tpu.reciprocal %1177 {approx = true} : vector<8x1xf32> -> vector<8x1xf32>
    %1179 = vector.broadcast %1178 : vector<8x1xf32> to vector<8x16xf32>
    %1180 = arith.mulf %1175, %1179 : vector<8x16xf32>
    %1181 = arith.truncf %1180 : vector<8x16xf32> to vector<8x16xbf16>
    %1182 = vector.extract_strided_slice %1167 {offsets = [0, 0], sizes = [16, 8], strides = [1, 1]} : vector<16x32xbf16> to vector<16x8xbf16>
    %cst_334 = arith.constant dense<0.000000e+00> : vector<8x8xf32>
    %1183 = tpu.matmul %1181, %1182, %cst_334 {dimension_numbers = #tpu.dot_dimension_numbers<[1], [0], [0], [1], [0, 0, 1, 1], [], []>} : vector<8x16xbf16>, vector<16x8xbf16>, vector<8x8xf32> -> vector<8x8xf32>
    %1184 = vector.extract_strided_slice %1165 {offsets = [0, 8], sizes = [8, 8], strides = [1, 1]} : vector<8x32xbf16> to vector<8x8xbf16>
    %1185 = vector.extract_strided_slice %1166 {offsets = [0, 8], sizes = [16, 8], strides = [1, 1]} : vector<16x32xbf16> to vector<16x8xbf16>
    %cst_335 = arith.constant dense<0.000000e+00> : vector<8x16xf32>
    %1186 = tpu.matmul %1184, %1185, %cst_335 {dimension_numbers = #tpu.dot_dimension_numbers<[1], [1], [0], [0], [0, 0, 1, 0], [], []>} : vector<8x8xbf16>, vector<16x8xbf16>, vector<8x16xf32> -> vector<8x16xf32>
    %cst_336 = arith.constant dense<0xFF800000> : vector<8xf32>
    %1187 = vector.multi_reduction <maximumf>, %1186, %cst_336 [1] : vector<8x16xf32> to vector<8xf32>
    %1188 = vector.shape_cast %1187 : vector<8xf32> to vector<8x1xf32>
    %1189 = vector.broadcast %1188 : vector<8x1xf32> to vector<8x16xf32>
    %1190 = arith.subf %1186, %1189 : vector<8x16xf32>
    %1191 = math.exp %1190 : vector<8x16xf32>
    %cst_337 = arith.constant dense<0.000000e+00> : vector<8xf32>
    %1192 = vector.multi_reduction <add>, %1191, %cst_337 [1] : vector<8x16xf32> to vector<8xf32>
    %1193 = vector.shape_cast %1192 : vector<8xf32> to vector<8x1xf32>
    %1194 = tpu.reciprocal %1193 {approx = true} : vector<8x1xf32> -> vector<8x1xf32>
    %1195 = vector.broadcast %1194 : vector<8x1xf32> to vector<8x16xf32>
    %1196 = arith.mulf %1191, %1195 : vector<8x16xf32>
    %1197 = arith.truncf %1196 : vector<8x16xf32> to vector<8x16xbf16>
    %1198 = vector.extract_strided_slice %1167 {offsets = [0, 8], sizes = [16, 8], strides = [1, 1]} : vector<16x32xbf16> to vector<16x8xbf16>
    %cst_338 = arith.constant dense<0.000000e+00> : vector<8x8xf32>
    %1199 = tpu.matmul %1197, %1198, %cst_338 {dimension_numbers = #tpu.dot_dimension_numbers<[1], [0], [0], [1], [0, 0, 1, 1], [], []>} : vector<8x16xbf16>, vector<16x8xbf16>, vector<8x8xf32> -> vector<8x8xf32>
    %1200 = vector.extract_strided_slice %1165 {offsets = [0, 16], sizes = [8, 8], strides = [1, 1]} : vector<8x32xbf16> to vector<8x8xbf16>
    %1201 = vector.extract_strided_slice %1166 {offsets = [0, 16], sizes = [16, 8], strides = [1, 1]} : vector<16x32xbf16> to vector<16x8xbf16>
    %cst_339 = arith.constant dense<0.000000e+00> : vector<8x16xf32>
    %1202 = tpu.matmul %1200, %1201, %cst_339 {dimension_numbers = #tpu.dot_dimension_numbers<[1], [1], [0], [0], [0, 0, 1, 0], [], []>} : vector<8x8xbf16>, vector<16x8xbf16>, vector<8x16xf32> -> vector<8x16xf32>
    %cst_340 = arith.constant dense<0xFF800000> : vector<8xf32>
    %1203 = vector.multi_reduction <maximumf>, %1202, %cst_340 [1] : vector<8x16xf32> to vector<8xf32>
    %1204 = vector.shape_cast %1203 : vector<8xf32> to vector<8x1xf32>
    %1205 = vector.broadcast %1204 : vector<8x1xf32> to vector<8x16xf32>
    %1206 = arith.subf %1202, %1205 : vector<8x16xf32>
    %1207 = math.exp %1206 : vector<8x16xf32>
    %cst_341 = arith.constant dense<0.000000e+00> : vector<8xf32>
    %1208 = vector.multi_reduction <add>, %1207, %cst_341 [1] : vector<8x16xf32> to vector<8xf32>
    %1209 = vector.shape_cast %1208 : vector<8xf32> to vector<8x1xf32>
    %1210 = tpu.reciprocal %1209 {approx = true} : vector<8x1xf32> -> vector<8x1xf32>
    %1211 = vector.broadcast %1210 : vector<8x1xf32> to vector<8x16xf32>
    %1212 = arith.mulf %1207, %1211 : vector<8x16xf32>
    %1213 = arith.truncf %1212 : vector<8x16xf32> to vector<8x16xbf16>
    %1214 = vector.extract_strided_slice %1167 {offsets = [0, 16], sizes = [16, 8], strides = [1, 1]} : vector<16x32xbf16> to vector<16x8xbf16>
    %cst_342 = arith.constant dense<0.000000e+00> : vector<8x8xf32>
    %1215 = tpu.matmul %1213, %1214, %cst_342 {dimension_numbers = #tpu.dot_dimension_numbers<[1], [0], [0], [1], [0, 0, 1, 1], [], []>} : vector<8x16xbf16>, vector<16x8xbf16>, vector<8x8xf32> -> vector<8x8xf32>
    %1216 = vector.extract_strided_slice %1165 {offsets = [0, 24], sizes = [8, 8], strides = [1, 1]} : vector<8x32xbf16> to vector<8x8xbf16>
    %1217 = vector.extract_strided_slice %1166 {offsets = [0, 24], sizes = [16, 8], strides = [1, 1]} : vector<16x32xbf16> to vector<16x8xbf16>
    %cst_343 = arith.constant dense<0.000000e+00> : vector<8x16xf32>
    %1218 = tpu.matmul %1216, %1217, %cst_343 {dimension_numbers = #tpu.dot_dimension_numbers<[1], [1], [0], [0], [0, 0, 1, 0], [], []>} : vector<8x8xbf16>, vector<16x8xbf16>, vector<8x16xf32> -> vector<8x16xf32>
    %cst_344 = arith.constant dense<0xFF800000> : vector<8xf32>
    %1219 = vector.multi_reduction <maximumf>, %1218, %cst_344 [1] : vector<8x16xf32> to vector<8xf32>
    %1220 = vector.shape_cast %1219 : vector<8xf32> to vector<8x1xf32>
    %1221 = vector.broadcast %1220 : vector<8x1xf32> to vector<8x16xf32>
    %1222 = arith.subf %1218, %1221 : vector<8x16xf32>
    %1223 = math.exp %1222 : vector<8x16xf32>
    %cst_345 = arith.constant dense<0.000000e+00> : vector<8xf32>
    %1224 = vector.multi_reduction <add>, %1223, %cst_345 [1] : vector<8x16xf32> to vector<8xf32>
    %1225 = vector.shape_cast %1224 : vector<8xf32> to vector<8x1xf32>
    %1226 = tpu.reciprocal %1225 {approx = true} : vector<8x1xf32> -> vector<8x1xf32>
    %1227 = vector.broadcast %1226 : vector<8x1xf32> to vector<8x16xf32>
    %1228 = arith.mulf %1223, %1227 : vector<8x16xf32>
    %1229 = arith.truncf %1228 : vector<8x16xf32> to vector<8x16xbf16>
    %1230 = vector.extract_strided_slice %1167 {offsets = [0, 24], sizes = [16, 8], strides = [1, 1]} : vector<16x32xbf16> to vector<16x8xbf16>
    %cst_346 = arith.constant dense<0.000000e+00> : vector<8x8xf32>
    %1231 = tpu.matmul %1229, %1230, %cst_346 {dimension_numbers = #tpu.dot_dimension_numbers<[1], [0], [0], [1], [0, 0, 1, 1], [], []>} : vector<8x16xbf16>, vector<16x8xbf16>, vector<8x8xf32> -> vector<8x8xf32>
    %1232 = tpu.concatenate %1183, %1199, %1215, %1231 in 1 : vector<8x8xf32>, vector<8x8xf32>, vector<8x8xf32>, vector<8x8xf32> -> vector<8x32xf32>
    %1233 = tpu.concatenate %1164, %1232 in 0 : vector<8x32xf32>, vector<8x32xf32> -> vector<16x32xf32>
    %c256_347 = arith.constant 256 : index
    %c0_348 = arith.constant 0 : index
    %1234 = vector.load %arg1[%c256_347, %c0_348] : memref<416x96xbf16, #tpu.memory_space<vmem>>, vector<32x32xbf16>
    %1235 = arith.truncf %1233 : vector<16x32xf32> to vector<16x32xbf16>
    %cst_349 = arith.constant dense<0.000000e+00> : vector<16x32xf32>
    %1236 = tpu.matmul %1235, %1234, %cst_349 {dimension_numbers = #tpu.dot_dimension_numbers<[1], [0], [0], [1], [0, 0, 1, 1], [], []>} : vector<16x32xbf16>, vector<32x32xbf16>, vector<16x32xf32> -> vector<16x32xf32>
    %c46_350 = arith.constant 46 : index
    %c0_351 = arith.constant 0 : index
    %1237 = vector.load %arg2[%c46_350, %c0_351] : memref<57x96xf32, #tpu.memory_space<vmem>>, vector<1x32xf32>
    %1238 = vector.broadcast %1237 : vector<1x32xf32> to vector<16x32xf32>
    %1239 = arith.addf %1236, %1238 : vector<16x32xf32>
    %1240 = arith.addf %1085, %1239 : vector<16x32xf32>
    %c51_352 = arith.constant 51 : index
    %c0_353 = arith.constant 0 : index
    %1241 = vector.load %arg2[%c51_352, %c0_353] : memref<57x96xf32, #tpu.memory_space<vmem>>, vector<1x32xf32>
    %c52_354 = arith.constant 52 : index
    %c0_355 = arith.constant 0 : index
    %1242 = vector.load %arg2[%c52_354, %c0_355] : memref<57x96xf32, #tpu.memory_space<vmem>>, vector<1x32xf32>
    %cst_356 = arith.constant dense<0.000000e+00> : vector<16xf32>
    %1243 = vector.multi_reduction <add>, %1240, %cst_356 [1] : vector<16x32xf32> to vector<16xf32>
    %1244 = vector.shape_cast %1243 : vector<16xf32> to vector<16x1xf32>
    %cst_357 = arith.constant 3.200000e+01 : f32
    %1245 = vector.broadcast %cst_357 : f32 to vector<16x1xf32>
    %1246 = arith.divf %1244, %1245 : vector<16x1xf32>
    %1247 = vector.broadcast %1246 : vector<16x1xf32> to vector<16x32xf32>
    %1248 = arith.subf %1240, %1247 : vector<16x32xf32>
    %1249 = arith.mulf %1248, %1248 : vector<16x32xf32>
    %cst_358 = arith.constant dense<0.000000e+00> : vector<16xf32>
    %1250 = vector.multi_reduction <add>, %1249, %cst_358 [1] : vector<16x32xf32> to vector<16xf32>
    %1251 = vector.shape_cast %1250 : vector<16xf32> to vector<16x1xf32>
    %cst_359 = arith.constant 3.200000e+01 : f32
    %1252 = vector.broadcast %cst_359 : f32 to vector<16x1xf32>
    %1253 = arith.divf %1251, %1252 : vector<16x1xf32>
    %1254 = vector.broadcast %1246 : vector<16x1xf32> to vector<16x32xf32>
    %1255 = arith.subf %1240, %1254 : vector<16x32xf32>
    %cst_360 = arith.constant 9.99999974E-6 : f32
    %1256 = vector.broadcast %cst_360 : f32 to vector<16x1xf32>
    %1257 = arith.addf %1253, %1256 : vector<16x1xf32>
    %1258 = math.rsqrt %1257 : vector<16x1xf32>
    %1259 = vector.broadcast %1258 : vector<16x1xf32> to vector<16x32xf32>
    %1260 = arith.mulf %1255, %1259 : vector<16x32xf32>
    %1261 = vector.broadcast %1241 : vector<1x32xf32> to vector<16x32xf32>
    %1262 = arith.mulf %1260, %1261 : vector<16x32xf32>
    %1263 = vector.broadcast %1242 : vector<1x32xf32> to vector<16x32xf32>
    %1264 = arith.addf %1262, %1263 : vector<16x32xf32>
    %c288_361 = arith.constant 288 : index
    %c0_362 = arith.constant 0 : index
    %1265 = vector.load %arg1[%c288_361, %c0_362] : memref<416x96xbf16, #tpu.memory_space<vmem>>, vector<32x64xbf16>
    %1266 = arith.truncf %1264 : vector<16x32xf32> to vector<16x32xbf16>
    %cst_363 = arith.constant dense<0.000000e+00> : vector<16x64xf32>
    %1267 = tpu.matmul %1266, %1265, %cst_363 {dimension_numbers = #tpu.dot_dimension_numbers<[1], [0], [0], [1], [0, 0, 1, 1], [], []>} : vector<16x32xbf16>, vector<32x64xbf16>, vector<16x64xf32> -> vector<16x64xf32>
    %c47_364 = arith.constant 47 : index
    %c0_365 = arith.constant 0 : index
    %1268 = vector.load %arg2[%c47_364, %c0_365] : memref<57x96xf32, #tpu.memory_space<vmem>>, vector<1x64xf32>
    %1269 = vector.broadcast %1268 : vector<1x64xf32> to vector<16x64xf32>
    %1270 = arith.addf %1267, %1269 : vector<16x64xf32>
    %cst_366 = arith.constant 0.000000e+00 : f32
    %1271 = vector.broadcast %cst_366 : f32 to vector<16x64xf32>
    %1272 = arith.maximumf %1270, %1271 : vector<16x64xf32>
    %c320_367 = arith.constant 320 : index
    %c0_368 = arith.constant 0 : index
    %1273 = vector.load %arg1[%c320_367, %c0_368] : memref<416x96xbf16, #tpu.memory_space<vmem>>, vector<64x32xbf16>
    %1274 = arith.truncf %1272 : vector<16x64xf32> to vector<16x64xbf16>
    %cst_369 = arith.constant dense<0.000000e+00> : vector<16x32xf32>
    %1275 = tpu.matmul %1274, %1273, %cst_369 {dimension_numbers = #tpu.dot_dimension_numbers<[1], [0], [0], [1], [0, 0, 1, 1], [], []>} : vector<16x64xbf16>, vector<64x32xbf16>, vector<16x32xf32> -> vector<16x32xf32>
    %c48_370 = arith.constant 48 : index
    %c0_371 = arith.constant 0 : index
    %1276 = vector.load %arg2[%c48_370, %c0_371] : memref<57x96xf32, #tpu.memory_space<vmem>>, vector<1x32xf32>
    %1277 = vector.broadcast %1276 : vector<1x32xf32> to vector<16x32xf32>
    %1278 = arith.addf %1275, %1277 : vector<16x32xf32>
    %1279 = arith.addf %1264, %1278 : vector<16x32xf32>
    %c53_372 = arith.constant 53 : index
    %c0_373 = arith.constant 0 : index
    %1280 = vector.load %arg2[%c53_372, %c0_373] : memref<57x96xf32, #tpu.memory_space<vmem>>, vector<1x32xf32>
    %c54_374 = arith.constant 54 : index
    %c0_375 = arith.constant 0 : index
    %1281 = vector.load %arg2[%c54_374, %c0_375] : memref<57x96xf32, #tpu.memory_space<vmem>>, vector<1x32xf32>
    %cst_376 = arith.constant dense<0.000000e+00> : vector<16xf32>
    %1282 = vector.multi_reduction <add>, %1279, %cst_376 [1] : vector<16x32xf32> to vector<16xf32>
    %1283 = vector.shape_cast %1282 : vector<16xf32> to vector<16x1xf32>
    %cst_377 = arith.constant 3.200000e+01 : f32
    %1284 = vector.broadcast %cst_377 : f32 to vector<16x1xf32>
    %1285 = arith.divf %1283, %1284 : vector<16x1xf32>
    %1286 = vector.broadcast %1285 : vector<16x1xf32> to vector<16x32xf32>
    %1287 = arith.subf %1279, %1286 : vector<16x32xf32>
    %1288 = arith.mulf %1287, %1287 : vector<16x32xf32>
    %cst_378 = arith.constant dense<0.000000e+00> : vector<16xf32>
    %1289 = vector.multi_reduction <add>, %1288, %cst_378 [1] : vector<16x32xf32> to vector<16xf32>
    %1290 = vector.shape_cast %1289 : vector<16xf32> to vector<16x1xf32>
    %cst_379 = arith.constant 3.200000e+01 : f32
    %1291 = vector.broadcast %cst_379 : f32 to vector<16x1xf32>
    %1292 = arith.divf %1290, %1291 : vector<16x1xf32>
    %1293 = vector.broadcast %1285 : vector<16x1xf32> to vector<16x32xf32>
    %1294 = arith.subf %1279, %1293 : vector<16x32xf32>
    %cst_380 = arith.constant 9.99999974E-6 : f32
    %1295 = vector.broadcast %cst_380 : f32 to vector<16x1xf32>
    %1296 = arith.addf %1292, %1295 : vector<16x1xf32>
    %1297 = math.rsqrt %1296 : vector<16x1xf32>
    %1298 = vector.broadcast %1297 : vector<16x1xf32> to vector<16x32xf32>
    %1299 = arith.mulf %1294, %1298 : vector<16x32xf32>
    %1300 = vector.broadcast %1280 : vector<1x32xf32> to vector<16x32xf32>
    %1301 = arith.mulf %1299, %1300 : vector<16x32xf32>
    %1302 = vector.broadcast %1281 : vector<1x32xf32> to vector<16x32xf32>
    %1303 = arith.addf %1301, %1302 : vector<16x32xf32>
    %c55 = arith.constant 55 : index
    %c0_381 = arith.constant 0 : index
    %1304 = vector.load %arg2[%c55, %c0_381] : memref<57x96xf32, #tpu.memory_space<vmem>>, vector<1x32xf32>
    %c56 = arith.constant 56 : index
    %c0_382 = arith.constant 0 : index
    %1305 = vector.load %arg2[%c56, %c0_382] : memref<57x96xf32, #tpu.memory_space<vmem>>, vector<1x32xf32>
    %cst_383 = arith.constant dense<0.000000e+00> : vector<16xf32>
    %1306 = vector.multi_reduction <add>, %1303, %cst_383 [1] : vector<16x32xf32> to vector<16xf32>
    %1307 = vector.shape_cast %1306 : vector<16xf32> to vector<16x1xf32>
    %cst_384 = arith.constant 3.200000e+01 : f32
    %1308 = vector.broadcast %cst_384 : f32 to vector<16x1xf32>
    %1309 = arith.divf %1307, %1308 : vector<16x1xf32>
    %1310 = vector.broadcast %1309 : vector<16x1xf32> to vector<16x32xf32>
    %1311 = arith.subf %1303, %1310 : vector<16x32xf32>
    %1312 = arith.mulf %1311, %1311 : vector<16x32xf32>
    %cst_385 = arith.constant dense<0.000000e+00> : vector<16xf32>
    %1313 = vector.multi_reduction <add>, %1312, %cst_385 [1] : vector<16x32xf32> to vector<16xf32>
    %1314 = vector.shape_cast %1313 : vector<16xf32> to vector<16x1xf32>
    %cst_386 = arith.constant 3.200000e+01 : f32
    %1315 = vector.broadcast %cst_386 : f32 to vector<16x1xf32>
    %1316 = arith.divf %1314, %1315 : vector<16x1xf32>
    %1317 = vector.broadcast %1309 : vector<16x1xf32> to vector<16x32xf32>
    %1318 = arith.subf %1303, %1317 : vector<16x32xf32>
    %cst_387 = arith.constant 9.99999974E-6 : f32
    %1319 = vector.broadcast %cst_387 : f32 to vector<16x1xf32>
    %1320 = arith.addf %1316, %1319 : vector<16x1xf32>
    %1321 = math.rsqrt %1320 : vector<16x1xf32>
    %1322 = vector.broadcast %1321 : vector<16x1xf32> to vector<16x32xf32>
    %1323 = arith.mulf %1318, %1322 : vector<16x32xf32>
    %1324 = vector.broadcast %1304 : vector<1x32xf32> to vector<16x32xf32>
    %1325 = arith.mulf %1323, %1324 : vector<16x32xf32>
    %1326 = vector.broadcast %1305 : vector<1x32xf32> to vector<16x32xf32>
    %1327 = arith.addf %1325, %1326 : vector<16x32xf32>
    %c384 = arith.constant 384 : index
    %c0_388 = arith.constant 0 : index
    %1328 = vector.load %arg1[%c384, %c0_388] : memref<416x96xbf16, #tpu.memory_space<vmem>>, vector<32x4xbf16>
    %1329 = arith.truncf %1327 : vector<16x32xf32> to vector<16x32xbf16>
    %cst_389 = arith.constant dense<0.000000e+00> : vector<16x4xf32>
    %1330 = tpu.matmul %1329, %1328, %cst_389 {dimension_numbers = #tpu.dot_dimension_numbers<[1], [0], [0], [1], [0, 0, 1, 1], [], []>} : vector<16x32xbf16>, vector<32x4xbf16>, vector<16x4xf32> -> vector<16x4xf32>
    %c32_390 = arith.constant 32 : index
    %c0_391 = arith.constant 0 : index
    %1331 = vector.load %arg2[%c32_390, %c0_391] : memref<57x96xf32, #tpu.memory_space<vmem>>, vector<1x4xf32>
    %1332 = vector.broadcast %1331 : vector<1x4xf32> to vector<16x4xf32>
    %1333 = arith.addf %1330, %1332 : vector<16x4xf32>
    %c0_392 = arith.constant 0 : index
    %c0_393 = arith.constant 0 : index
    %1334 = vector.load %arg3[%c0_392, %c0_393] : memref<16x4xf32, #tpu.memory_space<vmem>>, vector<16x4xf32>
    tpu.vector_store %arg3[%c0_392, %c0_393], %1333 {strides = array<i32>} : memref<16x4xf32, #tpu.memory_space<vmem>>, vector<16x4xf32>,
    return
  }
}

</mosaic_0001>

<llo_original>
// kernel: transformer_forward.1
$region0: #{transformer_forward.1}
  #allocation0 [shape = 'u32[]', space=smem, size = 0x4, offset = 0x4, fixed_abs, tag = 'smem constant byte address 0x4 - core index']
  #allocation1 [shape = 'u32[144,128]{1,0:T(1,128)}', space=vmem, size = 0x12000, scoped, tag = 'internal scratch']
  %s0 = inlined_call_operand.vmem [shape: f32[32,2], index: 0, kind: input, shape index: {}]
  %s1 = inlined_call_operand.vmem [shape: bf16[416,96], index: 1, kind: input, shape index: {}]
  %s2 = inlined_call_operand.vmem [shape: f32[57,96], index: 2, kind: input, shape index: {}]
  %s3 = inlined_call_operand.vmem [shape: f32[16,4], index: 3, kind: output, shape index: {}]
  %s4 = sld [smem:[#allocation0]]
  $region22: #{transformer_forward.1} parent=0
    _
  %s6 = ssub.s32 1, %s4
  %s7 = scalar_select 0, %s6, %s4
  // Predicated region
  $region2: #{transformer_forward.1} parent=0 // pred_check
    _
  $region3: #{transformer_forward.1} parent=0 // pred_check_branch
    %9 = sbr.rel (0) target = $region5
  $region4: #{transformer_forward.1} parent=0 // pred_region
    _
  $region5: #{transformer_forward.1} parent=0 // pred_fallthru
    _
  // Predicated region
  $region6: #{transformer_forward.1} parent=0 // pred_check
    _
  $region7: #{transformer_forward.1} parent=0 // pred_check_branch
    %11 = sbr.rel (0) target = $region9
  $region8: #{transformer_forward.1} parent=0 // pred_region
    _
  $region9: #{transformer_forward.1} parent=0 // pred_fallthru
    _
  // Predicated region
  $region10: #{transformer_forward.1} parent=0 // pred_check
    _
  $region11: #{transformer_forward.1} parent=0 // pred_check_branch
    %13 = sbr.rel (0) target = $region13
  $region12: #{transformer_forward.1} parent=0 // pred_region
    _
  $region13: #{transformer_forward.1} parent=0 // pred_fallthru
    _
  %v15 = vld [vmem:[%s0] sm:$0xff]
  %v16 = vld [vmem:[%s0 + $0x8] sm:$0xff]
  %v17 = vld [vmem:[%s0 + $0x10] sm:$0xff]
  %v18 = vld [vmem:[%s0 + $0x18] sm:$0xff]
  %v19 = vld [vmem:[%s2 + $0x18] sm:$0x3]
  %v20 = vld [vmem:[%s2 + $0x1e] sm:$0x1]
  %v21 = vlaneseq
  %v22 = vshrl.u32 %v21, 7
  %v23 = vsub.s32 0, %v22
  %v24 = vrot.slane %v20, %v23
  %26 = vset.pattern.permute.xlu0 0
  %27 = vperm.xlu0 %26, %v15
  %v28 = vpop.permute.xlu0 %27
  %31 = vset.pattern.permute.xlu0 0
  %32 = vperm.xlu0 %31, %v16
  %v33 = vpop.permute.xlu0 %32
  %36 = vset.pattern.permute.xlu0 0
  %37 = vperm.xlu0 %36, %v17
  %v38 = vpop.permute.xlu0 %37
  %41 = vset.pattern.permute.xlu0 0
  %42 = vperm.xlu0 %41, %v18
  %v43 = vpop.permute.xlu0 %42
  %v45 = vlaneseq
  %v46 = vshrl.u32 %v45, 7
  %v47 = vsub.s32 0, %v46
  %v48 = vrot.slane %v19, %v47
  %v49 = vmul.f32 %v28, %v48
  %v50 = vmul.f32 %v33, %v48
  %v51 = vmul.f32 %v38, %v48
  %v52 = vmul.f32 %v43, %v48
  %v53 = vadd.f32 %v24, %v49
  %v54 = vadd.f32 %v24, %v50
  %v55 = vadd.f32 %v24, %v51
  %v56 = vadd.f32 %v24, %v52
  %57 = vset.pattern.permute.xlu0 1
  %58 = vperm.xlu0 %57, %v15
  %v59 = vpop.permute.xlu0 %58
  %61 = vset.pattern.permute.xlu0 1
  %62 = vperm.xlu0 %61, %v16
  %v63 = vpop.permute.xlu0 %62
  %65 = vset.pattern.permute.xlu0 1
  %66 = vperm.xlu0 %65, %v17
  %v67 = vpop.permute.xlu0 %66
  %69 = vset.pattern.permute.xlu0 1
  %70 = vperm.xlu0 %69, %v18
  %v71 = vpop.permute.xlu0 %70
  %v73 = vlaneseq
  %v74 = vshrl.u32 %v73, 7
  %v75 = vsub.s32 1, %v74
  %v76 = vrot.slane %v19, %v75
  %v77 = vmul.f32 %v59, %v76
  %v78 = vmul.f32 %v63, %v76
  %v79 = vmul.f32 %v67, %v76
  %v80 = vmul.f32 %v71, %v76
  %v81 = vadd.f32 %v53, %v77
  %v82 = vadd.f32 %v54, %v78
  %v83 = vadd.f32 %v55, %v79
  %v84 = vadd.f32 %v56, %v80
  %v85 = vld [vmem:[%s2] sm:$0xff]
  %v86 = vld [vmem:[%s2 + $0x8] sm:$0xff]
  %v87 = vadd.f32 %v81, %v85
  %v88 = vadd.f32 %v82, %v86
  %v89 = vadd.f32 %v83, %v85
  %v90 = vadd.f32 %v84, %v86
  %v91 = vld [vmem:[%s1] sm:$0xf]
  %v92 = vld [vmem:[%s1 + $0x4] sm:$0xf]
  %v93 = vld [vmem:[%s1 + $0x8] sm:$0xf]
  %v94 = vld [vmem:[%s1 + $0xc] sm:$0xf]
  %v95 = vpack.c.bf16 %v88, %v87
  %v96 = vpack.c.bf16 %v90, %v89
  %v97 = vld [vmem:[%s2 + $0x21] sm:$0x1]
  %v98 = vlaneseq
  %v99 = vshrl.u32 %v98, 7
  %v100 = vsub.s32 0, %v99
  %v101 = vrot.slane %v97, %v100
  %v106 = vunpack.c.l.b16 %v91
  %v107 = vunpack.c.l.b16 %v92
  %v108 = vunpack.c.l.b16 %v93
  %v109 = vunpack.c.l.b16 %v94
  %v110 = vpack.c.b16 %v107, %v106
  %v111 = vpack.c.b16 %v109, %v108
  %vm114 = vcmask 261120
  %v116 = vsel %vm114, %v95, 0
  %v119 = vsel %vm114, %v96, 0
  %121 = vmatprep.subr.bf16.mxu0 0
  %122 = vmatpush1.bf16.msra.mxu0 %v110
  %123 = vmatprep.subr.bf16.mxu0 0
  %124 = vmatpush1.bf16.msra.mxu0 %v111
  %125 = vmatprep.subr.bf16.mxu0 0
  %126 = vmatpush1.bf16.msra.mxu0 0
  %127 = vmatprep.subr.bf16.mxu0 0
  %128 = vmatpush1.bf16.msra.mxu0 0
  %129 = vmatprep.subr.bf16.mxu0 0
  %130 = vmatpush1.bf16.msra.mxu0 0
  %131 = vmatprep.subr.bf16.mxu0 0
  %132 = vmatpush1.bf16.msra.mxu0 0
  %133 = vmatprep.subr.bf16.mxu0 0
  %134 = vmatpush1.bf16.msra.mxu0 0
  %135 = vmatprep.subr.bf16.mxu0 0
  %136 = vmatpush1.bf16.msra.mxu0 0
  %137 = vmatprep.subr.bf16.mxu0 0
  %138 = vmatpush1.bf16.msra.mxu0 0
  %139 = vmatprep.subr.bf16.mxu0 0
  %140 = vmatpush1.bf16.msra.mxu0 0
  %141 = vmatprep.subr.bf16.mxu0 0
  %142 = vmatpush1.bf16.msra.mxu0 0
  %143 = vmatprep.subr.bf16.mxu0 0
  %144 = vmatpush1.bf16.msra.mxu0 0
  %145 = vmatprep.subr.bf16.mxu0 0
  %146 = vmatpush1.bf16.msra.mxu0 0
  %147 = vmatprep.subr.bf16.mxu0 0
  %148 = vmatpush1.bf16.msra.mxu0 0
  %149 = vmatprep.subr.bf16.mxu0 0
  %150 = vmatpush1.bf16.msra.mxu0 0
  %151 = vmatprep.subr.bf16.mxu0 0
  %152 = vmatpush1.bf16.msra.mxu0 0
  %153 = vmatprep.mubr.bf16.mxu0 0
  %154 = vmatmul.mubr.bf16.gmra.mrb[0].mxu0 %v116
  %v155 = vpop.f32.mrb[0].mxu0
  %v156 = vadd.f32 %v101, %v155
  %v157 = vpop.f32.mrb[0].mxu0
  %v158 = vpop.f32.mrb[0].mxu0
  %v159 = vadd.f32 %v101, %v158
  %v160 = vpop.f32.mrb[0].mxu0
  %161 = vmatprep.mubr.bf16.mxu0 0
  %162 = vmatmul.mubr.bf16.gmra.mrb[0].mxu0 %v119
  %v163 = vpop.f32.mrb[0].mxu0
  %v164 = vadd.f32 %v101, %v163
  %v165 = vpop.f32.mrb[0].mxu0
  %v166 = vpop.f32.mrb[0].mxu0
  %v167 = vadd.f32 %v101, %v166
  %v168 = vpop.f32.mrb[0].mxu0
  %169 = vdwg.mxu0
  %v170 = vmul.f32 %v156, 0.35355338
  %v171 = vmul.f32 %v159, 0.35355338
  %v172 = vmul.f32 %v164, 0.35355338
  %v173 = vmul.f32 %v167, 0.35355338
  %v174 = vpack.c.bf16 %v171, %v170
  %v175 = vpack.c.bf16 %v173, %v172
  %v176 = vpack.c.bf16 %v159, %v156
  %v177 = vpack.c.bf16 %v167, %v164
  %179 = vrot.lane.b32.xlu0 %v176, 96
  %v180 = vpop.permute.xlu0 %179
  %vm181 = vcmask 64512
  %v183 = vsel %vm181, %v174, 0
  %v186 = vsel %vm181, %v180, 0
  %188 = vmatprep.subr.bf16.mxu0 0
  %189 = vmatpush1.bf16.xpose.msra.mxu0 %v186
  %190 = vmatprep.subr.bf16.mxu0 0
  %191 = vmatpush1.bf16.xpose.msra.mxu0 0
  %192 = vmatprep.subr.bf16.mxu0 0
  %193 = vmatpush1.bf16.xpose.msra.mxu0 0
  %194 = vmatprep.subr.bf16.mxu0 0
  %195 = vmatpush1.bf16.xpose.msra.mxu0 0
  %196 = vmatprep.subr.bf16.mxu0 0
  %197 = vmatpush1.bf16.xpose.msra.mxu0 0
  %198 = vmatprep.subr.bf16.mxu0 0
  %199 = vmatpush1.bf16.xpose.msra.mxu0 0
  %200 = vmatprep.subr.bf16.mxu0 0
  %201 = vmatpush1.bf16.xpose.msra.mxu0 0
  %202 = vmatprep.subr.bf16.mxu0 0
  %203 = vmatpush1.bf16.xpose.msra.mxu0 0
  %204 = vmatprep.subr.bf16.mxu0 0
  %205 = vmatpush1.bf16.xpose.msra.mxu0 0
  %206 = vmatprep.subr.bf16.mxu0 0
  %207 = vmatpush1.bf16.xpose.msra.mxu0 0
  %208 = vmatprep.subr.bf16.mxu0 0
  %209 = vmatpush1.bf16.xpose.msra.mxu0 0
  %210 = vmatprep.subr.bf16.mxu0 0
  %211 = vmatpush1.bf16.xpose.msra.mxu0 0
  %212 = vmatprep.subr.bf16.mxu0 0
  %213 = vmatpush1.bf16.xpose.msra.mxu0 0
  %214 = vmatprep.subr.bf16.mxu0 0
  %215 = vmatpush1.bf16.xpose.msra.mxu0 0
  %216 = vmatprep.subr.bf16.mxu0 0
  %217 = vmatpush1.bf16.xpose.msra.mxu0 0
  %218 = vmatprep.subr.bf16.mxu0 0
  %219 = vmatpush1.bf16.xpose.msra.mxu0 0
  %220 = vmatprep.mubr.bf16.mxu0 0
  %221 = vmatmul.mubr.bf16.gmra.mrb[0].mxu0 %v183
  %v222 = vpop.f32.mrb[0].mxu0
  %v223 = vadd.f32 0.0, %v222
  %v224 = vpop.f32.mrb[0].mxu0
  %v225 = vpop.f32.mrb[0].mxu0
  %v226 = vadd.f32 0.0, %v225
  %v227 = vpop.f32.mrb[0].mxu0
  %228 = vdwg.mxu0
  %vm229 = vcmask 130048
  %v230 = vsel %vm229, %v223, -inf
  %231 = vmax.xlane.f32.xlu0 %v230
  %v232 = vpop.xlane.xlu0 %231
  %v233 = vsel %vm229, %v226, -inf
  %234 = vmax.xlane.f32.xlu0 %v233
  %v235 = vpop.xlane.xlu0 %234
  %v236 = vsub.f32 %v223, %v232
  %v237 = vsub.f32 %v226, %v235
  %v238 = vmul.f32 %v236, 1.442695
  %v239 = vpow.pop %v238
  %v240 = vmul.f32 %v237, 1.442695
  %v241 = vpow.pop %v240
  %v242 = vsel %vm229, %v239, 0.0
  %243 = vadd.xlane.f32.xlu0 %v242
  %v244 = vpop.xlane.xlu0 %243
  %v245 = vsel %vm229, %v241, 0.0
  %246 = vadd.xlane.f32.xlu0 %v245
  %v247 = vpop.xlane.xlu0 %246
  %v248 = vrcp.pop %v244
  %v249 = vrcp.pop %v247
  %v250 = vmul.f32 %v239, %v248
  %v251 = vmul.f32 %v241, %v249
  %v252 = vpack.c.bf16 %v251, %v250
  %253 = vrot.lane.b32.xlu0 %v176, 64
  %v254 = vpop.permute.xlu0 %253
  %v257 = vsel %vm229, %v252, 0
  %259 = vmatprep.subr.bf16.mxu0 0
  %260 = vmatpush1.bf16.msra.mxu0 %v254
  %261 = vmatprep.subr.bf16.mxu0 0
  %262 = vmatpush1.bf16.msra.mxu0 0
  %263 = vmatprep.subr.bf16.mxu0 0
  %264 = vmatpush1.bf16.msra.mxu0 0
  %265 = vmatprep.subr.bf16.mxu0 0
  %266 = vmatpush1.bf16.msra.mxu0 0
  %267 = vmatprep.subr.bf16.mxu0 0
  %268 = vmatpush1.bf16.msra.mxu0 0
  %269 = vmatprep.subr.bf16.mxu0 0
  %270 = vmatpush1.bf16.msra.mxu0 0
  %271 = vmatprep.subr.bf16.mxu0 0
  %272 = vmatpush1.bf16.msra.mxu0 0
  %273 = vmatprep.subr.bf16.mxu0 0
  %274 = vmatpush1.bf16.msra.mxu0 0
  %275 = vmatprep.subr.bf16.mxu0 0
  %276 = vmatpush1.bf16.msra.mxu0 0
  %277 = vmatprep.subr.bf16.mxu0 0
  %278 = vmatpush1.bf16.msra.mxu0 0
  %279 = vmatprep.subr.bf16.mxu0 0
  %280 = vmatpush1.bf16.msra.mxu0 0
  %281 = vmatprep.subr.bf16.mxu0 0
  %282 = vmatpush1.bf16.msra.mxu0 0
  %283 = vmatprep.subr.bf16.mxu0 0
  %284 = vmatpush1.bf16.msra.mxu0 0
  %285 = vmatprep.subr.bf16.mxu0 0
  %286 = vmatpush1.bf16.msra.mxu0 0
  %287 = vmatprep.subr.bf16.mxu0 0
  %288 = vmatpush1.bf16.msra.mxu0 0
  %289 = vmatprep.subr.bf16.mxu0 0
  %290 = vmatpush1.bf16.msra.mxu0 0
  %291 = vmatprep.mubr.bf16.mxu0 0
  %292 = vmatmul.mubr.bf16.gmra.mrb[0].mxu0 %v257
  %v293 = vpop.f32.mrb[0].mxu0
  %v294 = vadd.f32 0.0, %v293
  %v295 = vpop.f32.mrb[0].mxu0
  %v296 = vpop.f32.mrb[0].mxu0
  %v297 = vadd.f32 0.0, %v296
  %v298 = vpop.f32.mrb[0].mxu0
  %299 = vdwg.mxu0
  %301 = vrot.lane.b32.xlu0 %v174, 120
  %v302 = vpop.permute.xlu0 %301
  %303 = vrot.lane.b32.xlu0 %v176, 88
  %v304 = vpop.permute.xlu0 %303
  %v306 = vsel %vm181, %v302, 0
  %v309 = vsel %vm181, %v304, 0
  %311 = vmatprep.subr.bf16.mxu0 0
  %312 = vmatpush1.bf16.xpose.msra.mxu0 %v309
  %313 = vmatprep.subr.bf16.mxu0 0
  %314 = vmatpush1.bf16.xpose.msra.mxu0 0
  %315 = vmatprep.subr.bf16.mxu0 0
  %316 = vmatpush1.bf16.xpose.msra.mxu0 0
  %317 = vmatprep.subr.bf16.mxu0 0
  %318 = vmatpush1.bf16.xpose.msra.mxu0 0
  %319 = vmatprep.subr.bf16.mxu0 0
  %320 = vmatpush1.bf16.xpose.msra.mxu0 0
  %321 = vmatprep.subr.bf16.mxu0 0
  %322 = vmatpush1.bf16.xpose.msra.mxu0 0
  %323 = vmatprep.subr.bf16.mxu0 0
  %324 = vmatpush1.bf16.xpose.msra.mxu0 0
  %325 = vmatprep.subr.bf16.mxu0 0
  %326 = vmatpush1.bf16.xpose.msra.mxu0 0
  %327 = vmatprep.subr.bf16.mxu0 0
  %328 = vmatpush1.bf16.xpose.msra.mxu0 0
  %329 = vmatprep.subr.bf16.mxu0 0
  %330 = vmatpush1.bf16.xpose.msra.mxu0 0
  %331 = vmatprep.subr.bf16.mxu0 0
  %332 = vmatpush1.bf16.xpose.msra.mxu0 0
  %333 = vmatprep.subr.bf16.mxu0 0
  %334 = vmatpush1.bf16.xpose.msra.mxu0 0
  %335 = vmatprep.subr.bf16.mxu0 0
  %336 = vmatpush1.bf16.xpose.msra.mxu0 0
  %337 = vmatprep.subr.bf16.mxu0 0
  %338 = vmatpush1.bf16.xpose.msra.mxu0 0
  %339 = vmatprep.subr.bf16.mxu0 0
  %340 = vmatpush1.bf16.xpose.msra.mxu0 0
  %341 = vmatprep.subr.bf16.mxu0 0
  %342 = vmatpush1.bf16.xpose.msra.mxu0 0
  %343 = vmatprep.mubr.bf16.mxu0 0
  %344 = vmatmul.mubr.bf16.gmra.mrb[0].mxu0 %v306
  %v345 = vpop.f32.mrb[0].mxu0
  %v346 = vadd.f32 0.0, %v345
  %v347 = vpop.f32.mrb[0].mxu0
  %v348 = vpop.f32.mrb[0].mxu0
  %v349 = vadd.f32 0.0, %v348
  %v350 = vpop.f32.mrb[0].mxu0
  %351 = vdwg.mxu0
  %v352 = vsel %vm229, %v346, -inf
  %353 = vmax.xlane.f32.xlu0 %v352
  %v354 = vpop.xlane.xlu0 %353
  %v355 = vsel %vm229, %v349, -inf
  %356 = vmax.xlane.f32.xlu0 %v355
  %v357 = vpop.xlane.xlu0 %356
  %v358 = vsub.f32 %v346, %v354
  %v359 = vsub.f32 %v349, %v357
  %v360 = vmul.f32 %v358, 1.442695
  %v361 = vpow.pop %v360
  %v362 = vmul.f32 %v359, 1.442695
  %v363 = vpow.pop %v362
  %v364 = vsel %vm229, %v361, 0.0
  %365 = vadd.xlane.f32.xlu0 %v364
  %v366 = vpop.xlane.xlu0 %365
  %v367 = vsel %vm229, %v363, 0.0
  %368 = vadd.xlane.f32.xlu0 %v367
  %v369 = vpop.xlane.xlu0 %368
  %v370 = vrcp.pop %v366
  %v371 = vrcp.pop %v369
  %v372 = vmul.f32 %v361, %v370
  %v373 = vmul.f32 %v363, %v371
  %v374 = vpack.c.bf16 %v373, %v372
  %375 = vrot.lane.b32.xlu0 %v176, 56
  %v376 = vpop.permute.xlu0 %375
  %v379 = vsel %vm229, %v374, 0
  %381 = vmatprep.subr.bf16.mxu0 0
  %382 = vmatpush1.bf16.msra.mxu0 %v376
  %383 = vmatprep.subr.bf16.mxu0 0
  %384 = vmatpush1.bf16.msra.mxu0 0
  %385 = vmatprep.subr.bf16.mxu0 0
  %386 = vmatpush1.bf16.msra.mxu0 0
  %387 = vmatprep.subr.bf16.mxu0 0
  %388 = vmatpush1.bf16.msra.mxu0 0
  %389 = vmatprep.subr.bf16.mxu0 0
  %390 = vmatpush1.bf16.msra.mxu0 0
  %391 = vmatprep.subr.bf16.mxu0 0
  %392 = vmatpush1.bf16.msra.mxu0 0
  %393 = vmatprep.subr.bf16.mxu0 0
  %394 = vmatpush1.bf16.msra.mxu0 0
  %395 = vmatprep.subr.bf16.mxu0 0
  %396 = vmatpush1.bf16.msra.mxu0 0
  %397 = vmatprep.subr.bf16.mxu0 0
  %398 = vmatpush1.bf16.msra.mxu0 0
  %399 = vmatprep.subr.bf16.mxu0 0
  %400 = vmatpush1.bf16.msra.mxu0 0
  %401 = vmatprep.subr.bf16.mxu0 0
  %402 = vmatpush1.bf16.msra.mxu0 0
  %403 = vmatprep.subr.bf16.mxu0 0
  %404 = vmatpush1.bf16.msra.mxu0 0
  %405 = vmatprep.subr.bf16.mxu0 0
  %406 = vmatpush1.bf16.msra.mxu0 0
  %407 = vmatprep.subr.bf16.mxu0 0
  %408 = vmatpush1.bf16.msra.mxu0 0
  %409 = vmatprep.subr.bf16.mxu0 0
  %410 = vmatpush1.bf16.msra.mxu0 0
  %411 = vmatprep.subr.bf16.mxu0 0
  %412 = vmatpush1.bf16.msra.mxu0 0
  %413 = vmatprep.mubr.bf16.mxu0 0
  %414 = vmatmul.mubr.bf16.gmra.mrb[0].mxu0 %v379
  %v415 = vpop.f32.mrb[0].mxu0
  %v416 = vadd.f32 0.0, %v415
  %v417 = vpop.f32.mrb[0].mxu0
  %v418 = vpop.f32.mrb[0].mxu0
  %v419 = vadd.f32 0.0, %v418
  %v420 = vpop.f32.mrb[0].mxu0
  %421 = vdwg.mxu0
  %422 = vrot.lane.b32.xlu0 %v174, 112
  %v423 = vpop.permute.xlu0 %422
  %424 = vrot.lane.b32.xlu0 %v176, 80
  %v425 = vpop.permute.xlu0 %424
  %v427 = vsel %vm181, %v423, 0
  %v430 = vsel %vm181, %v425, 0
  %432 = vmatprep.subr.bf16.mxu0 0
  %433 = vmatpush1.bf16.xpose.msra.mxu0 %v430
  %434 = vmatprep.subr.bf16.mxu0 0
  %435 = vmatpush1.bf16.xpose.msra.mxu0 0
  %436 = vmatprep.subr.bf16.mxu0 0
  %437 = vmatpush1.bf16.xpose.msra.mxu0 0
  %438 = vmatprep.subr.bf16.mxu0 0
  %439 = vmatpush1.bf16.xpose.msra.mxu0 0
  %440 = vmatprep.subr.bf16.mxu0 0
  %441 = vmatpush1.bf16.xpose.msra.mxu0 0
  %442 = vmatprep.subr.bf16.mxu0 0
  %443 = vmatpush1.bf16.xpose.msra.mxu0 0
  %444 = vmatprep.subr.bf16.mxu0 0
  %445 = vmatpush1.bf16.xpose.msra.mxu0 0
  %446 = vmatprep.subr.bf16.mxu0 0
  %447 = vmatpush1.bf16.xpose.msra.mxu0 0
  %448 = vmatprep.subr.bf16.mxu0 0
  %449 = vmatpush1.bf16.xpose.msra.mxu0 0
  %450 = vmatprep.subr.bf16.mxu0 0
  %451 = vmatpush1.bf16.xpose.msra.mxu0 0
  %452 = vmatprep.subr.bf16.mxu0 0
  %453 = vmatpush1.bf16.xpose.msra.mxu0 0
  %454 = vmatprep.subr.bf16.mxu0 0
  %455 = vmatpush1.bf16.xpose.msra.mxu0 0
  %456 = vmatprep.subr.bf16.mxu0 0
  %457 = vmatpush1.bf16.xpose.msra.mxu0 0
  %458 = vmatprep.subr.bf16.mxu0 0
  %459 = vmatpush1.bf16.xpose.msra.mxu0 0
  %460 = vmatprep.subr.bf16.mxu0 0
  %461 = vmatpush1.bf16.xpose.msra.mxu0 0
  %462 = vmatprep.subr.bf16.mxu0 0
  %463 = vmatpush1.bf16.xpose.msra.mxu0 0
  %464 = vmatprep.mubr.bf16.mxu0 0
  %465 = vmatmul.mubr.bf16.gmra.mrb[0].mxu0 %v427
  %v466 = vpop.f32.mrb[0].mxu0
  %v467 = vadd.f32 0.0, %v466
  %v468 = vpop.f32.mrb[0].mxu0
  %v469 = vpop.f32.mrb[0].mxu0
  %v470 = vadd.f32 0.0, %v469
  %v471 = vpop.f32.mrb[0].mxu0
  %472 = vdwg.mxu0
  %v473 = vsel %vm229, %v467, -inf
  %474 = vmax.xlane.f32.xlu0 %v473
  %v475 = vpop.xlane.xlu0 %474
  %v476 = vsel %vm229, %v470, -inf
  %477 = vmax.xlane.f32.xlu0 %v476
  %v478 = vpop.xlane.xlu0 %477
  %v479 = vsub.f32 %v467, %v475
  %v480 = vsub.f32 %v470, %v478
  %v481 = vmul.f32 %v479, 1.442695
  %v482 = vpow.pop %v481
  %v483 = vmul.f32 %v480, 1.442695
  %v484 = vpow.pop %v483
  %v485 = vsel %vm229, %v482, 0.0
  %486 = vadd.xlane.f32.xlu0 %v485
  %v487 = vpop.xlane.xlu0 %486
  %v488 = vsel %vm229, %v484, 0.0
  %489 = vadd.xlane.f32.xlu0 %v488
  %v490 = vpop.xlane.xlu0 %489
  %v491 = vrcp.pop %v487
  %v492 = vrcp.pop %v490
  %v493 = vmul.f32 %v482, %v491
  %v494 = vmul.f32 %v484, %v492
  %v495 = vpack.c.bf16 %v494, %v493
  %496 = vrot.lane.b32.xlu0 %v176, 48
  %v497 = vpop.permute.xlu0 %496
  %v500 = vsel %vm229, %v495, 0
  %502 = vmatprep.subr.bf16.mxu0 0
  %503 = vmatpush1.bf16.msra.mxu0 %v497
  %504 = vmatprep.subr.bf16.mxu0 0
  %505 = vmatpush1.bf16.msra.mxu0 0
  %506 = vmatprep.subr.bf16.mxu0 0
  %507 = vmatpush1.bf16.msra.mxu0 0
  %508 = vmatprep.subr.bf16.mxu0 0
  %509 = vmatpush1.bf16.msra.mxu0 0
  %510 = vmatprep.subr.bf16.mxu0 0
  %511 = vmatpush1.bf16.msra.mxu0 0
  %512 = vmatprep.subr.bf16.mxu0 0
  %513 = vmatpush1.bf16.msra.mxu0 0
  %514 = vmatprep.subr.bf16.mxu0 0
  %515 = vmatpush1.bf16.msra.mxu0 0
  %516 = vmatprep.subr.bf16.mxu0 0
  %517 = vmatpush1.bf16.msra.mxu0 0
  %518 = vmatprep.subr.bf16.mxu0 0
  %519 = vmatpush1.bf16.msra.mxu0 0
  %520 = vmatprep.subr.bf16.mxu0 0
  %521 = vmatpush1.bf16.msra.mxu0 0
  %522 = vmatprep.subr.bf16.mxu0 0
  %523 = vmatpush1.bf16.msra.mxu0 0
  %524 = vmatprep.subr.bf16.mxu0 0
  %525 = vmatpush1.bf16.msra.mxu0 0
  %526 = vmatprep.subr.bf16.mxu0 0
  %527 = vmatpush1.bf16.msra.mxu0 0
  %528 = vmatprep.subr.bf16.mxu0 0
  %529 = vmatpush1.bf16.msra.mxu0 0
  %530 = vmatprep.subr.bf16.mxu0 0
  %531 = vmatpush1.bf16.msra.mxu0 0
  %532 = vmatprep.subr.bf16.mxu0 0
  %533 = vmatpush1.bf16.msra.mxu0 0
  %534 = vmatprep.mubr.bf16.mxu0 0
  %535 = vmatmul.mubr.bf16.gmra.mrb[0].mxu0 %v500
  %v536 = vpop.f32.mrb[0].mxu0
  %v537 = vadd.f32 0.0, %v536
  %v538 = vpop.f32.mrb[0].mxu0
  %v539 = vpop.f32.mrb[0].mxu0
  %v540 = vadd.f32 0.0, %v539
  %v541 = vpop.f32.mrb[0].mxu0
  %542 = vdwg.mxu0
  %543 = vrot.lane.b32.xlu0 %v174, 104
  %v544 = vpop.permute.xlu0 %543
  %545 = vrot.lane.b32.xlu0 %v176, 72
  %v546 = vpop.permute.xlu0 %545
  %v548 = vsel %vm181, %v544, 0
  %v551 = vsel %vm181, %v546, 0
  %553 = vmatprep.subr.bf16.mxu0 0
  %554 = vmatpush1.bf16.xpose.msra.mxu0 %v551
  %555 = vmatprep.subr.bf16.mxu0 0
  %556 = vmatpush1.bf16.xpose.msra.mxu0 0
  %557 = vmatprep.subr.bf16.mxu0 0
  %558 = vmatpush1.bf16.xpose.msra.mxu0 0
  %559 = vmatprep.subr.bf16.mxu0 0
  %560 = vmatpush1.bf16.xpose.msra.mxu0 0
  %561 = vmatprep.subr.bf16.mxu0 0
  %562 = vmatpush1.bf16.xpose.msra.mxu0 0
  %563 = vmatprep.subr.bf16.mxu0 0
  %564 = vmatpush1.bf16.xpose.msra.mxu0 0
  %565 = vmatprep.subr.bf16.mxu0 0
  %566 = vmatpush1.bf16.xpose.msra.mxu0 0
  %567 = vmatprep.subr.bf16.mxu0 0
  %568 = vmatpush1.bf16.xpose.msra.mxu0 0
  %569 = vmatprep.subr.bf16.mxu0 0
  %570 = vmatpush1.bf16.xpose.msra.mxu0 0
  %571 = vmatprep.subr.bf16.mxu0 0
  %572 = vmatpush1.bf16.xpose.msra.mxu0 0
  %573 = vmatprep.subr.bf16.mxu0 0
  %574 = vmatpush1.bf16.xpose.msra.mxu0 0
  %575 = vmatprep.subr.bf16.mxu0 0
  %576 = vmatpush1.bf16.xpose.msra.mxu0 0
  %577 = vmatprep.subr.bf16.mxu0 0
  %578 = vmatpush1.bf16.xpose.msra.mxu0 0
  %579 = vmatprep.subr.bf16.mxu0 0
  %580 = vmatpush1.bf16.xpose.msra.mxu0 0
  %581 = vmatprep.subr.bf16.mxu0 0
  %582 = vmatpush1.bf16.xpose.msra.mxu0 0
  %583 = vmatprep.subr.bf16.mxu0 0
  %584 = vmatpush1.bf16.xpose.msra.mxu0 0
  %585 = vmatprep.mubr.bf16.mxu0 0
  %586 = vmatmul.mubr.bf16.gmra.mrb[0].mxu0 %v548
  %v587 = vpop.f32.mrb[0].mxu0
  %v588 = vadd.f32 0.0, %v587
  %v589 = vpop.f32.mrb[0].mxu0
  %v590 = vpop.f32.mrb[0].mxu0
  %v591 = vadd.f32 0.0, %v590
  %v592 = vpop.f32.mrb[0].mxu0
  %593 = vdwg.mxu0
  %v594 = vsel %vm229, %v588, -inf
  %595 = vmax.xlane.f32.xlu0 %v594
  %v596 = vpop.xlane.xlu0 %595
  %v597 = vsel %vm229, %v591, -inf
  %598 = vmax.xlane.f32.xlu0 %v597
  %v599 = vpop.xlane.xlu0 %598
  %v600 = vsub.f32 %v588, %v596
  %v601 = vsub.f32 %v591, %v599
  %v602 = vmul.f32 %v600, 1.442695
  %v603 = vpow.pop %v602
  %v604 = vmul.f32 %v601, 1.442695
  %v605 = vpow.pop %v604
  %v606 = vsel %vm229, %v603, 0.0
  %607 = vadd.xlane.f32.xlu0 %v606
  %v608 = vpop.xlane.xlu0 %607
  %v609 = vsel %vm229, %v605, 0.0
  %610 = vadd.xlane.f32.xlu0 %v609
  %v611 = vpop.xlane.xlu0 %610
  %v612 = vrcp.pop %v608
  %v613 = vrcp.pop %v611
  %v614 = vmul.f32 %v603, %v612
  %v615 = vmul.f32 %v605, %v613
  %v616 = vpack.c.bf16 %v615, %v614
  %617 = vrot.lane.b32.xlu0 %v176, 40
  %v618 = vpop.permute.xlu0 %617
  %v621 = vsel %vm229, %v616, 0
  %623 = vmatprep.subr.bf16.mxu0 0
  %624 = vmatpush1.bf16.msra.mxu0 %v618
  %625 = vmatprep.subr.bf16.mxu0 0
  %626 = vmatpush1.bf16.msra.mxu0 0
  %627 = vmatprep.subr.bf16.mxu0 0
  %628 = vmatpush1.bf16.msra.mxu0 0
  %629 = vmatprep.subr.bf16.mxu0 0
  %630 = vmatpush1.bf16.msra.mxu0 0
  %631 = vmatprep.subr.bf16.mxu0 0
  %632 = vmatpush1.bf16.msra.mxu0 0
  %633 = vmatprep.subr.bf16.mxu0 0
  %634 = vmatpush1.bf16.msra.mxu0 0
  %635 = vmatprep.subr.bf16.mxu0 0
  %636 = vmatpush1.bf16.msra.mxu0 0
  %637 = vmatprep.subr.bf16.mxu0 0
  %638 = vmatpush1.bf16.msra.mxu0 0
  %639 = vmatprep.subr.bf16.mxu0 0
  %640 = vmatpush1.bf16.msra.mxu0 0
  %641 = vmatprep.subr.bf16.mxu0 0
  %642 = vmatpush1.bf16.msra.mxu0 0
  %643 = vmatprep.subr.bf16.mxu0 0
  %644 = vmatpush1.bf16.msra.mxu0 0
  %645 = vmatprep.subr.bf16.mxu0 0
  %646 = vmatpush1.bf16.msra.mxu0 0
  %647 = vmatprep.subr.bf16.mxu0 0
  %648 = vmatpush1.bf16.msra.mxu0 0
  %649 = vmatprep.subr.bf16.mxu0 0
  %650 = vmatpush1.bf16.msra.mxu0 0
  %651 = vmatprep.subr.bf16.mxu0 0
  %652 = vmatpush1.bf16.msra.mxu0 0
  %653 = vmatprep.subr.bf16.mxu0 0
  %654 = vmatpush1.bf16.msra.mxu0 0
  %655 = vmatprep.mubr.bf16.mxu0 0
  %656 = vmatmul.mubr.bf16.gmra.mrb[0].mxu0 %v621
  %v657 = vpop.f32.mrb[0].mxu0
  %v658 = vadd.f32 0.0, %v657
  %v659 = vpop.f32.mrb[0].mxu0
  %v660 = vpop.f32.mrb[0].mxu0
  %v661 = vadd.f32 0.0, %v660
  %v662 = vpop.f32.mrb[0].mxu0
  %663 = vdwg.mxu0
  %666 = vrot.lane.b32.xlu0 %v416, 8
  %v667 = vpop.permute.xlu0 %666
  %668 = vrot.lane.b32.xlu0 %v419, 8
  %v669 = vpop.permute.xlu0 %668
  %674 = vrot.lane.b32.xlu0 %v537, 16
  %v675 = vpop.permute.xlu0 %674
  %676 = vrot.lane.b32.xlu0 %v540, 16
  %v677 = vpop.permute.xlu0 %676
  %682 = vrot.lane.b32.xlu0 %v658, 24
  %v683 = vpop.permute.xlu0 %682
  %684 = vrot.lane.b32.xlu0 %v661, 24
  %v685 = vpop.permute.xlu0 %684
  %v688 = vsel %vm181, %v294, %v667
  %v689 = vsel %vm181, %v297, %v669
  %v690 = vsel %vm229, %v688, %v675
  %v691 = vsel %vm229, %v689, %v677
  %vm692 = vcmask 195584
  %v693 = vsel %vm692, %v690, %v683
  %v694 = vsel %vm692, %v691, %v685
  %696 = vrot.lane.b32.xlu0 %v177, 96
  %v697 = vpop.permute.xlu0 %696
  %v699 = vsel %vm181, %v175, 0
  %v702 = vsel %vm181, %v697, 0
  %704 = vmatprep.subr.bf16.mxu0 0
  %705 = vmatpush1.bf16.xpose.msra.mxu0 %v702
  %706 = vmatprep.subr.bf16.mxu0 0
  %707 = vmatpush1.bf16.xpose.msra.mxu0 0
  %708 = vmatprep.subr.bf16.mxu0 0
  %709 = vmatpush1.bf16.xpose.msra.mxu0 0
  %710 = vmatprep.subr.bf16.mxu0 0
  %711 = vmatpush1.bf16.xpose.msra.mxu0 0
  %712 = vmatprep.subr.bf16.mxu0 0
  %713 = vmatpush1.bf16.xpose.msra.mxu0 0
  %714 = vmatprep.subr.bf16.mxu0 0
  %715 = vmatpush1.bf16.xpose.msra.mxu0 0
  %716 = vmatprep.subr.bf16.mxu0 0
  %717 = vmatpush1.bf16.xpose.msra.mxu0 0
  %718 = vmatprep.subr.bf16.mxu0 0
  %719 = vmatpush1.bf16.xpose.msra.mxu0 0
  %720 = vmatprep.subr.bf16.mxu0 0
  %721 = vmatpush1.bf16.xpose.msra.mxu0 0
  %722 = vmatprep.subr.bf16.mxu0 0
  %723 = vmatpush1.bf16.xpose.msra.mxu0 0
  %724 = vmatprep.subr.bf16.mxu0 0
  %725 = vmatpush1.bf16.xpose.msra.mxu0 0
  %726 = vmatprep.subr.bf16.mxu0 0
  %727 = vmatpush1.bf16.xpose.msra.mxu0 0
  %728 = vmatprep.subr.bf16.mxu0 0
  %729 = vmatpush1.bf16.xpose.msra.mxu0 0
  %730 = vmatprep.subr.bf16.mxu0 0
  %731 = vmatpush1.bf16.xpose.msra.mxu0 0
  %732 = vmatprep.subr.bf16.mxu0 0
  %733 = vmatpush1.bf16.xpose.msra.mxu0 0
  %734 = vmatprep.subr.bf16.mxu0 0
  %735 = vmatpush1.bf16.xpose.msra.mxu0 0
  %736 = vmatprep.mubr.bf16.mxu0 0
  %737 = vmatmul.mubr.bf16.gmra.mrb[0].mxu0 %v699
  %v738 = vpop.f32.mrb[0].mxu0
  %v739 = vadd.f32 0.0, %v738
  %v740 = vpop.f32.mrb[0].mxu0
  %v741 = vpop.f32.mrb[0].mxu0
  %v742 = vadd.f32 0.0, %v741
  %v743 = vpop.f32.mrb[0].mxu0
  %744 = vdwg.mxu0
  %v745 = vsel %vm229, %v739, -inf
  %746 = vmax.xlane.f32.xlu0 %v745
  %v747 = vpop.xlane.xlu0 %746
  %v748 = vsel %vm229, %v742, -inf
  %749 = vmax.xlane.f32.xlu0 %v748
  %v750 = vpop.xlane.xlu0 %749
  %v751 = vsub.f32 %v739, %v747
  %v752 = vsub.f32 %v742, %v750
  %v753 = vmul.f32 %v751, 1.442695
  %v754 = vpow.pop %v753
  %v755 = vmul.f32 %v752, 1.442695
  %v756 = vpow.pop %v755
  %v757 = vsel %vm229, %v754, 0.0
  %758 = vadd.xlane.f32.xlu0 %v757
  %v759 = vpop.xlane.xlu0 %758
  %v760 = vsel %vm229, %v756, 0.0
  %761 = vadd.xlane.f32.xlu0 %v760
  %v762 = vpop.xlane.xlu0 %761
  %v763 = vrcp.pop %v759
  %v764 = vrcp.pop %v762
  %v765 = vmul.f32 %v754, %v763
  %v766 = vmul.f32 %v756, %v764
  %v767 = vpack.c.bf16 %v766, %v765
  %768 = vrot.lane.b32.xlu0 %v177, 64
  %v769 = vpop.permute.xlu0 %768
  %v772 = vsel %vm229, %v767, 0
  %774 = vmatprep.subr.bf16.mxu0 0
  %775 = vmatpush1.bf16.msra.mxu0 %v769
  %776 = vmatprep.subr.bf16.mxu0 0
  %777 = vmatpush1.bf16.msra.mxu0 0
  %778 = vmatprep.subr.bf16.mxu0 0
  %779 = vmatpush1.bf16.msra.mxu0 0
  %780 = vmatprep.subr.bf16.mxu0 0
  %781 = vmatpush1.bf16.msra.mxu0 0
  %782 = vmatprep.subr.bf16.mxu0 0
  %783 = vmatpush1.bf16.msra.mxu0 0
  %784 = vmatprep.subr.bf16.mxu0 0
  %785 = vmatpush1.bf16.msra.mxu0 0
  %786 = vmatprep.subr.bf16.mxu0 0
  %787 = vmatpush1.bf16.msra.mxu0 0
  %788 = vmatprep.subr.bf16.mxu0 0
  %789 = vmatpush1.bf16.msra.mxu0 0
  %790 = vmatprep.subr.bf16.mxu0 0
  %791 = vmatpush1.bf16.msra.mxu0 0
  %792 = vmatprep.subr.bf16.mxu0 0
  %793 = vmatpush1.bf16.msra.mxu0 0
  %794 = vmatprep.subr.bf16.mxu0 0
  %795 = vmatpush1.bf16.msra.mxu0 0
  %796 = vmatprep.subr.bf16.mxu0 0
  %797 = vmatpush1.bf16.msra.mxu0 0
  %798 = vmatprep.subr.bf16.mxu0 0
  %799 = vmatpush1.bf16.msra.mxu0 0
  %800 = vmatprep.subr.bf16.mxu0 0
  %801 = vmatpush1.bf16.msra.mxu0 0
  %802 = vmatprep.subr.bf16.mxu0 0
  %803 = vmatpush1.bf16.msra.mxu0 0
  %804 = vmatprep.subr.bf16.mxu0 0
  %805 = vmatpush1.bf16.msra.mxu0 0
  %806 = vmatprep.mubr.bf16.mxu0 0
  %807 = vmatmul.mubr.bf16.gmra.mrb[0].mxu0 %v772
  %v808 = vpop.f32.mrb[0].mxu0
  %v809 = vadd.f32 0.0, %v808
  %v810 = vpop.f32.mrb[0].mxu0
  %v811 = vpop.f32.mrb[0].mxu0
  %v812 = vadd.f32 0.0, %v811
  %v813 = vpop.f32.mrb[0].mxu0
  %814 = vdwg.mxu0
  %816 = vrot.lane.b32.xlu0 %v175, 120
  %v817 = vpop.permute.xlu0 %816
  %818 = vrot.lane.b32.xlu0 %v177, 88
  %v819 = vpop.permute.xlu0 %818
  %v821 = vsel %vm181, %v817, 0
  %v824 = vsel %vm181, %v819, 0
  %826 = vmatprep.subr.bf16.mxu0 0
  %827 = vmatpush1.bf16.xpose.msra.mxu0 %v824
  %828 = vmatprep.subr.bf16.mxu0 0
  %829 = vmatpush1.bf16.xpose.msra.mxu0 0
  %830 = vmatprep.subr.bf16.mxu0 0
  %831 = vmatpush1.bf16.xpose.msra.mxu0 0
  %832 = vmatprep.subr.bf16.mxu0 0
  %833 = vmatpush1.bf16.xpose.msra.mxu0 0
  %834 = vmatprep.subr.bf16.mxu0 0
  %835 = vmatpush1.bf16.xpose.msra.mxu0 0
  %836 = vmatprep.subr.bf16.mxu0 0
  %837 = vmatpush1.bf16.xpose.msra.mxu0 0
  %838 = vmatprep.subr.bf16.mxu0 0
  %839 = vmatpush1.bf16.xpose.msra.mxu0 0
  %840 = vmatprep.subr.bf16.mxu0 0
  %841 = vmatpush1.bf16.xpose.msra.mxu0 0
  %842 = vmatprep.subr.bf16.mxu0 0
  %843 = vmatpush1.bf16.xpose.msra.mxu0 0
  %844 = vmatprep.subr.bf16.mxu0 0
  %845 = vmatpush1.bf16.xpose.msra.mxu0 0
  %846 = vmatprep.subr.bf16.mxu0 0
  %847 = vmatpush1.bf16.xpose.msra.mxu0 0
  %848 = vmatprep.subr.bf16.mxu0 0
  %849 = vmatpush1.bf16.xpose.msra.mxu0 0
  %850 = vmatprep.subr.bf16.mxu0 0
  %851 = vmatpush1.bf16.xpose.msra.mxu0 0
  %852 = vmatprep.subr.bf16.mxu0 0
  %853 = vmatpush1.bf16.xpose.msra.mxu0 0
  %854 = vmatprep.subr.bf16.mxu0 0
  %855 = vmatpush1.bf16.xpose.msra.mxu0 0
  %856 = vmatprep.subr.bf16.mxu0 0
  %857 = vmatpush1.bf16.xpose.msra.mxu0 0
  %858 = vmatprep.mubr.bf16.mxu0 0
  %859 = vmatmul.mubr.bf16.gmra.mrb[0].mxu0 %v821
  %v860 = vpop.f32.mrb[0].mxu0
  %v861 = vadd.f32 0.0, %v860
  %v862 = vpop.f32.mrb[0].mxu0
  %v863 = vpop.f32.mrb[0].mxu0
  %v864 = vadd.f32 0.0, %v863
  %v865 = vpop.f32.mrb[0].mxu0
  %866 = vdwg.mxu0
  %v867 = vsel %vm229, %v861, -inf
  %868 = vmax.xlane.f32.xlu0 %v867
  %v869 = vpop.xlane.xlu0 %868
  %v870 = vsel %vm229, %v864, -inf
  %871 = vmax.xlane.f32.xlu0 %v870
  %v872 = vpop.xlane.xlu0 %871
  %v873 = vsub.f32 %v861, %v869
  %v874 = vsub.f32 %v864, %v872
  %v875 = vmul.f32 %v873, 1.442695
  %v876 = vpow.pop %v875
  %v877 = vmul.f32 %v874, 1.442695
  %v878 = vpow.pop %v877
  %v879 = vsel %vm229, %v876, 0.0
  %880 = vadd.xlane.f32.xlu0 %v879
  %v881 = vpop.xlane.xlu0 %880
  %v882 = vsel %vm229, %v878, 0.0
  %883 = vadd.xlane.f32.xlu0 %v882
  %v884 = vpop.xlane.xlu0 %883
  %v885 = vrcp.pop %v881
  %v886 = vrcp.pop %v884
  %v887 = vmul.f32 %v876, %v885
  %v888 = vmul.f32 %v878, %v886
  %v889 = vpack.c.bf16 %v888, %v887
  %890 = vrot.lane.b32.xlu0 %v177, 56
  %v891 = vpop.permute.xlu0 %890
  %v894 = vsel %vm229, %v889, 0
  %896 = vmatprep.subr.bf16.mxu0 0
  %897 = vmatpush1.bf16.msra.mxu0 %v891
  %898 = vmatprep.subr.bf16.mxu0 0
  %899 = vmatpush1.bf16.msra.mxu0 0
  %900 = vmatprep.subr.bf16.mxu0 0
  %901 = vmatpush1.bf16.msra.mxu0 0
  %902 = vmatprep.subr.bf16.mxu0 0
  %903 = vmatpush1.bf16.msra.mxu0 0
  %904 = vmatprep.subr.bf16.mxu0 0
  %905 = vmatpush1.bf16.msra.mxu0 0
  %906 = vmatprep.subr.bf16.mxu0 0
  %907 = vmatpush1.bf16.msra.mxu0 0
  %908 = vmatprep.subr.bf16.mxu0 0
  %909 = vmatpush1.bf16.msra.mxu0 0
  %910 = vmatprep.subr.bf16.mxu0 0
  %911 = vmatpush1.bf16.msra.mxu0 0
  %912 = vmatprep.subr.bf16.mxu0 0
  %913 = vmatpush1.bf16.msra.mxu0 0
  %914 = vmatprep.subr.bf16.mxu0 0
  %915 = vmatpush1.bf16.msra.mxu0 0
  %916 = vmatprep.subr.bf16.mxu0 0
  %917 = vmatpush1.bf16.msra.mxu0 0
  %918 = vmatprep.subr.bf16.mxu0 0
  %919 = vmatpush1.bf16.msra.mxu0 0
  %920 = vmatprep.subr.bf16.mxu0 0
  %921 = vmatpush1.bf16.msra.mxu0 0
  %922 = vmatprep.subr.bf16.mxu0 0
  %923 = vmatpush1.bf16.msra.mxu0 0
  %924 = vmatprep.subr.bf16.mxu0 0
  %925 = vmatpush1.bf16.msra.mxu0 0
  %926 = vmatprep.subr.bf16.mxu0 0
  %927 = vmatpush1.bf16.msra.mxu0 0
  %928 = vmatprep.mubr.bf16.mxu0 0
  %929 = vmatmul.mubr.bf16.gmra.mrb[0].mxu0 %v894
  %v930 = vpop.f32.mrb[0].mxu0
  %v931 = vadd.f32 0.0, %v930
  %v932 = vpop.f32.mrb[0].mxu0
  %v933 = vpop.f32.mrb[0].mxu0
  %v934 = vadd.f32 0.0, %v933
  %v935 = vpop.f32.mrb[0].mxu0
  %936 = vdwg.mxu0
  %937 = vrot.lane.b32.xlu0 %v175, 112
  %v938 = vpop.permute.xlu0 %937
  %939 = vrot.lane.b32.xlu0 %v177, 80
  %v940 = vpop.permute.xlu0 %939
  %v942 = vsel %vm181, %v938, 0
  %v945 = vsel %vm181, %v940, 0
  %947 = vmatprep.subr.bf16.mxu0 0
  %948 = vmatpush1.bf16.xpose.msra.mxu0 %v945
  %949 = vmatprep.subr.bf16.mxu0 0
  %950 = vmatpush1.bf16.xpose.msra.mxu0 0
  %951 = vmatprep.subr.bf16.mxu0 0
  %952 = vmatpush1.bf16.xpose.msra.mxu0 0
  %953 = vmatprep.subr.bf16.mxu0 0
  %954 = vmatpush1.bf16.xpose.msra.mxu0 0
  %955 = vmatprep.subr.bf16.mxu0 0
  %956 = vmatpush1.bf16.xpose.msra.mxu0 0
  %957 = vmatprep.subr.bf16.mxu0 0
  %958 = vmatpush1.bf16.xpose.msra.mxu0 0
  %959 = vmatprep.subr.bf16.mxu0 0
  %960 = vmatpush1.bf16.xpose.msra.mxu0 0
  %961 = vmatprep.subr.bf16.mxu0 0
  %962 = vmatpush1.bf16.xpose.msra.mxu0 0
  %963 = vmatprep.subr.bf16.mxu0 0
  %964 = vmatpush1.bf16.xpose.msra.mxu0 0
  %965 = vmatprep.subr.bf16.mxu0 0
  %966 = vmatpush1.bf16.xpose.msra.mxu0 0
  %967 = vmatprep.subr.bf16.mxu0 0
  %968 = vmatpush1.bf16.xpose.msra.mxu0 0
  %969 = vmatprep.subr.bf16.mxu0 0
  %970 = vmatpush1.bf16.xpose.msra.mxu0 0
  %971 = vmatprep.subr.bf16.mxu0 0
  %972 = vmatpush1.bf16.xpose.msra.mxu0 0
  %973 = vmatprep.subr.bf16.mxu0 0
  %974 = vmatpush1.bf16.xpose.msra.mxu0 0
  %975 = vmatprep.subr.bf16.mxu0 0
  %976 = vmatpush1.bf16.xpose.msra.mxu0 0
  %977 = vmatprep.subr.bf16.mxu0 0
  %978 = vmatpush1.bf16.xpose.msra.mxu0 0
  %979 = vmatprep.mubr.bf16.mxu0 0
  %980 = vmatmul.mubr.bf16.gmra.mrb[0].mxu0 %v942
  %v981 = vpop.f32.mrb[0].mxu0
  %v982 = vadd.f32 0.0, %v981
  %v983 = vpop.f32.mrb[0].mxu0
  %v984 = vpop.f32.mrb[0].mxu0
  %v985 = vadd.f32 0.0, %v984
  %v986 = vpop.f32.mrb[0].mxu0
  %987 = vdwg.mxu0
  %v988 = vsel %vm229, %v982, -inf
  %989 = vmax.xlane.f32.xlu0 %v988
  %v990 = vpop.xlane.xlu0 %989
  %v991 = vsel %vm229, %v985, -inf
  %992 = vmax.xlane.f32.xlu0 %v991
  %v993 = vpop.xlane.xlu0 %992
  %v994 = vsub.f32 %v982, %v990
  %v995 = vsub.f32 %v985, %v993
  %v996 = vmul.f32 %v994, 1.442695
  %v997 = vpow.pop %v996
  %v998 = vmul.f32 %v995, 1.442695
  %v999 = vpow.pop %v998
  %v1000 = vsel %vm229, %v997, 0.0
  %1001 = vadd.xlane.f32.xlu0 %v1000
  %v1002 = vpop.xlane.xlu0 %1001
  %v1003 = vsel %vm229, %v999, 0.0
  %1004 = vadd.xlane.f32.xlu0 %v1003
  %v1005 = vpop.xlane.xlu0 %1004
  %v1006 = vrcp.pop %v1002
  %v1007 = vrcp.pop %v1005
  %v1008 = vmul.f32 %v997, %v1006
  %v1009 = vmul.f32 %v999, %v1007
  %v1010 = vpack.c.bf16 %v1009, %v1008
  %1011 = vrot.lane.b32.xlu0 %v177, 48
  %v1012 = vpop.permute.xlu0 %1011
  %v1015 = vsel %vm229, %v1010, 0
  %1017 = vmatprep.subr.bf16.mxu0 0
  %1018 = vmatpush1.bf16.msra.mxu0 %v1012
  %1019 = vmatprep.subr.bf16.mxu0 0
  %1020 = vmatpush1.bf16.msra.mxu0 0
  %1021 = vmatprep.subr.bf16.mxu0 0
  %1022 = vmatpush1.bf16.msra.mxu0 0
  %1023 = vmatprep.subr.bf16.mxu0 0
  %1024 = vmatpush1.bf16.msra.mxu0 0
  %1025 = vmatprep.subr.bf16.mxu0 0
  %1026 = vmatpush1.bf16.msra.mxu0 0
  %1027 = vmatprep.subr.bf16.mxu0 0
  %1028 = vmatpush1.bf16.msra.mxu0 0
  %1029 = vmatprep.subr.bf16.mxu0 0
  %1030 = vmatpush1.bf16.msra.mxu0 0
  %1031 = vmatprep.subr.bf16.mxu0 0
  %1032 = vmatpush1.bf16.msra.mxu0 0
  %1033 = vmatprep.subr.bf16.mxu0 0
  %1034 = vmatpush1.bf16.msra.mxu0 0
  %1035 = vmatprep.subr.bf16.mxu0 0
  %1036 = vmatpush1.bf16.msra.mxu0 0
  %1037 = vmatprep.subr.bf16.mxu0 0
  %1038 = vmatpush1.bf16.msra.mxu0 0
  %1039 = vmatprep.subr.bf16.mxu0 0
  %1040 = vmatpush1.bf16.msra.mxu0 0
  %1041 = vmatprep.subr.bf16.mxu0 0
  %1042 = vmatpush1.bf16.msra.mxu0 0
  %1043 = vmatprep.subr.bf16.mxu0 0
  %1044 = vmatpush1.bf16.msra.mxu0 0
  %1045 = vmatprep.subr.bf16.mxu0 0
  %1046 = vmatpush1.bf16.msra.mxu0 0
  %1047 = vmatprep.subr.bf16.mxu0 0
  %1048 = vmatpush1.bf16.msra.mxu0 0
  %1049 = vmatprep.mubr.bf16.mxu0 0
  %1050 = vmatmul.mubr.bf16.gmra.mrb[0].mxu0 %v1015
  %v1051 = vpop.f32.mrb[0].mxu0
  %v1052 = vadd.f32 0.0, %v1051
  %v1053 = vpop.f32.mrb[0].mxu0
  %v1054 = vpop.f32.mrb[0].mxu0
  %v1055 = vadd.f32 0.0, %v1054
  %v1056 = vpop.f32.mrb[0].mxu0
  %1057 = vdwg.mxu0
  %1058 = vrot.lane.b32.xlu0 %v175, 104
  %v1059 = vpop.permute.xlu0 %1058
  %1060 = vrot.lane.b32.xlu0 %v177, 72
  %v1061 = vpop.permute.xlu0 %1060
  %v1063 = vsel %vm181, %v1059, 0
  %v1066 = vsel %vm181, %v1061, 0
  %1068 = vmatprep.subr.bf16.mxu0 0
  %1069 = vmatpush1.bf16.xpose.msra.mxu0 %v1066
  %1070 = vmatprep.subr.bf16.mxu0 0
  %1071 = vmatpush1.bf16.xpose.msra.mxu0 0
  %1072 = vmatprep.subr.bf16.mxu0 0
  %1073 = vmatpush1.bf16.xpose.msra.mxu0 0
  %1074 = vmatprep.subr.bf16.mxu0 0
  %1075 = vmatpush1.bf16.xpose.msra.mxu0 0
  %1076 = vmatprep.subr.bf16.mxu0 0
  %1077 = vmatpush1.bf16.xpose.msra.mxu0 0
  %1078 = vmatprep.subr.bf16.mxu0 0
  %1079 = vmatpush1.bf16.xpose.msra.mxu0 0
  %1080 = vmatprep.subr.bf16.mxu0 0
  %1081 = vmatpush1.bf16.xpose.msra.mxu0 0
  %1082 = vmatprep.subr.bf16.mxu0 0
  %1083 = vmatpush1.bf16.xpose.msra.mxu0 0
  %1084 = vmatprep.subr.bf16.mxu0 0
  %1085 = vmatpush1.bf16.xpose.msra.mxu0 0
  %1086 = vmatprep.subr.bf16.mxu0 0
  %1087 = vmatpush1.bf16.xpose.msra.mxu0 0
  %1088 = vmatprep.subr.bf16.mxu0 0
  %1089 = vmatpush1.bf16.xpose.msra.mxu0 0
  %1090 = vmatprep.subr.bf16.mxu0 0
  %1091 = vmatpush1.bf16.xpose.msra.mxu0 0
  %1092 = vmatprep.subr.bf16.mxu0 0
  %1093 = vmatpush1.bf16.xpose.msra.mxu0 0
  %1094 = vmatprep.subr.bf16.mxu0 0
  %1095 = vmatpush1.bf16.xpose.msra.mxu0 0
  %1096 = vmatprep.subr.bf16.mxu0 0
  %1097 = vmatpush1.bf16.xpose.msra.mxu0 0
  %1098 = vmatprep.subr.bf16.mxu0 0
  %1099 = vmatpush1.bf16.xpose.msra.mxu0 0
  %1100 = vmatprep.mubr.bf16.mxu0 0
  %1101 = vmatmul.mubr.bf16.gmra.mrb[0].mxu0 %v1063
  %v1102 = vpop.f32.mrb[0].mxu0
  %v1103 = vadd.f32 0.0, %v1102
  %v1104 = vpop.f32.mrb[0].mxu0
  %v1105 = vpop.f32.mrb[0].mxu0
  %v1106 = vadd.f32 0.0, %v1105
  %v1107 = vpop.f32.mrb[0].mxu0
  %1108 = vdwg.mxu0
  %v1109 = vsel %vm229, %v1103, -inf
  %1110 = vmax.xlane.f32.xlu0 %v1109
  %v1111 = vpop.xlane.xlu0 %1110
  %v1112 = vsel %vm229, %v1106, -inf
  %1113 = vmax.xlane.f32.xlu0 %v1112
  %v1114 = vpop.xlane.xlu0 %1113
  %v1115 = vsub.f32 %v1103, %v1111
  %v1116 = vsub.f32 %v1106, %v1114
  %v1117 = vmul.f32 %v1115, 1.442695
  %v1118 = vpow.pop %v1117
  %v1119 = vmul.f32 %v1116, 1.442695
  %v1120 = vpow.pop %v1119
  %v1121 = vsel %vm229, %v1118, 0.0
  %1122 = vadd.xlane.f32.xlu0 %v1121
  %v1123 = vpop.xlane.xlu0 %1122
  %v1124 = vsel %vm229, %v1120, 0.0
  %1125 = vadd.xlane.f32.xlu0 %v1124
  %v1126 = vpop.xlane.xlu0 %1125
  %v1127 = vrcp.pop %v1123
  %v1128 = vrcp.pop %v1126
  %v1129 = vmul.f32 %v1118, %v1127
  %v1130 = vmul.f32 %v1120, %v1128
  %v1131 = vpack.c.bf16 %v1130, %v1129
  %1132 = vrot.lane.b32.xlu0 %v177, 40
  %v1133 = vpop.permute.xlu0 %1132
  %v1136 = vsel %vm229, %v1131, 0
  %1138 = vmatprep.subr.bf16.mxu0 0
  %1139 = vmatpush1.bf16.msra.mxu0 %v1133
  %1140 = vmatprep.subr.bf16.mxu0 0
  %1141 = vmatpush1.bf16.msra.mxu0 0
  %1142 = vmatprep.subr.bf16.mxu0 0
  %1143 = vmatpush1.bf16.msra.mxu0 0
  %1144 = vmatprep.subr.bf16.mxu0 0
  %1145 = vmatpush1.bf16.msra.mxu0 0
  %1146 = vmatprep.subr.bf16.mxu0 0
  %1147 = vmatpush1.bf16.msra.mxu0 0
  %1148 = vmatprep.subr.bf16.mxu0 0
  %1149 = vmatpush1.bf16.msra.mxu0 0
  %1150 = vmatprep.subr.bf16.mxu0 0
  %1151 = vmatpush1.bf16.msra.mxu0 0
  %1152 = vmatprep.subr.bf16.mxu0 0
  %1153 = vmatpush1.bf16.msra.mxu0 0
  %1154 = vmatprep.subr.bf16.mxu0 0
  %1155 = vmatpush1.bf16.msra.mxu0 0
  %1156 = vmatprep.subr.bf16.mxu0 0
  %1157 = vmatpush1.bf16.msra.mxu0 0
  %1158 = vmatprep.subr.bf16.mxu0 0
  %1159 = vmatpush1.bf16.msra.mxu0 0
  %1160 = vmatprep.subr.bf16.mxu0 0
  %1161 = vmatpush1.bf16.msra.mxu0 0
  %1162 = vmatprep.subr.bf16.mxu0 0
  %1163 = vmatpush1.bf16.msra.mxu0 0
  %1164 = vmatprep.subr.bf16.mxu0 0
  %1165 = vmatpush1.bf16.msra.mxu0 0
  %1166 = vmatprep.subr.bf16.mxu0 0
  %1167 = vmatpush1.bf16.msra.mxu0 0
  %1168 = vmatprep.subr.bf16.mxu0 0
  %1169 = vmatpush1.bf16.msra.mxu0 0
  %1170 = vmatprep.mubr.bf16.mxu0 0
  %1171 = vmatmul.mubr.bf16.gmra.mrb[0].mxu0 %v1136
  %v1172 = vpop.f32.mrb[0].mxu0
  %v1173 = vadd.f32 0.0, %v1172
  %v1174 = vpop.f32.mrb[0].mxu0
  %v1175 = vpop.f32.mrb[0].mxu0
  %v1176 = vadd.f32 0.0, %v1175
  %v1177 = vpop.f32.mrb[0].mxu0
  %1178 = vdwg.mxu0
  %1181 = vrot.lane.b32.xlu0 %v931, 8
  %v1182 = vpop.permute.xlu0 %1181
  %1183 = vrot.lane.b32.xlu0 %v934, 8
  %v1184 = vpop.permute.xlu0 %1183
  %1189 = vrot.lane.b32.xlu0 %v1052, 16
  %v1190 = vpop.permute.xlu0 %1189
  %1191 = vrot.lane.b32.xlu0 %v1055, 16
  %v1192 = vpop.permute.xlu0 %1191
  %1197 = vrot.lane.b32.xlu0 %v1173, 24
  %v1198 = vpop.permute.xlu0 %1197
  %1199 = vrot.lane.b32.xlu0 %v1176, 24
  %v1200 = vpop.permute.xlu0 %1199
  %v1203 = vsel %vm181, %v809, %v1182
  %v1204 = vsel %vm181, %v812, %v1184
  %v1205 = vsel %vm229, %v1203, %v1190
  %v1206 = vsel %vm229, %v1204, %v1192
  %v1207 = vsel %vm692, %v1205, %v1198
  %v1208 = vsel %vm692, %v1206, %v1200
  %v1209 = vld [vmem:[%s1 + $0x10] sm:$0xf]
  %v1210 = vld [vmem:[%s1 + $0x14] sm:$0xf]
  %v1211 = vld [vmem:[%s1 + $0x18] sm:$0xf]
  %v1212 = vld [vmem:[%s1 + $0x1c] sm:$0xf]
  %v1213 = vpack.c.bf16 %v694, %v693
  %v1214 = vpack.c.bf16 %v1208, %v1207
  %v1215 = vld [vmem:[%s2 + $0x22] sm:$0x1]
  %v1216 = vlaneseq
  %v1217 = vshrl.u32 %v1216, 7
  %v1218 = vsub.s32 0, %v1217
  %v1219 = vrot.slane %v1215, %v1218
  %v1224 = vunpack.c.l.b16 %v1209
  %v1225 = vunpack.c.l.b16 %v1210
  %v1226 = vunpack.c.l.b16 %v1211
  %v1227 = vunpack.c.l.b16 %v1212
  %v1228 = vpack.c.b16 %v1225, %v1224
  %v1229 = vpack.c.b16 %v1227, %v1226
  %v1233 = vsel %vm114, %v1213, 0
  %v1236 = vsel %vm114, %v1214, 0
  %1238 = vmatprep.subr.bf16.mxu0 0
  %1239 = vmatpush1.bf16.msra.mxu0 %v1228
  %1240 = vmatprep.subr.bf16.mxu0 0
  %1241 = vmatpush1.bf16.msra.mxu0 %v1229
  %1242 = vmatprep.subr.bf16.mxu0 0
  %1243 = vmatpush1.bf16.msra.mxu0 0
  %1244 = vmatprep.subr.bf16.mxu0 0
  %1245 = vmatpush1.bf16.msra.mxu0 0
  %1246 = vmatprep.subr.bf16.mxu0 0
  %1247 = vmatpush1.bf16.msra.mxu0 0
  %1248 = vmatprep.subr.bf16.mxu0 0
  %1249 = vmatpush1.bf16.msra.mxu0 0
  %1250 = vmatprep.subr.bf16.mxu0 0
  %1251 = vmatpush1.bf16.msra.mxu0 0
  %1252 = vmatprep.subr.bf16.mxu0 0
  %1253 = vmatpush1.bf16.msra.mxu0 0
  %1254 = vmatprep.subr.bf16.mxu0 0
  %1255 = vmatpush1.bf16.msra.mxu0 0
  %1256 = vmatprep.subr.bf16.mxu0 0
  %1257 = vmatpush1.bf16.msra.mxu0 0
  %1258 = vmatprep.subr.bf16.mxu0 0
  %1259 = vmatpush1.bf16.msra.mxu0 0
  %1260 = vmatprep.subr.bf16.mxu0 0
  %1261 = vmatpush1.bf16.msra.mxu0 0
  %1262 = vmatprep.subr.bf16.mxu0 0
  %1263 = vmatpush1.bf16.msra.mxu0 0
  %1264 = vmatprep.subr.bf16.mxu0 0
  %1265 = vmatpush1.bf16.msra.mxu0 0
  %1266 = vmatprep.subr.bf16.mxu0 0
  %1267 = vmatpush1.bf16.msra.mxu0 0
  %1268 = vmatprep.subr.bf16.mxu0 0
  %1269 = vmatpush1.bf16.msra.mxu0 0
  %1270 = vmatprep.mubr.bf16.mxu0 0
  %1271 = vmatmul.mubr.bf16.gmra.mrb[0].mxu0 %v1233
  %v1272 = vpop.f32.mrb[0].mxu0
  %v1273 = vadd.f32 %v1219, %v1272
  %v1274 = vpop.f32.mrb[0].mxu0
  %v1275 = vpop.f32.mrb[0].mxu0
  %v1276 = vadd.f32 %v1219, %v1275
  %v1277 = vpop.f32.mrb[0].mxu0
  %1278 = vmatprep.mubr.bf16.mxu0 0
  %1279 = vmatmul.mubr.bf16.gmra.mrb[0].mxu0 %v1236
  %v1280 = vpop.f32.mrb[0].mxu0
  %v1281 = vadd.f32 %v1219, %v1280
  %v1282 = vpop.f32.mrb[0].mxu0
  %v1283 = vpop.f32.mrb[0].mxu0
  %v1284 = vadd.f32 %v1219, %v1283
  %v1285 = vpop.f32.mrb[0].mxu0
  %1286 = vdwg.mxu0
  %v1287 = vadd.f32 %v87, %v1273
  %v1288 = vadd.f32 %v88, %v1276
  %v1289 = vadd.f32 %v89, %v1281
  %v1290 = vadd.f32 %v90, %v1284
  %v1291 = vld [vmem:[%s2 + $0x25] sm:$0x1]
  %v1292 = vld [vmem:[%s2 + $0x26] sm:$0x1]
  %v1293 = vsel %vm114, %v1287, 0.0
  %1294 = vadd.xlane.f32.xlu0 %v1293
  %v1295 = vpop.xlane.xlu0 %1294
  %v1296 = vsel %vm114, %v1288, 0.0
  %1297 = vadd.xlane.f32.xlu0 %v1296
  %v1298 = vpop.xlane.xlu0 %1297
  %v1299 = vsel %vm114, %v1289, 0.0
  %1300 = vadd.xlane.f32.xlu0 %v1299
  %v1301 = vpop.xlane.xlu0 %1300
  %v1302 = vsel %vm114, %v1290, 0.0
  %1303 = vadd.xlane.f32.xlu0 %v1302
  %v1304 = vpop.xlane.xlu0 %1303
  %v1305 = vrcp.pop 32.0
  %v1306 = vmul.f32 %v1295, %v1305
  %v1307 = vmul.f32 %v1298, %v1305
  %v1308 = vmul.f32 %v1301, %v1305
  %v1309 = vmul.f32 %v1304, %v1305
  %v1310 = vsub.f32 %v1287, %v1306
  %v1311 = vsub.f32 %v1288, %v1307
  %v1312 = vsub.f32 %v1289, %v1308
  %v1313 = vsub.f32 %v1290, %v1309
  %v1314 = vmul.f32 %v1310, %v1310
  %v1315 = vmul.f32 %v1311, %v1311
  %v1316 = vmul.f32 %v1312, %v1312
  %v1317 = vmul.f32 %v1313, %v1313
  %v1318 = vsel %vm114, %v1314, 0.0
  %1319 = vadd.xlane.f32.xlu0 %v1318
  %v1320 = vpop.xlane.xlu0 %1319
  %v1321 = vsel %vm114, %v1315, 0.0
  %1322 = vadd.xlane.f32.xlu0 %v1321
  %v1323 = vpop.xlane.xlu0 %1322
  %v1324 = vsel %vm114, %v1316, 0.0
  %1325 = vadd.xlane.f32.xlu0 %v1324
  %v1326 = vpop.xlane.xlu0 %1325
  %v1327 = vsel %vm114, %v1317, 0.0
  %1328 = vadd.xlane.f32.xlu0 %v1327
  %v1329 = vpop.xlane.xlu0 %1328
  %v1330 = vmul.f32 %v1320, %v1305
  %v1331 = vmul.f32 %v1323, %v1305
  %v1332 = vmul.f32 %v1326, %v1305
  %v1333 = vmul.f32 %v1329, %v1305
  %v1334 = vadd.f32 %v1330, 1e-05
  %v1335 = vadd.f32 %v1331, 1e-05
  %v1336 = vadd.f32 %v1332, 1e-05
  %v1337 = vadd.f32 %v1333, 1e-05
  %v1338 = vrsqrt.pop %v1334
  %v1339 = vrsqrt.pop %v1335
  %v1340 = vrsqrt.pop %v1336
  %v1341 = vrsqrt.pop %v1337
  %v1342 = vmul.f32 %v1310, %v1338
  %v1343 = vmul.f32 %v1311, %v1339
  %v1344 = vmul.f32 %v1312, %v1340
  %v1345 = vmul.f32 %v1313, %v1341
  %v1346 = vlaneseq
  %v1347 = vshrl.u32 %v1346, 7
  %v1348 = vsub.s32 0, %v1347
  %v1349 = vrot.slane %v1291, %v1348
  %v1350 = vmul.f32 %v1342, %v1349
  %v1351 = vmul.f32 %v1343, %v1349
  %v1352 = vmul.f32 %v1344, %v1349
  %v1353 = vmul.f32 %v1345, %v1349
  %v1354 = vlaneseq
  %v1355 = vshrl.u32 %v1354, 7
  %v1356 = vsub.s32 0, %v1355
  %v1357 = vrot.slane %v1292, %v1356
  %v1358 = vadd.f32 %v1350, %v1357
  %v1359 = vadd.f32 %v1351, %v1357
  %v1360 = vadd.f32 %v1352, %v1357
  %v1361 = vadd.f32 %v1353, %v1357
  %v1362 = vld [vmem:[%s1 + $0x20] sm:$0xf]
  %v1363 = vld [vmem:[%s1 + $0x24] sm:$0xf]
  %v1364 = vld [vmem:[%s1 + $0x28] sm:$0xf]
  %v1365 = vld [vmem:[%s1 + $0x2c] sm:$0xf]
  %v1366 = vpack.c.bf16 %v1359, %v1358
  %v1367 = vpack.c.bf16 %v1361, %v1360
  %v1368 = vld [vmem:[%s2 + $0x23] sm:$0x1]
  %v1369 = vlaneseq
  %v1370 = vshrl.u32 %v1369, 7
  %v1371 = vsub.s32 0, %v1370
  %v1372 = vrot.slane %v1368, %v1371
  %v1377 = vunpack.c.l.b16 %v1362
  %v1378 = vunpack.c.l.b16 %v1363
  %v1379 = vunpack.c.l.b16 %v1364
  %v1380 = vunpack.c.l.b16 %v1365
  %v1381 = vpack.c.b16 %v1378, %v1377
  %v1382 = vpack.c.b16 %v1380, %v1379
  %v1386 = vsel %vm114, %v1366, 0
  %v1389 = vsel %vm114, %v1367, 0
  %1391 = vmatprep.subr.bf16.mxu0 0
  %1392 = vmatpush1.bf16.msra.mxu0 %v1381
  %1393 = vmatprep.subr.bf16.mxu0 0
  %1394 = vmatpush1.bf16.msra.mxu0 %v1382
  %1395 = vmatprep.subr.bf16.mxu0 0
  %1396 = vmatpush1.bf16.msra.mxu0 0
  %1397 = vmatprep.subr.bf16.mxu0 0
  %1398 = vmatpush1.bf16.msra.mxu0 0
  %1399 = vmatprep.subr.bf16.mxu0 0
  %1400 = vmatpush1.bf16.msra.mxu0 0
  %1401 = vmatprep.subr.bf16.mxu0 0
  %1402 = vmatpush1.bf16.msra.mxu0 0
  %1403 = vmatprep.subr.bf16.mxu0 0
  %1404 = vmatpush1.bf16.msra.mxu0 0
  %1405 = vmatprep.subr.bf16.mxu0 0
  %1406 = vmatpush1.bf16.msra.mxu0 0
  %1407 = vmatprep.subr.bf16.mxu0 0
  %1408 = vmatpush1.bf16.msra.mxu0 0
  %1409 = vmatprep.subr.bf16.mxu0 0
  %1410 = vmatpush1.bf16.msra.mxu0 0
  %1411 = vmatprep.subr.bf16.mxu0 0
  %1412 = vmatpush1.bf16.msra.mxu0 0
  %1413 = vmatprep.subr.bf16.mxu0 0
  %1414 = vmatpush1.bf16.msra.mxu0 0
  %1415 = vmatprep.subr.bf16.mxu0 0
  %1416 = vmatpush1.bf16.msra.mxu0 0
  %1417 = vmatprep.subr.bf16.mxu0 0
  %1418 = vmatpush1.bf16.msra.mxu0 0
  %1419 = vmatprep.subr.bf16.mxu0 0
  %1420 = vmatpush1.bf16.msra.mxu0 0
  %1421 = vmatprep.subr.bf16.mxu0 0
  %1422 = vmatpush1.bf16.msra.mxu0 0
  %1423 = vmatprep.mubr.bf16.mxu0 0
  %1424 = vmatmul.mubr.bf16.gmra.mrb[0].mxu0 %v1386
  %v1425 = vpop.f32.mrb[0].mxu0
  %v1426 = vadd.f32 %v1372, %v1425
  %v1427 = vpop.f32.mrb[0].mxu0
  %v1428 = vpop.f32.mrb[0].mxu0
  %v1429 = vadd.f32 %v1372, %v1428
  %v1430 = vpop.f32.mrb[0].mxu0
  %1431 = vmatprep.mubr.bf16.mxu0 0
  %1432 = vmatmul.mubr.bf16.gmra.mrb[0].mxu0 %v1389
  %v1433 = vpop.f32.mrb[0].mxu0
  %v1434 = vadd.f32 %v1372, %v1433
  %v1435 = vpop.f32.mrb[0].mxu0
  %v1436 = vpop.f32.mrb[0].mxu0
  %v1437 = vadd.f32 %v1372, %v1436
  %v1438 = vpop.f32.mrb[0].mxu0
  %1439 = vdwg.mxu0
  %v1440 = vmax.f32 %v1426, 0.0
  %v1441 = vmax.f32 %v1429, 0.0
  %v1442 = vmax.f32 %v1434, 0.0
  %v1443 = vmax.f32 %v1437, 0.0
  %v1444 = vld [vmem:[%s1 + $0x30] sm:$0xf]
  %v1445 = vld [vmem:[%s1 + $0x34] sm:$0xf]
  %v1446 = vld [vmem:[%s1 + $0x38] sm:$0xf]
  %v1447 = vld [vmem:[%s1 + $0x3c] sm:$0xf]
  %v1448 = vld [vmem:[%s1 + $0x40] sm:$0xf]
  %v1449 = vld [vmem:[%s1 + $0x44] sm:$0xf]
  %v1450 = vld [vmem:[%s1 + $0x48] sm:$0xf]
  %v1451 = vld [vmem:[%s1 + $0x4c] sm:$0xf]
  %v1452 = vpack.c.bf16 %v1441, %v1440
  %v1453 = vpack.c.bf16 %v1443, %v1442
  %v1454 = vld [vmem:[%s2 + $0x24] sm:$0x1]
  %v1455 = vlaneseq
  %v1456 = vshrl.u32 %v1455, 7
  %v1457 = vsub.s32 0, %v1456
  %v1458 = vrot.slane %v1454, %v1457
  %v1467 = vunpack.c.l.b16 %v1444
  %v1468 = vunpack.c.l.b16 %v1445
  %v1469 = vunpack.c.l.b16 %v1446
  %v1470 = vunpack.c.l.b16 %v1447
  %v1471 = vunpack.c.l.b16 %v1448
  %v1472 = vunpack.c.l.b16 %v1449
  %v1473 = vunpack.c.l.b16 %v1450
  %v1474 = vunpack.c.l.b16 %v1451
  %v1475 = vpack.c.b16 %v1468, %v1467
  %v1476 = vpack.c.b16 %v1470, %v1469
  %v1477 = vpack.c.b16 %v1472, %v1471
  %v1478 = vpack.c.b16 %v1474, %v1473
  %vm1483 = vcmask 523264
  %v1485 = vsel %vm1483, %v1452, 0
  %v1488 = vsel %vm1483, %v1453, 0
  %1490 = vmatprep.subr.bf16.mxu0 0
  %1491 = vmatpush1.bf16.msra.mxu0 %v1475
  %1492 = vmatprep.subr.bf16.mxu0 0
  %1493 = vmatpush1.bf16.msra.mxu0 %v1476
  %1494 = vmatprep.subr.bf16.mxu0 0
  %1495 = vmatpush1.bf16.msra.mxu0 %v1477
  %1496 = vmatprep.subr.bf16.mxu0 0
  %1497 = vmatpush1.bf16.msra.mxu0 %v1478
  %1498 = vmatprep.subr.bf16.mxu0 0
  %1499 = vmatpush1.bf16.msra.mxu0 0
  %1500 = vmatprep.subr.bf16.mxu0 0
  %1501 = vmatpush1.bf16.msra.mxu0 0
  %1502 = vmatprep.subr.bf16.mxu0 0
  %1503 = vmatpush1.bf16.msra.mxu0 0
  %1504 = vmatprep.subr.bf16.mxu0 0
  %1505 = vmatpush1.bf16.msra.mxu0 0
  %1506 = vmatprep.subr.bf16.mxu0 0
  %1507 = vmatpush1.bf16.msra.mxu0 0
  %1508 = vmatprep.subr.bf16.mxu0 0
  %1509 = vmatpush1.bf16.msra.mxu0 0
  %1510 = vmatprep.subr.bf16.mxu0 0
  %1511 = vmatpush1.bf16.msra.mxu0 0
  %1512 = vmatprep.subr.bf16.mxu0 0
  %1513 = vmatpush1.bf16.msra.mxu0 0
  %1514 = vmatprep.subr.bf16.mxu0 0
  %1515 = vmatpush1.bf16.msra.mxu0 0
  %1516 = vmatprep.subr.bf16.mxu0 0
  %1517 = vmatpush1.bf16.msra.mxu0 0
  %1518 = vmatprep.subr.bf16.mxu0 0
  %1519 = vmatpush1.bf16.msra.mxu0 0
  %1520 = vmatprep.subr.bf16.mxu0 0
  %1521 = vmatpush1.bf16.msra.mxu0 0
  %1522 = vmatprep.mubr.bf16.mxu0 0
  %1523 = vmatmul.mubr.bf16.gmra.mrb[0].mxu0 %v1485
  %v1524 = vpop.f32.mrb[0].mxu0
  %v1525 = vadd.f32 %v1458, %v1524
  %v1526 = vpop.f32.mrb[0].mxu0
  %v1527 = vpop.f32.mrb[0].mxu0
  %v1528 = vadd.f32 %v1458, %v1527
  %v1529 = vpop.f32.mrb[0].mxu0
  %1530 = vmatprep.mubr.bf16.mxu0 0
  %1531 = vmatmul.mubr.bf16.gmra.mrb[0].mxu0 %v1488
  %v1532 = vpop.f32.mrb[0].mxu0
  %v1533 = vadd.f32 %v1458, %v1532
  %v1534 = vpop.f32.mrb[0].mxu0
  %v1535 = vpop.f32.mrb[0].mxu0
  %v1536 = vadd.f32 %v1458, %v1535
  %v1537 = vpop.f32.mrb[0].mxu0
  %1538 = vdwg.mxu0
  %v1539 = vadd.f32 %v1358, %v1525
  %v1540 = vadd.f32 %v1359, %v1528
  %v1541 = vadd.f32 %v1360, %v1533
  %v1542 = vadd.f32 %v1361, %v1536
  %v1543 = vld [vmem:[%s2 + $0x27] sm:$0x1]
  %v1544 = vld [vmem:[%s2 + $0x28] sm:$0x1]
  %v1545 = vsel %vm114, %v1539, 0.0
  %1546 = vadd.xlane.f32.xlu0 %v1545
  %v1547 = vpop.xlane.xlu0 %1546
  %v1548 = vsel %vm114, %v1540, 0.0
  %1549 = vadd.xlane.f32.xlu0 %v1548
  %v1550 = vpop.xlane.xlu0 %1549
  %v1551 = vsel %vm114, %v1541, 0.0
  %1552 = vadd.xlane.f32.xlu0 %v1551
  %v1553 = vpop.xlane.xlu0 %1552
  %v1554 = vsel %vm114, %v1542, 0.0
  %1555 = vadd.xlane.f32.xlu0 %v1554
  %v1556 = vpop.xlane.xlu0 %1555
  %v1557 = vmul.f32 %v1547, %v1305
  %v1558 = vmul.f32 %v1550, %v1305
  %v1559 = vmul.f32 %v1553, %v1305
  %v1560 = vmul.f32 %v1556, %v1305
  %v1561 = vsub.f32 %v1539, %v1557
  %v1562 = vsub.f32 %v1540, %v1558
  %v1563 = vsub.f32 %v1541, %v1559
  %v1564 = vsub.f32 %v1542, %v1560
  %v1565 = vmul.f32 %v1561, %v1561
  %v1566 = vmul.f32 %v1562, %v1562
  %v1567 = vmul.f32 %v1563, %v1563
  %v1568 = vmul.f32 %v1564, %v1564
  %v1569 = vsel %vm114, %v1565, 0.0
  %1570 = vadd.xlane.f32.xlu0 %v1569
  %v1571 = vpop.xlane.xlu0 %1570
  %v1572 = vsel %vm114, %v1566, 0.0
  %1573 = vadd.xlane.f32.xlu0 %v1572
  %v1574 = vpop.xlane.xlu0 %1573
  %v1575 = vsel %vm114, %v1567, 0.0
  %1576 = vadd.xlane.f32.xlu0 %v1575
  %v1577 = vpop.xlane.xlu0 %1576
  %v1578 = vsel %vm114, %v1568, 0.0
  %1579 = vadd.xlane.f32.xlu0 %v1578
  %v1580 = vpop.xlane.xlu0 %1579
  %v1581 = vmul.f32 %v1571, %v1305
  %v1582 = vmul.f32 %v1574, %v1305
  %v1583 = vmul.f32 %v1577, %v1305
  %v1584 = vmul.f32 %v1580, %v1305
  %v1585 = vadd.f32 %v1581, 1e-05
  %v1586 = vadd.f32 %v1582, 1e-05
  %v1587 = vadd.f32 %v1583, 1e-05
  %v1588 = vadd.f32 %v1584, 1e-05
  %v1589 = vrsqrt.pop %v1585
  %v1590 = vrsqrt.pop %v1586
  %v1591 = vrsqrt.pop %v1587
  %v1592 = vrsqrt.pop %v1588
  %v1593 = vmul.f32 %v1561, %v1589
  %v1594 = vmul.f32 %v1562, %v1590
  %v1595 = vmul.f32 %v1563, %v1591
  %v1596 = vmul.f32 %v1564, %v1592
  %v1597 = vlaneseq
  %v1598 = vshrl.u32 %v1597, 7
  %v1599 = vsub.s32 0, %v1598
  %v1600 = vrot.slane %v1543, %v1599
  %v1601 = vmul.f32 %v1593, %v1600
  %v1602 = vmul.f32 %v1594, %v1600
  %v1603 = vmul.f32 %v1595, %v1600
  %v1604 = vmul.f32 %v1596, %v1600
  %v1605 = vlaneseq
  %v1606 = vshrl.u32 %v1605, 7
  %v1607 = vsub.s32 0, %v1606
  %v1608 = vrot.slane %v1544, %v1607
  %v1609 = vadd.f32 %v1601, %v1608
  %v1610 = vadd.f32 %v1602, %v1608
  %v1611 = vadd.f32 %v1603, %v1608
  %v1612 = vadd.f32 %v1604, %v1608
  %v1613 = vpack.c.bf16 %v1610, %v1609
  %v1614 = vpack.c.bf16 %v1612, %v1611
  %v1616 = vsel %vm114, %v1613, 0
  %v1619 = vsel %vm114, %v1614, 0
  %1621 = vmatprep.subr.bf16.mxu0 0
  %1622 = vmatpush1.bf16.msra.mxu0 %v110
  %1623 = vmatprep.subr.bf16.mxu0 0
  %1624 = vmatpush1.bf16.msra.mxu0 %v111
  %1625 = vmatprep.subr.bf16.mxu0 0
  %1626 = vmatpush1.bf16.msra.mxu0 0
  %1627 = vmatprep.subr.bf16.mxu0 0
  %1628 = vmatpush1.bf16.msra.mxu0 0
  %1629 = vmatprep.subr.bf16.mxu0 0
  %1630 = vmatpush1.bf16.msra.mxu0 0
  %1631 = vmatprep.subr.bf16.mxu0 0
  %1632 = vmatpush1.bf16.msra.mxu0 0
  %1633 = vmatprep.subr.bf16.mxu0 0
  %1634 = vmatpush1.bf16.msra.mxu0 0
  %1635 = vmatprep.subr.bf16.mxu0 0
  %1636 = vmatpush1.bf16.msra.mxu0 0
  %1637 = vmatprep.subr.bf16.mxu0 0
  %1638 = vmatpush1.bf16.msra.mxu0 0
  %1639 = vmatprep.subr.bf16.mxu0 0
  %1640 = vmatpush1.bf16.msra.mxu0 0
  %1641 = vmatprep.subr.bf16.mxu0 0
  %1642 = vmatpush1.bf16.msra.mxu0 0
  %1643 = vmatprep.subr.bf16.mxu0 0
  %1644 = vmatpush1.bf16.msra.mxu0 0
  %1645 = vmatprep.subr.bf16.mxu0 0
  %1646 = vmatpush1.bf16.msra.mxu0 0
  %1647 = vmatprep.subr.bf16.mxu0 0
  %1648 = vmatpush1.bf16.msra.mxu0 0
  %1649 = vmatprep.subr.bf16.mxu0 0
  %1650 = vmatpush1.bf16.msra.mxu0 0
  %1651 = vmatprep.subr.bf16.mxu0 0
  %1652 = vmatpush1.bf16.msra.mxu0 0
  %1653 = vmatprep.mubr.bf16.mxu0 0
  %1654 = vmatmul.mubr.bf16.gmra.mrb[0].mxu0 %v1616
  %v1655 = vpop.f32.mrb[0].mxu0
  %v1656 = vadd.f32 %v101, %v1655
  %v1657 = vpop.f32.mrb[0].mxu0
  %v1658 = vpop.f32.mrb[0].mxu0
  %v1659 = vadd.f32 %v101, %v1658
  %v1660 = vpop.f32.mrb[0].mxu0
  %1661 = vmatprep.mubr.bf16.mxu0 0
  %1662 = vmatmul.mubr.bf16.gmra.mrb[0].mxu0 %v1619
  %v1663 = vpop.f32.mrb[0].mxu0
  %v1664 = vadd.f32 %v101, %v1663
  %v1665 = vpop.f32.mrb[0].mxu0
  %v1666 = vpop.f32.mrb[0].mxu0
  %v1667 = vadd.f32 %v101, %v1666
  %v1668 = vpop.f32.mrb[0].mxu0
  %1669 = vdwg.mxu0
  %v1670 = vmul.f32 %v1656, 0.35355338
  %v1671 = vmul.f32 %v1659, 0.35355338
  %v1672 = vmul.f32 %v1664, 0.35355338
  %v1673 = vmul.f32 %v1667, 0.35355338
  %v1674 = vpack.c.bf16 %v1671, %v1670
  %v1675 = vpack.c.bf16 %v1673, %v1672
  %v1676 = vpack.c.bf16 %v1659, %v1656
  %v1677 = vpack.c.bf16 %v1667, %v1664
  %1679 = vrot.lane.b32.xlu0 %v1676, 96
  %v1680 = vpop.permute.xlu0 %1679
  %v1682 = vsel %vm181, %v1674, 0
  %v1685 = vsel %vm181, %v1680, 0
  %1687 = vmatprep.subr.bf16.mxu0 0
  %1688 = vmatpush1.bf16.xpose.msra.mxu0 %v1685
  %1689 = vmatprep.subr.bf16.mxu0 0
  %1690 = vmatpush1.bf16.xpose.msra.mxu0 0
  %1691 = vmatprep.subr.bf16.mxu0 0
  %1692 = vmatpush1.bf16.xpose.msra.mxu0 0
  %1693 = vmatprep.subr.bf16.mxu0 0
  %1694 = vmatpush1.bf16.xpose.msra.mxu0 0
  %1695 = vmatprep.subr.bf16.mxu0 0
  %1696 = vmatpush1.bf16.xpose.msra.mxu0 0
  %1697 = vmatprep.subr.bf16.mxu0 0
  %1698 = vmatpush1.bf16.xpose.msra.mxu0 0
  %1699 = vmatprep.subr.bf16.mxu0 0
  %1700 = vmatpush1.bf16.xpose.msra.mxu0 0
  %1701 = vmatprep.subr.bf16.mxu0 0
  %1702 = vmatpush1.bf16.xpose.msra.mxu0 0
  %1703 = vmatprep.subr.bf16.mxu0 0
  %1704 = vmatpush1.bf16.xpose.msra.mxu0 0
  %1705 = vmatprep.subr.bf16.mxu0 0
  %1706 = vmatpush1.bf16.xpose.msra.mxu0 0
  %1707 = vmatprep.subr.bf16.mxu0 0
  %1708 = vmatpush1.bf16.xpose.msra.mxu0 0
  %1709 = vmatprep.subr.bf16.mxu0 0
  %1710 = vmatpush1.bf16.xpose.msra.mxu0 0
  %1711 = vmatprep.subr.bf16.mxu0 0
  %1712 = vmatpush1.bf16.xpose.msra.mxu0 0
  %1713 = vmatprep.subr.bf16.mxu0 0
  %1714 = vmatpush1.bf16.xpose.msra.mxu0 0
  %1715 = vmatprep.subr.bf16.mxu0 0
  %1716 = vmatpush1.bf16.xpose.msra.mxu0 0
  %1717 = vmatprep.subr.bf16.mxu0 0
  %1718 = vmatpush1.bf16.xpose.msra.mxu0 0
  %1719 = vmatprep.mubr.bf16.mxu0 0
  %1720 = vmatmul.mubr.bf16.gmra.mrb[0].mxu0 %v1682
  %v1721 = vpop.f32.mrb[0].mxu0
  %v1722 = vadd.f32 0.0, %v1721
  %v1723 = vpop.f32.mrb[0].mxu0
  %v1724 = vpop.f32.mrb[0].mxu0
  %v1725 = vadd.f32 0.0, %v1724
  %v1726 = vpop.f32.mrb[0].mxu0
  %1727 = vdwg.mxu0
  %v1728 = vsel %vm229, %v1722, -inf
  %1729 = vmax.xlane.f32.xlu0 %v1728
  %v1730 = vpop.xlane.xlu0 %1729
  %v1731 = vsel %vm229, %v1725, -inf
  %1732 = vmax.xlane.f32.xlu0 %v1731
  %v1733 = vpop.xlane.xlu0 %1732
  %v1734 = vsub.f32 %v1722, %v1730
  %v1735 = vsub.f32 %v1725, %v1733
  %v1736 = vmul.f32 %v1734, 1.442695
  %v1737 = vpow.pop %v1736
  %v1738 = vmul.f32 %v1735, 1.442695
  %v1739 = vpow.pop %v1738
  %v1740 = vsel %vm229, %v1737, 0.0
  %1741 = vadd.xlane.f32.xlu0 %v1740
  %v1742 = vpop.xlane.xlu0 %1741
  %v1743 = vsel %vm229, %v1739, 0.0
  %1744 = vadd.xlane.f32.xlu0 %v1743
  %v1745 = vpop.xlane.xlu0 %1744
  %v1746 = vrcp.pop %v1742
  %v1747 = vrcp.pop %v1745
  %v1748 = vmul.f32 %v1737, %v1746
  %v1749 = vmul.f32 %v1739, %v1747
  %v1750 = vpack.c.bf16 %v1749, %v1748
  %1751 = vrot.lane.b32.xlu0 %v1676, 64
  %v1752 = vpop.permute.xlu0 %1751
  %v1755 = vsel %vm229, %v1750, 0
  %1757 = vmatprep.subr.bf16.mxu0 0
  %1758 = vmatpush1.bf16.msra.mxu0 %v1752
  %1759 = vmatprep.subr.bf16.mxu0 0
  %1760 = vmatpush1.bf16.msra.mxu0 0
  %1761 = vmatprep.subr.bf16.mxu0 0
  %1762 = vmatpush1.bf16.msra.mxu0 0
  %1763 = vmatprep.subr.bf16.mxu0 0
  %1764 = vmatpush1.bf16.msra.mxu0 0
  %1765 = vmatprep.subr.bf16.mxu0 0
  %1766 = vmatpush1.bf16.msra.mxu0 0
  %1767 = vmatprep.subr.bf16.mxu0 0
  %1768 = vmatpush1.bf16.msra.mxu0 0
  %1769 = vmatprep.subr.bf16.mxu0 0
  %1770 = vmatpush1.bf16.msra.mxu0 0
  %1771 = vmatprep.subr.bf16.mxu0 0
  %1772 = vmatpush1.bf16.msra.mxu0 0
  %1773 = vmatprep.subr.bf16.mxu0 0
  %1774 = vmatpush1.bf16.msra.mxu0 0
  %1775 = vmatprep.subr.bf16.mxu0 0
  %1776 = vmatpush1.bf16.msra.mxu0 0
  %1777 = vmatprep.subr.bf16.mxu0 0
  %1778 = vmatpush1.bf16.msra.mxu0 0
  %1779 = vmatprep.subr.bf16.mxu0 0
  %1780 = vmatpush1.bf16.msra.mxu0 0
  %1781 = vmatprep.subr.bf16.mxu0 0
  %1782 = vmatpush1.bf16.msra.mxu0 0
  %1783 = vmatprep.subr.bf16.mxu0 0
  %1784 = vmatpush1.bf16.msra.mxu0 0
  %1785 = vmatprep.subr.bf16.mxu0 0
  %1786 = vmatpush1.bf16.msra.mxu0 0
  %1787 = vmatprep.subr.bf16.mxu0 0
  %1788 = vmatpush1.bf16.msra.mxu0 0
  %1789 = vmatprep.mubr.bf16.mxu0 0
  %1790 = vmatmul.mubr.bf16.gmra.mrb[0].mxu0 %v1755
  %v1791 = vpop.f32.mrb[0].mxu0
  %v1792 = vadd.f32 0.0, %v1791
  %v1793 = vpop.f32.mrb[0].mxu0
  %v1794 = vpop.f32.mrb[0].mxu0
  %v1795 = vadd.f32 0.0, %v1794
  %v1796 = vpop.f32.mrb[0].mxu0
  %1797 = vdwg.mxu0
  %1799 = vrot.lane.b32.xlu0 %v1674, 120
  %v1800 = vpop.permute.xlu0 %1799
  %1801 = vrot.lane.b32.xlu0 %v1676, 88
  %v1802 = vpop.permute.xlu0 %1801
  %v1804 = vsel %vm181, %v1800, 0
  %v1807 = vsel %vm181, %v1802, 0
  %1809 = vmatprep.subr.bf16.mxu0 0
  %1810 = vmatpush1.bf16.xpose.msra.mxu0 %v1807
  %1811 = vmatprep.subr.bf16.mxu0 0
  %1812 = vmatpush1.bf16.xpose.msra.mxu0 0
  %1813 = vmatprep.subr.bf16.mxu0 0
  %1814 = vmatpush1.bf16.xpose.msra.mxu0 0
  %1815 = vmatprep.subr.bf16.mxu0 0
  %1816 = vmatpush1.bf16.xpose.msra.mxu0 0
  %1817 = vmatprep.subr.bf16.mxu0 0
  %1818 = vmatpush1.bf16.xpose.msra.mxu0 0
  %1819 = vmatprep.subr.bf16.mxu0 0
  %1820 = vmatpush1.bf16.xpose.msra.mxu0 0
  %1821 = vmatprep.subr.bf16.mxu0 0
  %1822 = vmatpush1.bf16.xpose.msra.mxu0 0
  %1823 = vmatprep.subr.bf16.mxu0 0
  %1824 = vmatpush1.bf16.xpose.msra.mxu0 0
  %1825 = vmatprep.subr.bf16.mxu0 0
  %1826 = vmatpush1.bf16.xpose.msra.mxu0 0
  %1827 = vmatprep.subr.bf16.mxu0 0
  %1828 = vmatpush1.bf16.xpose.msra.mxu0 0
  %1829 = vmatprep.subr.bf16.mxu0 0
  %1830 = vmatpush1.bf16.xpose.msra.mxu0 0
  %1831 = vmatprep.subr.bf16.mxu0 0
  %1832 = vmatpush1.bf16.xpose.msra.mxu0 0
  %1833 = vmatprep.subr.bf16.mxu0 0
  %1834 = vmatpush1.bf16.xpose.msra.mxu0 0
  %1835 = vmatprep.subr.bf16.mxu0 0
  %1836 = vmatpush1.bf16.xpose.msra.mxu0 0
  %1837 = vmatprep.subr.bf16.mxu0 0
  %1838 = vmatpush1.bf16.xpose.msra.mxu0 0
  %1839 = vmatprep.subr.bf16.mxu0 0
  %1840 = vmatpush1.bf16.xpose.msra.mxu0 0
  %1841 = vmatprep.mubr.bf16.mxu0 0
  %1842 = vmatmul.mubr.bf16.gmra.mrb[0].mxu0 %v1804
  %v1843 = vpop.f32.mrb[0].mxu0
  %v1844 = vadd.f32 0.0, %v1843
  %v1845 = vpop.f32.mrb[0].mxu0
  %v1846 = vpop.f32.mrb[0].mxu0
  %v1847 = vadd.f32 0.0, %v1846
  %v1848 = vpop.f32.mrb[0].mxu0
  %1849 = vdwg.mxu0
  %v1850 = vsel %vm229, %v1844, -inf
  %1851 = vmax.xlane.f32.xlu0 %v1850
  %v1852 = vpop.xlane.xlu0 %1851
  %v1853 = vsel %vm229, %v1847, -inf
  %1854 = vmax.xlane.f32.xlu0 %v1853
  %v1855 = vpop.xlane.xlu0 %1854
  %v1856 = vsub.f32 %v1844, %v1852
  %v1857 = vsub.f32 %v1847, %v1855
  %v1858 = vmul.f32 %v1856, 1.442695
  %v1859 = vpow.pop %v1858
  %v1860 = vmul.f32 %v1857, 1.442695
  %v1861 = vpow.pop %v1860
  %v1862 = vsel %vm229, %v1859, 0.0
  %1863 = vadd.xlane.f32.xlu0 %v1862
  %v1864 = vpop.xlane.xlu0 %1863
  %v1865 = vsel %vm229, %v1861, 0.0
  %1866 = vadd.xlane.f32.xlu0 %v1865
  %v1867 = vpop.xlane.xlu0 %1866
  %v1868 = vrcp.pop %v1864
  %v1869 = vrcp.pop %v1867
  %v1870 = vmul.f32 %v1859, %v1868
  %v1871 = vmul.f32 %v1861, %v1869
  %v1872 = vpack.c.bf16 %v1871, %v1870
  %1873 = vrot.lane.b32.xlu0 %v1676, 56
  %v1874 = vpop.permute.xlu0 %1873
  %v1877 = vsel %vm229, %v1872, 0
  %1879 = vmatprep.subr.bf16.mxu0 0
  %1880 = vmatpush1.bf16.msra.mxu0 %v1874
  %1881 = vmatprep.subr.bf16.mxu0 0
  %1882 = vmatpush1.bf16.msra.mxu0 0
  %1883 = vmatprep.subr.bf16.mxu0 0
  %1884 = vmatpush1.bf16.msra.mxu0 0
  %1885 = vmatprep.subr.bf16.mxu0 0
  %1886 = vmatpush1.bf16.msra.mxu0 0
  %1887 = vmatprep.subr.bf16.mxu0 0
  %1888 = vmatpush1.bf16.msra.mxu0 0
  %1889 = vmatprep.subr.bf16.mxu0 0
  %1890 = vmatpush1.bf16.msra.mxu0 0
  %1891 = vmatprep.subr.bf16.mxu0 0
  %1892 = vmatpush1.bf16.msra.mxu0 0
  %1893 = vmatprep.subr.bf16.mxu0 0
  %1894 = vmatpush1.bf16.msra.mxu0 0
  %1895 = vmatprep.subr.bf16.mxu0 0
  %1896 = vmatpush1.bf16.msra.mxu0 0
  %1897 = vmatprep.subr.bf16.mxu0 0
  %1898 = vmatpush1.bf16.msra.mxu0 0
  %1899 = vmatprep.subr.bf16.mxu0 0
  %1900 = vmatpush1.bf16.msra.mxu0 0
  %1901 = vmatprep.subr.bf16.mxu0 0
  %1902 = vmatpush1.bf16.msra.mxu0 0
  %1903 = vmatprep.subr.bf16.mxu0 0
  %1904 = vmatpush1.bf16.msra.mxu0 0
  %1905 = vmatprep.subr.bf16.mxu0 0
  %1906 = vmatpush1.bf16.msra.mxu0 0
  %1907 = vmatprep.subr.bf16.mxu0 0
  %1908 = vmatpush1.bf16.msra.mxu0 0
  %1909 = vmatprep.subr.bf16.mxu0 0
  %1910 = vmatpush1.bf16.msra.mxu0 0
  %1911 = vmatprep.mubr.bf16.mxu0 0
  %1912 = vmatmul.mubr.bf16.gmra.mrb[0].mxu0 %v1877
  %v1913 = vpop.f32.mrb[0].mxu0
  %v1914 = vadd.f32 0.0, %v1913
  %v1915 = vpop.f32.mrb[0].mxu0
  %v1916 = vpop.f32.mrb[0].mxu0
  %v1917 = vadd.f32 0.0, %v1916
  %v1918 = vpop.f32.mrb[0].mxu0
  %1919 = vdwg.mxu0
  %1920 = vrot.lane.b32.xlu0 %v1674, 112
  %v1921 = vpop.permute.xlu0 %1920
  %1922 = vrot.lane.b32.xlu0 %v1676, 80
  %v1923 = vpop.permute.xlu0 %1922
  %v1925 = vsel %vm181, %v1921, 0
  %v1928 = vsel %vm181, %v1923, 0
  %1930 = vmatprep.subr.bf16.mxu0 0
  %1931 = vmatpush1.bf16.xpose.msra.mxu0 %v1928
  %1932 = vmatprep.subr.bf16.mxu0 0
  %1933 = vmatpush1.bf16.xpose.msra.mxu0 0
  %1934 = vmatprep.subr.bf16.mxu0 0
  %1935 = vmatpush1.bf16.xpose.msra.mxu0 0
  %1936 = vmatprep.subr.bf16.mxu0 0
  %1937 = vmatpush1.bf16.xpose.msra.mxu0 0
  %1938 = vmatprep.subr.bf16.mxu0 0
  %1939 = vmatpush1.bf16.xpose.msra.mxu0 0
  %1940 = vmatprep.subr.bf16.mxu0 0
  %1941 = vmatpush1.bf16.xpose.msra.mxu0 0
  %1942 = vmatprep.subr.bf16.mxu0 0
  %1943 = vmatpush1.bf16.xpose.msra.mxu0 0
  %1944 = vmatprep.subr.bf16.mxu0 0
  %1945 = vmatpush1.bf16.xpose.msra.mxu0 0
  %1946 = vmatprep.subr.bf16.mxu0 0
  %1947 = vmatpush1.bf16.xpose.msra.mxu0 0
  %1948 = vmatprep.subr.bf16.mxu0 0
  %1949 = vmatpush1.bf16.xpose.msra.mxu0 0
  %1950 = vmatprep.subr.bf16.mxu0 0
  %1951 = vmatpush1.bf16.xpose.msra.mxu0 0
  %1952 = vmatprep.subr.bf16.mxu0 0
  %1953 = vmatpush1.bf16.xpose.msra.mxu0 0
  %1954 = vmatprep.subr.bf16.mxu0 0
  %1955 = vmatpush1.bf16.xpose.msra.mxu0 0
  %1956 = vmatprep.subr.bf16.mxu0 0
  %1957 = vmatpush1.bf16.xpose.msra.mxu0 0
  %1958 = vmatprep.subr.bf16.mxu0 0
  %1959 = vmatpush1.bf16.xpose.msra.mxu0 0
  %1960 = vmatprep.subr.bf16.mxu0 0
  %1961 = vmatpush1.bf16.xpose.msra.mxu0 0
  %1962 = vmatprep.mubr.bf16.mxu0 0
  %1963 = vmatmul.mubr.bf16.gmra.mrb[0].mxu0 %v1925
  %v1964 = vpop.f32.mrb[0].mxu0
  %v1965 = vadd.f32 0.0, %v1964
  %v1966 = vpop.f32.mrb[0].mxu0
  %v1967 = vpop.f32.mrb[0].mxu0
  %v1968 = vadd.f32 0.0, %v1967
  %v1969 = vpop.f32.mrb[0].mxu0
  %1970 = vdwg.mxu0
  %v1971 = vsel %vm229, %v1965, -inf
  %1972 = vmax.xlane.f32.xlu0 %v1971
  %v1973 = vpop.xlane.xlu0 %1972
  %v1974 = vsel %vm229, %v1968, -inf
  %1975 = vmax.xlane.f32.xlu0 %v1974
  %v1976 = vpop.xlane.xlu0 %1975
  %v1977 = vsub.f32 %v1965, %v1973
  %v1978 = vsub.f32 %v1968, %v1976
  %v1979 = vmul.f32 %v1977, 1.442695
  %v1980 = vpow.pop %v1979
  %v1981 = vmul.f32 %v1978, 1.442695
  %v1982 = vpow.pop %v1981
  %v1983 = vsel %vm229, %v1980, 0.0
  %1984 = vadd.xlane.f32.xlu0 %v1983
  %v1985 = vpop.xlane.xlu0 %1984
  %v1986 = vsel %vm229, %v1982, 0.0
  %1987 = vadd.xlane.f32.xlu0 %v1986
  %v1988 = vpop.xlane.xlu0 %1987
  %v1989 = vrcp.pop %v1985
  %v1990 = vrcp.pop %v1988
  %v1991 = vmul.f32 %v1980, %v1989
  %v1992 = vmul.f32 %v1982, %v1990
  %v1993 = vpack.c.bf16 %v1992, %v1991
  %1994 = vrot.lane.b32.xlu0 %v1676, 48
  %v1995 = vpop.permute.xlu0 %1994
  %v1998 = vsel %vm229, %v1993, 0
  %2000 = vmatprep.subr.bf16.mxu0 0
  %2001 = vmatpush1.bf16.msra.mxu0 %v1995
  %2002 = vmatprep.subr.bf16.mxu0 0
  %2003 = vmatpush1.bf16.msra.mxu0 0
  %2004 = vmatprep.subr.bf16.mxu0 0
  %2005 = vmatpush1.bf16.msra.mxu0 0
  %2006 = vmatprep.subr.bf16.mxu0 0
  %2007 = vmatpush1.bf16.msra.mxu0 0
  %2008 = vmatprep.subr.bf16.mxu0 0
  %2009 = vmatpush1.bf16.msra.mxu0 0
  %2010 = vmatprep.subr.bf16.mxu0 0
  %2011 = vmatpush1.bf16.msra.mxu0 0
  %2012 = vmatprep.subr.bf16.mxu0 0
  %2013 = vmatpush1.bf16.msra.mxu0 0
  %2014 = vmatprep.subr.bf16.mxu0 0
  %2015 = vmatpush1.bf16.msra.mxu0 0
  %2016 = vmatprep.subr.bf16.mxu0 0
  %2017 = vmatpush1.bf16.msra.mxu0 0
  %2018 = vmatprep.subr.bf16.mxu0 0
  %2019 = vmatpush1.bf16.msra.mxu0 0
  %2020 = vmatprep.subr.bf16.mxu0 0
  %2021 = vmatpush1.bf16.msra.mxu0 0
  %2022 = vmatprep.subr.bf16.mxu0 0
  %2023 = vmatpush1.bf16.msra.mxu0 0
  %2024 = vmatprep.subr.bf16.mxu0 0
  %2025 = vmatpush1.bf16.msra.mxu0 0
  %2026 = vmatprep.subr.bf16.mxu0 0
  %2027 = vmatpush1.bf16.msra.mxu0 0
  %2028 = vmatprep.subr.bf16.mxu0 0
  %2029 = vmatpush1.bf16.msra.mxu0 0
  %2030 = vmatprep.subr.bf16.mxu0 0
  %2031 = vmatpush1.bf16.msra.mxu0 0
  %2032 = vmatprep.mubr.bf16.mxu0 0
  %2033 = vmatmul.mubr.bf16.gmra.mrb[0].mxu0 %v1998
  %v2034 = vpop.f32.mrb[0].mxu0
  %v2035 = vadd.f32 0.0, %v2034
  %v2036 = vpop.f32.mrb[0].mxu0
  %v2037 = vpop.f32.mrb[0].mxu0
  %v2038 = vadd.f32 0.0, %v2037
  %v2039 = vpop.f32.mrb[0].mxu0
  %2040 = vdwg.mxu0
  %2041 = vrot.lane.b32.xlu0 %v1674, 104
  %v2042 = vpop.permute.xlu0 %2041
  %2043 = vrot.lane.b32.xlu0 %v1676, 72
  %v2044 = vpop.permute.xlu0 %2043
  %v2046 = vsel %vm181, %v2042, 0
  %v2049 = vsel %vm181, %v2044, 0
  %2051 = vmatprep.subr.bf16.mxu0 0
  %2052 = vmatpush1.bf16.xpose.msra.mxu0 %v2049
  %2053 = vmatprep.subr.bf16.mxu0 0
  %2054 = vmatpush1.bf16.xpose.msra.mxu0 0
  %2055 = vmatprep.subr.bf16.mxu0 0
  %2056 = vmatpush1.bf16.xpose.msra.mxu0 0
  %2057 = vmatprep.subr.bf16.mxu0 0
  %2058 = vmatpush1.bf16.xpose.msra.mxu0 0
  %2059 = vmatprep.subr.bf16.mxu0 0
  %2060 = vmatpush1.bf16.xpose.msra.mxu0 0
  %2061 = vmatprep.subr.bf16.mxu0 0
  %2062 = vmatpush1.bf16.xpose.msra.mxu0 0
  %2063 = vmatprep.subr.bf16.mxu0 0
  %2064 = vmatpush1.bf16.xpose.msra.mxu0 0
  %2065 = vmatprep.subr.bf16.mxu0 0
  %2066 = vmatpush1.bf16.xpose.msra.mxu0 0
  %2067 = vmatprep.subr.bf16.mxu0 0
  %2068 = vmatpush1.bf16.xpose.msra.mxu0 0
  %2069 = vmatprep.subr.bf16.mxu0 0
  %2070 = vmatpush1.bf16.xpose.msra.mxu0 0
  %2071 = vmatprep.subr.bf16.mxu0 0
  %2072 = vmatpush1.bf16.xpose.msra.mxu0 0
  %2073 = vmatprep.subr.bf16.mxu0 0
  %2074 = vmatpush1.bf16.xpose.msra.mxu0 0
  %2075 = vmatprep.subr.bf16.mxu0 0
  %2076 = vmatpush1.bf16.xpose.msra.mxu0 0
  %2077 = vmatprep.subr.bf16.mxu0 0
  %2078 = vmatpush1.bf16.xpose.msra.mxu0 0
  %2079 = vmatprep.subr.bf16.mxu0 0
  %2080 = vmatpush1.bf16.xpose.msra.mxu0 0
  %2081 = vmatprep.subr.bf16.mxu0 0
  %2082 = vmatpush1.bf16.xpose.msra.mxu0 0
  %2083 = vmatprep.mubr.bf16.mxu0 0
  %2084 = vmatmul.mubr.bf16.gmra.mrb[0].mxu0 %v2046
  %v2085 = vpop.f32.mrb[0].mxu0
  %v2086 = vadd.f32 0.0, %v2085
  %v2087 = vpop.f32.mrb[0].mxu0
  %v2088 = vpop.f32.mrb[0].mxu0
  %v2089 = vadd.f32 0.0, %v2088
  %v2090 = vpop.f32.mrb[0].mxu0
  %2091 = vdwg.mxu0
  %v2092 = vsel %vm229, %v2086, -inf
  %2093 = vmax.xlane.f32.xlu0 %v2092
  %v2094 = vpop.xlane.xlu0 %2093
  %v2095 = vsel %vm229, %v2089, -inf
  %2096 = vmax.xlane.f32.xlu0 %v2095
  %v2097 = vpop.xlane.xlu0 %2096
  %v2098 = vsub.f32 %v2086, %v2094
  %v2099 = vsub.f32 %v2089, %v2097
  %v2100 = vmul.f32 %v2098, 1.442695
  %v2101 = vpow.pop %v2100
  %v2102 = vmul.f32 %v2099, 1.442695
  %v2103 = vpow.pop %v2102
  %v2104 = vsel %vm229, %v2101, 0.0
  %2105 = vadd.xlane.f32.xlu0 %v2104
  %v2106 = vpop.xlane.xlu0 %2105
  %v2107 = vsel %vm229, %v2103, 0.0
  %2108 = vadd.xlane.f32.xlu0 %v2107
  %v2109 = vpop.xlane.xlu0 %2108
  %v2110 = vrcp.pop %v2106
  %v2111 = vrcp.pop %v2109
  %v2112 = vmul.f32 %v2101, %v2110
  %v2113 = vmul.f32 %v2103, %v2111
  %v2114 = vpack.c.bf16 %v2113, %v2112
  %2115 = vrot.lane.b32.xlu0 %v1676, 40
  %v2116 = vpop.permute.xlu0 %2115
  %v2119 = vsel %vm229, %v2114, 0
  %2121 = vmatprep.subr.bf16.mxu0 0
  %2122 = vmatpush1.bf16.msra.mxu0 %v2116
  %2123 = vmatprep.subr.bf16.mxu0 0
  %2124 = vmatpush1.bf16.msra.mxu0 0
  %2125 = vmatprep.subr.bf16.mxu0 0
  %2126 = vmatpush1.bf16.msra.mxu0 0
  %2127 = vmatprep.subr.bf16.mxu0 0
  %2128 = vmatpush1.bf16.msra.mxu0 0
  %2129 = vmatprep.subr.bf16.mxu0 0
  %2130 = vmatpush1.bf16.msra.mxu0 0
  %2131 = vmatprep.subr.bf16.mxu0 0
  %2132 = vmatpush1.bf16.msra.mxu0 0
  %2133 = vmatprep.subr.bf16.mxu0 0
  %2134 = vmatpush1.bf16.msra.mxu0 0
  %2135 = vmatprep.subr.bf16.mxu0 0
  %2136 = vmatpush1.bf16.msra.mxu0 0
  %2137 = vmatprep.subr.bf16.mxu0 0
  %2138 = vmatpush1.bf16.msra.mxu0 0
  %2139 = vmatprep.subr.bf16.mxu0 0
  %2140 = vmatpush1.bf16.msra.mxu0 0
  %2141 = vmatprep.subr.bf16.mxu0 0
  %2142 = vmatpush1.bf16.msra.mxu0 0
  %2143 = vmatprep.subr.bf16.mxu0 0
  %2144 = vmatpush1.bf16.msra.mxu0 0
  %2145 = vmatprep.subr.bf16.mxu0 0
  %2146 = vmatpush1.bf16.msra.mxu0 0
  %2147 = vmatprep.subr.bf16.mxu0 0
  %2148 = vmatpush1.bf16.msra.mxu0 0
  %2149 = vmatprep.subr.bf16.mxu0 0
  %2150 = vmatpush1.bf16.msra.mxu0 0
  %2151 = vmatprep.subr.bf16.mxu0 0
  %2152 = vmatpush1.bf16.msra.mxu0 0
  %2153 = vmatprep.mubr.bf16.mxu0 0
  %2154 = vmatmul.mubr.bf16.gmra.mrb[0].mxu0 %v2119
  %v2155 = vpop.f32.mrb[0].mxu0
  %v2156 = vadd.f32 0.0, %v2155
  %v2157 = vpop.f32.mrb[0].mxu0
  %v2158 = vpop.f32.mrb[0].mxu0
  %v2159 = vadd.f32 0.0, %v2158
  %v2160 = vpop.f32.mrb[0].mxu0
  %2161 = vdwg.mxu0
  %2164 = vrot.lane.b32.xlu0 %v1914, 8
  %v2165 = vpop.permute.xlu0 %2164
  %2166 = vrot.lane.b32.xlu0 %v1917, 8
  %v2167 = vpop.permute.xlu0 %2166
  %2172 = vrot.lane.b32.xlu0 %v2035, 16
  %v2173 = vpop.permute.xlu0 %2172
  %2174 = vrot.lane.b32.xlu0 %v2038, 16
  %v2175 = vpop.permute.xlu0 %2174
  %2180 = vrot.lane.b32.xlu0 %v2156, 24
  %v2181 = vpop.permute.xlu0 %2180
  %2182 = vrot.lane.b32.xlu0 %v2159, 24
  %v2183 = vpop.permute.xlu0 %2182
  %v2186 = vsel %vm181, %v1792, %v2165
  %v2187 = vsel %vm181, %v1795, %v2167
  %v2188 = vsel %vm229, %v2186, %v2173
  %v2189 = vsel %vm229, %v2187, %v2175
  %v2190 = vsel %vm692, %v2188, %v2181
  %v2191 = vsel %vm692, %v2189, %v2183
  %2193 = vrot.lane.b32.xlu0 %v1677, 96
  %v2194 = vpop.permute.xlu0 %2193
  %v2196 = vsel %vm181, %v1675, 0
  %v2199 = vsel %vm181, %v2194, 0
  %2201 = vmatprep.subr.bf16.mxu0 0
  %2202 = vmatpush1.bf16.xpose.msra.mxu0 %v2199
  %2203 = vmatprep.subr.bf16.mxu0 0
  %2204 = vmatpush1.bf16.xpose.msra.mxu0 0
  %2205 = vmatprep.subr.bf16.mxu0 0
  %2206 = vmatpush1.bf16.xpose.msra.mxu0 0
  %2207 = vmatprep.subr.bf16.mxu0 0
  %2208 = vmatpush1.bf16.xpose.msra.mxu0 0
  %2209 = vmatprep.subr.bf16.mxu0 0
  %2210 = vmatpush1.bf16.xpose.msra.mxu0 0
  %2211 = vmatprep.subr.bf16.mxu0 0
  %2212 = vmatpush1.bf16.xpose.msra.mxu0 0
  %2213 = vmatprep.subr.bf16.mxu0 0
  %2214 = vmatpush1.bf16.xpose.msra.mxu0 0
  %2215 = vmatprep.subr.bf16.mxu0 0
  %2216 = vmatpush1.bf16.xpose.msra.mxu0 0
  %2217 = vmatprep.subr.bf16.mxu0 0
  %2218 = vmatpush1.bf16.xpose.msra.mxu0 0
  %2219 = vmatprep.subr.bf16.mxu0 0
  %2220 = vmatpush1.bf16.xpose.msra.mxu0 0
  %2221 = vmatprep.subr.bf16.mxu0 0
  %2222 = vmatpush1.bf16.xpose.msra.mxu0 0
  %2223 = vmatprep.subr.bf16.mxu0 0
  %2224 = vmatpush1.bf16.xpose.msra.mxu0 0
  %2225 = vmatprep.subr.bf16.mxu0 0
  %2226 = vmatpush1.bf16.xpose.msra.mxu0 0
  %2227 = vmatprep.subr.bf16.mxu0 0
  %2228 = vmatpush1.bf16.xpose.msra.mxu0 0
  %2229 = vmatprep.subr.bf16.mxu0 0
  %2230 = vmatpush1.bf16.xpose.msra.mxu0 0
  %2231 = vmatprep.subr.bf16.mxu0 0
  %2232 = vmatpush1.bf16.xpose.msra.mxu0 0
  %2233 = vmatprep.mubr.bf16.mxu0 0
  %2234 = vmatmul.mubr.bf16.gmra.mrb[0].mxu0 %v2196
  %v2235 = vpop.f32.mrb[0].mxu0
  %v2236 = vadd.f32 0.0, %v2235
  %v2237 = vpop.f32.mrb[0].mxu0
  %v2238 = vpop.f32.mrb[0].mxu0
  %v2239 = vadd.f32 0.0, %v2238
  %v2240 = vpop.f32.mrb[0].mxu0
  %2241 = vdwg.mxu0
  %v2242 = vsel %vm229, %v2236, -inf
  %2243 = vmax.xlane.f32.xlu0 %v2242
  %v2244 = vpop.xlane.xlu0 %2243
  %v2245 = vsel %vm229, %v2239, -inf
  %2246 = vmax.xlane.f32.xlu0 %v2245
  %v2247 = vpop.xlane.xlu0 %2246
  %v2248 = vsub.f32 %v2236, %v2244
  %v2249 = vsub.f32 %v2239, %v2247
  %v2250 = vmul.f32 %v2248, 1.442695
  %v2251 = vpow.pop %v2250
  %v2252 = vmul.f32 %v2249, 1.442695
  %v2253 = vpow.pop %v2252
  %v2254 = vsel %vm229, %v2251, 0.0
  %2255 = vadd.xlane.f32.xlu0 %v2254
  %v2256 = vpop.xlane.xlu0 %2255
  %v2257 = vsel %vm229, %v2253, 0.0
  %2258 = vadd.xlane.f32.xlu0 %v2257
  %v2259 = vpop.xlane.xlu0 %2258
  %v2260 = vrcp.pop %v2256
  %v2261 = vrcp.pop %v2259
  %v2262 = vmul.f32 %v2251, %v2260
  %v2263 = vmul.f32 %v2253, %v2261
  %v2264 = vpack.c.bf16 %v2263, %v2262
  %2265 = vrot.lane.b32.xlu0 %v1677, 64
  %v2266 = vpop.permute.xlu0 %2265
  %v2269 = vsel %vm229, %v2264, 0
  %2271 = vmatprep.subr.bf16.mxu0 0
  %2272 = vmatpush1.bf16.msra.mxu0 %v2266
  %2273 = vmatprep.subr.bf16.mxu0 0
  %2274 = vmatpush1.bf16.msra.mxu0 0
  %2275 = vmatprep.subr.bf16.mxu0 0
  %2276 = vmatpush1.bf16.msra.mxu0 0
  %2277 = vmatprep.subr.bf16.mxu0 0
  %2278 = vmatpush1.bf16.msra.mxu0 0
  %2279 = vmatprep.subr.bf16.mxu0 0
  %2280 = vmatpush1.bf16.msra.mxu0 0
  %2281 = vmatprep.subr.bf16.mxu0 0
  %2282 = vmatpush1.bf16.msra.mxu0 0
  %2283 = vmatprep.subr.bf16.mxu0 0
  %2284 = vmatpush1.bf16.msra.mxu0 0
  %2285 = vmatprep.subr.bf16.mxu0 0
  %2286 = vmatpush1.bf16.msra.mxu0 0
  %2287 = vmatprep.subr.bf16.mxu0 0
  %2288 = vmatpush1.bf16.msra.mxu0 0
  %2289 = vmatprep.subr.bf16.mxu0 0
  %2290 = vmatpush1.bf16.msra.mxu0 0
  %2291 = vmatprep.subr.bf16.mxu0 0
  %2292 = vmatpush1.bf16.msra.mxu0 0
  %2293 = vmatprep.subr.bf16.mxu0 0
  %2294 = vmatpush1.bf16.msra.mxu0 0
  %2295 = vmatprep.subr.bf16.mxu0 0
  %2296 = vmatpush1.bf16.msra.mxu0 0
  %2297 = vmatprep.subr.bf16.mxu0 0
  %2298 = vmatpush1.bf16.msra.mxu0 0
  %2299 = vmatprep.subr.bf16.mxu0 0
  %2300 = vmatpush1.bf16.msra.mxu0 0
  %2301 = vmatprep.subr.bf16.mxu0 0
  %2302 = vmatpush1.bf16.msra.mxu0 0
  %2303 = vmatprep.mubr.bf16.mxu0 0
  %2304 = vmatmul.mubr.bf16.gmra.mrb[0].mxu0 %v2269
  %v2305 = vpop.f32.mrb[0].mxu0
  %v2306 = vadd.f32 0.0, %v2305
  %v2307 = vpop.f32.mrb[0].mxu0
  %v2308 = vpop.f32.mrb[0].mxu0
  %v2309 = vadd.f32 0.0, %v2308
  %v2310 = vpop.f32.mrb[0].mxu0
  %2311 = vdwg.mxu0
  %2313 = vrot.lane.b32.xlu0 %v1675, 120
  %v2314 = vpop.permute.xlu0 %2313
  %2315 = vrot.lane.b32.xlu0 %v1677, 88
  %v2316 = vpop.permute.xlu0 %2315
  %v2318 = vsel %vm181, %v2314, 0
  %v2321 = vsel %vm181, %v2316, 0
  %2323 = vmatprep.subr.bf16.mxu0 0
  %2324 = vmatpush1.bf16.xpose.msra.mxu0 %v2321
  %2325 = vmatprep.subr.bf16.mxu0 0
  %2326 = vmatpush1.bf16.xpose.msra.mxu0 0
  %2327 = vmatprep.subr.bf16.mxu0 0
  %2328 = vmatpush1.bf16.xpose.msra.mxu0 0
  %2329 = vmatprep.subr.bf16.mxu0 0
  %2330 = vmatpush1.bf16.xpose.msra.mxu0 0
  %2331 = vmatprep.subr.bf16.mxu0 0
  %2332 = vmatpush1.bf16.xpose.msra.mxu0 0
  %2333 = vmatprep.subr.bf16.mxu0 0
  %2334 = vmatpush1.bf16.xpose.msra.mxu0 0
  %2335 = vmatprep.subr.bf16.mxu0 0
  %2336 = vmatpush1.bf16.xpose.msra.mxu0 0
  %2337 = vmatprep.subr.bf16.mxu0 0
  %2338 = vmatpush1.bf16.xpose.msra.mxu0 0
  %2339 = vmatprep.subr.bf16.mxu0 0
  %2340 = vmatpush1.bf16.xpose.msra.mxu0 0
  %2341 = vmatprep.subr.bf16.mxu0 0
  %2342 = vmatpush1.bf16.xpose.msra.mxu0 0
  %2343 = vmatprep.subr.bf16.mxu0 0
  %2344 = vmatpush1.bf16.xpose.msra.mxu0 0
  %2345 = vmatprep.subr.bf16.mxu0 0
  %2346 = vmatpush1.bf16.xpose.msra.mxu0 0
  %2347 = vmatprep.subr.bf16.mxu0 0
  %2348 = vmatpush1.bf16.xpose.msra.mxu0 0
  %2349 = vmatprep.subr.bf16.mxu0 0
  %2350 = vmatpush1.bf16.xpose.msra.mxu0 0
  %2351 = vmatprep.subr.bf16.mxu0 0
  %2352 = vmatpush1.bf16.xpose.msra.mxu0 0
  %2353 = vmatprep.subr.bf16.mxu0 0
  %2354 = vmatpush1.bf16.xpose.msra.mxu0 0
  %2355 = vmatprep.mubr.bf16.mxu0 0
  %2356 = vmatmul.mubr.bf16.gmra.mrb[0].mxu0 %v2318
  %v2357 = vpop.f32.mrb[0].mxu0
  %v2358 = vadd.f32 0.0, %v2357
  %v2359 = vpop.f32.mrb[0].mxu0
  %v2360 = vpop.f32.mrb[0].mxu0
  %v2361 = vadd.f32 0.0, %v2360
  %v2362 = vpop.f32.mrb[0].mxu0
  %2363 = vdwg.mxu0
  %v2364 = vsel %vm229, %v2358, -inf
  %2365 = vmax.xlane.f32.xlu0 %v2364
  %v2366 = vpop.xlane.xlu0 %2365
  %v2367 = vsel %vm229, %v2361, -inf
  %2368 = vmax.xlane.f32.xlu0 %v2367
  %v2369 = vpop.xlane.xlu0 %2368
  %v2370 = vsub.f32 %v2358, %v2366
  %v2371 = vsub.f32 %v2361, %v2369
  %v2372 = vmul.f32 %v2370, 1.442695
  %v2373 = vpow.pop %v2372
  %v2374 = vmul.f32 %v2371, 1.442695
  %v2375 = vpow.pop %v2374
  %v2376 = vsel %vm229, %v2373, 0.0
  %2377 = vadd.xlane.f32.xlu0 %v2376
  %v2378 = vpop.xlane.xlu0 %2377
  %v2379 = vsel %vm229, %v2375, 0.0
  %2380 = vadd.xlane.f32.xlu0 %v2379
  %v2381 = vpop.xlane.xlu0 %2380
  %v2382 = vrcp.pop %v2378
  %v2383 = vrcp.pop %v2381
  %v2384 = vmul.f32 %v2373, %v2382
  %v2385 = vmul.f32 %v2375, %v2383
  %v2386 = vpack.c.bf16 %v2385, %v2384
  %2387 = vrot.lane.b32.xlu0 %v1677, 56
  %v2388 = vpop.permute.xlu0 %2387
  %v2391 = vsel %vm229, %v2386, 0
  %2393 = vmatprep.subr.bf16.mxu0 0
  %2394 = vmatpush1.bf16.msra.mxu0 %v2388
  %2395 = vmatprep.subr.bf16.mxu0 0
  %2396 = vmatpush1.bf16.msra.mxu0 0
  %2397 = vmatprep.subr.bf16.mxu0 0
  %2398 = vmatpush1.bf16.msra.mxu0 0
  %2399 = vmatprep.subr.bf16.mxu0 0
  %2400 = vmatpush1.bf16.msra.mxu0 0
  %2401 = vmatprep.subr.bf16.mxu0 0
  %2402 = vmatpush1.bf16.msra.mxu0 0
  %2403 = vmatprep.subr.bf16.mxu0 0
  %2404 = vmatpush1.bf16.msra.mxu0 0
  %2405 = vmatprep.subr.bf16.mxu0 0
  %2406 = vmatpush1.bf16.msra.mxu0 0
  %2407 = vmatprep.subr.bf16.mxu0 0
  %2408 = vmatpush1.bf16.msra.mxu0 0
  %2409 = vmatprep.subr.bf16.mxu0 0
  %2410 = vmatpush1.bf16.msra.mxu0 0
  %2411 = vmatprep.subr.bf16.mxu0 0
  %2412 = vmatpush1.bf16.msra.mxu0 0
  %2413 = vmatprep.subr.bf16.mxu0 0
  %2414 = vmatpush1.bf16.msra.mxu0 0
  %2415 = vmatprep.subr.bf16.mxu0 0
  %2416 = vmatpush1.bf16.msra.mxu0 0
  %2417 = vmatprep.subr.bf16.mxu0 0
  %2418 = vmatpush1.bf16.msra.mxu0 0
  %2419 = vmatprep.subr.bf16.mxu0 0
  %2420 = vmatpush1.bf16.msra.mxu0 0
  %2421 = vmatprep.subr.bf16.mxu0 0
  %2422 = vmatpush1.bf16.msra.mxu0 0
  %2423 = vmatprep.subr.bf16.mxu0 0
  %2424 = vmatpush1.bf16.msra.mxu0 0
  %2425 = vmatprep.mubr.bf16.mxu0 0
  %2426 = vmatmul.mubr.bf16.gmra.mrb[0].mxu0 %v2391
  %v2427 = vpop.f32.mrb[0].mxu0
  %v2428 = vadd.f32 0.0, %v2427
  %v2429 = vpop.f32.mrb[0].mxu0
  %v2430 = vpop.f32.mrb[0].mxu0
  %v2431 = vadd.f32 0.0, %v2430
  %v2432 = vpop.f32.mrb[0].mxu0
  %2433 = vdwg.mxu0
  %2434 = vrot.lane.b32.xlu0 %v1675, 112
  %v2435 = vpop.permute.xlu0 %2434
  %2436 = vrot.lane.b32.xlu0 %v1677, 80
  %v2437 = vpop.permute.xlu0 %2436
  %v2439 = vsel %vm181, %v2435, 0
  %v2442 = vsel %vm181, %v2437, 0
  %2444 = vmatprep.subr.bf16.mxu0 0
  %2445 = vmatpush1.bf16.xpose.msra.mxu0 %v2442
  %2446 = vmatprep.subr.bf16.mxu0 0
  %2447 = vmatpush1.bf16.xpose.msra.mxu0 0
  %2448 = vmatprep.subr.bf16.mxu0 0
  %2449 = vmatpush1.bf16.xpose.msra.mxu0 0
  %2450 = vmatprep.subr.bf16.mxu0 0
  %2451 = vmatpush1.bf16.xpose.msra.mxu0 0
  %2452 = vmatprep.subr.bf16.mxu0 0
  %2453 = vmatpush1.bf16.xpose.msra.mxu0 0
  %2454 = vmatprep.subr.bf16.mxu0 0
  %2455 = vmatpush1.bf16.xpose.msra.mxu0 0
  %2456 = vmatprep.subr.bf16.mxu0 0
  %2457 = vmatpush1.bf16.xpose.msra.mxu0 0
  %2458 = vmatprep.subr.bf16.mxu0 0
  %2459 = vmatpush1.bf16.xpose.msra.mxu0 0
  %2460 = vmatprep.subr.bf16.mxu0 0
  %2461 = vmatpush1.bf16.xpose.msra.mxu0 0
  %2462 = vmatprep.subr.bf16.mxu0 0
  %2463 = vmatpush1.bf16.xpose.msra.mxu0 0
  %2464 = vmatprep.subr.bf16.mxu0 0
  %2465 = vmatpush1.bf16.xpose.msra.mxu0 0
  %2466 = vmatprep.subr.bf16.mxu0 0
  %2467 = vmatpush1.bf16.xpose.msra.mxu0 0
  %2468 = vmatprep.subr.bf16.mxu0 0
  %2469 = vmatpush1.bf16.xpose.msra.mxu0 0
  %2470 = vmatprep.subr.bf16.mxu0 0
  %2471 = vmatpush1.bf16.xpose.msra.mxu0 0
  %2472 = vmatprep.subr.bf16.mxu0 0
  %2473 = vmatpush1.bf16.xpose.msra.mxu0 0
  %2474 = vmatprep.subr.bf16.mxu0 0
  %2475 = vmatpush1.bf16.xpose.msra.mxu0 0
  %2476 = vmatprep.mubr.bf16.mxu0 0
  %2477 = vmatmul.mubr.bf16.gmra.mrb[0].mxu0 %v2439
  %v2478 = vpop.f32.mrb[0].mxu0
  %v2479 = vadd.f32 0.0, %v2478
  %v2480 = vpop.f32.mrb[0].mxu0
  %v2481 = vpop.f32.mrb[0].mxu0
  %v2482 = vadd.f32 0.0, %v2481
  %v2483 = vpop.f32.mrb[0].mxu0
  %2484 = vdwg.mxu0
  %v2485 = vsel %vm229, %v2479, -inf
  %2486 = vmax.xlane.f32.xlu0 %v2485
  %v2487 = vpop.xlane.xlu0 %2486
  %v2488 = vsel %vm229, %v2482, -inf
  %2489 = vmax.xlane.f32.xlu0 %v2488
  %v2490 = vpop.xlane.xlu0 %2489
  %v2491 = vsub.f32 %v2479, %v2487
  %v2492 = vsub.f32 %v2482, %v2490
  %v2493 = vmul.f32 %v2491, 1.442695
  %v2494 = vpow.pop %v2493
  %v2495 = vmul.f32 %v2492, 1.442695
  %v2496 = vpow.pop %v2495
  %v2497 = vsel %vm229, %v2494, 0.0
  %2498 = vadd.xlane.f32.xlu0 %v2497
  %v2499 = vpop.xlane.xlu0 %2498
  %v2500 = vsel %vm229, %v2496, 0.0
  %2501 = vadd.xlane.f32.xlu0 %v2500
  %v2502 = vpop.xlane.xlu0 %2501
  %v2503 = vrcp.pop %v2499
  %v2504 = vrcp.pop %v2502
  %v2505 = vmul.f32 %v2494, %v2503
  %v2506 = vmul.f32 %v2496, %v2504
  %v2507 = vpack.c.bf16 %v2506, %v2505
  %2508 = vrot.lane.b32.xlu0 %v1677, 48
  %v2509 = vpop.permute.xlu0 %2508
  %v2512 = vsel %vm229, %v2507, 0
  %2514 = vmatprep.subr.bf16.mxu0 0
  %2515 = vmatpush1.bf16.msra.mxu0 %v2509
  %2516 = vmatprep.subr.bf16.mxu0 0
  %2517 = vmatpush1.bf16.msra.mxu0 0
  %2518 = vmatprep.subr.bf16.mxu0 0
  %2519 = vmatpush1.bf16.msra.mxu0 0
  %2520 = vmatprep.subr.bf16.mxu0 0
  %2521 = vmatpush1.bf16.msra.mxu0 0
  %2522 = vmatprep.subr.bf16.mxu0 0
  %2523 = vmatpush1.bf16.msra.mxu0 0
  %2524 = vmatprep.subr.bf16.mxu0 0
  %2525 = vmatpush1.bf16.msra.mxu0 0
  %2526 = vmatprep.subr.bf16.mxu0 0
  %2527 = vmatpush1.bf16.msra.mxu0 0
  %2528 = vmatprep.subr.bf16.mxu0 0
  %2529 = vmatpush1.bf16.msra.mxu0 0
  %2530 = vmatprep.subr.bf16.mxu0 0
  %2531 = vmatpush1.bf16.msra.mxu0 0
  %2532 = vmatprep.subr.bf16.mxu0 0
  %2533 = vmatpush1.bf16.msra.mxu0 0
  %2534 = vmatprep.subr.bf16.mxu0 0
  %2535 = vmatpush1.bf16.msra.mxu0 0
  %2536 = vmatprep.subr.bf16.mxu0 0
  %2537 = vmatpush1.bf16.msra.mxu0 0
  %2538 = vmatprep.subr.bf16.mxu0 0
  %2539 = vmatpush1.bf16.msra.mxu0 0
  %2540 = vmatprep.subr.bf16.mxu0 0
  %2541 = vmatpush1.bf16.msra.mxu0 0
  %2542 = vmatprep.subr.bf16.mxu0 0
  %2543 = vmatpush1.bf16.msra.mxu0 0
  %2544 = vmatprep.subr.bf16.mxu0 0
  %2545 = vmatpush1.bf16.msra.mxu0 0
  %2546 = vmatprep.mubr.bf16.mxu0 0
  %2547 = vmatmul.mubr.bf16.gmra.mrb[0].mxu0 %v2512
  %v2548 = vpop.f32.mrb[0].mxu0
  %v2549 = vadd.f32 0.0, %v2548
  %v2550 = vpop.f32.mrb[0].mxu0
  %v2551 = vpop.f32.mrb[0].mxu0
  %v2552 = vadd.f32 0.0, %v2551
  %v2553 = vpop.f32.mrb[0].mxu0
  %2554 = vdwg.mxu0
  %2555 = vrot.lane.b32.xlu0 %v1675, 104
  %v2556 = vpop.permute.xlu0 %2555
  %2557 = vrot.lane.b32.xlu0 %v1677, 72
  %v2558 = vpop.permute.xlu0 %2557
  %v2560 = vsel %vm181, %v2556, 0
  %v2563 = vsel %vm181, %v2558, 0
  %2565 = vmatprep.subr.bf16.mxu0 0
  %2566 = vmatpush1.bf16.xpose.msra.mxu0 %v2563
  %2567 = vmatprep.subr.bf16.mxu0 0
  %2568 = vmatpush1.bf16.xpose.msra.mxu0 0
  %2569 = vmatprep.subr.bf16.mxu0 0
  %2570 = vmatpush1.bf16.xpose.msra.mxu0 0
  %2571 = vmatprep.subr.bf16.mxu0 0
  %2572 = vmatpush1.bf16.xpose.msra.mxu0 0
  %2573 = vmatprep.subr.bf16.mxu0 0
  %2574 = vmatpush1.bf16.xpose.msra.mxu0 0
  %2575 = vmatprep.subr.bf16.mxu0 0
  %2576 = vmatpush1.bf16.xpose.msra.mxu0 0
  %2577 = vmatprep.subr.bf16.mxu0 0
  %2578 = vmatpush1.bf16.xpose.msra.mxu0 0
  %2579 = vmatprep.subr.bf16.mxu0 0
  %2580 = vmatpush1.bf16.xpose.msra.mxu0 0
  %2581 = vmatprep.subr.bf16.mxu0 0
  %2582 = vmatpush1.bf16.xpose.msra.mxu0 0
  %2583 = vmatprep.subr.bf16.mxu0 0
  %2584 = vmatpush1.bf16.xpose.msra.mxu0 0
  %2585 = vmatprep.subr.bf16.mxu0 0
  %2586 = vmatpush1.bf16.xpose.msra.mxu0 0
  %2587 = vmatprep.subr.bf16.mxu0 0
  %2588 = vmatpush1.bf16.xpose.msra.mxu0 0
  %2589 = vmatprep.subr.bf16.mxu0 0
  %2590 = vmatpush1.bf16.xpose.msra.mxu0 0
  %2591 = vmatprep.subr.bf16.mxu0 0
  %2592 = vmatpush1.bf16.xpose.msra.mxu0 0
  %2593 = vmatprep.subr.bf16.mxu0 0
  %2594 = vmatpush1.bf16.xpose.msra.mxu0 0
  %2595 = vmatprep.subr.bf16.mxu0 0
  %2596 = vmatpush1.bf16.xpose.msra.mxu0 0
  %2597 = vmatprep.mubr.bf16.mxu0 0
  %2598 = vmatmul.mubr.bf16.gmra.mrb[0].mxu0 %v2560
  %v2599 = vpop.f32.mrb[0].mxu0
  %v2600 = vadd.f32 0.0, %v2599
  %v2601 = vpop.f32.mrb[0].mxu0
  %v2602 = vpop.f32.mrb[0].mxu0
  %v2603 = vadd.f32 0.0, %v2602
  %v2604 = vpop.f32.mrb[0].mxu0
  %2605 = vdwg.mxu0
  %v2606 = vsel %vm229, %v2600, -inf
  %2607 = vmax.xlane.f32.xlu0 %v2606
  %v2608 = vpop.xlane.xlu0 %2607
  %v2609 = vsel %vm229, %v2603, -inf
  %2610 = vmax.xlane.f32.xlu0 %v2609
  %v2611 = vpop.xlane.xlu0 %2610
  %v2612 = vsub.f32 %v2600, %v2608
  %v2613 = vsub.f32 %v2603, %v2611
  %v2614 = vmul.f32 %v2612, 1.442695
  %v2615 = vpow.pop %v2614
  %v2616 = vmul.f32 %v2613, 1.442695
  %v2617 = vpow.pop %v2616
  %v2618 = vsel %vm229, %v2615, 0.0
  %2619 = vadd.xlane.f32.xlu0 %v2618
  %v2620 = vpop.xlane.xlu0 %2619
  %v2621 = vsel %vm229, %v2617, 0.0
  %2622 = vadd.xlane.f32.xlu0 %v2621
  %v2623 = vpop.xlane.xlu0 %2622
  %v2624 = vrcp.pop %v2620
  %v2625 = vrcp.pop %v2623
  %v2626 = vmul.f32 %v2615, %v2624
  %v2627 = vmul.f32 %v2617, %v2625
  %v2628 = vpack.c.bf16 %v2627, %v2626
  %2629 = vrot.lane.b32.xlu0 %v1677, 40
  %v2630 = vpop.permute.xlu0 %2629
  %v2633 = vsel %vm229, %v2628, 0
  %2635 = vmatprep.subr.bf16.mxu0 0
  %2636 = vmatpush1.bf16.msra.mxu0 %v2630
  %2637 = vmatprep.subr.bf16.mxu0 0
  %2638 = vmatpush1.bf16.msra.mxu0 0
  %2639 = vmatprep.subr.bf16.mxu0 0
  %2640 = vmatpush1.bf16.msra.mxu0 0
  %2641 = vmatprep.subr.bf16.mxu0 0
  %2642 = vmatpush1.bf16.msra.mxu0 0
  %2643 = vmatprep.subr.bf16.mxu0 0
  %2644 = vmatpush1.bf16.msra.mxu0 0
  %2645 = vmatprep.subr.bf16.mxu0 0
  %2646 = vmatpush1.bf16.msra.mxu0 0
  %2647 = vmatprep.subr.bf16.mxu0 0
  %2648 = vmatpush1.bf16.msra.mxu0 0
  %2649 = vmatprep.subr.bf16.mxu0 0
  %2650 = vmatpush1.bf16.msra.mxu0 0
  %2651 = vmatprep.subr.bf16.mxu0 0
  %2652 = vmatpush1.bf16.msra.mxu0 0
  %2653 = vmatprep.subr.bf16.mxu0 0
  %2654 = vmatpush1.bf16.msra.mxu0 0
  %2655 = vmatprep.subr.bf16.mxu0 0
  %2656 = vmatpush1.bf16.msra.mxu0 0
  %2657 = vmatprep.subr.bf16.mxu0 0
  %2658 = vmatpush1.bf16.msra.mxu0 0
  %2659 = vmatprep.subr.bf16.mxu0 0
  %2660 = vmatpush1.bf16.msra.mxu0 0
  %2661 = vmatprep.subr.bf16.mxu0 0
  %2662 = vmatpush1.bf16.msra.mxu0 0
  %2663 = vmatprep.subr.bf16.mxu0 0
  %2664 = vmatpush1.bf16.msra.mxu0 0
  %2665 = vmatprep.subr.bf16.mxu0 0
  %2666 = vmatpush1.bf16.msra.mxu0 0
  %2667 = vmatprep.mubr.bf16.mxu0 0
  %2668 = vmatmul.mubr.bf16.gmra.mrb[0].mxu0 %v2633
  %v2669 = vpop.f32.mrb[0].mxu0
  %v2670 = vadd.f32 0.0, %v2669
  %v2671 = vpop.f32.mrb[0].mxu0
  %v2672 = vpop.f32.mrb[0].mxu0
  %v2673 = vadd.f32 0.0, %v2672
  %v2674 = vpop.f32.mrb[0].mxu0
  %2675 = vdwg.mxu0
  %2678 = vrot.lane.b32.xlu0 %v2428, 8
  %v2679 = vpop.permute.xlu0 %2678
  %2680 = vrot.lane.b32.xlu0 %v2431, 8
  %v2681 = vpop.permute.xlu0 %2680
  %2686 = vrot.lane.b32.xlu0 %v2549, 16
  %v2687 = vpop.permute.xlu0 %2686
  %2688 = vrot.lane.b32.xlu0 %v2552, 16
  %v2689 = vpop.permute.xlu0 %2688
  %2694 = vrot.lane.b32.xlu0 %v2670, 24
  %v2695 = vpop.permute.xlu0 %2694
  %2696 = vrot.lane.b32.xlu0 %v2673, 24
  %v2697 = vpop.permute.xlu0 %2696
  %v2700 = vsel %vm181, %v2306, %v2679
  %v2701 = vsel %vm181, %v2309, %v2681
  %v2702 = vsel %vm229, %v2700, %v2687
  %v2703 = vsel %vm229, %v2701, %v2689
  %v2704 = vsel %vm692, %v2702, %v2695
  %v2705 = vsel %vm692, %v2703, %v2697
  %v2706 = vpack.c.bf16 %v2191, %v2190
  %v2707 = vpack.c.bf16 %v2705, %v2704
  %v2709 = vsel %vm114, %v2706, 0
  %v2712 = vsel %vm114, %v2707, 0
  %2714 = vmatprep.subr.bf16.mxu0 0
  %2715 = vmatpush1.bf16.msra.mxu0 %v1228
  %2716 = vmatprep.subr.bf16.mxu0 0
  %2717 = vmatpush1.bf16.msra.mxu0 %v1229
  %2718 = vmatprep.subr.bf16.mxu0 0
  %2719 = vmatpush1.bf16.msra.mxu0 0
  %2720 = vmatprep.subr.bf16.mxu0 0
  %2721 = vmatpush1.bf16.msra.mxu0 0
  %2722 = vmatprep.subr.bf16.mxu0 0
  %2723 = vmatpush1.bf16.msra.mxu0 0
  %2724 = vmatprep.subr.bf16.mxu0 0
  %2725 = vmatpush1.bf16.msra.mxu0 0
  %2726 = vmatprep.subr.bf16.mxu0 0
  %2727 = vmatpush1.bf16.msra.mxu0 0
  %2728 = vmatprep.subr.bf16.mxu0 0
  %2729 = vmatpush1.bf16.msra.mxu0 0
  %2730 = vmatprep.subr.bf16.mxu0 0
  %2731 = vmatpush1.bf16.msra.mxu0 0
  %2732 = vmatprep.subr.bf16.mxu0 0
  %2733 = vmatpush1.bf16.msra.mxu0 0
  %2734 = vmatprep.subr.bf16.mxu0 0
  %2735 = vmatpush1.bf16.msra.mxu0 0
  %2736 = vmatprep.subr.bf16.mxu0 0
  %2737 = vmatpush1.bf16.msra.mxu0 0
  %2738 = vmatprep.subr.bf16.mxu0 0
  %2739 = vmatpush1.bf16.msra.mxu0 0
  %2740 = vmatprep.subr.bf16.mxu0 0
  %2741 = vmatpush1.bf16.msra.mxu0 0
  %2742 = vmatprep.subr.bf16.mxu0 0
  %2743 = vmatpush1.bf16.msra.mxu0 0
  %2744 = vmatprep.subr.bf16.mxu0 0
  %2745 = vmatpush1.bf16.msra.mxu0 0
  %2746 = vmatprep.mubr.bf16.mxu0 0
  %2747 = vmatmul.mubr.bf16.gmra.mrb[0].mxu0 %v2709
  %v2748 = vpop.f32.mrb[0].mxu0
  %v2749 = vadd.f32 %v1219, %v2748
  %v2750 = vpop.f32.mrb[0].mxu0
  %v2751 = vpop.f32.mrb[0].mxu0
  %v2752 = vadd.f32 %v1219, %v2751
  %v2753 = vpop.f32.mrb[0].mxu0
  %2754 = vmatprep.mubr.bf16.mxu0 0
  %2755 = vmatmul.mubr.bf16.gmra.mrb[0].mxu0 %v2712
  %v2756 = vpop.f32.mrb[0].mxu0
  %v2757 = vadd.f32 %v1219, %v2756
  %v2758 = vpop.f32.mrb[0].mxu0
  %v2759 = vpop.f32.mrb[0].mxu0
  %v2760 = vadd.f32 %v1219, %v2759
  %v2761 = vpop.f32.mrb[0].mxu0
  %2762 = vdwg.mxu0
  %v2763 = vadd.f32 %v1609, %v2749
  %v2764 = vadd.f32 %v1610, %v2752
  %v2765 = vadd.f32 %v1611, %v2757
  %v2766 = vadd.f32 %v1612, %v2760
  %v2767 = vsel %vm114, %v2763, 0.0
  %2768 = vadd.xlane.f32.xlu0 %v2767
  %v2769 = vpop.xlane.xlu0 %2768
  %v2770 = vsel %vm114, %v2764, 0.0
  %2771 = vadd.xlane.f32.xlu0 %v2770
  %v2772 = vpop.xlane.xlu0 %2771
  %v2773 = vsel %vm114, %v2765, 0.0
  %2774 = vadd.xlane.f32.xlu0 %v2773
  %v2775 = vpop.xlane.xlu0 %2774
  %v2776 = vsel %vm114, %v2766, 0.0
  %2777 = vadd.xlane.f32.xlu0 %v2776
  %v2778 = vpop.xlane.xlu0 %2777
  %v2779 = vmul.f32 %v2769, %v1305
  %v2780 = vmul.f32 %v2772, %v1305
  %v2781 = vmul.f32 %v2775, %v1305
  %v2782 = vmul.f32 %v2778, %v1305
  %v2783 = vsub.f32 %v2763, %v2779
  %v2784 = vsub.f32 %v2764, %v2780
  %v2785 = vsub.f32 %v2765, %v2781
  %v2786 = vsub.f32 %v2766, %v2782
  %v2787 = vmul.f32 %v2783, %v2783
  %v2788 = vmul.f32 %v2784, %v2784
  %v2789 = vmul.f32 %v2785, %v2785
  %v2790 = vmul.f32 %v2786, %v2786
  %v2791 = vsel %vm114, %v2787, 0.0
  %2792 = vadd.xlane.f32.xlu0 %v2791
  %v2793 = vpop.xlane.xlu0 %2792
  %v2794 = vsel %vm114, %v2788, 0.0
  %2795 = vadd.xlane.f32.xlu0 %v2794
  %v2796 = vpop.xlane.xlu0 %2795
  %v2797 = vsel %vm114, %v2789, 0.0
  %2798 = vadd.xlane.f32.xlu0 %v2797
  %v2799 = vpop.xlane.xlu0 %2798
  %v2800 = vsel %vm114, %v2790, 0.0
  %2801 = vadd.xlane.f32.xlu0 %v2800
  %v2802 = vpop.xlane.xlu0 %2801
  %v2803 = vmul.f32 %v2793, %v1305
  %v2804 = vmul.f32 %v2796, %v1305
  %v2805 = vmul.f32 %v2799, %v1305
  %v2806 = vmul.f32 %v2802, %v1305
  %v2807 = vadd.f32 %v2803, 1e-05
  %v2808 = vadd.f32 %v2804, 1e-05
  %v2809 = vadd.f32 %v2805, 1e-05
  %v2810 = vadd.f32 %v2806, 1e-05
  %v2811 = vrsqrt.pop %v2807
  %v2812 = vrsqrt.pop %v2808
  %v2813 = vrsqrt.pop %v2809
  %v2814 = vrsqrt.pop %v2810
  %v2815 = vmul.f32 %v2783, %v2811
  %v2816 = vmul.f32 %v2784, %v2812
  %v2817 = vmul.f32 %v2785, %v2813
  %v2818 = vmul.f32 %v2786, %v2814
  %v2819 = vmul.f32 %v2815, %v1349
  %v2820 = vmul.f32 %v2816, %v1349
  %v2821 = vmul.f32 %v2817, %v1349
  %v2822 = vmul.f32 %v2818, %v1349
  %v2823 = vadd.f32 %v2819, %v1357
  %v2824 = vadd.f32 %v2820, %v1357
  %v2825 = vadd.f32 %v2821, %v1357
  %v2826 = vadd.f32 %v2822, %v1357
  %v2827 = vpack.c.bf16 %v2824, %v2823
  %v2828 = vpack.c.bf16 %v2826, %v2825
  %v2830 = vsel %vm114, %v2827, 0
  %v2833 = vsel %vm114, %v2828, 0
  %2835 = vmatprep.subr.bf16.mxu0 0
  %2836 = vmatpush1.bf16.msra.mxu0 %v1381
  %2837 = vmatprep.subr.bf16.mxu0 0
  %2838 = vmatpush1.bf16.msra.mxu0 %v1382
  %2839 = vmatprep.subr.bf16.mxu0 0
  %2840 = vmatpush1.bf16.msra.mxu0 0
  %2841 = vmatprep.subr.bf16.mxu0 0
  %2842 = vmatpush1.bf16.msra.mxu0 0
  %2843 = vmatprep.subr.bf16.mxu0 0
  %2844 = vmatpush1.bf16.msra.mxu0 0
  %2845 = vmatprep.subr.bf16.mxu0 0
  %2846 = vmatpush1.bf16.msra.mxu0 0
  %2847 = vmatprep.subr.bf16.mxu0 0
  %2848 = vmatpush1.bf16.msra.mxu0 0
  %2849 = vmatprep.subr.bf16.mxu0 0
  %2850 = vmatpush1.bf16.msra.mxu0 0
  %2851 = vmatprep.subr.bf16.mxu0 0
  %2852 = vmatpush1.bf16.msra.mxu0 0
  %2853 = vmatprep.subr.bf16.mxu0 0
  %2854 = vmatpush1.bf16.msra.mxu0 0
  %2855 = vmatprep.subr.bf16.mxu0 0
  %2856 = vmatpush1.bf16.msra.mxu0 0
  %2857 = vmatprep.subr.bf16.mxu0 0
  %2858 = vmatpush1.bf16.msra.mxu0 0
  %2859 = vmatprep.subr.bf16.mxu0 0
  %2860 = vmatpush1.bf16.msra.mxu0 0
  %2861 = vmatprep.subr.bf16.mxu0 0
  %2862 = vmatpush1.bf16.msra.mxu0 0
  %2863 = vmatprep.subr.bf16.mxu0 0
  %2864 = vmatpush1.bf16.msra.mxu0 0
  %2865 = vmatprep.subr.bf16.mxu0 0
  %2866 = vmatpush1.bf16.msra.mxu0 0
  %2867 = vmatprep.mubr.bf16.mxu0 0
  %2868 = vmatmul.mubr.bf16.gmra.mrb[0].mxu0 %v2830
  %v2869 = vpop.f32.mrb[0].mxu0
  %v2870 = vadd.f32 %v1372, %v2869
  %v2871 = vpop.f32.mrb[0].mxu0
  %v2872 = vpop.f32.mrb[0].mxu0
  %v2873 = vadd.f32 %v1372, %v2872
  %v2874 = vpop.f32.mrb[0].mxu0
  %2875 = vmatprep.mubr.bf16.mxu0 0
  %2876 = vmatmul.mubr.bf16.gmra.mrb[0].mxu0 %v2833
  %v2877 = vpop.f32.mrb[0].mxu0
  %v2878 = vadd.f32 %v1372, %v2877
  %v2879 = vpop.f32.mrb[0].mxu0
  %v2880 = vpop.f32.mrb[0].mxu0
  %v2881 = vadd.f32 %v1372, %v2880
  %v2882 = vpop.f32.mrb[0].mxu0
  %2883 = vdwg.mxu0
  %v2884 = vmax.f32 %v2870, 0.0
  %v2885 = vmax.f32 %v2873, 0.0
  %v2886 = vmax.f32 %v2878, 0.0
  %v2887 = vmax.f32 %v2881, 0.0
  %v2888 = vpack.c.bf16 %v2885, %v2884
  %v2889 = vpack.c.bf16 %v2887, %v2886
  %v2891 = vsel %vm1483, %v2888, 0
  %v2894 = vsel %vm1483, %v2889, 0
  %2896 = vmatprep.subr.bf16.mxu0 0
  %2897 = vmatpush1.bf16.msra.mxu0 %v1475
  %2898 = vmatprep.subr.bf16.mxu0 0
  %2899 = vmatpush1.bf16.msra.mxu0 %v1476
  %2900 = vmatprep.subr.bf16.mxu0 0
  %2901 = vmatpush1.bf16.msra.mxu0 %v1477
  %2902 = vmatprep.subr.bf16.mxu0 0
  %2903 = vmatpush1.bf16.msra.mxu0 %v1478
  %2904 = vmatprep.subr.bf16.mxu0 0
  %2905 = vmatpush1.bf16.msra.mxu0 0
  %2906 = vmatprep.subr.bf16.mxu0 0
  %2907 = vmatpush1.bf16.msra.mxu0 0
  %2908 = vmatprep.subr.bf16.mxu0 0
  %2909 = vmatpush1.bf16.msra.mxu0 0
  %2910 = vmatprep.subr.bf16.mxu0 0
  %2911 = vmatpush1.bf16.msra.mxu0 0
  %2912 = vmatprep.subr.bf16.mxu0 0
  %2913 = vmatpush1.bf16.msra.mxu0 0
  %2914 = vmatprep.subr.bf16.mxu0 0
  %2915 = vmatpush1.bf16.msra.mxu0 0
  %2916 = vmatprep.subr.bf16.mxu0 0
  %2917 = vmatpush1.bf16.msra.mxu0 0
  %2918 = vmatprep.subr.bf16.mxu0 0
  %2919 = vmatpush1.bf16.msra.mxu0 0
  %2920 = vmatprep.subr.bf16.mxu0 0
  %2921 = vmatpush1.bf16.msra.mxu0 0
  %2922 = vmatprep.subr.bf16.mxu0 0
  %2923 = vmatpush1.bf16.msra.mxu0 0
  %2924 = vmatprep.subr.bf16.mxu0 0
  %2925 = vmatpush1.bf16.msra.mxu0 0
  %2926 = vmatprep.subr.bf16.mxu0 0
  %2927 = vmatpush1.bf16.msra.mxu0 0
  %2928 = vmatprep.mubr.bf16.mxu0 0
  %2929 = vmatmul.mubr.bf16.gmra.mrb[0].mxu0 %v2891
  %v2930 = vpop.f32.mrb[0].mxu0
  %v2931 = vadd.f32 %v1458, %v2930
  %v2932 = vpop.f32.mrb[0].mxu0
  %v2933 = vpop.f32.mrb[0].mxu0
  %v2934 = vadd.f32 %v1458, %v2933
  %v2935 = vpop.f32.mrb[0].mxu0
  %2936 = vmatprep.mubr.bf16.mxu0 0
  %2937 = vmatmul.mubr.bf16.gmra.mrb[0].mxu0 %v2894
  %v2938 = vpop.f32.mrb[0].mxu0
  %v2939 = vadd.f32 %v1458, %v2938
  %v2940 = vpop.f32.mrb[0].mxu0
  %v2941 = vpop.f32.mrb[0].mxu0
  %v2942 = vadd.f32 %v1458, %v2941
  %v2943 = vpop.f32.mrb[0].mxu0
  %2944 = vdwg.mxu0
  %v2945 = vadd.f32 %v2823, %v2931
  %v2946 = vadd.f32 %v2824, %v2934
  %v2947 = vadd.f32 %v2825, %v2939
  %v2948 = vadd.f32 %v2826, %v2942
  %v2949 = vsel %vm114, %v2945, 0.0
  %2950 = vadd.xlane.f32.xlu0 %v2949
  %v2951 = vpop.xlane.xlu0 %2950
  %v2952 = vsel %vm114, %v2946, 0.0
  %2953 = vadd.xlane.f32.xlu0 %v2952
  %v2954 = vpop.xlane.xlu0 %2953
  %v2955 = vsel %vm114, %v2947, 0.0
  %2956 = vadd.xlane.f32.xlu0 %v2955
  %v2957 = vpop.xlane.xlu0 %2956
  %v2958 = vsel %vm114, %v2948, 0.0
  %2959 = vadd.xlane.f32.xlu0 %v2958
  %v2960 = vpop.xlane.xlu0 %2959
  %v2961 = vmul.f32 %v2951, %v1305
  %v2962 = vmul.f32 %v2954, %v1305
  %v2963 = vmul.f32 %v2957, %v1305
  %v2964 = vmul.f32 %v2960, %v1305
  %v2965 = vsub.f32 %v2945, %v2961
  %v2966 = vsub.f32 %v2946, %v2962
  %v2967 = vsub.f32 %v2947, %v2963
  %v2968 = vsub.f32 %v2948, %v2964
  %v2969 = vmul.f32 %v2965, %v2965
  %v2970 = vmul.f32 %v2966, %v2966
  %v2971 = vmul.f32 %v2967, %v2967
  %v2972 = vmul.f32 %v2968, %v2968
  %v2973 = vsel %vm114, %v2969, 0.0
  %2974 = vadd.xlane.f32.xlu0 %v2973
  %v2975 = vpop.xlane.xlu0 %2974
  %v2976 = vsel %vm114, %v2970, 0.0
  %2977 = vadd.xlane.f32.xlu0 %v2976
  %v2978 = vpop.xlane.xlu0 %2977
  %v2979 = vsel %vm114, %v2971, 0.0
  %2980 = vadd.xlane.f32.xlu0 %v2979
  %v2981 = vpop.xlane.xlu0 %2980
  %v2982 = vsel %vm114, %v2972, 0.0
  %2983 = vadd.xlane.f32.xlu0 %v2982
  %v2984 = vpop.xlane.xlu0 %2983
  %v2985 = vmul.f32 %v2975, %v1305
  %v2986 = vmul.f32 %v2978, %v1305
  %v2987 = vmul.f32 %v2981, %v1305
  %v2988 = vmul.f32 %v2984, %v1305
  %v2989 = vadd.f32 %v2985, 1e-05
  %v2990 = vadd.f32 %v2986, 1e-05
  %v2991 = vadd.f32 %v2987, 1e-05
  %v2992 = vadd.f32 %v2988, 1e-05
  %v2993 = vrsqrt.pop %v2989
  %v2994 = vrsqrt.pop %v2990
  %v2995 = vrsqrt.pop %v2991
  %v2996 = vrsqrt.pop %v2992
  %v2997 = vmul.f32 %v2965, %v2993
  %v2998 = vmul.f32 %v2966, %v2994
  %v2999 = vmul.f32 %v2967, %v2995
  %v3000 = vmul.f32 %v2968, %v2996
  %v3001 = vmul.f32 %v2997, %v1600
  %v3002 = vmul.f32 %v2998, %v1600
  %v3003 = vmul.f32 %v2999, %v1600
  %v3004 = vmul.f32 %v3000, %v1600
  %v3005 = vadd.f32 %v3001, %v1608
  %v3006 = vadd.f32 %v3002, %v1608
  %v3007 = vadd.f32 %v3003, %v1608
  %v3008 = vadd.f32 %v3004, %v1608
  %v3009 = vld [vmem:[%s2 + $0x29] sm:$0x1]
  %v3010 = vld [vmem:[%s2 + $0x2a] sm:$0x1]
  %v3011 = vsel %vm114, %v3005, 0.0
  %3012 = vadd.xlane.f32.xlu0 %v3011
  %v3013 = vpop.xlane.xlu0 %3012
  %v3014 = vsel %vm114, %v3006, 0.0
  %3015 = vadd.xlane.f32.xlu0 %v3014
  %v3016 = vpop.xlane.xlu0 %3015
  %v3017 = vsel %vm114, %v3007, 0.0
  %3018 = vadd.xlane.f32.xlu0 %v3017
  %v3019 = vpop.xlane.xlu0 %3018
  %v3020 = vsel %vm114, %v3008, 0.0
  %3021 = vadd.xlane.f32.xlu0 %v3020
  %v3022 = vpop.xlane.xlu0 %3021
  %v3023 = vmul.f32 %v3013, %v1305
  %v3024 = vmul.f32 %v3016, %v1305
  %v3025 = vmul.f32 %v3019, %v1305
  %v3026 = vmul.f32 %v3022, %v1305
  %v3027 = vsub.f32 %v3005, %v3023
  %v3028 = vsub.f32 %v3006, %v3024
  %v3029 = vsub.f32 %v3007, %v3025
  %v3030 = vsub.f32 %v3008, %v3026
  %v3031 = vmul.f32 %v3027, %v3027
  %v3032 = vmul.f32 %v3028, %v3028
  %v3033 = vmul.f32 %v3029, %v3029
  %v3034 = vmul.f32 %v3030, %v3030
  %v3035 = vsel %vm114, %v3031, 0.0
  %3036 = vadd.xlane.f32.xlu0 %v3035
  %v3037 = vpop.xlane.xlu0 %3036
  %v3038 = vsel %vm114, %v3032, 0.0
  %3039 = vadd.xlane.f32.xlu0 %v3038
  %v3040 = vpop.xlane.xlu0 %3039
  %v3041 = vsel %vm114, %v3033, 0.0
  %3042 = vadd.xlane.f32.xlu0 %v3041
  %v3043 = vpop.xlane.xlu0 %3042
  %v3044 = vsel %vm114, %v3034, 0.0
  %3045 = vadd.xlane.f32.xlu0 %v3044
  %v3046 = vpop.xlane.xlu0 %3045
  %v3047 = vmul.f32 %v3037, %v1305
  %v3048 = vmul.f32 %v3040, %v1305
  %v3049 = vmul.f32 %v3043, %v1305
  %v3050 = vmul.f32 %v3046, %v1305
  %v3051 = vadd.f32 %v3047, 1e-05
  %v3052 = vadd.f32 %v3048, 1e-05
  %v3053 = vadd.f32 %v3049, 1e-05
  %v3054 = vadd.f32 %v3050, 1e-05
  %v3055 = vrsqrt.pop %v3051
  %v3056 = vrsqrt.pop %v3052
  %v3057 = vrsqrt.pop %v3053
  %v3058 = vrsqrt.pop %v3054
  %v3059 = vmul.f32 %v3027, %v3055
  %v3060 = vmul.f32 %v3028, %v3056
  %v3061 = vmul.f32 %v3029, %v3057
  %v3062 = vmul.f32 %v3030, %v3058
  %v3063 = vlaneseq
  %v3064 = vshrl.u32 %v3063, 7
  %v3065 = vsub.s32 0, %v3064
  %v3066 = vrot.slane %v3009, %v3065
  %v3067 = vmul.f32 %v3059, %v3066
  %v3068 = vmul.f32 %v3060, %v3066
  %v3069 = vmul.f32 %v3061, %v3066
  %v3070 = vmul.f32 %v3062, %v3066
  %v3071 = vlaneseq
  %v3072 = vshrl.u32 %v3071, 7
  %v3073 = vsub.s32 0, %v3072
  %v3074 = vrot.slane %v3010, %v3073
  %v3075 = vadd.f32 %v3067, %v3074
  %v3076 = vadd.f32 %v3068, %v3074
  %v3077 = vadd.f32 %v3069, %v3074
  %v3078 = vadd.f32 %v3070, %v3074
  %v3079 = vld [vmem:[%s2 + $0x1f] sm:$0x1]
  %v3080 = vlaneseq
  %v3081 = vshrl.u32 %v3080, 7
  %v3082 = vsub.s32 0, %v3081
  %v3083 = vrot.slane %v3079, %v3082
  %v3084 = vld [vmem:[%s2 + $0x10] sm:$0xff]
  %v3085 = vadd.f32 %v3083, %v3084
  %v3086 = vld [vmem:[%s1 + $0x70] sm:$0xf]
  %v3087 = vld [vmem:[%s1 + $0x74] sm:$0xf]
  %v3088 = vld [vmem:[%s1 + $0x78] sm:$0xf]
  %v3089 = vld [vmem:[%s1 + $0x7c] sm:$0xf]
  %v3090 = vpack.c.bf16 %v3076, %v3075
  %v3091 = vpack.c.bf16 %v3078, %v3077
  %v3092 = vld [vmem:[%s2 + $0x2d] sm:$0x1]
  %v3093 = vlaneseq
  %v3094 = vshrl.u32 %v3093, 7
  %v3095 = vsub.s32 0, %v3094
  %v3096 = vrot.slane %v3092, %v3095
  %v3101 = vunpack.c.l.b16 %v3086
  %v3102 = vunpack.c.l.b16 %v3087
  %v3103 = vunpack.c.l.b16 %v3088
  %v3104 = vunpack.c.l.b16 %v3089
  %v3105 = vpack.c.b16 %v3102, %v3101
  %v3106 = vpack.c.b16 %v3104, %v3103
  %3107 = vrot.lane.b32.xlu0 %v3105, 96
  %v3108 = vpop.permute.xlu0 %3107
  %3109 = vrot.lane.b32.xlu0 %v3106, 96
  %v3110 = vpop.permute.xlu0 %3109
  %3114 = vrot.lane.b32.xlu0 %v3096, 96
  %v3115 = vpop.permute.xlu0 %3114
  %v3118 = vsel %vm114, %v3090, 0
  %v3121 = vsel %vm114, %v3091, 0
  %3123 = vmatprep.subr.bf16.mxu0 0
  %3124 = vmatpush1.bf16.msra.mxu0 %v3108
  %3125 = vmatprep.subr.bf16.mxu0 0
  %3126 = vmatpush1.bf16.msra.mxu0 %v3110
  %3127 = vmatprep.subr.bf16.mxu0 0
  %3128 = vmatpush1.bf16.msra.mxu0 0
  %3129 = vmatprep.subr.bf16.mxu0 0
  %3130 = vmatpush1.bf16.msra.mxu0 0
  %3131 = vmatprep.subr.bf16.mxu0 0
  %3132 = vmatpush1.bf16.msra.mxu0 0
  %3133 = vmatprep.subr.bf16.mxu0 0
  %3134 = vmatpush1.bf16.msra.mxu0 0
  %3135 = vmatprep.subr.bf16.mxu0 0
  %3136 = vmatpush1.bf16.msra.mxu0 0
  %3137 = vmatprep.subr.bf16.mxu0 0
  %3138 = vmatpush1.bf16.msra.mxu0 0
  %3139 = vmatprep.subr.bf16.mxu0 0
  %3140 = vmatpush1.bf16.msra.mxu0 0
  %3141 = vmatprep.subr.bf16.mxu0 0
  %3142 = vmatpush1.bf16.msra.mxu0 0
  %3143 = vmatprep.subr.bf16.mxu0 0
  %3144 = vmatpush1.bf16.msra.mxu0 0
  %3145 = vmatprep.subr.bf16.mxu0 0
  %3146 = vmatpush1.bf16.msra.mxu0 0
  %3147 = vmatprep.subr.bf16.mxu0 0
  %3148 = vmatpush1.bf16.msra.mxu0 0
  %3149 = vmatprep.subr.bf16.mxu0 0
  %3150 = vmatpush1.bf16.msra.mxu0 0
  %3151 = vmatprep.subr.bf16.mxu0 0
  %3152 = vmatpush1.bf16.msra.mxu0 0
  %3153 = vmatprep.subr.bf16.mxu0 0
  %3154 = vmatpush1.bf16.msra.mxu0 0
  %3155 = vmatprep.mubr.bf16.mxu0 0
  %3156 = vmatmul.mubr.bf16.gmra.mrb[0].mxu0 %v3118
  %v3157 = vpop.f32.mrb[0].mxu0
  %v3158 = vadd.f32 %v3115, %v3157
  %v3159 = vpop.f32.mrb[0].mxu0
  %v3160 = vpop.f32.mrb[0].mxu0
  %v3161 = vadd.f32 %v3115, %v3160
  %v3162 = vpop.f32.mrb[0].mxu0
  %3163 = vmatprep.mubr.bf16.mxu0 0
  %3164 = vmatmul.mubr.bf16.gmra.mrb[0].mxu0 %v3121
  %v3165 = vpop.f32.mrb[0].mxu0
  %v3166 = vadd.f32 %v3115, %v3165
  %v3167 = vpop.f32.mrb[0].mxu0
  %v3168 = vpop.f32.mrb[0].mxu0
  %v3169 = vadd.f32 %v3115, %v3168
  %v3170 = vpop.f32.mrb[0].mxu0
  %3171 = vdwg.mxu0
  %v3172 = vpack.c.bf16 %v3161, %v3158
  %v3173 = vpack.c.bf16 %v3169, %v3166
  %v3174 = vld [vmem:[%s1 + $0x50] sm:$0xf]
  %v3175 = vld [vmem:[%s1 + $0x54] sm:$0xf]
  %v3176 = vld [vmem:[%s1 + $0x58] sm:$0xf]
  %v3177 = vld [vmem:[%s1 + $0x5c] sm:$0xf]
  %v3178 = vpack.c.bf16 %v3085, %v3085
  %v3179 = vld [vmem:[%s2 + $0x2b] sm:$0x1]
  %v3180 = vlaneseq
  %v3181 = vshrl.u32 %v3180, 7
  %v3182 = vsub.s32 0, %v3181
  %v3183 = vrot.slane %v3179, %v3182
  %v3188 = vunpack.c.l.b16 %v3174
  %v3189 = vunpack.c.l.b16 %v3175
  %v3190 = vunpack.c.l.b16 %v3176
  %v3191 = vunpack.c.l.b16 %v3177
  %v3192 = vpack.c.b16 %v3189, %v3188
  %v3193 = vpack.c.b16 %v3191, %v3190
  %v3197 = vsel %vm114, %v3178, 0
  %3199 = vmatprep.subr.bf16.mxu0 0
  %3200 = vmatpush1.bf16.msra.mxu0 %v3192
  %3201 = vmatprep.subr.bf16.mxu0 0
  %3202 = vmatpush1.bf16.msra.mxu0 %v3193
  %3203 = vmatprep.subr.bf16.mxu0 0
  %3204 = vmatpush1.bf16.msra.mxu0 0
  %3205 = vmatprep.subr.bf16.mxu0 0
  %3206 = vmatpush1.bf16.msra.mxu0 0
  %3207 = vmatprep.subr.bf16.mxu0 0
  %3208 = vmatpush1.bf16.msra.mxu0 0
  %3209 = vmatprep.subr.bf16.mxu0 0
  %3210 = vmatpush1.bf16.msra.mxu0 0
  %3211 = vmatprep.subr.bf16.mxu0 0
  %3212 = vmatpush1.bf16.msra.mxu0 0
  %3213 = vmatprep.subr.bf16.mxu0 0
  %3214 = vmatpush1.bf16.msra.mxu0 0
  %3215 = vmatprep.subr.bf16.mxu0 0
  %3216 = vmatpush1.bf16.msra.mxu0 0
  %3217 = vmatprep.subr.bf16.mxu0 0
  %3218 = vmatpush1.bf16.msra.mxu0 0
  %3219 = vmatprep.subr.bf16.mxu0 0
  %3220 = vmatpush1.bf16.msra.mxu0 0
  %3221 = vmatprep.subr.bf16.mxu0 0
  %3222 = vmatpush1.bf16.msra.mxu0 0
  %3223 = vmatprep.subr.bf16.mxu0 0
  %3224 = vmatpush1.bf16.msra.mxu0 0
  %3225 = vmatprep.subr.bf16.mxu0 0
  %3226 = vmatpush1.bf16.msra.mxu0 0
  %3227 = vmatprep.subr.bf16.mxu0 0
  %3228 = vmatpush1.bf16.msra.mxu0 0
  %3229 = vmatprep.subr.bf16.mxu0 0
  %3230 = vmatpush1.bf16.msra.mxu0 0
  %3231 = vmatprep.mubr.bf16.mxu0 0
  %3232 = vmatmul.mubr.bf16.gmra.mrb[0].mxu0 %v3197
  %v3233 = vpop.f32.mrb[0].mxu0
  %v3234 = vadd.f32 %v3183, %v3233
  %v3235 = vpop.f32.mrb[0].mxu0
  %v3236 = vpop.f32.mrb[0].mxu0
  %v3237 = vadd.f32 %v3183, %v3236
  %v3238 = vpop.f32.mrb[0].mxu0
  %3239 = vdwg.mxu0
  %v3240 = vmul.f32 %v3234, 0.35355338
  %v3241 = vmul.f32 %v3237, 0.35355338
  %v3242 = vpack.c.bf16 %v3241, %v3240
  %v3243 = vpack.c.bf16 %v3237, %v3234
  %3245 = vrot.lane.b32.xlu0 %v3243, 96
  %v3246 = vpop.permute.xlu0 %3245
  %v3248 = vsel %vm181, %v3242, 0
  %v3251 = vsel %vm181, %v3246, 0
  %3253 = vmatprep.subr.bf16.mxu0 0
  %3254 = vmatpush1.bf16.xpose.msra.mxu0 %v3251
  %3255 = vmatprep.subr.bf16.mxu0 0
  %3256 = vmatpush1.bf16.xpose.msra.mxu0 0
  %3257 = vmatprep.subr.bf16.mxu0 0
  %3258 = vmatpush1.bf16.xpose.msra.mxu0 0
  %3259 = vmatprep.subr.bf16.mxu0 0
  %3260 = vmatpush1.bf16.xpose.msra.mxu0 0
  %3261 = vmatprep.subr.bf16.mxu0 0
  %3262 = vmatpush1.bf16.xpose.msra.mxu0 0
  %3263 = vmatprep.subr.bf16.mxu0 0
  %3264 = vmatpush1.bf16.xpose.msra.mxu0 0
  %3265 = vmatprep.subr.bf16.mxu0 0
  %3266 = vmatpush1.bf16.xpose.msra.mxu0 0
  %3267 = vmatprep.subr.bf16.mxu0 0
  %3268 = vmatpush1.bf16.xpose.msra.mxu0 0
  %3269 = vmatprep.subr.bf16.mxu0 0
  %3270 = vmatpush1.bf16.xpose.msra.mxu0 0
  %3271 = vmatprep.subr.bf16.mxu0 0
  %3272 = vmatpush1.bf16.xpose.msra.mxu0 0
  %3273 = vmatprep.subr.bf16.mxu0 0
  %3274 = vmatpush1.bf16.xpose.msra.mxu0 0
  %3275 = vmatprep.subr.bf16.mxu0 0
  %3276 = vmatpush1.bf16.xpose.msra.mxu0 0
  %3277 = vmatprep.subr.bf16.mxu0 0
  %3278 = vmatpush1.bf16.xpose.msra.mxu0 0
  %3279 = vmatprep.subr.bf16.mxu0 0
  %3280 = vmatpush1.bf16.xpose.msra.mxu0 0
  %3281 = vmatprep.subr.bf16.mxu0 0
  %3282 = vmatpush1.bf16.xpose.msra.mxu0 0
  %3283 = vmatprep.subr.bf16.mxu0 0
  %3284 = vmatpush1.bf16.xpose.msra.mxu0 0
  %3285 = vmatprep.mubr.bf16.mxu0 0
  %3286 = vmatmul.mubr.bf16.gmra.mrb[0].mxu0 %v3248
  %v3287 = vpop.f32.mrb[0].mxu0
  %v3288 = vadd.f32 0.0, %v3287
  %v3289 = vpop.f32.mrb[0].mxu0
  %v3290 = vpop.f32.mrb[0].mxu0
  %v3291 = vpop.f32.mrb[0].mxu0
  %3292 = vdwg.mxu0
  %v3293 = vsel %vm181, %v3288, -inf
  %3294 = vmax.xlane.f32.xlu0 %v3293
  %v3295 = vpop.xlane.xlu0 %3294
  %v3296 = vsub.f32 %v3288, %v3295
  %v3297 = vmul.f32 %v3296, 1.442695
  %v3298 = vpow.pop %v3297
  %v3299 = vsel %vm181, %v3298, 0.0
  %3300 = vadd.xlane.f32.xlu0 %v3299
  %v3301 = vpop.xlane.xlu0 %3300
  %v3302 = vrcp.pop %v3301
  %v3303 = vmul.f32 %v3298, %v3302
  %v3304 = vpack.c.bf16 %v3303, %v3303
  %3305 = vrot.lane.b32.xlu0 %v3243, 64
  %v3306 = vpop.permute.xlu0 %3305
  %v3308 = vsel %vm181, %v3304, 0
  %vm3310 = vcmask 1043456
  %v3312 = vsel %vm3310, %v3306, 0
  %3314 = vmatprep.subr.bf16.mxu0 0
  %3315 = vmatpush1.bf16.msra.mxu0 %v3312
  %3316 = vmatprep.subr.bf16.mxu0 0
  %3317 = vmatpush1.bf16.msra.mxu0 0
  %3318 = vmatprep.subr.bf16.mxu0 0
  %3319 = vmatpush1.bf16.msra.mxu0 0
  %3320 = vmatprep.subr.bf16.mxu0 0
  %3321 = vmatpush1.bf16.msra.mxu0 0
  %3322 = vmatprep.subr.bf16.mxu0 0
  %3323 = vmatpush1.bf16.msra.mxu0 0
  %3324 = vmatprep.subr.bf16.mxu0 0
  %3325 = vmatpush1.bf16.msra.mxu0 0
  %3326 = vmatprep.subr.bf16.mxu0 0
  %3327 = vmatpush1.bf16.msra.mxu0 0
  %3328 = vmatprep.subr.bf16.mxu0 0
  %3329 = vmatpush1.bf16.msra.mxu0 0
  %3330 = vmatprep.subr.bf16.mxu0 0
  %3331 = vmatpush1.bf16.msra.mxu0 0
  %3332 = vmatprep.subr.bf16.mxu0 0
  %3333 = vmatpush1.bf16.msra.mxu0 0
  %3334 = vmatprep.subr.bf16.mxu0 0
  %3335 = vmatpush1.bf16.msra.mxu0 0
  %3336 = vmatprep.subr.bf16.mxu0 0
  %3337 = vmatpush1.bf16.msra.mxu0 0
  %3338 = vmatprep.subr.bf16.mxu0 0
  %3339 = vmatpush1.bf16.msra.mxu0 0
  %3340 = vmatprep.subr.bf16.mxu0 0
  %3341 = vmatpush1.bf16.msra.mxu0 0
  %3342 = vmatprep.subr.bf16.mxu0 0
  %3343 = vmatpush1.bf16.msra.mxu0 0
  %3344 = vmatprep.subr.bf16.mxu0 0
  %3345 = vmatpush1.bf16.msra.mxu0 0
  %3346 = vmatprep.mubr.bf16.mxu0 0
  %3347 = vmatmul.mubr.bf16.gmra.mrb[0].mxu0 %v3308
  %v3348 = vpop.f32.mrb[0].mxu0
  %v3349 = vadd.f32 0.0, %v3348
  %v3350 = vpop.f32.mrb[0].mxu0
  %v3351 = vpop.f32.mrb[0].mxu0
  %v3352 = vpop.f32.mrb[0].mxu0
  %3353 = vdwg.mxu0
  %3355 = vrot.lane.b32.xlu0 %v3242, 120
  %v3356 = vpop.permute.xlu0 %3355
  %3357 = vrot.lane.b32.xlu0 %v3243, 88
  %v3358 = vpop.permute.xlu0 %3357
  %v3360 = vsel %vm181, %v3356, 0
  %v3363 = vsel %vm181, %v3358, 0
  %3365 = vmatprep.subr.bf16.mxu0 0
  %3366 = vmatpush1.bf16.xpose.msra.mxu0 %v3363
  %3367 = vmatprep.subr.bf16.mxu0 0
  %3368 = vmatpush1.bf16.xpose.msra.mxu0 0
  %3369 = vmatprep.subr.bf16.mxu0 0
  %3370 = vmatpush1.bf16.xpose.msra.mxu0 0
  %3371 = vmatprep.subr.bf16.mxu0 0
  %3372 = vmatpush1.bf16.xpose.msra.mxu0 0
  %3373 = vmatprep.subr.bf16.mxu0 0
  %3374 = vmatpush1.bf16.xpose.msra.mxu0 0
  %3375 = vmatprep.subr.bf16.mxu0 0
  %3376 = vmatpush1.bf16.xpose.msra.mxu0 0
  %3377 = vmatprep.subr.bf16.mxu0 0
  %3378 = vmatpush1.bf16.xpose.msra.mxu0 0
  %3379 = vmatprep.subr.bf16.mxu0 0
  %3380 = vmatpush1.bf16.xpose.msra.mxu0 0
  %3381 = vmatprep.subr.bf16.mxu0 0
  %3382 = vmatpush1.bf16.xpose.msra.mxu0 0
  %3383 = vmatprep.subr.bf16.mxu0 0
  %3384 = vmatpush1.bf16.xpose.msra.mxu0 0
  %3385 = vmatprep.subr.bf16.mxu0 0
  %3386 = vmatpush1.bf16.xpose.msra.mxu0 0
  %3387 = vmatprep.subr.bf16.mxu0 0
  %3388 = vmatpush1.bf16.xpose.msra.mxu0 0
  %3389 = vmatprep.subr.bf16.mxu0 0
  %3390 = vmatpush1.bf16.xpose.msra.mxu0 0
  %3391 = vmatprep.subr.bf16.mxu0 0
  %3392 = vmatpush1.bf16.xpose.msra.mxu0 0
  %3393 = vmatprep.subr.bf16.mxu0 0
  %3394 = vmatpush1.bf16.xpose.msra.mxu0 0
  %3395 = vmatprep.subr.bf16.mxu0 0
  %3396 = vmatpush1.bf16.xpose.msra.mxu0 0
  %3397 = vmatprep.mubr.bf16.mxu0 0
  %3398 = vmatmul.mubr.bf16.gmra.mrb[0].mxu0 %v3360
  %v3399 = vpop.f32.mrb[0].mxu0
  %v3400 = vadd.f32 0.0, %v3399
  %v3401 = vpop.f32.mrb[0].mxu0
  %v3402 = vpop.f32.mrb[0].mxu0
  %v3403 = vpop.f32.mrb[0].mxu0
  %3404 = vdwg.mxu0
  %v3405 = vsel %vm181, %v3400, -inf
  %3406 = vmax.xlane.f32.xlu0 %v3405
  %v3407 = vpop.xlane.xlu0 %3406
  %v3408 = vsub.f32 %v3400, %v3407
  %v3409 = vmul.f32 %v3408, 1.442695
  %v3410 = vpow.pop %v3409
  %v3411 = vsel %vm181, %v3410, 0.0
  %3412 = vadd.xlane.f32.xlu0 %v3411
  %v3413 = vpop.xlane.xlu0 %3412
  %v3414 = vrcp.pop %v3413
  %v3415 = vmul.f32 %v3410, %v3414
  %v3416 = vpack.c.bf16 %v3415, %v3415
  %3417 = vrot.lane.b32.xlu0 %v3243, 56
  %v3418 = vpop.permute.xlu0 %3417
  %v3420 = vsel %vm181, %v3416, 0
  %v3423 = vsel %vm3310, %v3418, 0
  %3425 = vmatprep.subr.bf16.mxu0 0
  %3426 = vmatpush1.bf16.msra.mxu0 %v3423
  %3427 = vmatprep.subr.bf16.mxu0 0
  %3428 = vmatpush1.bf16.msra.mxu0 0
  %3429 = vmatprep.subr.bf16.mxu0 0
  %3430 = vmatpush1.bf16.msra.mxu0 0
  %3431 = vmatprep.subr.bf16.mxu0 0
  %3432 = vmatpush1.bf16.msra.mxu0 0
  %3433 = vmatprep.subr.bf16.mxu0 0
  %3434 = vmatpush1.bf16.msra.mxu0 0
  %3435 = vmatprep.subr.bf16.mxu0 0
  %3436 = vmatpush1.bf16.msra.mxu0 0
  %3437 = vmatprep.subr.bf16.mxu0 0
  %3438 = vmatpush1.bf16.msra.mxu0 0
  %3439 = vmatprep.subr.bf16.mxu0 0
  %3440 = vmatpush1.bf16.msra.mxu0 0
  %3441 = vmatprep.subr.bf16.mxu0 0
  %3442 = vmatpush1.bf16.msra.mxu0 0
  %3443 = vmatprep.subr.bf16.mxu0 0
  %3444 = vmatpush1.bf16.msra.mxu0 0
  %3445 = vmatprep.subr.bf16.mxu0 0
  %3446 = vmatpush1.bf16.msra.mxu0 0
  %3447 = vmatprep.subr.bf16.mxu0 0
  %3448 = vmatpush1.bf16.msra.mxu0 0
  %3449 = vmatprep.subr.bf16.mxu0 0
  %3450 = vmatpush1.bf16.msra.mxu0 0
  %3451 = vmatprep.subr.bf16.mxu0 0
  %3452 = vmatpush1.bf16.msra.mxu0 0
  %3453 = vmatprep.subr.bf16.mxu0 0
  %3454 = vmatpush1.bf16.msra.mxu0 0
  %3455 = vmatprep.subr.bf16.mxu0 0
  %3456 = vmatpush1.bf16.msra.mxu0 0
  %3457 = vmatprep.mubr.bf16.mxu0 0
  %3458 = vmatmul.mubr.bf16.gmra.mrb[0].mxu0 %v3420
  %v3459 = vpop.f32.mrb[0].mxu0
  %v3460 = vadd.f32 0.0, %v3459
  %v3461 = vpop.f32.mrb[0].mxu0
  %v3462 = vpop.f32.mrb[0].mxu0
  %v3463 = vpop.f32.mrb[0].mxu0
  %3464 = vdwg.mxu0
  %3465 = vrot.lane.b32.xlu0 %v3242, 112
  %v3466 = vpop.permute.xlu0 %3465
  %3467 = vrot.lane.b32.xlu0 %v3243, 80
  %v3468 = vpop.permute.xlu0 %3467
  %v3470 = vsel %vm181, %v3466, 0
  %v3473 = vsel %vm181, %v3468, 0
  %3475 = vmatprep.subr.bf16.mxu0 0
  %3476 = vmatpush1.bf16.xpose.msra.mxu0 %v3473
  %3477 = vmatprep.subr.bf16.mxu0 0
  %3478 = vmatpush1.bf16.xpose.msra.mxu0 0
  %3479 = vmatprep.subr.bf16.mxu0 0
  %3480 = vmatpush1.bf16.xpose.msra.mxu0 0
  %3481 = vmatprep.subr.bf16.mxu0 0
  %3482 = vmatpush1.bf16.xpose.msra.mxu0 0
  %3483 = vmatprep.subr.bf16.mxu0 0
  %3484 = vmatpush1.bf16.xpose.msra.mxu0 0
  %3485 = vmatprep.subr.bf16.mxu0 0
  %3486 = vmatpush1.bf16.xpose.msra.mxu0 0
  %3487 = vmatprep.subr.bf16.mxu0 0
  %3488 = vmatpush1.bf16.xpose.msra.mxu0 0
  %3489 = vmatprep.subr.bf16.mxu0 0
  %3490 = vmatpush1.bf16.xpose.msra.mxu0 0
  %3491 = vmatprep.subr.bf16.mxu0 0
  %3492 = vmatpush1.bf16.xpose.msra.mxu0 0
  %3493 = vmatprep.subr.bf16.mxu0 0
  %3494 = vmatpush1.bf16.xpose.msra.mxu0 0
  %3495 = vmatprep.subr.bf16.mxu0 0
  %3496 = vmatpush1.bf16.xpose.msra.mxu0 0
  %3497 = vmatprep.subr.bf16.mxu0 0
  %3498 = vmatpush1.bf16.xpose.msra.mxu0 0
  %3499 = vmatprep.subr.bf16.mxu0 0
  %3500 = vmatpush1.bf16.xpose.msra.mxu0 0
  %3501 = vmatprep.subr.bf16.mxu0 0
  %3502 = vmatpush1.bf16.xpose.msra.mxu0 0
  %3503 = vmatprep.subr.bf16.mxu0 0
  %3504 = vmatpush1.bf16.xpose.msra.mxu0 0
  %3505 = vmatprep.subr.bf16.mxu0 0
  %3506 = vmatpush1.bf16.xpose.msra.mxu0 0
  %3507 = vmatprep.mubr.bf16.mxu0 0
  %3508 = vmatmul.mubr.bf16.gmra.mrb[0].mxu0 %v3470
  %v3509 = vpop.f32.mrb[0].mxu0
  %v3510 = vadd.f32 0.0, %v3509
  %v3511 = vpop.f32.mrb[0].mxu0
  %v3512 = vpop.f32.mrb[0].mxu0
  %v3513 = vpop.f32.mrb[0].mxu0
  %3514 = vdwg.mxu0
  %v3515 = vsel %vm181, %v3510, -inf
  %3516 = vmax.xlane.f32.xlu0 %v3515
  %v3517 = vpop.xlane.xlu0 %3516
  %v3518 = vsub.f32 %v3510, %v3517
  %v3519 = vmul.f32 %v3518, 1.442695
  %v3520 = vpow.pop %v3519
  %v3521 = vsel %vm181, %v3520, 0.0
  %3522 = vadd.xlane.f32.xlu0 %v3521
  %v3523 = vpop.xlane.xlu0 %3522
  %v3524 = vrcp.pop %v3523
  %v3525 = vmul.f32 %v3520, %v3524
  %v3526 = vpack.c.bf16 %v3525, %v3525
  %3527 = vrot.lane.b32.xlu0 %v3243, 48
  %v3528 = vpop.permute.xlu0 %3527
  %v3530 = vsel %vm181, %v3526, 0
  %v3533 = vsel %vm3310, %v3528, 0
  %3535 = vmatprep.subr.bf16.mxu0 0
  %3536 = vmatpush1.bf16.msra.mxu0 %v3533
  %3537 = vmatprep.subr.bf16.mxu0 0
  %3538 = vmatpush1.bf16.msra.mxu0 0
  %3539 = vmatprep.subr.bf16.mxu0 0
  %3540 = vmatpush1.bf16.msra.mxu0 0
  %3541 = vmatprep.subr.bf16.mxu0 0
  %3542 = vmatpush1.bf16.msra.mxu0 0
  %3543 = vmatprep.subr.bf16.mxu0 0
  %3544 = vmatpush1.bf16.msra.mxu0 0
  %3545 = vmatprep.subr.bf16.mxu0 0
  %3546 = vmatpush1.bf16.msra.mxu0 0
  %3547 = vmatprep.subr.bf16.mxu0 0
  %3548 = vmatpush1.bf16.msra.mxu0 0
  %3549 = vmatprep.subr.bf16.mxu0 0
  %3550 = vmatpush1.bf16.msra.mxu0 0
  %3551 = vmatprep.subr.bf16.mxu0 0
  %3552 = vmatpush1.bf16.msra.mxu0 0
  %3553 = vmatprep.subr.bf16.mxu0 0
  %3554 = vmatpush1.bf16.msra.mxu0 0
  %3555 = vmatprep.subr.bf16.mxu0 0
  %3556 = vmatpush1.bf16.msra.mxu0 0
  %3557 = vmatprep.subr.bf16.mxu0 0
  %3558 = vmatpush1.bf16.msra.mxu0 0
  %3559 = vmatprep.subr.bf16.mxu0 0
  %3560 = vmatpush1.bf16.msra.mxu0 0
  %3561 = vmatprep.subr.bf16.mxu0 0
  %3562 = vmatpush1.bf16.msra.mxu0 0
  %3563 = vmatprep.subr.bf16.mxu0 0
  %3564 = vmatpush1.bf16.msra.mxu0 0
  %3565 = vmatprep.subr.bf16.mxu0 0
  %3566 = vmatpush1.bf16.msra.mxu0 0
  %3567 = vmatprep.mubr.bf16.mxu0 0
  %3568 = vmatmul.mubr.bf16.gmra.mrb[0].mxu0 %v3530
  %v3569 = vpop.f32.mrb[0].mxu0
  %v3570 = vadd.f32 0.0, %v3569
  %v3571 = vpop.f32.mrb[0].mxu0
  %v3572 = vpop.f32.mrb[0].mxu0
  %v3573 = vpop.f32.mrb[0].mxu0
  %3574 = vdwg.mxu0
  %3575 = vrot.lane.b32.xlu0 %v3242, 104
  %v3576 = vpop.permute.xlu0 %3575
  %3577 = vrot.lane.b32.xlu0 %v3243, 72
  %v3578 = vpop.permute.xlu0 %3577
  %v3580 = vsel %vm181, %v3576, 0
  %v3583 = vsel %vm181, %v3578, 0
  %3585 = vmatprep.subr.bf16.mxu0 0
  %3586 = vmatpush1.bf16.xpose.msra.mxu0 %v3583
  %3587 = vmatprep.subr.bf16.mxu0 0
  %3588 = vmatpush1.bf16.xpose.msra.mxu0 0
  %3589 = vmatprep.subr.bf16.mxu0 0
  %3590 = vmatpush1.bf16.xpose.msra.mxu0 0
  %3591 = vmatprep.subr.bf16.mxu0 0
  %3592 = vmatpush1.bf16.xpose.msra.mxu0 0
  %3593 = vmatprep.subr.bf16.mxu0 0
  %3594 = vmatpush1.bf16.xpose.msra.mxu0 0
  %3595 = vmatprep.subr.bf16.mxu0 0
  %3596 = vmatpush1.bf16.xpose.msra.mxu0 0
  %3597 = vmatprep.subr.bf16.mxu0 0
  %3598 = vmatpush1.bf16.xpose.msra.mxu0 0
  %3599 = vmatprep.subr.bf16.mxu0 0
  %3600 = vmatpush1.bf16.xpose.msra.mxu0 0
  %3601 = vmatprep.subr.bf16.mxu0 0
  %3602 = vmatpush1.bf16.xpose.msra.mxu0 0
  %3603 = vmatprep.subr.bf16.mxu0 0
  %3604 = vmatpush1.bf16.xpose.msra.mxu0 0
  %3605 = vmatprep.subr.bf16.mxu0 0
  %3606 = vmatpush1.bf16.xpose.msra.mxu0 0
  %3607 = vmatprep.subr.bf16.mxu0 0
  %3608 = vmatpush1.bf16.xpose.msra.mxu0 0
  %3609 = vmatprep.subr.bf16.mxu0 0
  %3610 = vmatpush1.bf16.xpose.msra.mxu0 0
  %3611 = vmatprep.subr.bf16.mxu0 0
  %3612 = vmatpush1.bf16.xpose.msra.mxu0 0
  %3613 = vmatprep.subr.bf16.mxu0 0
  %3614 = vmatpush1.bf16.xpose.msra.mxu0 0
  %3615 = vmatprep.subr.bf16.mxu0 0
  %3616 = vmatpush1.bf16.xpose.msra.mxu0 0
  %3617 = vmatprep.mubr.bf16.mxu0 0
  %3618 = vmatmul.mubr.bf16.gmra.mrb[0].mxu0 %v3580
  %v3619 = vpop.f32.mrb[0].mxu0
  %v3620 = vadd.f32 0.0, %v3619
  %v3621 = vpop.f32.mrb[0].mxu0
  %v3622 = vpop.f32.mrb[0].mxu0
  %v3623 = vpop.f32.mrb[0].mxu0
  %3624 = vdwg.mxu0
  %v3625 = vsel %vm181, %v3620, -inf
  %3626 = vmax.xlane.f32.xlu0 %v3625
  %v3627 = vpop.xlane.xlu0 %3626
  %v3628 = vsub.f32 %v3620, %v3627
  %v3629 = vmul.f32 %v3628, 1.442695
  %v3630 = vpow.pop %v3629
  %v3631 = vsel %vm181, %v3630, 0.0
  %3632 = vadd.xlane.f32.xlu0 %v3631
  %v3633 = vpop.xlane.xlu0 %3632
  %v3634 = vrcp.pop %v3633
  %v3635 = vmul.f32 %v3630, %v3634
  %v3636 = vpack.c.bf16 %v3635, %v3635
  %3637 = vrot.lane.b32.xlu0 %v3243, 40
  %v3638 = vpop.permute.xlu0 %3637
  %v3640 = vsel %vm181, %v3636, 0
  %v3643 = vsel %vm3310, %v3638, 0
  %3645 = vmatprep.subr.bf16.mxu0 0
  %3646 = vmatpush1.bf16.msra.mxu0 %v3643
  %3647 = vmatprep.subr.bf16.mxu0 0
  %3648 = vmatpush1.bf16.msra.mxu0 0
  %3649 = vmatprep.subr.bf16.mxu0 0
  %3650 = vmatpush1.bf16.msra.mxu0 0
  %3651 = vmatprep.subr.bf16.mxu0 0
  %3652 = vmatpush1.bf16.msra.mxu0 0
  %3653 = vmatprep.subr.bf16.mxu0 0
  %3654 = vmatpush1.bf16.msra.mxu0 0
  %3655 = vmatprep.subr.bf16.mxu0 0
  %3656 = vmatpush1.bf16.msra.mxu0 0
  %3657 = vmatprep.subr.bf16.mxu0 0
  %3658 = vmatpush1.bf16.msra.mxu0 0
  %3659 = vmatprep.subr.bf16.mxu0 0
  %3660 = vmatpush1.bf16.msra.mxu0 0
  %3661 = vmatprep.subr.bf16.mxu0 0
  %3662 = vmatpush1.bf16.msra.mxu0 0
  %3663 = vmatprep.subr.bf16.mxu0 0
  %3664 = vmatpush1.bf16.msra.mxu0 0
  %3665 = vmatprep.subr.bf16.mxu0 0
  %3666 = vmatpush1.bf16.msra.mxu0 0
  %3667 = vmatprep.subr.bf16.mxu0 0
  %3668 = vmatpush1.bf16.msra.mxu0 0
  %3669 = vmatprep.subr.bf16.mxu0 0
  %3670 = vmatpush1.bf16.msra.mxu0 0
  %3671 = vmatprep.subr.bf16.mxu0 0
  %3672 = vmatpush1.bf16.msra.mxu0 0
  %3673 = vmatprep.subr.bf16.mxu0 0
  %3674 = vmatpush1.bf16.msra.mxu0 0
  %3675 = vmatprep.subr.bf16.mxu0 0
  %3676 = vmatpush1.bf16.msra.mxu0 0
  %3677 = vmatprep.mubr.bf16.mxu0 0
  %3678 = vmatmul.mubr.bf16.gmra.mrb[0].mxu0 %v3640
  %v3679 = vpop.f32.mrb[0].mxu0
  %v3680 = vadd.f32 0.0, %v3679
  %v3681 = vpop.f32.mrb[0].mxu0
  %v3682 = vpop.f32.mrb[0].mxu0
  %v3683 = vpop.f32.mrb[0].mxu0
  %3684 = vdwg.mxu0
  %3686 = vrot.lane.b32.xlu0 %v3460, 8
  %v3687 = vpop.permute.xlu0 %3686
  %3690 = vrot.lane.b32.xlu0 %v3570, 16
  %v3691 = vpop.permute.xlu0 %3690
  %3694 = vrot.lane.b32.xlu0 %v3680, 24
  %v3695 = vpop.permute.xlu0 %3694
  %v3697 = vsel %vm181, %v3349, %v3687
  %v3698 = vsel %vm229, %v3697, %v3691
  %v3699 = vsel %vm692, %v3698, %v3695
  %v3700 = vrot.slane %v3242, 4
  %v3701 = vrot.slane %v3243, 4
  %3702 = vrot.lane.b32.xlu0 %v3701, 96
  %v3703 = vpop.permute.xlu0 %3702
  %v3705 = vsel %vm181, %v3700, 0
  %v3708 = vsel %vm181, %v3703, 0
  %3710 = vmatprep.subr.bf16.mxu0 0
  %3711 = vmatpush1.bf16.xpose.msra.mxu0 %v3708
  %3712 = vmatprep.subr.bf16.mxu0 0
  %3713 = vmatpush1.bf16.xpose.msra.mxu0 0
  %3714 = vmatprep.subr.bf16.mxu0 0
  %3715 = vmatpush1.bf16.xpose.msra.mxu0 0
  %3716 = vmatprep.subr.bf16.mxu0 0
  %3717 = vmatpush1.bf16.xpose.msra.mxu0 0
  %3718 = vmatprep.subr.bf16.mxu0 0
  %3719 = vmatpush1.bf16.xpose.msra.mxu0 0
  %3720 = vmatprep.subr.bf16.mxu0 0
  %3721 = vmatpush1.bf16.xpose.msra.mxu0 0
  %3722 = vmatprep.subr.bf16.mxu0 0
  %3723 = vmatpush1.bf16.xpose.msra.mxu0 0
  %3724 = vmatprep.subr.bf16.mxu0 0
  %3725 = vmatpush1.bf16.xpose.msra.mxu0 0
  %3726 = vmatprep.subr.bf16.mxu0 0
  %3727 = vmatpush1.bf16.xpose.msra.mxu0 0
  %3728 = vmatprep.subr.bf16.mxu0 0
  %3729 = vmatpush1.bf16.xpose.msra.mxu0 0
  %3730 = vmatprep.subr.bf16.mxu0 0
  %3731 = vmatpush1.bf16.xpose.msra.mxu0 0
  %3732 = vmatprep.subr.bf16.mxu0 0
  %3733 = vmatpush1.bf16.xpose.msra.mxu0 0
  %3734 = vmatprep.subr.bf16.mxu0 0
  %3735 = vmatpush1.bf16.xpose.msra.mxu0 0
  %3736 = vmatprep.subr.bf16.mxu0 0
  %3737 = vmatpush1.bf16.xpose.msra.mxu0 0
  %3738 = vmatprep.subr.bf16.mxu0 0
  %3739 = vmatpush1.bf16.xpose.msra.mxu0 0
  %3740 = vmatprep.subr.bf16.mxu0 0
  %3741 = vmatpush1.bf16.xpose.msra.mxu0 0
  %3742 = vmatprep.mubr.bf16.mxu0 0
  %3743 = vmatmul.mubr.bf16.gmra.mrb[0].mxu0 %v3705
  %v3744 = vpop.f32.mrb[0].mxu0
  %v3745 = vadd.f32 0.0, %v3744
  %v3746 = vpop.f32.mrb[0].mxu0
  %v3747 = vpop.f32.mrb[0].mxu0
  %v3748 = vpop.f32.mrb[0].mxu0
  %3749 = vdwg.mxu0
  %v3750 = vsel %vm181, %v3745, -inf
  %3751 = vmax.xlane.f32.xlu0 %v3750
  %v3752 = vpop.xlane.xlu0 %3751
  %v3753 = vsub.f32 %v3745, %v3752
  %v3754 = vmul.f32 %v3753, 1.442695
  %v3755 = vpow.pop %v3754
  %v3756 = vsel %vm181, %v3755, 0.0
  %3757 = vadd.xlane.f32.xlu0 %v3756
  %v3758 = vpop.xlane.xlu0 %3757
  %v3759 = vrcp.pop %v3758
  %v3760 = vmul.f32 %v3755, %v3759
  %v3761 = vpack.c.bf16 %v3760, %v3760
  %3762 = vrot.lane.b32.xlu0 %v3701, 64
  %v3763 = vpop.permute.xlu0 %3762
  %v3765 = vsel %vm181, %v3761, 0
  %v3768 = vsel %vm3310, %v3763, 0
  %3770 = vmatprep.subr.bf16.mxu0 0
  %3771 = vmatpush1.bf16.msra.mxu0 %v3768
  %3772 = vmatprep.subr.bf16.mxu0 0
  %3773 = vmatpush1.bf16.msra.mxu0 0
  %3774 = vmatprep.subr.bf16.mxu0 0
  %3775 = vmatpush1.bf16.msra.mxu0 0
  %3776 = vmatprep.subr.bf16.mxu0 0
  %3777 = vmatpush1.bf16.msra.mxu0 0
  %3778 = vmatprep.subr.bf16.mxu0 0
  %3779 = vmatpush1.bf16.msra.mxu0 0
  %3780 = vmatprep.subr.bf16.mxu0 0
  %3781 = vmatpush1.bf16.msra.mxu0 0
  %3782 = vmatprep.subr.bf16.mxu0 0
  %3783 = vmatpush1.bf16.msra.mxu0 0
  %3784 = vmatprep.subr.bf16.mxu0 0
  %3785 = vmatpush1.bf16.msra.mxu0 0
  %3786 = vmatprep.subr.bf16.mxu0 0
  %3787 = vmatpush1.bf16.msra.mxu0 0
  %3788 = vmatprep.subr.bf16.mxu0 0
  %3789 = vmatpush1.bf16.msra.mxu0 0
  %3790 = vmatprep.subr.bf16.mxu0 0
  %3791 = vmatpush1.bf16.msra.mxu0 0
  %3792 = vmatprep.subr.bf16.mxu0 0
  %3793 = vmatpush1.bf16.msra.mxu0 0
  %3794 = vmatprep.subr.bf16.mxu0 0
  %3795 = vmatpush1.bf16.msra.mxu0 0
  %3796 = vmatprep.subr.bf16.mxu0 0
  %3797 = vmatpush1.bf16.msra.mxu0 0
  %3798 = vmatprep.subr.bf16.mxu0 0
  %3799 = vmatpush1.bf16.msra.mxu0 0
  %3800 = vmatprep.subr.bf16.mxu0 0
  %3801 = vmatpush1.bf16.msra.mxu0 0
  %3802 = vmatprep.mubr.bf16.mxu0 0
  %3803 = vmatmul.mubr.bf16.gmra.mrb[0].mxu0 %v3765
  %v3804 = vpop.f32.mrb[0].mxu0
  %v3805 = vadd.f32 0.0, %v3804
  %v3806 = vpop.f32.mrb[0].mxu0
  %v3807 = vpop.f32.mrb[0].mxu0
  %v3808 = vpop.f32.mrb[0].mxu0
  %3809 = vdwg.mxu0
  %3810 = vrot.lane.b32.xlu0 %v3700, 120
  %v3811 = vpop.permute.xlu0 %3810
  %3812 = vrot.lane.b32.xlu0 %v3701, 88
  %v3813 = vpop.permute.xlu0 %3812
  %v3815 = vsel %vm181, %v3811, 0
  %v3818 = vsel %vm181, %v3813, 0
  %3820 = vmatprep.subr.bf16.mxu0 0
  %3821 = vmatpush1.bf16.xpose.msra.mxu0 %v3818
  %3822 = vmatprep.subr.bf16.mxu0 0
  %3823 = vmatpush1.bf16.xpose.msra.mxu0 0
  %3824 = vmatprep.subr.bf16.mxu0 0
  %3825 = vmatpush1.bf16.xpose.msra.mxu0 0
  %3826 = vmatprep.subr.bf16.mxu0 0
  %3827 = vmatpush1.bf16.xpose.msra.mxu0 0
  %3828 = vmatprep.subr.bf16.mxu0 0
  %3829 = vmatpush1.bf16.xpose.msra.mxu0 0
  %3830 = vmatprep.subr.bf16.mxu0 0
  %3831 = vmatpush1.bf16.xpose.msra.mxu0 0
  %3832 = vmatprep.subr.bf16.mxu0 0
  %3833 = vmatpush1.bf16.xpose.msra.mxu0 0
  %3834 = vmatprep.subr.bf16.mxu0 0
  %3835 = vmatpush1.bf16.xpose.msra.mxu0 0
  %3836 = vmatprep.subr.bf16.mxu0 0
  %3837 = vmatpush1.bf16.xpose.msra.mxu0 0
  %3838 = vmatprep.subr.bf16.mxu0 0
  %3839 = vmatpush1.bf16.xpose.msra.mxu0 0
  %3840 = vmatprep.subr.bf16.mxu0 0
  %3841 = vmatpush1.bf16.xpose.msra.mxu0 0
  %3842 = vmatprep.subr.bf16.mxu0 0
  %3843 = vmatpush1.bf16.xpose.msra.mxu0 0
  %3844 = vmatprep.subr.bf16.mxu0 0
  %3845 = vmatpush1.bf16.xpose.msra.mxu0 0
  %3846 = vmatprep.subr.bf16.mxu0 0
  %3847 = vmatpush1.bf16.xpose.msra.mxu0 0
  %3848 = vmatprep.subr.bf16.mxu0 0
  %3849 = vmatpush1.bf16.xpose.msra.mxu0 0
  %3850 = vmatprep.subr.bf16.mxu0 0
  %3851 = vmatpush1.bf16.xpose.msra.mxu0 0
  %3852 = vmatprep.mubr.bf16.mxu0 0
  %3853 = vmatmul.mubr.bf16.gmra.mrb[0].mxu0 %v3815
  %v3854 = vpop.f32.mrb[0].mxu0
  %v3855 = vadd.f32 0.0, %v3854
  %v3856 = vpop.f32.mrb[0].mxu0
  %v3857 = vpop.f32.mrb[0].mxu0
  %v3858 = vpop.f32.mrb[0].mxu0
  %3859 = vdwg.mxu0
  %v3860 = vsel %vm181, %v3855, -inf
  %3861 = vmax.xlane.f32.xlu0 %v3860
  %v3862 = vpop.xlane.xlu0 %3861
  %v3863 = vsub.f32 %v3855, %v3862
  %v3864 = vmul.f32 %v3863, 1.442695
  %v3865 = vpow.pop %v3864
  %v3866 = vsel %vm181, %v3865, 0.0
  %3867 = vadd.xlane.f32.xlu0 %v3866
  %v3868 = vpop.xlane.xlu0 %3867
  %v3869 = vrcp.pop %v3868
  %v3870 = vmul.f32 %v3865, %v3869
  %v3871 = vpack.c.bf16 %v3870, %v3870
  %3872 = vrot.lane.b32.xlu0 %v3701, 56
  %v3873 = vpop.permute.xlu0 %3872
  %v3875 = vsel %vm181, %v3871, 0
  %v3878 = vsel %vm3310, %v3873, 0
  %3880 = vmatprep.subr.bf16.mxu0 0
  %3881 = vmatpush1.bf16.msra.mxu0 %v3878
  %3882 = vmatprep.subr.bf16.mxu0 0
  %3883 = vmatpush1.bf16.msra.mxu0 0
  %3884 = vmatprep.subr.bf16.mxu0 0
  %3885 = vmatpush1.bf16.msra.mxu0 0
  %3886 = vmatprep.subr.bf16.mxu0 0
  %3887 = vmatpush1.bf16.msra.mxu0 0
  %3888 = vmatprep.subr.bf16.mxu0 0
  %3889 = vmatpush1.bf16.msra.mxu0 0
  %3890 = vmatprep.subr.bf16.mxu0 0
  %3891 = vmatpush1.bf16.msra.mxu0 0
  %3892 = vmatprep.subr.bf16.mxu0 0
  %3893 = vmatpush1.bf16.msra.mxu0 0
  %3894 = vmatprep.subr.bf16.mxu0 0
  %3895 = vmatpush1.bf16.msra.mxu0 0
  %3896 = vmatprep.subr.bf16.mxu0 0
  %3897 = vmatpush1.bf16.msra.mxu0 0
  %3898 = vmatprep.subr.bf16.mxu0 0
  %3899 = vmatpush1.bf16.msra.mxu0 0
  %3900 = vmatprep.subr.bf16.mxu0 0
  %3901 = vmatpush1.bf16.msra.mxu0 0
  %3902 = vmatprep.subr.bf16.mxu0 0
  %3903 = vmatpush1.bf16.msra.mxu0 0
  %3904 = vmatprep.subr.bf16.mxu0 0
  %3905 = vmatpush1.bf16.msra.mxu0 0
  %3906 = vmatprep.subr.bf16.mxu0 0
  %3907 = vmatpush1.bf16.msra.mxu0 0
  %3908 = vmatprep.subr.bf16.mxu0 0
  %3909 = vmatpush1.bf16.msra.mxu0 0
  %3910 = vmatprep.subr.bf16.mxu0 0
  %3911 = vmatpush1.bf16.msra.mxu0 0
  %3912 = vmatprep.mubr.bf16.mxu0 0
  %3913 = vmatmul.mubr.bf16.gmra.mrb[0].mxu0 %v3875
  %v3914 = vpop.f32.mrb[0].mxu0
  %v3915 = vadd.f32 0.0, %v3914
  %v3916 = vpop.f32.mrb[0].mxu0
  %v3917 = vpop.f32.mrb[0].mxu0
  %v3918 = vpop.f32.mrb[0].mxu0
  %3919 = vdwg.mxu0
  %3920 = vrot.lane.b32.xlu0 %v3700, 112
  %v3921 = vpop.permute.xlu0 %3920
  %3922 = vrot.lane.b32.xlu0 %v3701, 80
  %v3923 = vpop.permute.xlu0 %3922
  %v3925 = vsel %vm181, %v3921, 0
  %v3928 = vsel %vm181, %v3923, 0
  %3930 = vmatprep.subr.bf16.mxu0 0
  %3931 = vmatpush1.bf16.xpose.msra.mxu0 %v3928
  %3932 = vmatprep.subr.bf16.mxu0 0
  %3933 = vmatpush1.bf16.xpose.msra.mxu0 0
  %3934 = vmatprep.subr.bf16.mxu0 0
  %3935 = vmatpush1.bf16.xpose.msra.mxu0 0
  %3936 = vmatprep.subr.bf16.mxu0 0
  %3937 = vmatpush1.bf16.xpose.msra.mxu0 0
  %3938 = vmatprep.subr.bf16.mxu0 0
  %3939 = vmatpush1.bf16.xpose.msra.mxu0 0
  %3940 = vmatprep.subr.bf16.mxu0 0
  %3941 = vmatpush1.bf16.xpose.msra.mxu0 0
  %3942 = vmatprep.subr.bf16.mxu0 0
  %3943 = vmatpush1.bf16.xpose.msra.mxu0 0
  %3944 = vmatprep.subr.bf16.mxu0 0
  %3945 = vmatpush1.bf16.xpose.msra.mxu0 0
  %3946 = vmatprep.subr.bf16.mxu0 0
  %3947 = vmatpush1.bf16.xpose.msra.mxu0 0
  %3948 = vmatprep.subr.bf16.mxu0 0
  %3949 = vmatpush1.bf16.xpose.msra.mxu0 0
  %3950 = vmatprep.subr.bf16.mxu0 0
  %3951 = vmatpush1.bf16.xpose.msra.mxu0 0
  %3952 = vmatprep.subr.bf16.mxu0 0
  %3953 = vmatpush1.bf16.xpose.msra.mxu0 0
  %3954 = vmatprep.subr.bf16.mxu0 0
  %3955 = vmatpush1.bf16.xpose.msra.mxu0 0
  %3956 = vmatprep.subr.bf16.mxu0 0
  %3957 = vmatpush1.bf16.xpose.msra.mxu0 0
  %3958 = vmatprep.subr.bf16.mxu0 0
  %3959 = vmatpush1.bf16.xpose.msra.mxu0 0
  %3960 = vmatprep.subr.bf16.mxu0 0
  %3961 = vmatpush1.bf16.xpose.msra.mxu0 0
  %3962 = vmatprep.mubr.bf16.mxu0 0
  %3963 = vmatmul.mubr.bf16.gmra.mrb[0].mxu0 %v3925
  %v3964 = vpop.f32.mrb[0].mxu0
  %v3965 = vadd.f32 0.0, %v3964
  %v3966 = vpop.f32.mrb[0].mxu0
  %v3967 = vpop.f32.mrb[0].mxu0
  %v3968 = vpop.f32.mrb[0].mxu0
  %3969 = vdwg.mxu0
  %v3970 = vsel %vm181, %v3965, -inf
  %3971 = vmax.xlane.f32.xlu0 %v3970
  %v3972 = vpop.xlane.xlu0 %3971
  %v3973 = vsub.f32 %v3965, %v3972
  %v3974 = vmul.f32 %v3973, 1.442695
  %v3975 = vpow.pop %v3974
  %v3976 = vsel %vm181, %v3975, 0.0
  %3977 = vadd.xlane.f32.xlu0 %v3976
  %v3978 = vpop.xlane.xlu0 %3977
  %v3979 = vrcp.pop %v3978
  %v3980 = vmul.f32 %v3975, %v3979
  %v3981 = vpack.c.bf16 %v3980, %v3980
  %3982 = vrot.lane.b32.xlu0 %v3701, 48
  %v3983 = vpop.permute.xlu0 %3982
  %v3985 = vsel %vm181, %v3981, 0
  %v3988 = vsel %vm3310, %v3983, 0
  %3990 = vmatprep.subr.bf16.mxu0 0
  %3991 = vmatpush1.bf16.msra.mxu0 %v3988
  %3992 = vmatprep.subr.bf16.mxu0 0
  %3993 = vmatpush1.bf16.msra.mxu0 0
  %3994 = vmatprep.subr.bf16.mxu0 0
  %3995 = vmatpush1.bf16.msra.mxu0 0
  %3996 = vmatprep.subr.bf16.mxu0 0
  %3997 = vmatpush1.bf16.msra.mxu0 0
  %3998 = vmatprep.subr.bf16.mxu0 0
  %3999 = vmatpush1.bf16.msra.mxu0 0
  %4000 = vmatprep.subr.bf16.mxu0 0
  %4001 = vmatpush1.bf16.msra.mxu0 0
  %4002 = vmatprep.subr.bf16.mxu0 0
  %4003 = vmatpush1.bf16.msra.mxu0 0
  %4004 = vmatprep.subr.bf16.mxu0 0
  %4005 = vmatpush1.bf16.msra.mxu0 0
  %4006 = vmatprep.subr.bf16.mxu0 0
  %4007 = vmatpush1.bf16.msra.mxu0 0
  %4008 = vmatprep.subr.bf16.mxu0 0
  %4009 = vmatpush1.bf16.msra.mxu0 0
  %4010 = vmatprep.subr.bf16.mxu0 0
  %4011 = vmatpush1.bf16.msra.mxu0 0
  %4012 = vmatprep.subr.bf16.mxu0 0
  %4013 = vmatpush1.bf16.msra.mxu0 0
  %4014 = vmatprep.subr.bf16.mxu0 0
  %4015 = vmatpush1.bf16.msra.mxu0 0
  %4016 = vmatprep.subr.bf16.mxu0 0
  %4017 = vmatpush1.bf16.msra.mxu0 0
  %4018 = vmatprep.subr.bf16.mxu0 0
  %4019 = vmatpush1.bf16.msra.mxu0 0
  %4020 = vmatprep.subr.bf16.mxu0 0
  %4021 = vmatpush1.bf16.msra.mxu0 0
  %4022 = vmatprep.mubr.bf16.mxu0 0
  %4023 = vmatmul.mubr.bf16.gmra.mrb[0].mxu0 %v3985
  %v4024 = vpop.f32.mrb[0].mxu0
  %v4025 = vadd.f32 0.0, %v4024
  %v4026 = vpop.f32.mrb[0].mxu0
  %v4027 = vpop.f32.mrb[0].mxu0
  %v4028 = vpop.f32.mrb[0].mxu0
  %4029 = vdwg.mxu0
  %4030 = vrot.lane.b32.xlu0 %v3700, 104
  %v4031 = vpop.permute.xlu0 %4030
  %4032 = vrot.lane.b32.xlu0 %v3701, 72
  %v4033 = vpop.permute.xlu0 %4032
  %v4035 = vsel %vm181, %v4031, 0
  %v4038 = vsel %vm181, %v4033, 0
  %4040 = vmatprep.subr.bf16.mxu0 0
  %4041 = vmatpush1.bf16.xpose.msra.mxu0 %v4038
  %4042 = vmatprep.subr.bf16.mxu0 0
  %4043 = vmatpush1.bf16.xpose.msra.mxu0 0
  %4044 = vmatprep.subr.bf16.mxu0 0
  %4045 = vmatpush1.bf16.xpose.msra.mxu0 0
  %4046 = vmatprep.subr.bf16.mxu0 0
  %4047 = vmatpush1.bf16.xpose.msra.mxu0 0
  %4048 = vmatprep.subr.bf16.mxu0 0
  %4049 = vmatpush1.bf16.xpose.msra.mxu0 0
  %4050 = vmatprep.subr.bf16.mxu0 0
  %4051 = vmatpush1.bf16.xpose.msra.mxu0 0
  %4052 = vmatprep.subr.bf16.mxu0 0
  %4053 = vmatpush1.bf16.xpose.msra.mxu0 0
  %4054 = vmatprep.subr.bf16.mxu0 0
  %4055 = vmatpush1.bf16.xpose.msra.mxu0 0
  %4056 = vmatprep.subr.bf16.mxu0 0
  %4057 = vmatpush1.bf16.xpose.msra.mxu0 0
  %4058 = vmatprep.subr.bf16.mxu0 0
  %4059 = vmatpush1.bf16.xpose.msra.mxu0 0
  %4060 = vmatprep.subr.bf16.mxu0 0
  %4061 = vmatpush1.bf16.xpose.msra.mxu0 0
  %4062 = vmatprep.subr.bf16.mxu0 0
  %4063 = vmatpush1.bf16.xpose.msra.mxu0 0
  %4064 = vmatprep.subr.bf16.mxu0 0
  %4065 = vmatpush1.bf16.xpose.msra.mxu0 0
  %4066 = vmatprep.subr.bf16.mxu0 0
  %4067 = vmatpush1.bf16.xpose.msra.mxu0 0
  %4068 = vmatprep.subr.bf16.mxu0 0
  %4069 = vmatpush1.bf16.xpose.msra.mxu0 0
  %4070 = vmatprep.subr.bf16.mxu0 0
  %4071 = vmatpush1.bf16.xpose.msra.mxu0 0
  %4072 = vmatprep.mubr.bf16.mxu0 0
  %4073 = vmatmul.mubr.bf16.gmra.mrb[0].mxu0 %v4035
  %v4074 = vpop.f32.mrb[0].mxu0
  %v4075 = vadd.f32 0.0, %v4074
  %v4076 = vpop.f32.mrb[0].mxu0
  %v4077 = vpop.f32.mrb[0].mxu0
  %v4078 = vpop.f32.mrb[0].mxu0
  %4079 = vdwg.mxu0
  %v4080 = vsel %vm181, %v4075, -inf
  %4081 = vmax.xlane.f32.xlu0 %v4080
  %v4082 = vpop.xlane.xlu0 %4081
  %v4083 = vsub.f32 %v4075, %v4082
  %v4084 = vmul.f32 %v4083, 1.442695
  %v4085 = vpow.pop %v4084
  %v4086 = vsel %vm181, %v4085, 0.0
  %4087 = vadd.xlane.f32.xlu0 %v4086
  %v4088 = vpop.xlane.xlu0 %4087
  %v4089 = vrcp.pop %v4088
  %v4090 = vmul.f32 %v4085, %v4089
  %v4091 = vpack.c.bf16 %v4090, %v4090
  %4092 = vrot.lane.b32.xlu0 %v3701, 40
  %v4093 = vpop.permute.xlu0 %4092
  %v4095 = vsel %vm181, %v4091, 0
  %v4098 = vsel %vm3310, %v4093, 0
  %4100 = vmatprep.subr.bf16.mxu0 0
  %4101 = vmatpush1.bf16.msra.mxu0 %v4098
  %4102 = vmatprep.subr.bf16.mxu0 0
  %4103 = vmatpush1.bf16.msra.mxu0 0
  %4104 = vmatprep.subr.bf16.mxu0 0
  %4105 = vmatpush1.bf16.msra.mxu0 0
  %4106 = vmatprep.subr.bf16.mxu0 0
  %4107 = vmatpush1.bf16.msra.mxu0 0
  %4108 = vmatprep.subr.bf16.mxu0 0
  %4109 = vmatpush1.bf16.msra.mxu0 0
  %4110 = vmatprep.subr.bf16.mxu0 0
  %4111 = vmatpush1.bf16.msra.mxu0 0
  %4112 = vmatprep.subr.bf16.mxu0 0
  %4113 = vmatpush1.bf16.msra.mxu0 0
  %4114 = vmatprep.subr.bf16.mxu0 0
  %4115 = vmatpush1.bf16.msra.mxu0 0
  %4116 = vmatprep.subr.bf16.mxu0 0
  %4117 = vmatpush1.bf16.msra.mxu0 0
  %4118 = vmatprep.subr.bf16.mxu0 0
  %4119 = vmatpush1.bf16.msra.mxu0 0
  %4120 = vmatprep.subr.bf16.mxu0 0
  %4121 = vmatpush1.bf16.msra.mxu0 0
  %4122 = vmatprep.subr.bf16.mxu0 0
  %4123 = vmatpush1.bf16.msra.mxu0 0
  %4124 = vmatprep.subr.bf16.mxu0 0
  %4125 = vmatpush1.bf16.msra.mxu0 0
  %4126 = vmatprep.subr.bf16.mxu0 0
  %4127 = vmatpush1.bf16.msra.mxu0 0
  %4128 = vmatprep.subr.bf16.mxu0 0
  %4129 = vmatpush1.bf16.msra.mxu0 0
  %4130 = vmatprep.subr.bf16.mxu0 0
  %4131 = vmatpush1.bf16.msra.mxu0 0
  %4132 = vmatprep.mubr.bf16.mxu0 0
  %4133 = vmatmul.mubr.bf16.gmra.mrb[0].mxu0 %v4095
  %v4134 = vpop.f32.mrb[0].mxu0
  %v4135 = vadd.f32 0.0, %v4134
  %v4136 = vpop.f32.mrb[0].mxu0
  %v4137 = vpop.f32.mrb[0].mxu0
  %v4138 = vpop.f32.mrb[0].mxu0
  %4139 = vdwg.mxu0
  %4141 = vrot.lane.b32.xlu0 %v3915, 8
  %v4142 = vpop.permute.xlu0 %4141
  %4145 = vrot.lane.b32.xlu0 %v4025, 16
  %v4146 = vpop.permute.xlu0 %4145
  %4149 = vrot.lane.b32.xlu0 %v4135, 24
  %v4150 = vpop.permute.xlu0 %4149
  %v4152 = vsel %vm181, %v3805, %v4142
  %v4153 = vsel %vm229, %v4152, %v4146
  %v4154 = vsel %vm692, %v4153, %v4150
  %v4155 = vld [vmem:[%s1 + $0x60] sm:$0xf]
  %v4156 = vld [vmem:[%s1 + $0x64] sm:$0xf]
  %v4157 = vld [vmem:[%s1 + $0x68] sm:$0xf]
  %v4158 = vld [vmem:[%s1 + $0x6c] sm:$0xf]
  %v4159 = vpack.c.bf16 %v4154, %v3699
  %v4160 = vld [vmem:[%s2 + $0x2c] sm:$0x1]
  %v4161 = vlaneseq
  %v4162 = vshrl.u32 %v4161, 7
  %v4163 = vsub.s32 0, %v4162
  %v4164 = vrot.slane %v4160, %v4163
  %v4169 = vunpack.c.l.b16 %v4155
  %v4170 = vunpack.c.l.b16 %v4156
  %v4171 = vunpack.c.l.b16 %v4157
  %v4172 = vunpack.c.l.b16 %v4158
  %v4173 = vpack.c.b16 %v4170, %v4169
  %v4174 = vpack.c.b16 %v4172, %v4171
  %v4178 = vsel %vm114, %v4159, 0
  %4180 = vmatprep.subr.bf16.mxu0 0
  %4181 = vmatpush1.bf16.msra.mxu0 %v4173
  %4182 = vmatprep.subr.bf16.mxu0 0
  %4183 = vmatpush1.bf16.msra.mxu0 %v4174
  %4184 = vmatprep.subr.bf16.mxu0 0
  %4185 = vmatpush1.bf16.msra.mxu0 0
  %4186 = vmatprep.subr.bf16.mxu0 0
  %4187 = vmatpush1.bf16.msra.mxu0 0
  %4188 = vmatprep.subr.bf16.mxu0 0
  %4189 = vmatpush1.bf16.msra.mxu0 0
  %4190 = vmatprep.subr.bf16.mxu0 0
  %4191 = vmatpush1.bf16.msra.mxu0 0
  %4192 = vmatprep.subr.bf16.mxu0 0
  %4193 = vmatpush1.bf16.msra.mxu0 0
  %4194 = vmatprep.subr.bf16.mxu0 0
  %4195 = vmatpush1.bf16.msra.mxu0 0
  %4196 = vmatprep.subr.bf16.mxu0 0
  %4197 = vmatpush1.bf16.msra.mxu0 0
  %4198 = vmatprep.subr.bf16.mxu0 0
  %4199 = vmatpush1.bf16.msra.mxu0 0
  %4200 = vmatprep.subr.bf16.mxu0 0
  %4201 = vmatpush1.bf16.msra.mxu0 0
  %4202 = vmatprep.subr.bf16.mxu0 0
  %4203 = vmatpush1.bf16.msra.mxu0 0
  %4204 = vmatprep.subr.bf16.mxu0 0
  %4205 = vmatpush1.bf16.msra.mxu0 0
  %4206 = vmatprep.subr.bf16.mxu0 0
  %4207 = vmatpush1.bf16.msra.mxu0 0
  %4208 = vmatprep.subr.bf16.mxu0 0
  %4209 = vmatpush1.bf16.msra.mxu0 0
  %4210 = vmatprep.subr.bf16.mxu0 0
  %4211 = vmatpush1.bf16.msra.mxu0 0
  %4212 = vmatprep.mubr.bf16.mxu0 0
  %4213 = vmatmul.mubr.bf16.gmra.mrb[0].mxu0 %v4178
  %v4214 = vpop.f32.mrb[0].mxu0
  %v4215 = vadd.f32 %v4164, %v4214
  %v4216 = vpop.f32.mrb[0].mxu0
  %v4217 = vpop.f32.mrb[0].mxu0
  %v4218 = vadd.f32 %v4164, %v4217
  %v4219 = vpop.f32.mrb[0].mxu0
  %4220 = vdwg.mxu0
  %v4221 = vadd.f32 %v3085, %v4215
  %v4222 = vadd.f32 %v3085, %v4218
  %v4223 = vld [vmem:[%s2 + $0x31] sm:$0x1]
  %v4224 = vld [vmem:[%s2 + $0x32] sm:$0x1]
  %v4225 = vsel %vm114, %v4221, 0.0
  %4226 = vadd.xlane.f32.xlu0 %v4225
  %v4227 = vpop.xlane.xlu0 %4226
  %v4228 = vsel %vm114, %v4222, 0.0
  %4229 = vadd.xlane.f32.xlu0 %v4228
  %v4230 = vpop.xlane.xlu0 %4229
  %v4231 = vmul.f32 %v4227, %v1305
  %v4232 = vmul.f32 %v4230, %v1305
  %v4233 = vsub.f32 %v4221, %v4231
  %v4234 = vsub.f32 %v4222, %v4232
  %v4235 = vmul.f32 %v4233, %v4233
  %v4236 = vmul.f32 %v4234, %v4234
  %v4237 = vsel %vm114, %v4235, 0.0
  %4238 = vadd.xlane.f32.xlu0 %v4237
  %v4239 = vpop.xlane.xlu0 %4238
  %v4240 = vsel %vm114, %v4236, 0.0
  %4241 = vadd.xlane.f32.xlu0 %v4240
  %v4242 = vpop.xlane.xlu0 %4241
  %v4243 = vmul.f32 %v4239, %v1305
  %v4244 = vmul.f32 %v4242, %v1305
  %v4245 = vadd.f32 %v4243, 1e-05
  %v4246 = vadd.f32 %v4244, 1e-05
  %v4247 = vrsqrt.pop %v4245
  %v4248 = vrsqrt.pop %v4246
  %v4249 = vmul.f32 %v4233, %v4247
  %v4250 = vmul.f32 %v4234, %v4248
  %v4251 = vlaneseq
  %v4252 = vshrl.u32 %v4251, 7
  %v4253 = vsub.s32 0, %v4252
  %v4254 = vrot.slane %v4223, %v4253
  %v4255 = vmul.f32 %v4249, %v4254
  %v4256 = vmul.f32 %v4250, %v4254
  %v4257 = vlaneseq
  %v4258 = vshrl.u32 %v4257, 7
  %v4259 = vsub.s32 0, %v4258
  %v4260 = vrot.slane %v4224, %v4259
  %v4261 = vadd.f32 %v4255, %v4260
  %v4262 = vadd.f32 %v4256, %v4260
  %v4263 = vpack.c.bf16 %v4262, %v4261
  %v4267 = vsel %vm114, %v4263, 0
  %4269 = vmatprep.subr.bf16.mxu0 0
  %4270 = vmatpush1.bf16.msra.mxu0 %v3105
  %4271 = vmatprep.subr.bf16.mxu0 0
  %4272 = vmatpush1.bf16.msra.mxu0 %v3106
  %4273 = vmatprep.subr.bf16.mxu0 0
  %4274 = vmatpush1.bf16.msra.mxu0 0
  %4275 = vmatprep.subr.bf16.mxu0 0
  %4276 = vmatpush1.bf16.msra.mxu0 0
  %4277 = vmatprep.subr.bf16.mxu0 0
  %4278 = vmatpush1.bf16.msra.mxu0 0
  %4279 = vmatprep.subr.bf16.mxu0 0
  %4280 = vmatpush1.bf16.msra.mxu0 0
  %4281 = vmatprep.subr.bf16.mxu0 0
  %4282 = vmatpush1.bf16.msra.mxu0 0
  %4283 = vmatprep.subr.bf16.mxu0 0
  %4284 = vmatpush1.bf16.msra.mxu0 0
  %4285 = vmatprep.subr.bf16.mxu0 0
  %4286 = vmatpush1.bf16.msra.mxu0 0
  %4287 = vmatprep.subr.bf16.mxu0 0
  %4288 = vmatpush1.bf16.msra.mxu0 0
  %4289 = vmatprep.subr.bf16.mxu0 0
  %4290 = vmatpush1.bf16.msra.mxu0 0
  %4291 = vmatprep.subr.bf16.mxu0 0
  %4292 = vmatpush1.bf16.msra.mxu0 0
  %4293 = vmatprep.subr.bf16.mxu0 0
  %4294 = vmatpush1.bf16.msra.mxu0 0
  %4295 = vmatprep.subr.bf16.mxu0 0
  %4296 = vmatpush1.bf16.msra.mxu0 0
  %4297 = vmatprep.subr.bf16.mxu0 0
  %4298 = vmatpush1.bf16.msra.mxu0 0
  %4299 = vmatprep.subr.bf16.mxu0 0
  %4300 = vmatpush1.bf16.msra.mxu0 0
  %4301 = vmatprep.mubr.bf16.mxu0 0
  %4302 = vmatmul.mubr.bf16.gmra.mrb[0].mxu0 %v4267
  %v4303 = vpop.f32.mrb[0].mxu0
  %v4304 = vadd.f32 %v3096, %v4303
  %v4305 = vpop.f32.mrb[0].mxu0
  %v4306 = vpop.f32.mrb[0].mxu0
  %v4307 = vadd.f32 %v3096, %v4306
  %v4308 = vpop.f32.mrb[0].mxu0
  %4309 = vdwg.mxu0
  %v4310 = vmul.f32 %v4304, 0.35355338
  %v4311 = vmul.f32 %v4307, 0.35355338
  %v4312 = vpack.c.bf16 %v4311, %v4310
  %v4314 = vsel %vm181, %v4312, 0
  %v4317 = vsel %vm181, %v3172, 0
  %4319 = vmatprep.subr.bf16.mxu0 0
  %4320 = vmatpush1.bf16.xpose.msra.mxu0 %v4317
  %4321 = vmatprep.subr.bf16.mxu0 0
  %4322 = vmatpush1.bf16.xpose.msra.mxu0 0
  %4323 = vmatprep.subr.bf16.mxu0 0
  %4324 = vmatpush1.bf16.xpose.msra.mxu0 0
  %4325 = vmatprep.subr.bf16.mxu0 0
  %4326 = vmatpush1.bf16.xpose.msra.mxu0 0
  %4327 = vmatprep.subr.bf16.mxu0 0
  %4328 = vmatpush1.bf16.xpose.msra.mxu0 0
  %4329 = vmatprep.subr.bf16.mxu0 0
  %4330 = vmatpush1.bf16.xpose.msra.mxu0 0
  %4331 = vmatprep.subr.bf16.mxu0 0
  %4332 = vmatpush1.bf16.xpose.msra.mxu0 0
  %4333 = vmatprep.subr.bf16.mxu0 0
  %4334 = vmatpush1.bf16.xpose.msra.mxu0 0
  %4335 = vmatprep.subr.bf16.mxu0 0
  %4336 = vmatpush1.bf16.xpose.msra.mxu0 0
  %4337 = vmatprep.subr.bf16.mxu0 0
  %4338 = vmatpush1.bf16.xpose.msra.mxu0 0
  %4339 = vmatprep.subr.bf16.mxu0 0
  %4340 = vmatpush1.bf16.xpose.msra.mxu0 0
  %4341 = vmatprep.subr.bf16.mxu0 0
  %4342 = vmatpush1.bf16.xpose.msra.mxu0 0
  %4343 = vmatprep.subr.bf16.mxu0 0
  %4344 = vmatpush1.bf16.xpose.msra.mxu0 0
  %4345 = vmatprep.subr.bf16.mxu0 0
  %4346 = vmatpush1.bf16.xpose.msra.mxu0 0
  %4347 = vmatprep.subr.bf16.mxu0 0
  %4348 = vmatpush1.bf16.xpose.msra.mxu0 0
  %4349 = vmatprep.subr.bf16.mxu0 0
  %4350 = vmatpush1.bf16.xpose.msra.mxu0 0
  %4351 = vmatprep.mubr.bf16.mxu0 0
  %4352 = vmatmul.mubr.bf16.gmra.mrb[0].mxu0 %v4314
  %v4353 = vpop.f32.mrb[0].mxu0
  %v4354 = vadd.f32 0.0, %v4353
  %v4355 = vpop.f32.mrb[0].mxu0
  %v4356 = vpop.f32.mrb[0].mxu0
  %v4357 = vpop.f32.mrb[0].mxu0
  %4358 = vdwg.mxu0
  %v4359 = vsel %vm229, %v4354, -inf
  %4360 = vmax.xlane.f32.xlu0 %v4359
  %v4361 = vpop.xlane.xlu0 %4360
  %v4362 = vsub.f32 %v4354, %v4361
  %v4363 = vmul.f32 %v4362, 1.442695
  %v4364 = vpow.pop %v4363
  %v4365 = vsel %vm229, %v4364, 0.0
  %4366 = vadd.xlane.f32.xlu0 %v4365
  %v4367 = vpop.xlane.xlu0 %4366
  %v4368 = vrcp.pop %v4367
  %v4369 = vmul.f32 %v4364, %v4368
  %v4370 = vpack.c.bf16 %v4369, %v4369
  %4372 = vrot.lane.b32.xlu0 %v3172, 96
  %v4373 = vpop.permute.xlu0 %4372
  %v4376 = vsel %vm229, %v4370, 0
  %4378 = vmatprep.subr.bf16.mxu0 0
  %4379 = vmatpush1.bf16.msra.mxu0 %v4373
  %4380 = vmatprep.subr.bf16.mxu0 0
  %4381 = vmatpush1.bf16.msra.mxu0 0
  %4382 = vmatprep.subr.bf16.mxu0 0
  %4383 = vmatpush1.bf16.msra.mxu0 0
  %4384 = vmatprep.subr.bf16.mxu0 0
  %4385 = vmatpush1.bf16.msra.mxu0 0
  %4386 = vmatprep.subr.bf16.mxu0 0
  %4387 = vmatpush1.bf16.msra.mxu0 0
  %4388 = vmatprep.subr.bf16.mxu0 0
  %4389 = vmatpush1.bf16.msra.mxu0 0
  %4390 = vmatprep.subr.bf16.mxu0 0
  %4391 = vmatpush1.bf16.msra.mxu0 0
  %4392 = vmatprep.subr.bf16.mxu0 0
  %4393 = vmatpush1.bf16.msra.mxu0 0
  %4394 = vmatprep.subr.bf16.mxu0 0
  %4395 = vmatpush1.bf16.msra.mxu0 0
  %4396 = vmatprep.subr.bf16.mxu0 0
  %4397 = vmatpush1.bf16.msra.mxu0 0
  %4398 = vmatprep.subr.bf16.mxu0 0
  %4399 = vmatpush1.bf16.msra.mxu0 0
  %4400 = vmatprep.subr.bf16.mxu0 0
  %4401 = vmatpush1.bf16.msra.mxu0 0
  %4402 = vmatprep.subr.bf16.mxu0 0
  %4403 = vmatpush1.bf16.msra.mxu0 0
  %4404 = vmatprep.subr.bf16.mxu0 0
  %4405 = vmatpush1.bf16.msra.mxu0 0
  %4406 = vmatprep.subr.bf16.mxu0 0
  %4407 = vmatpush1.bf16.msra.mxu0 0
  %4408 = vmatprep.subr.bf16.mxu0 0
  %4409 = vmatpush1.bf16.msra.mxu0 0
  %4410 = vmatprep.mubr.bf16.mxu0 0
  %4411 = vmatmul.mubr.bf16.gmra.mrb[0].mxu0 %v4376
  %v4412 = vpop.f32.mrb[0].mxu0
  %v4413 = vadd.f32 0.0, %v4412
  %v4414 = vpop.f32.mrb[0].mxu0
  %v4415 = vpop.f32.mrb[0].mxu0
  %v4416 = vpop.f32.mrb[0].mxu0
  %4417 = vdwg.mxu0
  %4419 = vrot.lane.b32.xlu0 %v4312, 120
  %v4420 = vpop.permute.xlu0 %4419
  %4421 = vrot.lane.b32.xlu0 %v3172, 120
  %v4422 = vpop.permute.xlu0 %4421
  %v4424 = vsel %vm181, %v4420, 0
  %v4427 = vsel %vm181, %v4422, 0
  %4429 = vmatprep.subr.bf16.mxu0 0
  %4430 = vmatpush1.bf16.xpose.msra.mxu0 %v4427
  %4431 = vmatprep.subr.bf16.mxu0 0
  %4432 = vmatpush1.bf16.xpose.msra.mxu0 0
  %4433 = vmatprep.subr.bf16.mxu0 0
  %4434 = vmatpush1.bf16.xpose.msra.mxu0 0
  %4435 = vmatprep.subr.bf16.mxu0 0
  %4436 = vmatpush1.bf16.xpose.msra.mxu0 0
  %4437 = vmatprep.subr.bf16.mxu0 0
  %4438 = vmatpush1.bf16.xpose.msra.mxu0 0
  %4439 = vmatprep.subr.bf16.mxu0 0
  %4440 = vmatpush1.bf16.xpose.msra.mxu0 0
  %4441 = vmatprep.subr.bf16.mxu0 0
  %4442 = vmatpush1.bf16.xpose.msra.mxu0 0
  %4443 = vmatprep.subr.bf16.mxu0 0
  %4444 = vmatpush1.bf16.xpose.msra.mxu0 0
  %4445 = vmatprep.subr.bf16.mxu0 0
  %4446 = vmatpush1.bf16.xpose.msra.mxu0 0
  %4447 = vmatprep.subr.bf16.mxu0 0
  %4448 = vmatpush1.bf16.xpose.msra.mxu0 0
  %4449 = vmatprep.subr.bf16.mxu0 0
  %4450 = vmatpush1.bf16.xpose.msra.mxu0 0
  %4451 = vmatprep.subr.bf16.mxu0 0
  %4452 = vmatpush1.bf16.xpose.msra.mxu0 0
  %4453 = vmatprep.subr.bf16.mxu0 0
  %4454 = vmatpush1.bf16.xpose.msra.mxu0 0
  %4455 = vmatprep.subr.bf16.mxu0 0
  %4456 = vmatpush1.bf16.xpose.msra.mxu0 0
  %4457 = vmatprep.subr.bf16.mxu0 0
  %4458 = vmatpush1.bf16.xpose.msra.mxu0 0
  %4459 = vmatprep.subr.bf16.mxu0 0
  %4460 = vmatpush1.bf16.xpose.msra.mxu0 0
  %4461 = vmatprep.mubr.bf16.mxu0 0
  %4462 = vmatmul.mubr.bf16.gmra.mrb[0].mxu0 %v4424
  %v4463 = vpop.f32.mrb[0].mxu0
  %v4464 = vadd.f32 0.0, %v4463
  %v4465 = vpop.f32.mrb[0].mxu0
  %v4466 = vpop.f32.mrb[0].mxu0
  %v4467 = vpop.f32.mrb[0].mxu0
  %4468 = vdwg.mxu0
  %v4469 = vsel %vm229, %v4464, -inf
  %4470 = vmax.xlane.f32.xlu0 %v4469
  %v4471 = vpop.xlane.xlu0 %4470
  %v4472 = vsub.f32 %v4464, %v4471
  %v4473 = vmul.f32 %v4472, 1.442695
  %v4474 = vpow.pop %v4473
  %v4475 = vsel %vm229, %v4474, 0.0
  %4476 = vadd.xlane.f32.xlu0 %v4475
  %v4477 = vpop.xlane.xlu0 %4476
  %v4478 = vrcp.pop %v4477
  %v4479 = vmul.f32 %v4474, %v4478
  %v4480 = vpack.c.bf16 %v4479, %v4479
  %4481 = vrot.lane.b32.xlu0 %v3172, 88
  %v4482 = vpop.permute.xlu0 %4481
  %v4485 = vsel %vm229, %v4480, 0
  %4487 = vmatprep.subr.bf16.mxu0 0
  %4488 = vmatpush1.bf16.msra.mxu0 %v4482
  %4489 = vmatprep.subr.bf16.mxu0 0
  %4490 = vmatpush1.bf16.msra.mxu0 0
  %4491 = vmatprep.subr.bf16.mxu0 0
  %4492 = vmatpush1.bf16.msra.mxu0 0
  %4493 = vmatprep.subr.bf16.mxu0 0
  %4494 = vmatpush1.bf16.msra.mxu0 0
  %4495 = vmatprep.subr.bf16.mxu0 0
  %4496 = vmatpush1.bf16.msra.mxu0 0
  %4497 = vmatprep.subr.bf16.mxu0 0
  %4498 = vmatpush1.bf16.msra.mxu0 0
  %4499 = vmatprep.subr.bf16.mxu0 0
  %4500 = vmatpush1.bf16.msra.mxu0 0
  %4501 = vmatprep.subr.bf16.mxu0 0
  %4502 = vmatpush1.bf16.msra.mxu0 0
  %4503 = vmatprep.subr.bf16.mxu0 0
  %4504 = vmatpush1.bf16.msra.mxu0 0
  %4505 = vmatprep.subr.bf16.mxu0 0
  %4506 = vmatpush1.bf16.msra.mxu0 0
  %4507 = vmatprep.subr.bf16.mxu0 0
  %4508 = vmatpush1.bf16.msra.mxu0 0
  %4509 = vmatprep.subr.bf16.mxu0 0
  %4510 = vmatpush1.bf16.msra.mxu0 0
  %4511 = vmatprep.subr.bf16.mxu0 0
  %4512 = vmatpush1.bf16.msra.mxu0 0
  %4513 = vmatprep.subr.bf16.mxu0 0
  %4514 = vmatpush1.bf16.msra.mxu0 0
  %4515 = vmatprep.subr.bf16.mxu0 0
  %4516 = vmatpush1.bf16.msra.mxu0 0
  %4517 = vmatprep.subr.bf16.mxu0 0
  %4518 = vmatpush1.bf16.msra.mxu0 0
  %4519 = vmatprep.mubr.bf16.mxu0 0
  %4520 = vmatmul.mubr.bf16.gmra.mrb[0].mxu0 %v4485
  %v4521 = vpop.f32.mrb[0].mxu0
  %v4522 = vadd.f32 0.0, %v4521
  %v4523 = vpop.f32.mrb[0].mxu0
  %v4524 = vpop.f32.mrb[0].mxu0
  %v4525 = vpop.f32.mrb[0].mxu0
  %4526 = vdwg.mxu0
  %4527 = vrot.lane.b32.xlu0 %v4312, 112
  %v4528 = vpop.permute.xlu0 %4527
  %4529 = vrot.lane.b32.xlu0 %v3172, 112
  %v4530 = vpop.permute.xlu0 %4529
  %v4532 = vsel %vm181, %v4528, 0
  %v4535 = vsel %vm181, %v4530, 0
  %4537 = vmatprep.subr.bf16.mxu0 0
  %4538 = vmatpush1.bf16.xpose.msra.mxu0 %v4535
  %4539 = vmatprep.subr.bf16.mxu0 0
  %4540 = vmatpush1.bf16.xpose.msra.mxu0 0
  %4541 = vmatprep.subr.bf16.mxu0 0
  %4542 = vmatpush1.bf16.xpose.msra.mxu0 0
  %4543 = vmatprep.subr.bf16.mxu0 0
  %4544 = vmatpush1.bf16.xpose.msra.mxu0 0
  %4545 = vmatprep.subr.bf16.mxu0 0
  %4546 = vmatpush1.bf16.xpose.msra.mxu0 0
  %4547 = vmatprep.subr.bf16.mxu0 0
  %4548 = vmatpush1.bf16.xpose.msra.mxu0 0
  %4549 = vmatprep.subr.bf16.mxu0 0
  %4550 = vmatpush1.bf16.xpose.msra.mxu0 0
  %4551 = vmatprep.subr.bf16.mxu0 0
  %4552 = vmatpush1.bf16.xpose.msra.mxu0 0
  %4553 = vmatprep.subr.bf16.mxu0 0
  %4554 = vmatpush1.bf16.xpose.msra.mxu0 0
  %4555 = vmatprep.subr.bf16.mxu0 0
  %4556 = vmatpush1.bf16.xpose.msra.mxu0 0
  %4557 = vmatprep.subr.bf16.mxu0 0
  %4558 = vmatpush1.bf16.xpose.msra.mxu0 0
  %4559 = vmatprep.subr.bf16.mxu0 0
  %4560 = vmatpush1.bf16.xpose.msra.mxu0 0
  %4561 = vmatprep.subr.bf16.mxu0 0
  %4562 = vmatpush1.bf16.xpose.msra.mxu0 0
  %4563 = vmatprep.subr.bf16.mxu0 0
  %4564 = vmatpush1.bf16.xpose.msra.mxu0 0
  %4565 = vmatprep.subr.bf16.mxu0 0
  %4566 = vmatpush1.bf16.xpose.msra.mxu0 0
  %4567 = vmatprep.subr.bf16.mxu0 0
  %4568 = vmatpush1.bf16.xpose.msra.mxu0 0
  %4569 = vmatprep.mubr.bf16.mxu0 0
  %4570 = vmatmul.mubr.bf16.gmra.mrb[0].mxu0 %v4532
  %v4571 = vpop.f32.mrb[0].mxu0
  %v4572 = vadd.f32 0.0, %v4571
  %v4573 = vpop.f32.mrb[0].mxu0
  %v4574 = vpop.f32.mrb[0].mxu0
  %v4575 = vpop.f32.mrb[0].mxu0
  %4576 = vdwg.mxu0
  %v4577 = vsel %vm229, %v4572, -inf
  %4578 = vmax.xlane.f32.xlu0 %v4577
  %v4579 = vpop.xlane.xlu0 %4578
  %v4580 = vsub.f32 %v4572, %v4579
  %v4581 = vmul.f32 %v4580, 1.442695
  %v4582 = vpow.pop %v4581
  %v4583 = vsel %vm229, %v4582, 0.0
  %4584 = vadd.xlane.f32.xlu0 %v4583
  %v4585 = vpop.xlane.xlu0 %4584
  %v4586 = vrcp.pop %v4585
  %v4587 = vmul.f32 %v4582, %v4586
  %v4588 = vpack.c.bf16 %v4587, %v4587
  %4589 = vrot.lane.b32.xlu0 %v3172, 80
  %v4590 = vpop.permute.xlu0 %4589
  %v4593 = vsel %vm229, %v4588, 0
  %4595 = vmatprep.subr.bf16.mxu0 0
  %4596 = vmatpush1.bf16.msra.mxu0 %v4590
  %4597 = vmatprep.subr.bf16.mxu0 0
  %4598 = vmatpush1.bf16.msra.mxu0 0
  %4599 = vmatprep.subr.bf16.mxu0 0
  %4600 = vmatpush1.bf16.msra.mxu0 0
  %4601 = vmatprep.subr.bf16.mxu0 0
  %4602 = vmatpush1.bf16.msra.mxu0 0
  %4603 = vmatprep.subr.bf16.mxu0 0
  %4604 = vmatpush1.bf16.msra.mxu0 0
  %4605 = vmatprep.subr.bf16.mxu0 0
  %4606 = vmatpush1.bf16.msra.mxu0 0
  %4607 = vmatprep.subr.bf16.mxu0 0
  %4608 = vmatpush1.bf16.msra.mxu0 0
  %4609 = vmatprep.subr.bf16.mxu0 0
  %4610 = vmatpush1.bf16.msra.mxu0 0
  %4611 = vmatprep.subr.bf16.mxu0 0
  %4612 = vmatpush1.bf16.msra.mxu0 0
  %4613 = vmatprep.subr.bf16.mxu0 0
  %4614 = vmatpush1.bf16.msra.mxu0 0
  %4615 = vmatprep.subr.bf16.mxu0 0
  %4616 = vmatpush1.bf16.msra.mxu0 0
  %4617 = vmatprep.subr.bf16.mxu0 0
  %4618 = vmatpush1.bf16.msra.mxu0 0
  %4619 = vmatprep.subr.bf16.mxu0 0
  %4620 = vmatpush1.bf16.msra.mxu0 0
  %4621 = vmatprep.subr.bf16.mxu0 0
  %4622 = vmatpush1.bf16.msra.mxu0 0
  %4623 = vmatprep.subr.bf16.mxu0 0
  %4624 = vmatpush1.bf16.msra.mxu0 0
  %4625 = vmatprep.subr.bf16.mxu0 0
  %4626 = vmatpush1.bf16.msra.mxu0 0
  %4627 = vmatprep.mubr.bf16.mxu0 0
  %4628 = vmatmul.mubr.bf16.gmra.mrb[0].mxu0 %v4593
  %v4629 = vpop.f32.mrb[0].mxu0
  %v4630 = vadd.f32 0.0, %v4629
  %v4631 = vpop.f32.mrb[0].mxu0
  %v4632 = vpop.f32.mrb[0].mxu0
  %v4633 = vpop.f32.mrb[0].mxu0
  %4634 = vdwg.mxu0
  %4635 = vrot.lane.b32.xlu0 %v4312, 104
  %v4636 = vpop.permute.xlu0 %4635
  %4637 = vrot.lane.b32.xlu0 %v3172, 104
  %v4638 = vpop.permute.xlu0 %4637
  %v4640 = vsel %vm181, %v4636, 0
  %v4643 = vsel %vm181, %v4638, 0
  %4645 = vmatprep.subr.bf16.mxu0 0
  %4646 = vmatpush1.bf16.xpose.msra.mxu0 %v4643
  %4647 = vmatprep.subr.bf16.mxu0 0
  %4648 = vmatpush1.bf16.xpose.msra.mxu0 0
  %4649 = vmatprep.subr.bf16.mxu0 0
  %4650 = vmatpush1.bf16.xpose.msra.mxu0 0
  %4651 = vmatprep.subr.bf16.mxu0 0
  %4652 = vmatpush1.bf16.xpose.msra.mxu0 0
  %4653 = vmatprep.subr.bf16.mxu0 0
  %4654 = vmatpush1.bf16.xpose.msra.mxu0 0
  %4655 = vmatprep.subr.bf16.mxu0 0
  %4656 = vmatpush1.bf16.xpose.msra.mxu0 0
  %4657 = vmatprep.subr.bf16.mxu0 0
  %4658 = vmatpush1.bf16.xpose.msra.mxu0 0
  %4659 = vmatprep.subr.bf16.mxu0 0
  %4660 = vmatpush1.bf16.xpose.msra.mxu0 0
  %4661 = vmatprep.subr.bf16.mxu0 0
  %4662 = vmatpush1.bf16.xpose.msra.mxu0 0
  %4663 = vmatprep.subr.bf16.mxu0 0
  %4664 = vmatpush1.bf16.xpose.msra.mxu0 0
  %4665 = vmatprep.subr.bf16.mxu0 0
  %4666 = vmatpush1.bf16.xpose.msra.mxu0 0
  %4667 = vmatprep.subr.bf16.mxu0 0
  %4668 = vmatpush1.bf16.xpose.msra.mxu0 0
  %4669 = vmatprep.subr.bf16.mxu0 0
  %4670 = vmatpush1.bf16.xpose.msra.mxu0 0
  %4671 = vmatprep.subr.bf16.mxu0 0
  %4672 = vmatpush1.bf16.xpose.msra.mxu0 0
  %4673 = vmatprep.subr.bf16.mxu0 0
  %4674 = vmatpush1.bf16.xpose.msra.mxu0 0
  %4675 = vmatprep.subr.bf16.mxu0 0
  %4676 = vmatpush1.bf16.xpose.msra.mxu0 0
  %4677 = vmatprep.mubr.bf16.mxu0 0
  %4678 = vmatmul.mubr.bf16.gmra.mrb[0].mxu0 %v4640
  %v4679 = vpop.f32.mrb[0].mxu0
  %v4680 = vadd.f32 0.0, %v4679
  %v4681 = vpop.f32.mrb[0].mxu0
  %v4682 = vpop.f32.mrb[0].mxu0
  %v4683 = vpop.f32.mrb[0].mxu0
  %4684 = vdwg.mxu0
  %v4685 = vsel %vm229, %v4680, -inf
  %4686 = vmax.xlane.f32.xlu0 %v4685
  %v4687 = vpop.xlane.xlu0 %4686
  %v4688 = vsub.f32 %v4680, %v4687
  %v4689 = vmul.f32 %v4688, 1.442695
  %v4690 = vpow.pop %v4689
  %v4691 = vsel %vm229, %v4690, 0.0
  %4692 = vadd.xlane.f32.xlu0 %v4691
  %v4693 = vpop.xlane.xlu0 %4692
  %v4694 = vrcp.pop %v4693
  %v4695 = vmul.f32 %v4690, %v4694
  %v4696 = vpack.c.bf16 %v4695, %v4695
  %4697 = vrot.lane.b32.xlu0 %v3172, 72
  %v4698 = vpop.permute.xlu0 %4697
  %v4701 = vsel %vm229, %v4696, 0
  %4703 = vmatprep.subr.bf16.mxu0 0
  %4704 = vmatpush1.bf16.msra.mxu0 %v4698
  %4705 = vmatprep.subr.bf16.mxu0 0
  %4706 = vmatpush1.bf16.msra.mxu0 0
  %4707 = vmatprep.subr.bf16.mxu0 0
  %4708 = vmatpush1.bf16.msra.mxu0 0
  %4709 = vmatprep.subr.bf16.mxu0 0
  %4710 = vmatpush1.bf16.msra.mxu0 0
  %4711 = vmatprep.subr.bf16.mxu0 0
  %4712 = vmatpush1.bf16.msra.mxu0 0
  %4713 = vmatprep.subr.bf16.mxu0 0
  %4714 = vmatpush1.bf16.msra.mxu0 0
  %4715 = vmatprep.subr.bf16.mxu0 0
  %4716 = vmatpush1.bf16.msra.mxu0 0
  %4717 = vmatprep.subr.bf16.mxu0 0
  %4718 = vmatpush1.bf16.msra.mxu0 0
  %4719 = vmatprep.subr.bf16.mxu0 0
  %4720 = vmatpush1.bf16.msra.mxu0 0
  %4721 = vmatprep.subr.bf16.mxu0 0
  %4722 = vmatpush1.bf16.msra.mxu0 0
  %4723 = vmatprep.subr.bf16.mxu0 0
  %4724 = vmatpush1.bf16.msra.mxu0 0
  %4725 = vmatprep.subr.bf16.mxu0 0
  %4726 = vmatpush1.bf16.msra.mxu0 0
  %4727 = vmatprep.subr.bf16.mxu0 0
  %4728 = vmatpush1.bf16.msra.mxu0 0
  %4729 = vmatprep.subr.bf16.mxu0 0
  %4730 = vmatpush1.bf16.msra.mxu0 0
  %4731 = vmatprep.subr.bf16.mxu0 0
  %4732 = vmatpush1.bf16.msra.mxu0 0
  %4733 = vmatprep.subr.bf16.mxu0 0
  %4734 = vmatpush1.bf16.msra.mxu0 0
  %4735 = vmatprep.mubr.bf16.mxu0 0
  %4736 = vmatmul.mubr.bf16.gmra.mrb[0].mxu0 %v4701
  %v4737 = vpop.f32.mrb[0].mxu0
  %v4738 = vadd.f32 0.0, %v4737
  %v4739 = vpop.f32.mrb[0].mxu0
  %v4740 = vpop.f32.mrb[0].mxu0
  %v4741 = vpop.f32.mrb[0].mxu0
  %4742 = vdwg.mxu0
  %4744 = vrot.lane.b32.xlu0 %v4522, 8
  %v4745 = vpop.permute.xlu0 %4744
  %4748 = vrot.lane.b32.xlu0 %v4630, 16
  %v4749 = vpop.permute.xlu0 %4748
  %4752 = vrot.lane.b32.xlu0 %v4738, 24
  %v4753 = vpop.permute.xlu0 %4752
  %v4755 = vsel %vm181, %v4413, %v4745
  %v4756 = vsel %vm229, %v4755, %v4749
  %v4757 = vsel %vm692, %v4756, %v4753
  %v4758 = vrot.slane %v4312, 4
  %v4760 = vsel %vm181, %v4758, 0
  %v4763 = vsel %vm181, %v3173, 0
  %4765 = vmatprep.subr.bf16.mxu0 0
  %4766 = vmatpush1.bf16.xpose.msra.mxu0 %v4763
  %4767 = vmatprep.subr.bf16.mxu0 0
  %4768 = vmatpush1.bf16.xpose.msra.mxu0 0
  %4769 = vmatprep.subr.bf16.mxu0 0
  %4770 = vmatpush1.bf16.xpose.msra.mxu0 0
  %4771 = vmatprep.subr.bf16.mxu0 0
  %4772 = vmatpush1.bf16.xpose.msra.mxu0 0
  %4773 = vmatprep.subr.bf16.mxu0 0
  %4774 = vmatpush1.bf16.xpose.msra.mxu0 0
  %4775 = vmatprep.subr.bf16.mxu0 0
  %4776 = vmatpush1.bf16.xpose.msra.mxu0 0
  %4777 = vmatprep.subr.bf16.mxu0 0
  %4778 = vmatpush1.bf16.xpose.msra.mxu0 0
  %4779 = vmatprep.subr.bf16.mxu0 0
  %4780 = vmatpush1.bf16.xpose.msra.mxu0 0
  %4781 = vmatprep.subr.bf16.mxu0 0
  %4782 = vmatpush1.bf16.xpose.msra.mxu0 0
  %4783 = vmatprep.subr.bf16.mxu0 0
  %4784 = vmatpush1.bf16.xpose.msra.mxu0 0
  %4785 = vmatprep.subr.bf16.mxu0 0
  %4786 = vmatpush1.bf16.xpose.msra.mxu0 0
  %4787 = vmatprep.subr.bf16.mxu0 0
  %4788 = vmatpush1.bf16.xpose.msra.mxu0 0
  %4789 = vmatprep.subr.bf16.mxu0 0
  %4790 = vmatpush1.bf16.xpose.msra.mxu0 0
  %4791 = vmatprep.subr.bf16.mxu0 0
  %4792 = vmatpush1.bf16.xpose.msra.mxu0 0
  %4793 = vmatprep.subr.bf16.mxu0 0
  %4794 = vmatpush1.bf16.xpose.msra.mxu0 0
  %4795 = vmatprep.subr.bf16.mxu0 0
  %4796 = vmatpush1.bf16.xpose.msra.mxu0 0
  %4797 = vmatprep.mubr.bf16.mxu0 0
  %4798 = vmatmul.mubr.bf16.gmra.mrb[0].mxu0 %v4760
  %v4799 = vpop.f32.mrb[0].mxu0
  %v4800 = vadd.f32 0.0, %v4799
  %v4801 = vpop.f32.mrb[0].mxu0
  %v4802 = vpop.f32.mrb[0].mxu0
  %v4803 = vpop.f32.mrb[0].mxu0
  %4804 = vdwg.mxu0
  %v4805 = vsel %vm229, %v4800, -inf
  %4806 = vmax.xlane.f32.xlu0 %v4805
  %v4807 = vpop.xlane.xlu0 %4806
  %v4808 = vsub.f32 %v4800, %v4807
  %v4809 = vmul.f32 %v4808, 1.442695
  %v4810 = vpow.pop %v4809
  %v4811 = vsel %vm229, %v4810, 0.0
  %4812 = vadd.xlane.f32.xlu0 %v4811
  %v4813 = vpop.xlane.xlu0 %4812
  %v4814 = vrcp.pop %v4813
  %v4815 = vmul.f32 %v4810, %v4814
  %v4816 = vpack.c.bf16 %v4815, %v4815
  %4818 = vrot.lane.b32.xlu0 %v3173, 96
  %v4819 = vpop.permute.xlu0 %4818
  %v4822 = vsel %vm229, %v4816, 0
  %4824 = vmatprep.subr.bf16.mxu0 0
  %4825 = vmatpush1.bf16.msra.mxu0 %v4819
  %4826 = vmatprep.subr.bf16.mxu0 0
  %4827 = vmatpush1.bf16.msra.mxu0 0
  %4828 = vmatprep.subr.bf16.mxu0 0
  %4829 = vmatpush1.bf16.msra.mxu0 0
  %4830 = vmatprep.subr.bf16.mxu0 0
  %4831 = vmatpush1.bf16.msra.mxu0 0
  %4832 = vmatprep.subr.bf16.mxu0 0
  %4833 = vmatpush1.bf16.msra.mxu0 0
  %4834 = vmatprep.subr.bf16.mxu0 0
  %4835 = vmatpush1.bf16.msra.mxu0 0
  %4836 = vmatprep.subr.bf16.mxu0 0
  %4837 = vmatpush1.bf16.msra.mxu0 0
  %4838 = vmatprep.subr.bf16.mxu0 0
  %4839 = vmatpush1.bf16.msra.mxu0 0
  %4840 = vmatprep.subr.bf16.mxu0 0
  %4841 = vmatpush1.bf16.msra.mxu0 0
  %4842 = vmatprep.subr.bf16.mxu0 0
  %4843 = vmatpush1.bf16.msra.mxu0 0
  %4844 = vmatprep.subr.bf16.mxu0 0
  %4845 = vmatpush1.bf16.msra.mxu0 0
  %4846 = vmatprep.subr.bf16.mxu0 0
  %4847 = vmatpush1.bf16.msra.mxu0 0
  %4848 = vmatprep.subr.bf16.mxu0 0
  %4849 = vmatpush1.bf16.msra.mxu0 0
  %4850 = vmatprep.subr.bf16.mxu0 0
  %4851 = vmatpush1.bf16.msra.mxu0 0
  %4852 = vmatprep.subr.bf16.mxu0 0
  %4853 = vmatpush1.bf16.msra.mxu0 0
  %4854 = vmatprep.subr.bf16.mxu0 0
  %4855 = vmatpush1.bf16.msra.mxu0 0
  %4856 = vmatprep.mubr.bf16.mxu0 0
  %4857 = vmatmul.mubr.bf16.gmra.mrb[0].mxu0 %v4822
  %v4858 = vpop.f32.mrb[0].mxu0
  %v4859 = vadd.f32 0.0, %v4858
  %v4860 = vpop.f32.mrb[0].mxu0
  %v4861 = vpop.f32.mrb[0].mxu0
  %v4862 = vpop.f32.mrb[0].mxu0
  %4863 = vdwg.mxu0
  %4864 = vrot.lane.b32.xlu0 %v4758, 120
  %v4865 = vpop.permute.xlu0 %4864
  %4866 = vrot.lane.b32.xlu0 %v3173, 120
  %v4867 = vpop.permute.xlu0 %4866
  %v4869 = vsel %vm181, %v4865, 0
  %v4872 = vsel %vm181, %v4867, 0
  %4874 = vmatprep.subr.bf16.mxu0 0
  %4875 = vmatpush1.bf16.xpose.msra.mxu0 %v4872
  %4876 = vmatprep.subr.bf16.mxu0 0
  %4877 = vmatpush1.bf16.xpose.msra.mxu0 0
  %4878 = vmatprep.subr.bf16.mxu0 0
  %4879 = vmatpush1.bf16.xpose.msra.mxu0 0
  %4880 = vmatprep.subr.bf16.mxu0 0
  %4881 = vmatpush1.bf16.xpose.msra.mxu0 0
  %4882 = vmatprep.subr.bf16.mxu0 0
  %4883 = vmatpush1.bf16.xpose.msra.mxu0 0
  %4884 = vmatprep.subr.bf16.mxu0 0
  %4885 = vmatpush1.bf16.xpose.msra.mxu0 0
  %4886 = vmatprep.subr.bf16.mxu0 0
  %4887 = vmatpush1.bf16.xpose.msra.mxu0 0
  %4888 = vmatprep.subr.bf16.mxu0 0
  %4889 = vmatpush1.bf16.xpose.msra.mxu0 0
  %4890 = vmatprep.subr.bf16.mxu0 0
  %4891 = vmatpush1.bf16.xpose.msra.mxu0 0
  %4892 = vmatprep.subr.bf16.mxu0 0
  %4893 = vmatpush1.bf16.xpose.msra.mxu0 0
  %4894 = vmatprep.subr.bf16.mxu0 0
  %4895 = vmatpush1.bf16.xpose.msra.mxu0 0
  %4896 = vmatprep.subr.bf16.mxu0 0
  %4897 = vmatpush1.bf16.xpose.msra.mxu0 0
  %4898 = vmatprep.subr.bf16.mxu0 0
  %4899 = vmatpush1.bf16.xpose.msra.mxu0 0
  %4900 = vmatprep.subr.bf16.mxu0 0
  %4901 = vmatpush1.bf16.xpose.msra.mxu0 0
  %4902 = vmatprep.subr.bf16.mxu0 0
  %4903 = vmatpush1.bf16.xpose.msra.mxu0 0
  %4904 = vmatprep.subr.bf16.mxu0 0
  %4905 = vmatpush1.bf16.xpose.msra.mxu0 0
  %4906 = vmatprep.mubr.bf16.mxu0 0
  %4907 = vmatmul.mubr.bf16.gmra.mrb[0].mxu0 %v4869
  %v4908 = vpop.f32.mrb[0].mxu0
  %v4909 = vadd.f32 0.0, %v4908
  %v4910 = vpop.f32.mrb[0].mxu0
  %v4911 = vpop.f32.mrb[0].mxu0
  %v4912 = vpop.f32.mrb[0].mxu0
  %4913 = vdwg.mxu0
  %v4914 = vsel %vm229, %v4909, -inf
  %4915 = vmax.xlane.f32.xlu0 %v4914
  %v4916 = vpop.xlane.xlu0 %4915
  %v4917 = vsub.f32 %v4909, %v4916
  %v4918 = vmul.f32 %v4917, 1.442695
  %v4919 = vpow.pop %v4918
  %v4920 = vsel %vm229, %v4919, 0.0
  %4921 = vadd.xlane.f32.xlu0 %v4920
  %v4922 = vpop.xlane.xlu0 %4921
  %v4923 = vrcp.pop %v4922
  %v4924 = vmul.f32 %v4919, %v4923
  %v4925 = vpack.c.bf16 %v4924, %v4924
  %4926 = vrot.lane.b32.xlu0 %v3173, 88
  %v4927 = vpop.permute.xlu0 %4926
  %v4930 = vsel %vm229, %v4925, 0
  %4932 = vmatprep.subr.bf16.mxu0 0
  %4933 = vmatpush1.bf16.msra.mxu0 %v4927
  %4934 = vmatprep.subr.bf16.mxu0 0
  %4935 = vmatpush1.bf16.msra.mxu0 0
  %4936 = vmatprep.subr.bf16.mxu0 0
  %4937 = vmatpush1.bf16.msra.mxu0 0
  %4938 = vmatprep.subr.bf16.mxu0 0
  %4939 = vmatpush1.bf16.msra.mxu0 0
  %4940 = vmatprep.subr.bf16.mxu0 0
  %4941 = vmatpush1.bf16.msra.mxu0 0
  %4942 = vmatprep.subr.bf16.mxu0 0
  %4943 = vmatpush1.bf16.msra.mxu0 0
  %4944 = vmatprep.subr.bf16.mxu0 0
  %4945 = vmatpush1.bf16.msra.mxu0 0
  %4946 = vmatprep.subr.bf16.mxu0 0
  %4947 = vmatpush1.bf16.msra.mxu0 0
  %4948 = vmatprep.subr.bf16.mxu0 0
  %4949 = vmatpush1.bf16.msra.mxu0 0
  %4950 = vmatprep.subr.bf16.mxu0 0
  %4951 = vmatpush1.bf16.msra.mxu0 0
  %4952 = vmatprep.subr.bf16.mxu0 0
  %4953 = vmatpush1.bf16.msra.mxu0 0
  %4954 = vmatprep.subr.bf16.mxu0 0
  %4955 = vmatpush1.bf16.msra.mxu0 0
  %4956 = vmatprep.subr.bf16.mxu0 0
  %4957 = vmatpush1.bf16.msra.mxu0 0
  %4958 = vmatprep.subr.bf16.mxu0 0
  %4959 = vmatpush1.bf16.msra.mxu0 0
  %4960 = vmatprep.subr.bf16.mxu0 0
  %4961 = vmatpush1.bf16.msra.mxu0 0
  %4962 = vmatprep.subr.bf16.mxu0 0
  %4963 = vmatpush1.bf16.msra.mxu0 0
  %4964 = vmatprep.mubr.bf16.mxu0 0
  %4965 = vmatmul.mubr.bf16.gmra.mrb[0].mxu0 %v4930
  %v4966 = vpop.f32.mrb[0].mxu0
  %v4967 = vadd.f32 0.0, %v4966
  %v4968 = vpop.f32.mrb[0].mxu0
  %v4969 = vpop.f32.mrb[0].mxu0
  %v4970 = vpop.f32.mrb[0].mxu0
  %4971 = vdwg.mxu0
  %4972 = vrot.lane.b32.xlu0 %v4758, 112
  %v4973 = vpop.permute.xlu0 %4972
  %4974 = vrot.lane.b32.xlu0 %v3173, 112
  %v4975 = vpop.permute.xlu0 %4974
  %v4977 = vsel %vm181, %v4973, 0
  %v4980 = vsel %vm181, %v4975, 0
  %4982 = vmatprep.subr.bf16.mxu0 0
  %4983 = vmatpush1.bf16.xpose.msra.mxu0 %v4980
  %4984 = vmatprep.subr.bf16.mxu0 0
  %4985 = vmatpush1.bf16.xpose.msra.mxu0 0
  %4986 = vmatprep.subr.bf16.mxu0 0
  %4987 = vmatpush1.bf16.xpose.msra.mxu0 0
  %4988 = vmatprep.subr.bf16.mxu0 0
  %4989 = vmatpush1.bf16.xpose.msra.mxu0 0
  %4990 = vmatprep.subr.bf16.mxu0 0
  %4991 = vmatpush1.bf16.xpose.msra.mxu0 0
  %4992 = vmatprep.subr.bf16.mxu0 0
  %4993 = vmatpush1.bf16.xpose.msra.mxu0 0
  %4994 = vmatprep.subr.bf16.mxu0 0
  %4995 = vmatpush1.bf16.xpose.msra.mxu0 0
  %4996 = vmatprep.subr.bf16.mxu0 0
  %4997 = vmatpush1.bf16.xpose.msra.mxu0 0
  %4998 = vmatprep.subr.bf16.mxu0 0
  %4999 = vmatpush1.bf16.xpose.msra.mxu0 0
  %5000 = vmatprep.subr.bf16.mxu0 0
  %5001 = vmatpush1.bf16.xpose.msra.mxu0 0
  %5002 = vmatprep.subr.bf16.mxu0 0
  %5003 = vmatpush1.bf16.xpose.msra.mxu0 0
  %5004 = vmatprep.subr.bf16.mxu0 0
  %5005 = vmatpush1.bf16.xpose.msra.mxu0 0
  %5006 = vmatprep.subr.bf16.mxu0 0
  %5007 = vmatpush1.bf16.xpose.msra.mxu0 0
  %5008 = vmatprep.subr.bf16.mxu0 0
  %5009 = vmatpush1.bf16.xpose.msra.mxu0 0
  %5010 = vmatprep.subr.bf16.mxu0 0
  %5011 = vmatpush1.bf16.xpose.msra.mxu0 0
  %5012 = vmatprep.subr.bf16.mxu0 0
  %5013 = vmatpush1.bf16.xpose.msra.mxu0 0
  %5014 = vmatprep.mubr.bf16.mxu0 0
  %5015 = vmatmul.mubr.bf16.gmra.mrb[0].mxu0 %v4977
  %v5016 = vpop.f32.mrb[0].mxu0
  %v5017 = vadd.f32 0.0, %v5016
  %v5018 = vpop.f32.mrb[0].mxu0
  %v5019 = vpop.f32.mrb[0].mxu0
  %v5020 = vpop.f32.mrb[0].mxu0
  %5021 = vdwg.mxu0
  %v5022 = vsel %vm229, %v5017, -inf
  %5023 = vmax.xlane.f32.xlu0 %v5022
  %v5024 = vpop.xlane.xlu0 %5023
  %v5025 = vsub.f32 %v5017, %v5024
  %v5026 = vmul.f32 %v5025, 1.442695
  %v5027 = vpow.pop %v5026
  %v5028 = vsel %vm229, %v5027, 0.0
  %5029 = vadd.xlane.f32.xlu0 %v5028
  %v5030 = vpop.xlane.xlu0 %5029
  %v5031 = vrcp.pop %v5030
  %v5032 = vmul.f32 %v5027, %v5031
  %v5033 = vpack.c.bf16 %v5032, %v5032
  %5034 = vrot.lane.b32.xlu0 %v3173, 80
  %v5035 = vpop.permute.xlu0 %5034
  %v5038 = vsel %vm229, %v5033, 0
  %5040 = vmatprep.subr.bf16.mxu0 0
  %5041 = vmatpush1.bf16.msra.mxu0 %v5035
  %5042 = vmatprep.subr.bf16.mxu0 0
  %5043 = vmatpush1.bf16.msra.mxu0 0
  %5044 = vmatprep.subr.bf16.mxu0 0
  %5045 = vmatpush1.bf16.msra.mxu0 0
  %5046 = vmatprep.subr.bf16.mxu0 0
  %5047 = vmatpush1.bf16.msra.mxu0 0
  %5048 = vmatprep.subr.bf16.mxu0 0
  %5049 = vmatpush1.bf16.msra.mxu0 0
  %5050 = vmatprep.subr.bf16.mxu0 0
  %5051 = vmatpush1.bf16.msra.mxu0 0
  %5052 = vmatprep.subr.bf16.mxu0 0
  %5053 = vmatpush1.bf16.msra.mxu0 0
  %5054 = vmatprep.subr.bf16.mxu0 0
  %5055 = vmatpush1.bf16.msra.mxu0 0
  %5056 = vmatprep.subr.bf16.mxu0 0
  %5057 = vmatpush1.bf16.msra.mxu0 0
  %5058 = vmatprep.subr.bf16.mxu0 0
  %5059 = vmatpush1.bf16.msra.mxu0 0
  %5060 = vmatprep.subr.bf16.mxu0 0
  %5061 = vmatpush1.bf16.msra.mxu0 0
  %5062 = vmatprep.subr.bf16.mxu0 0
  %5063 = vmatpush1.bf16.msra.mxu0 0
  %5064 = vmatprep.subr.bf16.mxu0 0
  %5065 = vmatpush1.bf16.msra.mxu0 0
  %5066 = vmatprep.subr.bf16.mxu0 0
  %5067 = vmatpush1.bf16.msra.mxu0 0
  %5068 = vmatprep.subr.bf16.mxu0 0
  %5069 = vmatpush1.bf16.msra.mxu0 0
  %5070 = vmatprep.subr.bf16.mxu0 0
  %5071 = vmatpush1.bf16.msra.mxu0 0
  %5072 = vmatprep.mubr.bf16.mxu0 0
  %5073 = vmatmul.mubr.bf16.gmra.mrb[0].mxu0 %v5038
  %v5074 = vpop.f32.mrb[0].mxu0
  %v5075 = vadd.f32 0.0, %v5074
  %v5076 = vpop.f32.mrb[0].mxu0
  %v5077 = vpop.f32.mrb[0].mxu0
  %v5078 = vpop.f32.mrb[0].mxu0
  %5079 = vdwg.mxu0
  %5080 = vrot.lane.b32.xlu0 %v4758, 104
  %v5081 = vpop.permute.xlu0 %5080
  %5082 = vrot.lane.b32.xlu0 %v3173, 104
  %v5083 = vpop.permute.xlu0 %5082
  %v5085 = vsel %vm181, %v5081, 0
  %v5088 = vsel %vm181, %v5083, 0
  %5090 = vmatprep.subr.bf16.mxu0 0
  %5091 = vmatpush1.bf16.xpose.msra.mxu0 %v5088
  %5092 = vmatprep.subr.bf16.mxu0 0
  %5093 = vmatpush1.bf16.xpose.msra.mxu0 0
  %5094 = vmatprep.subr.bf16.mxu0 0
  %5095 = vmatpush1.bf16.xpose.msra.mxu0 0
  %5096 = vmatprep.subr.bf16.mxu0 0
  %5097 = vmatpush1.bf16.xpose.msra.mxu0 0
  %5098 = vmatprep.subr.bf16.mxu0 0
  %5099 = vmatpush1.bf16.xpose.msra.mxu0 0
  %5100 = vmatprep.subr.bf16.mxu0 0
  %5101 = vmatpush1.bf16.xpose.msra.mxu0 0
  %5102 = vmatprep.subr.bf16.mxu0 0
  %5103 = vmatpush1.bf16.xpose.msra.mxu0 0
  %5104 = vmatprep.subr.bf16.mxu0 0
  %5105 = vmatpush1.bf16.xpose.msra.mxu0 0
  %5106 = vmatprep.subr.bf16.mxu0 0
  %5107 = vmatpush1.bf16.xpose.msra.mxu0 0
  %5108 = vmatprep.subr.bf16.mxu0 0
  %5109 = vmatpush1.bf16.xpose.msra.mxu0 0
  %5110 = vmatprep.subr.bf16.mxu0 0
  %5111 = vmatpush1.bf16.xpose.msra.mxu0 0
  %5112 = vmatprep.subr.bf16.mxu0 0
  %5113 = vmatpush1.bf16.xpose.msra.mxu0 0
  %5114 = vmatprep.subr.bf16.mxu0 0
  %5115 = vmatpush1.bf16.xpose.msra.mxu0 0
  %5116 = vmatprep.subr.bf16.mxu0 0
  %5117 = vmatpush1.bf16.xpose.msra.mxu0 0
  %5118 = vmatprep.subr.bf16.mxu0 0
  %5119 = vmatpush1.bf16.xpose.msra.mxu0 0
  %5120 = vmatprep.subr.bf16.mxu0 0
  %5121 = vmatpush1.bf16.xpose.msra.mxu0 0
  %5122 = vmatprep.mubr.bf16.mxu0 0
  %5123 = vmatmul.mubr.bf16.gmra.mrb[0].mxu0 %v5085
  %v5124 = vpop.f32.mrb[0].mxu0
  %v5125 = vadd.f32 0.0, %v5124
  %v5126 = vpop.f32.mrb[0].mxu0
  %v5127 = vpop.f32.mrb[0].mxu0
  %v5128 = vpop.f32.mrb[0].mxu0
  %5129 = vdwg.mxu0
  %v5130 = vsel %vm229, %v5125, -inf
  %5131 = vmax.xlane.f32.xlu0 %v5130
  %v5132 = vpop.xlane.xlu0 %5131
  %v5133 = vsub.f32 %v5125, %v5132
  %v5134 = vmul.f32 %v5133, 1.442695
  %v5135 = vpow.pop %v5134
  %v5136 = vsel %vm229, %v5135, 0.0
  %5137 = vadd.xlane.f32.xlu0 %v5136
  %v5138 = vpop.xlane.xlu0 %5137
  %v5139 = vrcp.pop %v5138
  %v5140 = vmul.f32 %v5135, %v5139
  %v5141 = vpack.c.bf16 %v5140, %v5140
  %5142 = vrot.lane.b32.xlu0 %v3173, 72
  %v5143 = vpop.permute.xlu0 %5142
  %v5146 = vsel %vm229, %v5141, 0
  %5148 = vmatprep.subr.bf16.mxu0 0
  %5149 = vmatpush1.bf16.msra.mxu0 %v5143
  %5150 = vmatprep.subr.bf16.mxu0 0
  %5151 = vmatpush1.bf16.msra.mxu0 0
  %5152 = vmatprep.subr.bf16.mxu0 0
  %5153 = vmatpush1.bf16.msra.mxu0 0
  %5154 = vmatprep.subr.bf16.mxu0 0
  %5155 = vmatpush1.bf16.msra.mxu0 0
  %5156 = vmatprep.subr.bf16.mxu0 0
  %5157 = vmatpush1.bf16.msra.mxu0 0
  %5158 = vmatprep.subr.bf16.mxu0 0
  %5159 = vmatpush1.bf16.msra.mxu0 0
  %5160 = vmatprep.subr.bf16.mxu0 0
  %5161 = vmatpush1.bf16.msra.mxu0 0
  %5162 = vmatprep.subr.bf16.mxu0 0
  %5163 = vmatpush1.bf16.msra.mxu0 0
  %5164 = vmatprep.subr.bf16.mxu0 0
  %5165 = vmatpush1.bf16.msra.mxu0 0
  %5166 = vmatprep.subr.bf16.mxu0 0
  %5167 = vmatpush1.bf16.msra.mxu0 0
  %5168 = vmatprep.subr.bf16.mxu0 0
  %5169 = vmatpush1.bf16.msra.mxu0 0
  %5170 = vmatprep.subr.bf16.mxu0 0
  %5171 = vmatpush1.bf16.msra.mxu0 0
  %5172 = vmatprep.subr.bf16.mxu0 0
  %5173 = vmatpush1.bf16.msra.mxu0 0
  %5174 = vmatprep.subr.bf16.mxu0 0
  %5175 = vmatpush1.bf16.msra.mxu0 0
  %5176 = vmatprep.subr.bf16.mxu0 0
  %5177 = vmatpush1.bf16.msra.mxu0 0
  %5178 = vmatprep.subr.bf16.mxu0 0
  %5179 = vmatpush1.bf16.msra.mxu0 0
  %5180 = vmatprep.mubr.bf16.mxu0 0
  %5181 = vmatmul.mubr.bf16.gmra.mrb[0].mxu0 %v5146
  %v5182 = vpop.f32.mrb[0].mxu0
  %v5183 = vadd.f32 0.0, %v5182
  %v5184 = vpop.f32.mrb[0].mxu0
  %v5185 = vpop.f32.mrb[0].mxu0
  %v5186 = vpop.f32.mrb[0].mxu0
  %5187 = vdwg.mxu0
  %5189 = vrot.lane.b32.xlu0 %v4967, 8
  %v5190 = vpop.permute.xlu0 %5189
  %5193 = vrot.lane.b32.xlu0 %v5075, 16
  %v5194 = vpop.permute.xlu0 %5193
  %5197 = vrot.lane.b32.xlu0 %v5183, 24
  %v5198 = vpop.permute.xlu0 %5197
  %v5200 = vsel %vm181, %v4859, %v5190
  %v5201 = vsel %vm229, %v5200, %v5194
  %v5202 = vsel %vm692, %v5201, %v5198
  %v5203 = vld [vmem:[%s1 + $0x80] sm:$0xf]
  %v5204 = vld [vmem:[%s1 + $0x84] sm:$0xf]
  %v5205 = vld [vmem:[%s1 + $0x88] sm:$0xf]
  %v5206 = vld [vmem:[%s1 + $0x8c] sm:$0xf]
  %v5207 = vpack.c.bf16 %v5202, %v4757
  %v5208 = vld [vmem:[%s2 + $0x2e] sm:$0x1]
  %v5209 = vlaneseq
  %v5210 = vshrl.u32 %v5209, 7
  %v5211 = vsub.s32 0, %v5210
  %v5212 = vrot.slane %v5208, %v5211
  %v5217 = vunpack.c.l.b16 %v5203
  %v5218 = vunpack.c.l.b16 %v5204
  %v5219 = vunpack.c.l.b16 %v5205
  %v5220 = vunpack.c.l.b16 %v5206
  %v5221 = vpack.c.b16 %v5218, %v5217
  %v5222 = vpack.c.b16 %v5220, %v5219
  %v5226 = vsel %vm114, %v5207, 0
  %5228 = vmatprep.subr.bf16.mxu0 0
  %5229 = vmatpush1.bf16.msra.mxu0 %v5221
  %5230 = vmatprep.subr.bf16.mxu0 0
  %5231 = vmatpush1.bf16.msra.mxu0 %v5222
  %5232 = vmatprep.subr.bf16.mxu0 0
  %5233 = vmatpush1.bf16.msra.mxu0 0
  %5234 = vmatprep.subr.bf16.mxu0 0
  %5235 = vmatpush1.bf16.msra.mxu0 0
  %5236 = vmatprep.subr.bf16.mxu0 0
  %5237 = vmatpush1.bf16.msra.mxu0 0
  %5238 = vmatprep.subr.bf16.mxu0 0
  %5239 = vmatpush1.bf16.msra.mxu0 0
  %5240 = vmatprep.subr.bf16.mxu0 0
  %5241 = vmatpush1.bf16.msra.mxu0 0
  %5242 = vmatprep.subr.bf16.mxu0 0
  %5243 = vmatpush1.bf16.msra.mxu0 0
  %5244 = vmatprep.subr.bf16.mxu0 0
  %5245 = vmatpush1.bf16.msra.mxu0 0
  %5246 = vmatprep.subr.bf16.mxu0 0
  %5247 = vmatpush1.bf16.msra.mxu0 0
  %5248 = vmatprep.subr.bf16.mxu0 0
  %5249 = vmatpush1.bf16.msra.mxu0 0
  %5250 = vmatprep.subr.bf16.mxu0 0
  %5251 = vmatpush1.bf16.msra.mxu0 0
  %5252 = vmatprep.subr.bf16.mxu0 0
  %5253 = vmatpush1.bf16.msra.mxu0 0
  %5254 = vmatprep.subr.bf16.mxu0 0
  %5255 = vmatpush1.bf16.msra.mxu0 0
  %5256 = vmatprep.subr.bf16.mxu0 0
  %5257 = vmatpush1.bf16.msra.mxu0 0
  %5258 = vmatprep.subr.bf16.mxu0 0
  %5259 = vmatpush1.bf16.msra.mxu0 0
  %5260 = vmatprep.mubr.bf16.mxu0 0
  %5261 = vmatmul.mubr.bf16.gmra.mrb[0].mxu0 %v5226
  %v5262 = vpop.f32.mrb[0].mxu0
  %v5263 = vadd.f32 %v5212, %v5262
  %v5264 = vpop.f32.mrb[0].mxu0
  %v5265 = vpop.f32.mrb[0].mxu0
  %v5266 = vadd.f32 %v5212, %v5265
  %v5267 = vpop.f32.mrb[0].mxu0
  %5268 = vdwg.mxu0
  %v5269 = vadd.f32 %v4261, %v5263
  %v5270 = vadd.f32 %v4262, %v5266
  %v5271 = vld [vmem:[%s2 + $0x33] sm:$0x1]
  %v5272 = vld [vmem:[%s2 + $0x34] sm:$0x1]
  %v5273 = vsel %vm114, %v5269, 0.0
  %5274 = vadd.xlane.f32.xlu0 %v5273
  %v5275 = vpop.xlane.xlu0 %5274
  %v5276 = vsel %vm114, %v5270, 0.0
  %5277 = vadd.xlane.f32.xlu0 %v5276
  %v5278 = vpop.xlane.xlu0 %5277
  %v5279 = vmul.f32 %v5275, %v1305
  %v5280 = vmul.f32 %v5278, %v1305
  %v5281 = vsub.f32 %v5269, %v5279
  %v5282 = vsub.f32 %v5270, %v5280
  %v5283 = vmul.f32 %v5281, %v5281
  %v5284 = vmul.f32 %v5282, %v5282
  %v5285 = vsel %vm114, %v5283, 0.0
  %5286 = vadd.xlane.f32.xlu0 %v5285
  %v5287 = vpop.xlane.xlu0 %5286
  %v5288 = vsel %vm114, %v5284, 0.0
  %5289 = vadd.xlane.f32.xlu0 %v5288
  %v5290 = vpop.xlane.xlu0 %5289
  %v5291 = vmul.f32 %v5287, %v1305
  %v5292 = vmul.f32 %v5290, %v1305
  %v5293 = vadd.f32 %v5291, 1e-05
  %v5294 = vadd.f32 %v5292, 1e-05
  %v5295 = vrsqrt.pop %v5293
  %v5296 = vrsqrt.pop %v5294
  %v5297 = vmul.f32 %v5281, %v5295
  %v5298 = vmul.f32 %v5282, %v5296
  %v5299 = vlaneseq
  %v5300 = vshrl.u32 %v5299, 7
  %v5301 = vsub.s32 0, %v5300
  %v5302 = vrot.slane %v5271, %v5301
  %v5303 = vmul.f32 %v5297, %v5302
  %v5304 = vmul.f32 %v5298, %v5302
  %v5305 = vlaneseq
  %v5306 = vshrl.u32 %v5305, 7
  %v5307 = vsub.s32 0, %v5306
  %v5308 = vrot.slane %v5272, %v5307
  %v5309 = vadd.f32 %v5303, %v5308
  %v5310 = vadd.f32 %v5304, %v5308
  %v5311 = vld [vmem:[%s1 + $0x90] sm:$0xf]
  %v5312 = vld [vmem:[%s1 + $0x94] sm:$0xf]
  %v5313 = vld [vmem:[%s1 + $0x98] sm:$0xf]
  %v5314 = vld [vmem:[%s1 + $0x9c] sm:$0xf]
  %v5315 = vpack.c.bf16 %v5310, %v5309
  %v5316 = vld [vmem:[%s2 + $0x2f] sm:$0x1]
  %v5317 = vlaneseq
  %v5318 = vshrl.u32 %v5317, 7
  %v5319 = vsub.s32 0, %v5318
  %v5320 = vrot.slane %v5316, %v5319
  %v5325 = vunpack.c.l.b16 %v5311
  %v5326 = vunpack.c.l.b16 %v5312
  %v5327 = vunpack.c.l.b16 %v5313
  %v5328 = vunpack.c.l.b16 %v5314
  %v5329 = vpack.c.b16 %v5326, %v5325
  %v5330 = vpack.c.b16 %v5328, %v5327
  %v5334 = vsel %vm114, %v5315, 0
  %5336 = vmatprep.subr.bf16.mxu0 0
  %5337 = vmatpush1.bf16.msra.mxu0 %v5329
  %5338 = vmatprep.subr.bf16.mxu0 0
  %5339 = vmatpush1.bf16.msra.mxu0 %v5330
  %5340 = vmatprep.subr.bf16.mxu0 0
  %5341 = vmatpush1.bf16.msra.mxu0 0
  %5342 = vmatprep.subr.bf16.mxu0 0
  %5343 = vmatpush1.bf16.msra.mxu0 0
  %5344 = vmatprep.subr.bf16.mxu0 0
  %5345 = vmatpush1.bf16.msra.mxu0 0
  %5346 = vmatprep.subr.bf16.mxu0 0
  %5347 = vmatpush1.bf16.msra.mxu0 0
  %5348 = vmatprep.subr.bf16.mxu0 0
  %5349 = vmatpush1.bf16.msra.mxu0 0
  %5350 = vmatprep.subr.bf16.mxu0 0
  %5351 = vmatpush1.bf16.msra.mxu0 0
  %5352 = vmatprep.subr.bf16.mxu0 0
  %5353 = vmatpush1.bf16.msra.mxu0 0
  %5354 = vmatprep.subr.bf16.mxu0 0
  %5355 = vmatpush1.bf16.msra.mxu0 0
  %5356 = vmatprep.subr.bf16.mxu0 0
  %5357 = vmatpush1.bf16.msra.mxu0 0
  %5358 = vmatprep.subr.bf16.mxu0 0
  %5359 = vmatpush1.bf16.msra.mxu0 0
  %5360 = vmatprep.subr.bf16.mxu0 0
  %5361 = vmatpush1.bf16.msra.mxu0 0
  %5362 = vmatprep.subr.bf16.mxu0 0
  %5363 = vmatpush1.bf16.msra.mxu0 0
  %5364 = vmatprep.subr.bf16.mxu0 0
  %5365 = vmatpush1.bf16.msra.mxu0 0
  %5366 = vmatprep.subr.bf16.mxu0 0
  %5367 = vmatpush1.bf16.msra.mxu0 0
  %5368 = vmatprep.mubr.bf16.mxu0 0
  %5369 = vmatmul.mubr.bf16.gmra.mrb[0].mxu0 %v5334
  %v5370 = vpop.f32.mrb[0].mxu0
  %v5371 = vadd.f32 %v5320, %v5370
  %v5372 = vpop.f32.mrb[0].mxu0
  %v5373 = vpop.f32.mrb[0].mxu0
  %v5374 = vadd.f32 %v5320, %v5373
  %v5375 = vpop.f32.mrb[0].mxu0
  %5376 = vdwg.mxu0
  %v5377 = vmax.f32 %v5371, 0.0
  %v5378 = vmax.f32 %v5374, 0.0
  %v5379 = vld [vmem:[%s1 + $0xa0] sm:$0xf]
  %v5380 = vld [vmem:[%s1 + $0xa4] sm:$0xf]
  %v5381 = vld [vmem:[%s1 + $0xa8] sm:$0xf]
  %v5382 = vld [vmem:[%s1 + $0xac] sm:$0xf]
  %v5383 = vld [vmem:[%s1 + $0xb0] sm:$0xf]
  %v5384 = vld [vmem:[%s1 + $0xb4] sm:$0xf]
  %v5385 = vld [vmem:[%s1 + $0xb8] sm:$0xf]
  %v5386 = vld [vmem:[%s1 + $0xbc] sm:$0xf]
  %v5387 = vpack.c.bf16 %v5378, %v5377
  %v5388 = vld [vmem:[%s2 + $0x30] sm:$0x1]
  %v5389 = vlaneseq
  %v5390 = vshrl.u32 %v5389, 7
  %v5391 = vsub.s32 0, %v5390
  %v5392 = vrot.slane %v5388, %v5391
  %v5401 = vunpack.c.l.b16 %v5379
  %v5402 = vunpack.c.l.b16 %v5380
  %v5403 = vunpack.c.l.b16 %v5381
  %v5404 = vunpack.c.l.b16 %v5382
  %v5405 = vunpack.c.l.b16 %v5383
  %v5406 = vunpack.c.l.b16 %v5384
  %v5407 = vunpack.c.l.b16 %v5385
  %v5408 = vunpack.c.l.b16 %v5386
  %v5409 = vpack.c.b16 %v5402, %v5401
  %v5410 = vpack.c.b16 %v5404, %v5403
  %v5411 = vpack.c.b16 %v5406, %v5405
  %v5412 = vpack.c.b16 %v5408, %v5407
  %v5418 = vsel %vm1483, %v5387, 0
  %5420 = vmatprep.subr.bf16.mxu0 0
  %5421 = vmatpush1.bf16.msra.mxu0 %v5409
  %5422 = vmatprep.subr.bf16.mxu0 0
  %5423 = vmatpush1.bf16.msra.mxu0 %v5410
  %5424 = vmatprep.subr.bf16.mxu0 0
  %5425 = vmatpush1.bf16.msra.mxu0 %v5411
  %5426 = vmatprep.subr.bf16.mxu0 0
  %5427 = vmatpush1.bf16.msra.mxu0 %v5412
  %5428 = vmatprep.subr.bf16.mxu0 0
  %5429 = vmatpush1.bf16.msra.mxu0 0
  %5430 = vmatprep.subr.bf16.mxu0 0
  %5431 = vmatpush1.bf16.msra.mxu0 0
  %5432 = vmatprep.subr.bf16.mxu0 0
  %5433 = vmatpush1.bf16.msra.mxu0 0
  %5434 = vmatprep.subr.bf16.mxu0 0
  %5435 = vmatpush1.bf16.msra.mxu0 0
  %5436 = vmatprep.subr.bf16.mxu0 0
  %5437 = vmatpush1.bf16.msra.mxu0 0
  %5438 = vmatprep.subr.bf16.mxu0 0
  %5439 = vmatpush1.bf16.msra.mxu0 0
  %5440 = vmatprep.subr.bf16.mxu0 0
  %5441 = vmatpush1.bf16.msra.mxu0 0
  %5442 = vmatprep.subr.bf16.mxu0 0
  %5443 = vmatpush1.bf16.msra.mxu0 0
  %5444 = vmatprep.subr.bf16.mxu0 0
  %5445 = vmatpush1.bf16.msra.mxu0 0
  %5446 = vmatprep.subr.bf16.mxu0 0
  %5447 = vmatpush1.bf16.msra.mxu0 0
  %5448 = vmatprep.subr.bf16.mxu0 0
  %5449 = vmatpush1.bf16.msra.mxu0 0
  %5450 = vmatprep.subr.bf16.mxu0 0
  %5451 = vmatpush1.bf16.msra.mxu0 0
  %5452 = vmatprep.mubr.bf16.mxu0 0
  %5453 = vmatmul.mubr.bf16.gmra.mrb[0].mxu0 %v5418
  %v5454 = vpop.f32.mrb[0].mxu0
  %v5455 = vadd.f32 %v5392, %v5454
  %v5456 = vpop.f32.mrb[0].mxu0
  %v5457 = vpop.f32.mrb[0].mxu0
  %v5458 = vadd.f32 %v5392, %v5457
  %v5459 = vpop.f32.mrb[0].mxu0
  %5460 = vdwg.mxu0
  %v5461 = vadd.f32 %v5309, %v5455
  %v5462 = vadd.f32 %v5310, %v5458
  %v5463 = vld [vmem:[%s2 + $0x35] sm:$0x1]
  %v5464 = vld [vmem:[%s2 + $0x36] sm:$0x1]
  %v5465 = vsel %vm114, %v5461, 0.0
  %5466 = vadd.xlane.f32.xlu0 %v5465
  %v5467 = vpop.xlane.xlu0 %5466
  %v5468 = vsel %vm114, %v5462, 0.0
  %5469 = vadd.xlane.f32.xlu0 %v5468
  %v5470 = vpop.xlane.xlu0 %5469
  %v5471 = vmul.f32 %v5467, %v1305
  %v5472 = vmul.f32 %v5470, %v1305
  %v5473 = vsub.f32 %v5461, %v5471
  %v5474 = vsub.f32 %v5462, %v5472
  %v5475 = vmul.f32 %v5473, %v5473
  %v5476 = vmul.f32 %v5474, %v5474
  %v5477 = vsel %vm114, %v5475, 0.0
  %5478 = vadd.xlane.f32.xlu0 %v5477
  %v5479 = vpop.xlane.xlu0 %5478
  %v5480 = vsel %vm114, %v5476, 0.0
  %5481 = vadd.xlane.f32.xlu0 %v5480
  %v5482 = vpop.xlane.xlu0 %5481
  %v5483 = vmul.f32 %v5479, %v1305
  %v5484 = vmul.f32 %v5482, %v1305
  %v5485 = vadd.f32 %v5483, 1e-05
  %v5486 = vadd.f32 %v5484, 1e-05
  %v5487 = vrsqrt.pop %v5485
  %v5488 = vrsqrt.pop %v5486
  %v5489 = vmul.f32 %v5473, %v5487
  %v5490 = vmul.f32 %v5474, %v5488
  %v5491 = vlaneseq
  %v5492 = vshrl.u32 %v5491, 7
  %v5493 = vsub.s32 0, %v5492
  %v5494 = vrot.slane %v5463, %v5493
  %v5495 = vmul.f32 %v5489, %v5494
  %v5496 = vmul.f32 %v5490, %v5494
  %v5497 = vlaneseq
  %v5498 = vshrl.u32 %v5497, 7
  %v5499 = vsub.s32 0, %v5498
  %v5500 = vrot.slane %v5464, %v5499
  %v5501 = vadd.f32 %v5495, %v5500
  %v5502 = vadd.f32 %v5496, %v5500
  %v5503 = vpack.c.bf16 %v5502, %v5501
  %v5505 = vsel %vm114, %v5503, 0
  %5507 = vmatprep.subr.bf16.mxu0 0
  %5508 = vmatpush1.bf16.msra.mxu0 %v3192
  %5509 = vmatprep.subr.bf16.mxu0 0
  %5510 = vmatpush1.bf16.msra.mxu0 %v3193
  %5511 = vmatprep.subr.bf16.mxu0 0
  %5512 = vmatpush1.bf16.msra.mxu0 0
  %5513 = vmatprep.subr.bf16.mxu0 0
  %5514 = vmatpush1.bf16.msra.mxu0 0
  %5515 = vmatprep.subr.bf16.mxu0 0
  %5516 = vmatpush1.bf16.msra.mxu0 0
  %5517 = vmatprep.subr.bf16.mxu0 0
  %5518 = vmatpush1.bf16.msra.mxu0 0
  %5519 = vmatprep.subr.bf16.mxu0 0
  %5520 = vmatpush1.bf16.msra.mxu0 0
  %5521 = vmatprep.subr.bf16.mxu0 0
  %5522 = vmatpush1.bf16.msra.mxu0 0
  %5523 = vmatprep.subr.bf16.mxu0 0
  %5524 = vmatpush1.bf16.msra.mxu0 0
  %5525 = vmatprep.subr.bf16.mxu0 0
  %5526 = vmatpush1.bf16.msra.mxu0 0
  %5527 = vmatprep.subr.bf16.mxu0 0
  %5528 = vmatpush1.bf16.msra.mxu0 0
  %5529 = vmatprep.subr.bf16.mxu0 0
  %5530 = vmatpush1.bf16.msra.mxu0 0
  %5531 = vmatprep.subr.bf16.mxu0 0
  %5532 = vmatpush1.bf16.msra.mxu0 0
  %5533 = vmatprep.subr.bf16.mxu0 0
  %5534 = vmatpush1.bf16.msra.mxu0 0
  %5535 = vmatprep.subr.bf16.mxu0 0
  %5536 = vmatpush1.bf16.msra.mxu0 0
  %5537 = vmatprep.subr.bf16.mxu0 0
  %5538 = vmatpush1.bf16.msra.mxu0 0
  %5539 = vmatprep.mubr.bf16.mxu0 0
  %5540 = vmatmul.mubr.bf16.gmra.mrb[0].mxu0 %v5505
  %v5541 = vpop.f32.mrb[0].mxu0
  %v5542 = vadd.f32 %v3183, %v5541
  %v5543 = vpop.f32.mrb[0].mxu0
  %v5544 = vpop.f32.mrb[0].mxu0
  %v5545 = vadd.f32 %v3183, %v5544
  %v5546 = vpop.f32.mrb[0].mxu0
  %5547 = vdwg.mxu0
  %v5548 = vmul.f32 %v5542, 0.35355338
  %v5549 = vmul.f32 %v5545, 0.35355338
  %v5550 = vpack.c.bf16 %v5549, %v5548
  %v5551 = vpack.c.bf16 %v5545, %v5542
  %5553 = vrot.lane.b32.xlu0 %v5551, 96
  %v5554 = vpop.permute.xlu0 %5553
  %v5556 = vsel %vm181, %v5550, 0
  %v5559 = vsel %vm181, %v5554, 0
  %5561 = vmatprep.subr.bf16.mxu0 0
  %5562 = vmatpush1.bf16.xpose.msra.mxu0 %v5559
  %5563 = vmatprep.subr.bf16.mxu0 0
  %5564 = vmatpush1.bf16.xpose.msra.mxu0 0
  %5565 = vmatprep.subr.bf16.mxu0 0
  %5566 = vmatpush1.bf16.xpose.msra.mxu0 0
  %5567 = vmatprep.subr.bf16.mxu0 0
  %5568 = vmatpush1.bf16.xpose.msra.mxu0 0
  %5569 = vmatprep.subr.bf16.mxu0 0
  %5570 = vmatpush1.bf16.xpose.msra.mxu0 0
  %5571 = vmatprep.subr.bf16.mxu0 0
  %5572 = vmatpush1.bf16.xpose.msra.mxu0 0
  %5573 = vmatprep.subr.bf16.mxu0 0
  %5574 = vmatpush1.bf16.xpose.msra.mxu0 0
  %5575 = vmatprep.subr.bf16.mxu0 0
  %5576 = vmatpush1.bf16.xpose.msra.mxu0 0
  %5577 = vmatprep.subr.bf16.mxu0 0
  %5578 = vmatpush1.bf16.xpose.msra.mxu0 0
  %5579 = vmatprep.subr.bf16.mxu0 0
  %5580 = vmatpush1.bf16.xpose.msra.mxu0 0
  %5581 = vmatprep.subr.bf16.mxu0 0
  %5582 = vmatpush1.bf16.xpose.msra.mxu0 0
  %5583 = vmatprep.subr.bf16.mxu0 0
  %5584 = vmatpush1.bf16.xpose.msra.mxu0 0
  %5585 = vmatprep.subr.bf16.mxu0 0
  %5586 = vmatpush1.bf16.xpose.msra.mxu0 0
  %5587 = vmatprep.subr.bf16.mxu0 0
  %5588 = vmatpush1.bf16.xpose.msra.mxu0 0
  %5589 = vmatprep.subr.bf16.mxu0 0
  %5590 = vmatpush1.bf16.xpose.msra.mxu0 0
  %5591 = vmatprep.subr.bf16.mxu0 0
  %5592 = vmatpush1.bf16.xpose.msra.mxu0 0
  %5593 = vmatprep.mubr.bf16.mxu0 0
  %5594 = vmatmul.mubr.bf16.gmra.mrb[0].mxu0 %v5556
  %v5595 = vpop.f32.mrb[0].mxu0
  %v5596 = vadd.f32 0.0, %v5595
  %v5597 = vpop.f32.mrb[0].mxu0
  %v5598 = vpop.f32.mrb[0].mxu0
  %v5599 = vpop.f32.mrb[0].mxu0
  %5600 = vdwg.mxu0
  %v5601 = vsel %vm181, %v5596, -inf
  %5602 = vmax.xlane.f32.xlu0 %v5601
  %v5603 = vpop.xlane.xlu0 %5602
  %v5604 = vsub.f32 %v5596, %v5603
  %v5605 = vmul.f32 %v5604, 1.442695
  %v5606 = vpow.pop %v5605
  %v5607 = vsel %vm181, %v5606, 0.0
  %5608 = vadd.xlane.f32.xlu0 %v5607
  %v5609 = vpop.xlane.xlu0 %5608
  %v5610 = vrcp.pop %v5609
  %v5611 = vmul.f32 %v5606, %v5610
  %v5612 = vpack.c.bf16 %v5611, %v5611
  %5613 = vrot.lane.b32.xlu0 %v5551, 64
  %v5614 = vpop.permute.xlu0 %5613
  %v5616 = vsel %vm181, %v5612, 0
  %v5619 = vsel %vm3310, %v5614, 0
  %5621 = vmatprep.subr.bf16.mxu0 0
  %5622 = vmatpush1.bf16.msra.mxu0 %v5619
  %5623 = vmatprep.subr.bf16.mxu0 0
  %5624 = vmatpush1.bf16.msra.mxu0 0
  %5625 = vmatprep.subr.bf16.mxu0 0
  %5626 = vmatpush1.bf16.msra.mxu0 0
  %5627 = vmatprep.subr.bf16.mxu0 0
  %5628 = vmatpush1.bf16.msra.mxu0 0
  %5629 = vmatprep.subr.bf16.mxu0 0
  %5630 = vmatpush1.bf16.msra.mxu0 0
  %5631 = vmatprep.subr.bf16.mxu0 0
  %5632 = vmatpush1.bf16.msra.mxu0 0
  %5633 = vmatprep.subr.bf16.mxu0 0
  %5634 = vmatpush1.bf16.msra.mxu0 0
  %5635 = vmatprep.subr.bf16.mxu0 0
  %5636 = vmatpush1.bf16.msra.mxu0 0
  %5637 = vmatprep.subr.bf16.mxu0 0
  %5638 = vmatpush1.bf16.msra.mxu0 0
  %5639 = vmatprep.subr.bf16.mxu0 0
  %5640 = vmatpush1.bf16.msra.mxu0 0
  %5641 = vmatprep.subr.bf16.mxu0 0
  %5642 = vmatpush1.bf16.msra.mxu0 0
  %5643 = vmatprep.subr.bf16.mxu0 0
  %5644 = vmatpush1.bf16.msra.mxu0 0
  %5645 = vmatprep.subr.bf16.mxu0 0
  %5646 = vmatpush1.bf16.msra.mxu0 0
  %5647 = vmatprep.subr.bf16.mxu0 0
  %5648 = vmatpush1.bf16.msra.mxu0 0
  %5649 = vmatprep.subr.bf16.mxu0 0
  %5650 = vmatpush1.bf16.msra.mxu0 0
  %5651 = vmatprep.subr.bf16.mxu0 0
  %5652 = vmatpush1.bf16.msra.mxu0 0
  %5653 = vmatprep.mubr.bf16.mxu0 0
  %5654 = vmatmul.mubr.bf16.gmra.mrb[0].mxu0 %v5616
  %v5655 = vpop.f32.mrb[0].mxu0
  %v5656 = vadd.f32 0.0, %v5655
  %v5657 = vpop.f32.mrb[0].mxu0
  %v5658 = vpop.f32.mrb[0].mxu0
  %v5659 = vpop.f32.mrb[0].mxu0
  %5660 = vdwg.mxu0
  %5662 = vrot.lane.b32.xlu0 %v5550, 120
  %v5663 = vpop.permute.xlu0 %5662
  %5664 = vrot.lane.b32.xlu0 %v5551, 88
  %v5665 = vpop.permute.xlu0 %5664
  %v5667 = vsel %vm181, %v5663, 0
  %v5670 = vsel %vm181, %v5665, 0
  %5672 = vmatprep.subr.bf16.mxu0 0
  %5673 = vmatpush1.bf16.xpose.msra.mxu0 %v5670
  %5674 = vmatprep.subr.bf16.mxu0 0
  %5675 = vmatpush1.bf16.xpose.msra.mxu0 0
  %5676 = vmatprep.subr.bf16.mxu0 0
  %5677 = vmatpush1.bf16.xpose.msra.mxu0 0
  %5678 = vmatprep.subr.bf16.mxu0 0
  %5679 = vmatpush1.bf16.xpose.msra.mxu0 0
  %5680 = vmatprep.subr.bf16.mxu0 0
  %5681 = vmatpush1.bf16.xpose.msra.mxu0 0
  %5682 = vmatprep.subr.bf16.mxu0 0
  %5683 = vmatpush1.bf16.xpose.msra.mxu0 0
  %5684 = vmatprep.subr.bf16.mxu0 0
  %5685 = vmatpush1.bf16.xpose.msra.mxu0 0
  %5686 = vmatprep.subr.bf16.mxu0 0
  %5687 = vmatpush1.bf16.xpose.msra.mxu0 0
  %5688 = vmatprep.subr.bf16.mxu0 0
  %5689 = vmatpush1.bf16.xpose.msra.mxu0 0
  %5690 = vmatprep.subr.bf16.mxu0 0
  %5691 = vmatpush1.bf16.xpose.msra.mxu0 0
  %5692 = vmatprep.subr.bf16.mxu0 0
  %5693 = vmatpush1.bf16.xpose.msra.mxu0 0
  %5694 = vmatprep.subr.bf16.mxu0 0
  %5695 = vmatpush1.bf16.xpose.msra.mxu0 0
  %5696 = vmatprep.subr.bf16.mxu0 0
  %5697 = vmatpush1.bf16.xpose.msra.mxu0 0
  %5698 = vmatprep.subr.bf16.mxu0 0
  %5699 = vmatpush1.bf16.xpose.msra.mxu0 0
  %5700 = vmatprep.subr.bf16.mxu0 0
  %5701 = vmatpush1.bf16.xpose.msra.mxu0 0
  %5702 = vmatprep.subr.bf16.mxu0 0
  %5703 = vmatpush1.bf16.xpose.msra.mxu0 0
  %5704 = vmatprep.mubr.bf16.mxu0 0
  %5705 = vmatmul.mubr.bf16.gmra.mrb[0].mxu0 %v5667
  %v5706 = vpop.f32.mrb[0].mxu0
  %v5707 = vadd.f32 0.0, %v5706
  %v5708 = vpop.f32.mrb[0].mxu0
  %v5709 = vpop.f32.mrb[0].mxu0
  %v5710 = vpop.f32.mrb[0].mxu0
  %5711 = vdwg.mxu0
  %v5712 = vsel %vm181, %v5707, -inf
  %5713 = vmax.xlane.f32.xlu0 %v5712
  %v5714 = vpop.xlane.xlu0 %5713
  %v5715 = vsub.f32 %v5707, %v5714
  %v5716 = vmul.f32 %v5715, 1.442695
  %v5717 = vpow.pop %v5716
  %v5718 = vsel %vm181, %v5717, 0.0
  %5719 = vadd.xlane.f32.xlu0 %v5718
  %v5720 = vpop.xlane.xlu0 %5719
  %v5721 = vrcp.pop %v5720
  %v5722 = vmul.f32 %v5717, %v5721
  %v5723 = vpack.c.bf16 %v5722, %v5722
  %5724 = vrot.lane.b32.xlu0 %v5551, 56
  %v5725 = vpop.permute.xlu0 %5724
  %v5727 = vsel %vm181, %v5723, 0
  %v5730 = vsel %vm3310, %v5725, 0
  %5732 = vmatprep.subr.bf16.mxu0 0
  %5733 = vmatpush1.bf16.msra.mxu0 %v5730
  %5734 = vmatprep.subr.bf16.mxu0 0
  %5735 = vmatpush1.bf16.msra.mxu0 0
  %5736 = vmatprep.subr.bf16.mxu0 0
  %5737 = vmatpush1.bf16.msra.mxu0 0
  %5738 = vmatprep.subr.bf16.mxu0 0
  %5739 = vmatpush1.bf16.msra.mxu0 0
  %5740 = vmatprep.subr.bf16.mxu0 0
  %5741 = vmatpush1.bf16.msra.mxu0 0
  %5742 = vmatprep.subr.bf16.mxu0 0
  %5743 = vmatpush1.bf16.msra.mxu0 0
  %5744 = vmatprep.subr.bf16.mxu0 0
  %5745 = vmatpush1.bf16.msra.mxu0 0
  %5746 = vmatprep.subr.bf16.mxu0 0
  %5747 = vmatpush1.bf16.msra.mxu0 0
  %5748 = vmatprep.subr.bf16.mxu0 0
  %5749 = vmatpush1.bf16.msra.mxu0 0
  %5750 = vmatprep.subr.bf16.mxu0 0
  %5751 = vmatpush1.bf16.msra.mxu0 0
  %5752 = vmatprep.subr.bf16.mxu0 0
  %5753 = vmatpush1.bf16.msra.mxu0 0
  %5754 = vmatprep.subr.bf16.mxu0 0
  %5755 = vmatpush1.bf16.msra.mxu0 0
  %5756 = vmatprep.subr.bf16.mxu0 0
  %5757 = vmatpush1.bf16.msra.mxu0 0
  %5758 = vmatprep.subr.bf16.mxu0 0
  %5759 = vmatpush1.bf16.msra.mxu0 0
  %5760 = vmatprep.subr.bf16.mxu0 0
  %5761 = vmatpush1.bf16.msra.mxu0 0
  %5762 = vmatprep.subr.bf16.mxu0 0
  %5763 = vmatpush1.bf16.msra.mxu0 0
  %5764 = vmatprep.mubr.bf16.mxu0 0
  %5765 = vmatmul.mubr.bf16.gmra.mrb[0].mxu0 %v5727
  %v5766 = vpop.f32.mrb[0].mxu0
  %v5767 = vadd.f32 0.0, %v5766
  %v5768 = vpop.f32.mrb[0].mxu0
  %v5769 = vpop.f32.mrb[0].mxu0
  %v5770 = vpop.f32.mrb[0].mxu0
  %5771 = vdwg.mxu0
  %5772 = vrot.lane.b32.xlu0 %v5550, 112
  %v5773 = vpop.permute.xlu0 %5772
  %5774 = vrot.lane.b32.xlu0 %v5551, 80
  %v5775 = vpop.permute.xlu0 %5774
  %v5777 = vsel %vm181, %v5773, 0
  %v5780 = vsel %vm181, %v5775, 0
  %5782 = vmatprep.subr.bf16.mxu0 0
  %5783 = vmatpush1.bf16.xpose.msra.mxu0 %v5780
  %5784 = vmatprep.subr.bf16.mxu0 0
  %5785 = vmatpush1.bf16.xpose.msra.mxu0 0
  %5786 = vmatprep.subr.bf16.mxu0 0
  %5787 = vmatpush1.bf16.xpose.msra.mxu0 0
  %5788 = vmatprep.subr.bf16.mxu0 0
  %5789 = vmatpush1.bf16.xpose.msra.mxu0 0
  %5790 = vmatprep.subr.bf16.mxu0 0
  %5791 = vmatpush1.bf16.xpose.msra.mxu0 0
  %5792 = vmatprep.subr.bf16.mxu0 0
  %5793 = vmatpush1.bf16.xpose.msra.mxu0 0
  %5794 = vmatprep.subr.bf16.mxu0 0
  %5795 = vmatpush1.bf16.xpose.msra.mxu0 0
  %5796 = vmatprep.subr.bf16.mxu0 0
  %5797 = vmatpush1.bf16.xpose.msra.mxu0 0
  %5798 = vmatprep.subr.bf16.mxu0 0
  %5799 = vmatpush1.bf16.xpose.msra.mxu0 0
  %5800 = vmatprep.subr.bf16.mxu0 0
  %5801 = vmatpush1.bf16.xpose.msra.mxu0 0
  %5802 = vmatprep.subr.bf16.mxu0 0
  %5803 = vmatpush1.bf16.xpose.msra.mxu0 0
  %5804 = vmatprep.subr.bf16.mxu0 0
  %5805 = vmatpush1.bf16.xpose.msra.mxu0 0
  %5806 = vmatprep.subr.bf16.mxu0 0
  %5807 = vmatpush1.bf16.xpose.msra.mxu0 0
  %5808 = vmatprep.subr.bf16.mxu0 0
  %5809 = vmatpush1.bf16.xpose.msra.mxu0 0
  %5810 = vmatprep.subr.bf16.mxu0 0
  %5811 = vmatpush1.bf16.xpose.msra.mxu0 0
  %5812 = vmatprep.subr.bf16.mxu0 0
  %5813 = vmatpush1.bf16.xpose.msra.mxu0 0
  %5814 = vmatprep.mubr.bf16.mxu0 0
  %5815 = vmatmul.mubr.bf16.gmra.mrb[0].mxu0 %v5777
  %v5816 = vpop.f32.mrb[0].mxu0
  %v5817 = vadd.f32 0.0, %v5816
  %v5818 = vpop.f32.mrb[0].mxu0
  %v5819 = vpop.f32.mrb[0].mxu0
  %v5820 = vpop.f32.mrb[0].mxu0
  %5821 = vdwg.mxu0
  %v5822 = vsel %vm181, %v5817, -inf
  %5823 = vmax.xlane.f32.xlu0 %v5822
  %v5824 = vpop.xlane.xlu0 %5823
  %v5825 = vsub.f32 %v5817, %v5824
  %v5826 = vmul.f32 %v5825, 1.442695
  %v5827 = vpow.pop %v5826
  %v5828 = vsel %vm181, %v5827, 0.0
  %5829 = vadd.xlane.f32.xlu0 %v5828
  %v5830 = vpop.xlane.xlu0 %5829
  %v5831 = vrcp.pop %v5830
  %v5832 = vmul.f32 %v5827, %v5831
  %v5833 = vpack.c.bf16 %v5832, %v5832
  %5834 = vrot.lane.b32.xlu0 %v5551, 48
  %v5835 = vpop.permute.xlu0 %5834
  %v5837 = vsel %vm181, %v5833, 0
  %v5840 = vsel %vm3310, %v5835, 0
  %5842 = vmatprep.subr.bf16.mxu0 0
  %5843 = vmatpush1.bf16.msra.mxu0 %v5840
  %5844 = vmatprep.subr.bf16.mxu0 0
  %5845 = vmatpush1.bf16.msra.mxu0 0
  %5846 = vmatprep.subr.bf16.mxu0 0
  %5847 = vmatpush1.bf16.msra.mxu0 0
  %5848 = vmatprep.subr.bf16.mxu0 0
  %5849 = vmatpush1.bf16.msra.mxu0 0
  %5850 = vmatprep.subr.bf16.mxu0 0
  %5851 = vmatpush1.bf16.msra.mxu0 0
  %5852 = vmatprep.subr.bf16.mxu0 0
  %5853 = vmatpush1.bf16.msra.mxu0 0
  %5854 = vmatprep.subr.bf16.mxu0 0
  %5855 = vmatpush1.bf16.msra.mxu0 0
  %5856 = vmatprep.subr.bf16.mxu0 0
  %5857 = vmatpush1.bf16.msra.mxu0 0
  %5858 = vmatprep.subr.bf16.mxu0 0
  %5859 = vmatpush1.bf16.msra.mxu0 0
  %5860 = vmatprep.subr.bf16.mxu0 0
  %5861 = vmatpush1.bf16.msra.mxu0 0
  %5862 = vmatprep.subr.bf16.mxu0 0
  %5863 = vmatpush1.bf16.msra.mxu0 0
  %5864 = vmatprep.subr.bf16.mxu0 0
  %5865 = vmatpush1.bf16.msra.mxu0 0
  %5866 = vmatprep.subr.bf16.mxu0 0
  %5867 = vmatpush1.bf16.msra.mxu0 0
  %5868 = vmatprep.subr.bf16.mxu0 0
  %5869 = vmatpush1.bf16.msra.mxu0 0
  %5870 = vmatprep.subr.bf16.mxu0 0
  %5871 = vmatpush1.bf16.msra.mxu0 0
  %5872 = vmatprep.subr.bf16.mxu0 0
  %5873 = vmatpush1.bf16.msra.mxu0 0
  %5874 = vmatprep.mubr.bf16.mxu0 0
  %5875 = vmatmul.mubr.bf16.gmra.mrb[0].mxu0 %v5837
  %v5876 = vpop.f32.mrb[0].mxu0
  %v5877 = vadd.f32 0.0, %v5876
  %v5878 = vpop.f32.mrb[0].mxu0
  %v5879 = vpop.f32.mrb[0].mxu0
  %v5880 = vpop.f32.mrb[0].mxu0
  %5881 = vdwg.mxu0
  %5882 = vrot.lane.b32.xlu0 %v5550, 104
  %v5883 = vpop.permute.xlu0 %5882
  %5884 = vrot.lane.b32.xlu0 %v5551, 72
  %v5885 = vpop.permute.xlu0 %5884
  %v5887 = vsel %vm181, %v5883, 0
  %v5890 = vsel %vm181, %v5885, 0
  %5892 = vmatprep.subr.bf16.mxu0 0
  %5893 = vmatpush1.bf16.xpose.msra.mxu0 %v5890
  %5894 = vmatprep.subr.bf16.mxu0 0
  %5895 = vmatpush1.bf16.xpose.msra.mxu0 0
  %5896 = vmatprep.subr.bf16.mxu0 0
  %5897 = vmatpush1.bf16.xpose.msra.mxu0 0
  %5898 = vmatprep.subr.bf16.mxu0 0
  %5899 = vmatpush1.bf16.xpose.msra.mxu0 0
  %5900 = vmatprep.subr.bf16.mxu0 0
  %5901 = vmatpush1.bf16.xpose.msra.mxu0 0
  %5902 = vmatprep.subr.bf16.mxu0 0
  %5903 = vmatpush1.bf16.xpose.msra.mxu0 0
  %5904 = vmatprep.subr.bf16.mxu0 0
  %5905 = vmatpush1.bf16.xpose.msra.mxu0 0
  %5906 = vmatprep.subr.bf16.mxu0 0
  %5907 = vmatpush1.bf16.xpose.msra.mxu0 0
  %5908 = vmatprep.subr.bf16.mxu0 0
  %5909 = vmatpush1.bf16.xpose.msra.mxu0 0
  %5910 = vmatprep.subr.bf16.mxu0 0
  %5911 = vmatpush1.bf16.xpose.msra.mxu0 0
  %5912 = vmatprep.subr.bf16.mxu0 0
  %5913 = vmatpush1.bf16.xpose.msra.mxu0 0
  %5914 = vmatprep.subr.bf16.mxu0 0
  %5915 = vmatpush1.bf16.xpose.msra.mxu0 0
  %5916 = vmatprep.subr.bf16.mxu0 0
  %5917 = vmatpush1.bf16.xpose.msra.mxu0 0
  %5918 = vmatprep.subr.bf16.mxu0 0
  %5919 = vmatpush1.bf16.xpose.msra.mxu0 0
  %5920 = vmatprep.subr.bf16.mxu0 0
  %5921 = vmatpush1.bf16.xpose.msra.mxu0 0
  %5922 = vmatprep.subr.bf16.mxu0 0
  %5923 = vmatpush1.bf16.xpose.msra.mxu0 0
  %5924 = vmatprep.mubr.bf16.mxu0 0
  %5925 = vmatmul.mubr.bf16.gmra.mrb[0].mxu0 %v5887
  %v5926 = vpop.f32.mrb[0].mxu0
  %v5927 = vadd.f32 0.0, %v5926
  %v5928 = vpop.f32.mrb[0].mxu0
  %v5929 = vpop.f32.mrb[0].mxu0
  %v5930 = vpop.f32.mrb[0].mxu0
  %5931 = vdwg.mxu0
  %v5932 = vsel %vm181, %v5927, -inf
  %5933 = vmax.xlane.f32.xlu0 %v5932
  %v5934 = vpop.xlane.xlu0 %5933
  %v5935 = vsub.f32 %v5927, %v5934
  %v5936 = vmul.f32 %v5935, 1.442695
  %v5937 = vpow.pop %v5936
  %v5938 = vsel %vm181, %v5937, 0.0
  %5939 = vadd.xlane.f32.xlu0 %v5938
  %v5940 = vpop.xlane.xlu0 %5939
  %v5941 = vrcp.pop %v5940
  %v5942 = vmul.f32 %v5937, %v5941
  %v5943 = vpack.c.bf16 %v5942, %v5942
  %5944 = vrot.lane.b32.xlu0 %v5551, 40
  %v5945 = vpop.permute.xlu0 %5944
  %v5947 = vsel %vm181, %v5943, 0
  %v5950 = vsel %vm3310, %v5945, 0
  %5952 = vmatprep.subr.bf16.mxu0 0
  %5953 = vmatpush1.bf16.msra.mxu0 %v5950
  %5954 = vmatprep.subr.bf16.mxu0 0
  %5955 = vmatpush1.bf16.msra.mxu0 0
  %5956 = vmatprep.subr.bf16.mxu0 0
  %5957 = vmatpush1.bf16.msra.mxu0 0
  %5958 = vmatprep.subr.bf16.mxu0 0
  %5959 = vmatpush1.bf16.msra.mxu0 0
  %5960 = vmatprep.subr.bf16.mxu0 0
  %5961 = vmatpush1.bf16.msra.mxu0 0
  %5962 = vmatprep.subr.bf16.mxu0 0
  %5963 = vmatpush1.bf16.msra.mxu0 0
  %5964 = vmatprep.subr.bf16.mxu0 0
  %5965 = vmatpush1.bf16.msra.mxu0 0
  %5966 = vmatprep.subr.bf16.mxu0 0
  %5967 = vmatpush1.bf16.msra.mxu0 0
  %5968 = vmatprep.subr.bf16.mxu0 0
  %5969 = vmatpush1.bf16.msra.mxu0 0
  %5970 = vmatprep.subr.bf16.mxu0 0
  %5971 = vmatpush1.bf16.msra.mxu0 0
  %5972 = vmatprep.subr.bf16.mxu0 0
  %5973 = vmatpush1.bf16.msra.mxu0 0
  %5974 = vmatprep.subr.bf16.mxu0 0
  %5975 = vmatpush1.bf16.msra.mxu0 0
  %5976 = vmatprep.subr.bf16.mxu0 0
  %5977 = vmatpush1.bf16.msra.mxu0 0
  %5978 = vmatprep.subr.bf16.mxu0 0
  %5979 = vmatpush1.bf16.msra.mxu0 0
  %5980 = vmatprep.subr.bf16.mxu0 0
  %5981 = vmatpush1.bf16.msra.mxu0 0
  %5982 = vmatprep.subr.bf16.mxu0 0
  %5983 = vmatpush1.bf16.msra.mxu0 0
  %5984 = vmatprep.mubr.bf16.mxu0 0
  %5985 = vmatmul.mubr.bf16.gmra.mrb[0].mxu0 %v5947
  %v5986 = vpop.f32.mrb[0].mxu0
  %v5987 = vadd.f32 0.0, %v5986
  %v5988 = vpop.f32.mrb[0].mxu0
  %v5989 = vpop.f32.mrb[0].mxu0
  %v5990 = vpop.f32.mrb[0].mxu0
  %5991 = vdwg.mxu0
  %5993 = vrot.lane.b32.xlu0 %v5767, 8
  %v5994 = vpop.permute.xlu0 %5993
  %5997 = vrot.lane.b32.xlu0 %v5877, 16
  %v5998 = vpop.permute.xlu0 %5997
  %6001 = vrot.lane.b32.xlu0 %v5987, 24
  %v6002 = vpop.permute.xlu0 %6001
  %v6004 = vsel %vm181, %v5656, %v5994
  %v6005 = vsel %vm229, %v6004, %v5998
  %v6006 = vsel %vm692, %v6005, %v6002
  %v6007 = vrot.slane %v5550, 4
  %v6008 = vrot.slane %v5551, 4
  %6009 = vrot.lane.b32.xlu0 %v6008, 96
  %v6010 = vpop.permute.xlu0 %6009
  %v6012 = vsel %vm181, %v6007, 0
  %v6015 = vsel %vm181, %v6010, 0
  %6017 = vmatprep.subr.bf16.mxu0 0
  %6018 = vmatpush1.bf16.xpose.msra.mxu0 %v6015
  %6019 = vmatprep.subr.bf16.mxu0 0
  %6020 = vmatpush1.bf16.xpose.msra.mxu0 0
  %6021 = vmatprep.subr.bf16.mxu0 0
  %6022 = vmatpush1.bf16.xpose.msra.mxu0 0
  %6023 = vmatprep.subr.bf16.mxu0 0
  %6024 = vmatpush1.bf16.xpose.msra.mxu0 0
  %6025 = vmatprep.subr.bf16.mxu0 0
  %6026 = vmatpush1.bf16.xpose.msra.mxu0 0
  %6027 = vmatprep.subr.bf16.mxu0 0
  %6028 = vmatpush1.bf16.xpose.msra.mxu0 0
  %6029 = vmatprep.subr.bf16.mxu0 0
  %6030 = vmatpush1.bf16.xpose.msra.mxu0 0
  %6031 = vmatprep.subr.bf16.mxu0 0
  %6032 = vmatpush1.bf16.xpose.msra.mxu0 0
  %6033 = vmatprep.subr.bf16.mxu0 0
  %6034 = vmatpush1.bf16.xpose.msra.mxu0 0
  %6035 = vmatprep.subr.bf16.mxu0 0
  %6036 = vmatpush1.bf16.xpose.msra.mxu0 0
  %6037 = vmatprep.subr.bf16.mxu0 0
  %6038 = vmatpush1.bf16.xpose.msra.mxu0 0
  %6039 = vmatprep.subr.bf16.mxu0 0
  %6040 = vmatpush1.bf16.xpose.msra.mxu0 0
  %6041 = vmatprep.subr.bf16.mxu0 0
  %6042 = vmatpush1.bf16.xpose.msra.mxu0 0
  %6043 = vmatprep.subr.bf16.mxu0 0
  %6044 = vmatpush1.bf16.xpose.msra.mxu0 0
  %6045 = vmatprep.subr.bf16.mxu0 0
  %6046 = vmatpush1.bf16.xpose.msra.mxu0 0
  %6047 = vmatprep.subr.bf16.mxu0 0
  %6048 = vmatpush1.bf16.xpose.msra.mxu0 0
  %6049 = vmatprep.mubr.bf16.mxu0 0
  %6050 = vmatmul.mubr.bf16.gmra.mrb[0].mxu0 %v6012
  %v6051 = vpop.f32.mrb[0].mxu0
  %v6052 = vadd.f32 0.0, %v6051
  %v6053 = vpop.f32.mrb[0].mxu0
  %v6054 = vpop.f32.mrb[0].mxu0
  %v6055 = vpop.f32.mrb[0].mxu0
  %6056 = vdwg.mxu0
  %v6057 = vsel %vm181, %v6052, -inf
  %6058 = vmax.xlane.f32.xlu0 %v6057
  %v6059 = vpop.xlane.xlu0 %6058
  %v6060 = vsub.f32 %v6052, %v6059
  %v6061 = vmul.f32 %v6060, 1.442695
  %v6062 = vpow.pop %v6061
  %v6063 = vsel %vm181, %v6062, 0.0
  %6064 = vadd.xlane.f32.xlu0 %v6063
  %v6065 = vpop.xlane.xlu0 %6064
  %v6066 = vrcp.pop %v6065
  %v6067 = vmul.f32 %v6062, %v6066
  %v6068 = vpack.c.bf16 %v6067, %v6067
  %6069 = vrot.lane.b32.xlu0 %v6008, 64
  %v6070 = vpop.permute.xlu0 %6069
  %v6072 = vsel %vm181, %v6068, 0
  %v6075 = vsel %vm3310, %v6070, 0
  %6077 = vmatprep.subr.bf16.mxu0 0
  %6078 = vmatpush1.bf16.msra.mxu0 %v6075
  %6079 = vmatprep.subr.bf16.mxu0 0
  %6080 = vmatpush1.bf16.msra.mxu0 0
  %6081 = vmatprep.subr.bf16.mxu0 0
  %6082 = vmatpush1.bf16.msra.mxu0 0
  %6083 = vmatprep.subr.bf16.mxu0 0
  %6084 = vmatpush1.bf16.msra.mxu0 0
  %6085 = vmatprep.subr.bf16.mxu0 0
  %6086 = vmatpush1.bf16.msra.mxu0 0
  %6087 = vmatprep.subr.bf16.mxu0 0
  %6088 = vmatpush1.bf16.msra.mxu0 0
  %6089 = vmatprep.subr.bf16.mxu0 0
  %6090 = vmatpush1.bf16.msra.mxu0 0
  %6091 = vmatprep.subr.bf16.mxu0 0
  %6092 = vmatpush1.bf16.msra.mxu0 0
  %6093 = vmatprep.subr.bf16.mxu0 0
  %6094 = vmatpush1.bf16.msra.mxu0 0
  %6095 = vmatprep.subr.bf16.mxu0 0
  %6096 = vmatpush1.bf16.msra.mxu0 0
  %6097 = vmatprep.subr.bf16.mxu0 0
  %6098 = vmatpush1.bf16.msra.mxu0 0
  %6099 = vmatprep.subr.bf16.mxu0 0
  %6100 = vmatpush1.bf16.msra.mxu0 0
  %6101 = vmatprep.subr.bf16.mxu0 0
  %6102 = vmatpush1.bf16.msra.mxu0 0
  %6103 = vmatprep.subr.bf16.mxu0 0
  %6104 = vmatpush1.bf16.msra.mxu0 0
  %6105 = vmatprep.subr.bf16.mxu0 0
  %6106 = vmatpush1.bf16.msra.mxu0 0
  %6107 = vmatprep.subr.bf16.mxu0 0
  %6108 = vmatpush1.bf16.msra.mxu0 0
  %6109 = vmatprep.mubr.bf16.mxu0 0
  %6110 = vmatmul.mubr.bf16.gmra.mrb[0].mxu0 %v6072
  %v6111 = vpop.f32.mrb[0].mxu0
  %v6112 = vadd.f32 0.0, %v6111
  %v6113 = vpop.f32.mrb[0].mxu0
  %v6114 = vpop.f32.mrb[0].mxu0
  %v6115 = vpop.f32.mrb[0].mxu0
  %6116 = vdwg.mxu0
  %6117 = vrot.lane.b32.xlu0 %v6007, 120
  %v6118 = vpop.permute.xlu0 %6117
  %6119 = vrot.lane.b32.xlu0 %v6008, 88
  %v6120 = vpop.permute.xlu0 %6119
  %v6122 = vsel %vm181, %v6118, 0
  %v6125 = vsel %vm181, %v6120, 0
  %6127 = vmatprep.subr.bf16.mxu0 0
  %6128 = vmatpush1.bf16.xpose.msra.mxu0 %v6125
  %6129 = vmatprep.subr.bf16.mxu0 0
  %6130 = vmatpush1.bf16.xpose.msra.mxu0 0
  %6131 = vmatprep.subr.bf16.mxu0 0
  %6132 = vmatpush1.bf16.xpose.msra.mxu0 0
  %6133 = vmatprep.subr.bf16.mxu0 0
  %6134 = vmatpush1.bf16.xpose.msra.mxu0 0
  %6135 = vmatprep.subr.bf16.mxu0 0
  %6136 = vmatpush1.bf16.xpose.msra.mxu0 0
  %6137 = vmatprep.subr.bf16.mxu0 0
  %6138 = vmatpush1.bf16.xpose.msra.mxu0 0
  %6139 = vmatprep.subr.bf16.mxu0 0
  %6140 = vmatpush1.bf16.xpose.msra.mxu0 0
  %6141 = vmatprep.subr.bf16.mxu0 0
  %6142 = vmatpush1.bf16.xpose.msra.mxu0 0
  %6143 = vmatprep.subr.bf16.mxu0 0
  %6144 = vmatpush1.bf16.xpose.msra.mxu0 0
  %6145 = vmatprep.subr.bf16.mxu0 0
  %6146 = vmatpush1.bf16.xpose.msra.mxu0 0
  %6147 = vmatprep.subr.bf16.mxu0 0
  %6148 = vmatpush1.bf16.xpose.msra.mxu0 0
  %6149 = vmatprep.subr.bf16.mxu0 0
  %6150 = vmatpush1.bf16.xpose.msra.mxu0 0
  %6151 = vmatprep.subr.bf16.mxu0 0
  %6152 = vmatpush1.bf16.xpose.msra.mxu0 0
  %6153 = vmatprep.subr.bf16.mxu0 0
  %6154 = vmatpush1.bf16.xpose.msra.mxu0 0
  %6155 = vmatprep.subr.bf16.mxu0 0
  %6156 = vmatpush1.bf16.xpose.msra.mxu0 0
  %6157 = vmatprep.subr.bf16.mxu0 0
  %6158 = vmatpush1.bf16.xpose.msra.mxu0 0
  %6159 = vmatprep.mubr.bf16.mxu0 0
  %6160 = vmatmul.mubr.bf16.gmra.mrb[0].mxu0 %v6122
  %v6161 = vpop.f32.mrb[0].mxu0
  %v6162 = vadd.f32 0.0, %v6161
  %v6163 = vpop.f32.mrb[0].mxu0
  %v6164 = vpop.f32.mrb[0].mxu0
  %v6165 = vpop.f32.mrb[0].mxu0
  %6166 = vdwg.mxu0
  %v6167 = vsel %vm181, %v6162, -inf
  %6168 = vmax.xlane.f32.xlu0 %v6167
  %v6169 = vpop.xlane.xlu0 %6168
  %v6170 = vsub.f32 %v6162, %v6169
  %v6171 = vmul.f32 %v6170, 1.442695
  %v6172 = vpow.pop %v6171
  %v6173 = vsel %vm181, %v6172, 0.0
  %6174 = vadd.xlane.f32.xlu0 %v6173
  %v6175 = vpop.xlane.xlu0 %6174
  %v6176 = vrcp.pop %v6175
  %v6177 = vmul.f32 %v6172, %v6176
  %v6178 = vpack.c.bf16 %v6177, %v6177
  %6179 = vrot.lane.b32.xlu0 %v6008, 56
  %v6180 = vpop.permute.xlu0 %6179
  %v6182 = vsel %vm181, %v6178, 0
  %v6185 = vsel %vm3310, %v6180, 0
  %6187 = vmatprep.subr.bf16.mxu0 0
  %6188 = vmatpush1.bf16.msra.mxu0 %v6185
  %6189 = vmatprep.subr.bf16.mxu0 0
  %6190 = vmatpush1.bf16.msra.mxu0 0
  %6191 = vmatprep.subr.bf16.mxu0 0
  %6192 = vmatpush1.bf16.msra.mxu0 0
  %6193 = vmatprep.subr.bf16.mxu0 0
  %6194 = vmatpush1.bf16.msra.mxu0 0
  %6195 = vmatprep.subr.bf16.mxu0 0
  %6196 = vmatpush1.bf16.msra.mxu0 0
  %6197 = vmatprep.subr.bf16.mxu0 0
  %6198 = vmatpush1.bf16.msra.mxu0 0
  %6199 = vmatprep.subr.bf16.mxu0 0
  %6200 = vmatpush1.bf16.msra.mxu0 0
  %6201 = vmatprep.subr.bf16.mxu0 0
  %6202 = vmatpush1.bf16.msra.mxu0 0
  %6203 = vmatprep.subr.bf16.mxu0 0
  %6204 = vmatpush1.bf16.msra.mxu0 0
  %6205 = vmatprep.subr.bf16.mxu0 0
  %6206 = vmatpush1.bf16.msra.mxu0 0
  %6207 = vmatprep.subr.bf16.mxu0 0
  %6208 = vmatpush1.bf16.msra.mxu0 0
  %6209 = vmatprep.subr.bf16.mxu0 0
  %6210 = vmatpush1.bf16.msra.mxu0 0
  %6211 = vmatprep.subr.bf16.mxu0 0
  %6212 = vmatpush1.bf16.msra.mxu0 0
  %6213 = vmatprep.subr.bf16.mxu0 0
  %6214 = vmatpush1.bf16.msra.mxu0 0
  %6215 = vmatprep.subr.bf16.mxu0 0
  %6216 = vmatpush1.bf16.msra.mxu0 0
  %6217 = vmatprep.subr.bf16.mxu0 0
  %6218 = vmatpush1.bf16.msra.mxu0 0
  %6219 = vmatprep.mubr.bf16.mxu0 0
  %6220 = vmatmul.mubr.bf16.gmra.mrb[0].mxu0 %v6182
  %v6221 = vpop.f32.mrb[0].mxu0
  %v6222 = vadd.f32 0.0, %v6221
  %v6223 = vpop.f32.mrb[0].mxu0
  %v6224 = vpop.f32.mrb[0].mxu0
  %v6225 = vpop.f32.mrb[0].mxu0
  %6226 = vdwg.mxu0
  %6227 = vrot.lane.b32.xlu0 %v6007, 112
  %v6228 = vpop.permute.xlu0 %6227
  %6229 = vrot.lane.b32.xlu0 %v6008, 80
  %v6230 = vpop.permute.xlu0 %6229
  %v6232 = vsel %vm181, %v6228, 0
  %v6235 = vsel %vm181, %v6230, 0
  %6237 = vmatprep.subr.bf16.mxu0 0
  %6238 = vmatpush1.bf16.xpose.msra.mxu0 %v6235
  %6239 = vmatprep.subr.bf16.mxu0 0
  %6240 = vmatpush1.bf16.xpose.msra.mxu0 0
  %6241 = vmatprep.subr.bf16.mxu0 0
  %6242 = vmatpush1.bf16.xpose.msra.mxu0 0
  %6243 = vmatprep.subr.bf16.mxu0 0
  %6244 = vmatpush1.bf16.xpose.msra.mxu0 0
  %6245 = vmatprep.subr.bf16.mxu0 0
  %6246 = vmatpush1.bf16.xpose.msra.mxu0 0
  %6247 = vmatprep.subr.bf16.mxu0 0
  %6248 = vmatpush1.bf16.xpose.msra.mxu0 0
  %6249 = vmatprep.subr.bf16.mxu0 0
  %6250 = vmatpush1.bf16.xpose.msra.mxu0 0
  %6251 = vmatprep.subr.bf16.mxu0 0
  %6252 = vmatpush1.bf16.xpose.msra.mxu0 0
  %6253 = vmatprep.subr.bf16.mxu0 0
  %6254 = vmatpush1.bf16.xpose.msra.mxu0 0
  %6255 = vmatprep.subr.bf16.mxu0 0
  %6256 = vmatpush1.bf16.xpose.msra.mxu0 0
  %6257 = vmatprep.subr.bf16.mxu0 0
  %6258 = vmatpush1.bf16.xpose.msra.mxu0 0
  %6259 = vmatprep.subr.bf16.mxu0 0
  %6260 = vmatpush1.bf16.xpose.msra.mxu0 0
  %6261 = vmatprep.subr.bf16.mxu0 0
  %6262 = vmatpush1.bf16.xpose.msra.mxu0 0
  %6263 = vmatprep.subr.bf16.mxu0 0
  %6264 = vmatpush1.bf16.xpose.msra.mxu0 0
  %6265 = vmatprep.subr.bf16.mxu0 0
  %6266 = vmatpush1.bf16.xpose.msra.mxu0 0
  %6267 = vmatprep.subr.bf16.mxu0 0
  %6268 = vmatpush1.bf16.xpose.msra.mxu0 0
  %6269 = vmatprep.mubr.bf16.mxu0 0
  %6270 = vmatmul.mubr.bf16.gmra.mrb[0].mxu0 %v6232
  %v6271 = vpop.f32.mrb[0].mxu0
  %v6272 = vadd.f32 0.0, %v6271
  %v6273 = vpop.f32.mrb[0].mxu0
  %v6274 = vpop.f32.mrb[0].mxu0
  %v6275 = vpop.f32.mrb[0].mxu0
  %6276 = vdwg.mxu0
  %v6277 = vsel %vm181, %v6272, -inf
  %6278 = vmax.xlane.f32.xlu0 %v6277
  %v6279 = vpop.xlane.xlu0 %6278
  %v6280 = vsub.f32 %v6272, %v6279
  %v6281 = vmul.f32 %v6280, 1.442695
  %v6282 = vpow.pop %v6281
  %v6283 = vsel %vm181, %v6282, 0.0
  %6284 = vadd.xlane.f32.xlu0 %v6283
  %v6285 = vpop.xlane.xlu0 %6284
  %v6286 = vrcp.pop %v6285
  %v6287 = vmul.f32 %v6282, %v6286
  %v6288 = vpack.c.bf16 %v6287, %v6287
  %6289 = vrot.lane.b32.xlu0 %v6008, 48
  %v6290 = vpop.permute.xlu0 %6289
  %v6292 = vsel %vm181, %v6288, 0
  %v6295 = vsel %vm3310, %v6290, 0
  %6297 = vmatprep.subr.bf16.mxu0 0
  %6298 = vmatpush1.bf16.msra.mxu0 %v6295
  %6299 = vmatprep.subr.bf16.mxu0 0
  %6300 = vmatpush1.bf16.msra.mxu0 0
  %6301 = vmatprep.subr.bf16.mxu0 0
  %6302 = vmatpush1.bf16.msra.mxu0 0
  %6303 = vmatprep.subr.bf16.mxu0 0
  %6304 = vmatpush1.bf16.msra.mxu0 0
  %6305 = vmatprep.subr.bf16.mxu0 0
  %6306 = vmatpush1.bf16.msra.mxu0 0
  %6307 = vmatprep.subr.bf16.mxu0 0
  %6308 = vmatpush1.bf16.msra.mxu0 0
  %6309 = vmatprep.subr.bf16.mxu0 0
  %6310 = vmatpush1.bf16.msra.mxu0 0
  %6311 = vmatprep.subr.bf16.mxu0 0
  %6312 = vmatpush1.bf16.msra.mxu0 0
  %6313 = vmatprep.subr.bf16.mxu0 0
  %6314 = vmatpush1.bf16.msra.mxu0 0
  %6315 = vmatprep.subr.bf16.mxu0 0
  %6316 = vmatpush1.bf16.msra.mxu0 0
  %6317 = vmatprep.subr.bf16.mxu0 0
  %6318 = vmatpush1.bf16.msra.mxu0 0
  %6319 = vmatprep.subr.bf16.mxu0 0
  %6320 = vmatpush1.bf16.msra.mxu0 0
  %6321 = vmatprep.subr.bf16.mxu0 0
  %6322 = vmatpush1.bf16.msra.mxu0 0
  %6323 = vmatprep.subr.bf16.mxu0 0
  %6324 = vmatpush1.bf16.msra.mxu0 0
  %6325 = vmatprep.subr.bf16.mxu0 0
  %6326 = vmatpush1.bf16.msra.mxu0 0
  %6327 = vmatprep.subr.bf16.mxu0 0
  %6328 = vmatpush1.bf16.msra.mxu0 0
  %6329 = vmatprep.mubr.bf16.mxu0 0
  %6330 = vmatmul.mubr.bf16.gmra.mrb[0].mxu0 %v6292
  %v6331 = vpop.f32.mrb[0].mxu0
  %v6332 = vadd.f32 0.0, %v6331
  %v6333 = vpop.f32.mrb[0].mxu0
  %v6334 = vpop.f32.mrb[0].mxu0
  %v6335 = vpop.f32.mrb[0].mxu0
  %6336 = vdwg.mxu0
  %6337 = vrot.lane.b32.xlu0 %v6007, 104
  %v6338 = vpop.permute.xlu0 %6337
  %6339 = vrot.lane.b32.xlu0 %v6008, 72
  %v6340 = vpop.permute.xlu0 %6339
  %v6342 = vsel %vm181, %v6338, 0
  %v6345 = vsel %vm181, %v6340, 0
  %6347 = vmatprep.subr.bf16.mxu0 0
  %6348 = vmatpush1.bf16.xpose.msra.mxu0 %v6345
  %6349 = vmatprep.subr.bf16.mxu0 0
  %6350 = vmatpush1.bf16.xpose.msra.mxu0 0
  %6351 = vmatprep.subr.bf16.mxu0 0
  %6352 = vmatpush1.bf16.xpose.msra.mxu0 0
  %6353 = vmatprep.subr.bf16.mxu0 0
  %6354 = vmatpush1.bf16.xpose.msra.mxu0 0
  %6355 = vmatprep.subr.bf16.mxu0 0
  %6356 = vmatpush1.bf16.xpose.msra.mxu0 0
  %6357 = vmatprep.subr.bf16.mxu0 0
  %6358 = vmatpush1.bf16.xpose.msra.mxu0 0
  %6359 = vmatprep.subr.bf16.mxu0 0
  %6360 = vmatpush1.bf16.xpose.msra.mxu0 0
  %6361 = vmatprep.subr.bf16.mxu0 0
  %6362 = vmatpush1.bf16.xpose.msra.mxu0 0
  %6363 = vmatprep.subr.bf16.mxu0 0
  %6364 = vmatpush1.bf16.xpose.msra.mxu0 0
  %6365 = vmatprep.subr.bf16.mxu0 0
  %6366 = vmatpush1.bf16.xpose.msra.mxu0 0
  %6367 = vmatprep.subr.bf16.mxu0 0
  %6368 = vmatpush1.bf16.xpose.msra.mxu0 0
  %6369 = vmatprep.subr.bf16.mxu0 0
  %6370 = vmatpush1.bf16.xpose.msra.mxu0 0
  %6371 = vmatprep.subr.bf16.mxu0 0
  %6372 = vmatpush1.bf16.xpose.msra.mxu0 0
  %6373 = vmatprep.subr.bf16.mxu0 0
  %6374 = vmatpush1.bf16.xpose.msra.mxu0 0
  %6375 = vmatprep.subr.bf16.mxu0 0
  %6376 = vmatpush1.bf16.xpose.msra.mxu0 0
  %6377 = vmatprep.subr.bf16.mxu0 0
  %6378 = vmatpush1.bf16.xpose.msra.mxu0 0
  %6379 = vmatprep.mubr.bf16.mxu0 0
  %6380 = vmatmul.mubr.bf16.gmra.mrb[0].mxu0 %v6342
  %v6381 = vpop.f32.mrb[0].mxu0
  %v6382 = vadd.f32 0.0, %v6381
  %v6383 = vpop.f32.mrb[0].mxu0
  %v6384 = vpop.f32.mrb[0].mxu0
  %v6385 = vpop.f32.mrb[0].mxu0
  %6386 = vdwg.mxu0
  %v6387 = vsel %vm181, %v6382, -inf
  %6388 = vmax.xlane.f32.xlu0 %v6387
  %v6389 = vpop.xlane.xlu0 %6388
  %v6390 = vsub.f32 %v6382, %v6389
  %v6391 = vmul.f32 %v6390, 1.442695
  %v6392 = vpow.pop %v6391
  %v6393 = vsel %vm181, %v6392, 0.0
  %6394 = vadd.xlane.f32.xlu0 %v6393
  %v6395 = vpop.xlane.xlu0 %6394
  %v6396 = vrcp.pop %v6395
  %v6397 = vmul.f32 %v6392, %v6396
  %v6398 = vpack.c.bf16 %v6397, %v6397
  %6399 = vrot.lane.b32.xlu0 %v6008, 40
  %v6400 = vpop.permute.xlu0 %6399
  %v6402 = vsel %vm181, %v6398, 0
  %v6405 = vsel %vm3310, %v6400, 0
  %6407 = vmatprep.subr.bf16.mxu0 0
  %6408 = vmatpush1.bf16.msra.mxu0 %v6405
  %6409 = vmatprep.subr.bf16.mxu0 0
  %6410 = vmatpush1.bf16.msra.mxu0 0
  %6411 = vmatprep.subr.bf16.mxu0 0
  %6412 = vmatpush1.bf16.msra.mxu0 0
  %6413 = vmatprep.subr.bf16.mxu0 0
  %6414 = vmatpush1.bf16.msra.mxu0 0
  %6415 = vmatprep.subr.bf16.mxu0 0
  %6416 = vmatpush1.bf16.msra.mxu0 0
  %6417 = vmatprep.subr.bf16.mxu0 0
  %6418 = vmatpush1.bf16.msra.mxu0 0
  %6419 = vmatprep.subr.bf16.mxu0 0
  %6420 = vmatpush1.bf16.msra.mxu0 0
  %6421 = vmatprep.subr.bf16.mxu0 0
  %6422 = vmatpush1.bf16.msra.mxu0 0
  %6423 = vmatprep.subr.bf16.mxu0 0
  %6424 = vmatpush1.bf16.msra.mxu0 0
  %6425 = vmatprep.subr.bf16.mxu0 0
  %6426 = vmatpush1.bf16.msra.mxu0 0
  %6427 = vmatprep.subr.bf16.mxu0 0
  %6428 = vmatpush1.bf16.msra.mxu0 0
  %6429 = vmatprep.subr.bf16.mxu0 0
  %6430 = vmatpush1.bf16.msra.mxu0 0
  %6431 = vmatprep.subr.bf16.mxu0 0
  %6432 = vmatpush1.bf16.msra.mxu0 0
  %6433 = vmatprep.subr.bf16.mxu0 0
  %6434 = vmatpush1.bf16.msra.mxu0 0
  %6435 = vmatprep.subr.bf16.mxu0 0
  %6436 = vmatpush1.bf16.msra.mxu0 0
  %6437 = vmatprep.subr.bf16.mxu0 0
  %6438 = vmatpush1.bf16.msra.mxu0 0
  %6439 = vmatprep.mubr.bf16.mxu0 0
  %6440 = vmatmul.mubr.bf16.gmra.mrb[0].mxu0 %v6402
  %v6441 = vpop.f32.mrb[0].mxu0
  %v6442 = vadd.f32 0.0, %v6441
  %v6443 = vpop.f32.mrb[0].mxu0
  %v6444 = vpop.f32.mrb[0].mxu0
  %v6445 = vpop.f32.mrb[0].mxu0
  %6446 = vdwg.mxu0
  %6448 = vrot.lane.b32.xlu0 %v6222, 8
  %v6449 = vpop.permute.xlu0 %6448
  %6452 = vrot.lane.b32.xlu0 %v6332, 16
  %v6453 = vpop.permute.xlu0 %6452
  %6456 = vrot.lane.b32.xlu0 %v6442, 24
  %v6457 = vpop.permute.xlu0 %6456
  %v6459 = vsel %vm181, %v6112, %v6449
  %v6460 = vsel %vm229, %v6459, %v6453
  %v6461 = vsel %vm692, %v6460, %v6457
  %v6462 = vpack.c.bf16 %v6461, %v6006
  %v6464 = vsel %vm114, %v6462, 0
  %6466 = vmatprep.subr.bf16.mxu0 0
  %6467 = vmatpush1.bf16.msra.mxu0 %v4173
  %6468 = vmatprep.subr.bf16.mxu0 0
  %6469 = vmatpush1.bf16.msra.mxu0 %v4174
  %6470 = vmatprep.subr.bf16.mxu0 0
  %6471 = vmatpush1.bf16.msra.mxu0 0
  %6472 = vmatprep.subr.bf16.mxu0 0
  %6473 = vmatpush1.bf16.msra.mxu0 0
  %6474 = vmatprep.subr.bf16.mxu0 0
  %6475 = vmatpush1.bf16.msra.mxu0 0
  %6476 = vmatprep.subr.bf16.mxu0 0
  %6477 = vmatpush1.bf16.msra.mxu0 0
  %6478 = vmatprep.subr.bf16.mxu0 0
  %6479 = vmatpush1.bf16.msra.mxu0 0
  %6480 = vmatprep.subr.bf16.mxu0 0
  %6481 = vmatpush1.bf16.msra.mxu0 0
  %6482 = vmatprep.subr.bf16.mxu0 0
  %6483 = vmatpush1.bf16.msra.mxu0 0
  %6484 = vmatprep.subr.bf16.mxu0 0
  %6485 = vmatpush1.bf16.msra.mxu0 0
  %6486 = vmatprep.subr.bf16.mxu0 0
  %6487 = vmatpush1.bf16.msra.mxu0 0
  %6488 = vmatprep.subr.bf16.mxu0 0
  %6489 = vmatpush1.bf16.msra.mxu0 0
  %6490 = vmatprep.subr.bf16.mxu0 0
  %6491 = vmatpush1.bf16.msra.mxu0 0
  %6492 = vmatprep.subr.bf16.mxu0 0
  %6493 = vmatpush1.bf16.msra.mxu0 0
  %6494 = vmatprep.subr.bf16.mxu0 0
  %6495 = vmatpush1.bf16.msra.mxu0 0
  %6496 = vmatprep.subr.bf16.mxu0 0
  %6497 = vmatpush1.bf16.msra.mxu0 0
  %6498 = vmatprep.mubr.bf16.mxu0 0
  %6499 = vmatmul.mubr.bf16.gmra.mrb[0].mxu0 %v6464
  %v6500 = vpop.f32.mrb[0].mxu0
  %v6501 = vadd.f32 %v4164, %v6500
  %v6502 = vpop.f32.mrb[0].mxu0
  %v6503 = vpop.f32.mrb[0].mxu0
  %v6504 = vadd.f32 %v4164, %v6503
  %v6505 = vpop.f32.mrb[0].mxu0
  %6506 = vdwg.mxu0
  %v6507 = vadd.f32 %v5501, %v6501
  %v6508 = vadd.f32 %v5502, %v6504
  %v6509 = vsel %vm114, %v6507, 0.0
  %6510 = vadd.xlane.f32.xlu0 %v6509
  %v6511 = vpop.xlane.xlu0 %6510
  %v6512 = vsel %vm114, %v6508, 0.0
  %6513 = vadd.xlane.f32.xlu0 %v6512
  %v6514 = vpop.xlane.xlu0 %6513
  %v6515 = vmul.f32 %v6511, %v1305
  %v6516 = vmul.f32 %v6514, %v1305
  %v6517 = vsub.f32 %v6507, %v6515
  %v6518 = vsub.f32 %v6508, %v6516
  %v6519 = vmul.f32 %v6517, %v6517
  %v6520 = vmul.f32 %v6518, %v6518
  %v6521 = vsel %vm114, %v6519, 0.0
  %6522 = vadd.xlane.f32.xlu0 %v6521
  %v6523 = vpop.xlane.xlu0 %6522
  %v6524 = vsel %vm114, %v6520, 0.0
  %6525 = vadd.xlane.f32.xlu0 %v6524
  %v6526 = vpop.xlane.xlu0 %6525
  %v6527 = vmul.f32 %v6523, %v1305
  %v6528 = vmul.f32 %v6526, %v1305
  %v6529 = vadd.f32 %v6527, 1e-05
  %v6530 = vadd.f32 %v6528, 1e-05
  %v6531 = vrsqrt.pop %v6529
  %v6532 = vrsqrt.pop %v6530
  %v6533 = vmul.f32 %v6517, %v6531
  %v6534 = vmul.f32 %v6518, %v6532
  %v6535 = vmul.f32 %v6533, %v4254
  %v6536 = vmul.f32 %v6534, %v4254
  %v6537 = vadd.f32 %v6535, %v4260
  %v6538 = vadd.f32 %v6536, %v4260
  %v6539 = vpack.c.bf16 %v6538, %v6537
  %v6541 = vsel %vm114, %v6539, 0
  %6543 = vmatprep.subr.bf16.mxu0 0
  %6544 = vmatpush1.bf16.msra.mxu0 %v3105
  %6545 = vmatprep.subr.bf16.mxu0 0
  %6546 = vmatpush1.bf16.msra.mxu0 %v3106
  %6547 = vmatprep.subr.bf16.mxu0 0
  %6548 = vmatpush1.bf16.msra.mxu0 0
  %6549 = vmatprep.subr.bf16.mxu0 0
  %6550 = vmatpush1.bf16.msra.mxu0 0
  %6551 = vmatprep.subr.bf16.mxu0 0
  %6552 = vmatpush1.bf16.msra.mxu0 0
  %6553 = vmatprep.subr.bf16.mxu0 0
  %6554 = vmatpush1.bf16.msra.mxu0 0
  %6555 = vmatprep.subr.bf16.mxu0 0
  %6556 = vmatpush1.bf16.msra.mxu0 0
  %6557 = vmatprep.subr.bf16.mxu0 0
  %6558 = vmatpush1.bf16.msra.mxu0 0
  %6559 = vmatprep.subr.bf16.mxu0 0
  %6560 = vmatpush1.bf16.msra.mxu0 0
  %6561 = vmatprep.subr.bf16.mxu0 0
  %6562 = vmatpush1.bf16.msra.mxu0 0
  %6563 = vmatprep.subr.bf16.mxu0 0
  %6564 = vmatpush1.bf16.msra.mxu0 0
  %6565 = vmatprep.subr.bf16.mxu0 0
  %6566 = vmatpush1.bf16.msra.mxu0 0
  %6567 = vmatprep.subr.bf16.mxu0 0
  %6568 = vmatpush1.bf16.msra.mxu0 0
  %6569 = vmatprep.subr.bf16.mxu0 0
  %6570 = vmatpush1.bf16.msra.mxu0 0
  %6571 = vmatprep.subr.bf16.mxu0 0
  %6572 = vmatpush1.bf16.msra.mxu0 0
  %6573 = vmatprep.subr.bf16.mxu0 0
  %6574 = vmatpush1.bf16.msra.mxu0 0
  %6575 = vmatprep.mubr.bf16.mxu0 0
  %6576 = vmatmul.mubr.bf16.gmra.mrb[0].mxu0 %v6541
  %v6577 = vpop.f32.mrb[0].mxu0
  %v6578 = vadd.f32 %v3096, %v6577
  %v6579 = vpop.f32.mrb[0].mxu0
  %v6580 = vpop.f32.mrb[0].mxu0
  %v6581 = vadd.f32 %v3096, %v6580
  %v6582 = vpop.f32.mrb[0].mxu0
  %6583 = vdwg.mxu0
  %v6584 = vmul.f32 %v6578, 0.35355338
  %v6585 = vmul.f32 %v6581, 0.35355338
  %v6586 = vpack.c.bf16 %v6585, %v6584
  %v6588 = vsel %vm181, %v6586, 0
  %6590 = vmatprep.subr.bf16.mxu0 0
  %6591 = vmatpush1.bf16.xpose.msra.mxu0 %v4317
  %6592 = vmatprep.subr.bf16.mxu0 0
  %6593 = vmatpush1.bf16.xpose.msra.mxu0 0
  %6594 = vmatprep.subr.bf16.mxu0 0
  %6595 = vmatpush1.bf16.xpose.msra.mxu0 0
  %6596 = vmatprep.subr.bf16.mxu0 0
  %6597 = vmatpush1.bf16.xpose.msra.mxu0 0
  %6598 = vmatprep.subr.bf16.mxu0 0
  %6599 = vmatpush1.bf16.xpose.msra.mxu0 0
  %6600 = vmatprep.subr.bf16.mxu0 0
  %6601 = vmatpush1.bf16.xpose.msra.mxu0 0
  %6602 = vmatprep.subr.bf16.mxu0 0
  %6603 = vmatpush1.bf16.xpose.msra.mxu0 0
  %6604 = vmatprep.subr.bf16.mxu0 0
  %6605 = vmatpush1.bf16.xpose.msra.mxu0 0
  %6606 = vmatprep.subr.bf16.mxu0 0
  %6607 = vmatpush1.bf16.xpose.msra.mxu0 0
  %6608 = vmatprep.subr.bf16.mxu0 0
  %6609 = vmatpush1.bf16.xpose.msra.mxu0 0
  %6610 = vmatprep.subr.bf16.mxu0 0
  %6611 = vmatpush1.bf16.xpose.msra.mxu0 0
  %6612 = vmatprep.subr.bf16.mxu0 0
  %6613 = vmatpush1.bf16.xpose.msra.mxu0 0
  %6614 = vmatprep.subr.bf16.mxu0 0
  %6615 = vmatpush1.bf16.xpose.msra.mxu0 0
  %6616 = vmatprep.subr.bf16.mxu0 0
  %6617 = vmatpush1.bf16.xpose.msra.mxu0 0
  %6618 = vmatprep.subr.bf16.mxu0 0
  %6619 = vmatpush1.bf16.xpose.msra.mxu0 0
  %6620 = vmatprep.subr.bf16.mxu0 0
  %6621 = vmatpush1.bf16.xpose.msra.mxu0 0
  %6622 = vmatprep.mubr.bf16.mxu0 0
  %6623 = vmatmul.mubr.bf16.gmra.mrb[0].mxu0 %v6588
  %v6624 = vpop.f32.mrb[0].mxu0
  %v6625 = vadd.f32 0.0, %v6624
  %v6626 = vpop.f32.mrb[0].mxu0
  %v6627 = vpop.f32.mrb[0].mxu0
  %v6628 = vpop.f32.mrb[0].mxu0
  %6629 = vdwg.mxu0
  %v6630 = vsel %vm229, %v6625, -inf
  %6631 = vmax.xlane.f32.xlu0 %v6630
  %v6632 = vpop.xlane.xlu0 %6631
  %v6633 = vsub.f32 %v6625, %v6632
  %v6634 = vmul.f32 %v6633, 1.442695
  %v6635 = vpow.pop %v6634
  %v6636 = vsel %vm229, %v6635, 0.0
  %6637 = vadd.xlane.f32.xlu0 %v6636
  %v6638 = vpop.xlane.xlu0 %6637
  %v6639 = vrcp.pop %v6638
  %v6640 = vmul.f32 %v6635, %v6639
  %v6641 = vpack.c.bf16 %v6640, %v6640
  %v6643 = vsel %vm229, %v6641, 0
  %6645 = vmatprep.subr.bf16.mxu0 0
  %6646 = vmatpush1.bf16.msra.mxu0 %v4373
  %6647 = vmatprep.subr.bf16.mxu0 0
  %6648 = vmatpush1.bf16.msra.mxu0 0
  %6649 = vmatprep.subr.bf16.mxu0 0
  %6650 = vmatpush1.bf16.msra.mxu0 0
  %6651 = vmatprep.subr.bf16.mxu0 0
  %6652 = vmatpush1.bf16.msra.mxu0 0
  %6653 = vmatprep.subr.bf16.mxu0 0
  %6654 = vmatpush1.bf16.msra.mxu0 0
  %6655 = vmatprep.subr.bf16.mxu0 0
  %6656 = vmatpush1.bf16.msra.mxu0 0
  %6657 = vmatprep.subr.bf16.mxu0 0
  %6658 = vmatpush1.bf16.msra.mxu0 0
  %6659 = vmatprep.subr.bf16.mxu0 0
  %6660 = vmatpush1.bf16.msra.mxu0 0
  %6661 = vmatprep.subr.bf16.mxu0 0
  %6662 = vmatpush1.bf16.msra.mxu0 0
  %6663 = vmatprep.subr.bf16.mxu0 0
  %6664 = vmatpush1.bf16.msra.mxu0 0
  %6665 = vmatprep.subr.bf16.mxu0 0
  %6666 = vmatpush1.bf16.msra.mxu0 0
  %6667 = vmatprep.subr.bf16.mxu0 0
  %6668 = vmatpush1.bf16.msra.mxu0 0
  %6669 = vmatprep.subr.bf16.mxu0 0
  %6670 = vmatpush1.bf16.msra.mxu0 0
  %6671 = vmatprep.subr.bf16.mxu0 0
  %6672 = vmatpush1.bf16.msra.mxu0 0
  %6673 = vmatprep.subr.bf16.mxu0 0
  %6674 = vmatpush1.bf16.msra.mxu0 0
  %6675 = vmatprep.subr.bf16.mxu0 0
  %6676 = vmatpush1.bf16.msra.mxu0 0
  %6677 = vmatprep.mubr.bf16.mxu0 0
  %6678 = vmatmul.mubr.bf16.gmra.mrb[0].mxu0 %v6643
  %v6679 = vpop.f32.mrb[0].mxu0
  %v6680 = vadd.f32 0.0, %v6679
  %v6681 = vpop.f32.mrb[0].mxu0
  %v6682 = vpop.f32.mrb[0].mxu0
  %v6683 = vpop.f32.mrb[0].mxu0
  %6684 = vdwg.mxu0
  %6686 = vrot.lane.b32.xlu0 %v6586, 120
  %v6687 = vpop.permute.xlu0 %6686
  %v6689 = vsel %vm181, %v6687, 0
  %6691 = vmatprep.subr.bf16.mxu0 0
  %6692 = vmatpush1.bf16.xpose.msra.mxu0 %v4427
  %6693 = vmatprep.subr.bf16.mxu0 0
  %6694 = vmatpush1.bf16.xpose.msra.mxu0 0
  %6695 = vmatprep.subr.bf16.mxu0 0
  %6696 = vmatpush1.bf16.xpose.msra.mxu0 0
  %6697 = vmatprep.subr.bf16.mxu0 0
  %6698 = vmatpush1.bf16.xpose.msra.mxu0 0
  %6699 = vmatprep.subr.bf16.mxu0 0
  %6700 = vmatpush1.bf16.xpose.msra.mxu0 0
  %6701 = vmatprep.subr.bf16.mxu0 0
  %6702 = vmatpush1.bf16.xpose.msra.mxu0 0
  %6703 = vmatprep.subr.bf16.mxu0 0
  %6704 = vmatpush1.bf16.xpose.msra.mxu0 0
  %6705 = vmatprep.subr.bf16.mxu0 0
  %6706 = vmatpush1.bf16.xpose.msra.mxu0 0
  %6707 = vmatprep.subr.bf16.mxu0 0
  %6708 = vmatpush1.bf16.xpose.msra.mxu0 0
  %6709 = vmatprep.subr.bf16.mxu0 0
  %6710 = vmatpush1.bf16.xpose.msra.mxu0 0
  %6711 = vmatprep.subr.bf16.mxu0 0
  %6712 = vmatpush1.bf16.xpose.msra.mxu0 0
  %6713 = vmatprep.subr.bf16.mxu0 0
  %6714 = vmatpush1.bf16.xpose.msra.mxu0 0
  %6715 = vmatprep.subr.bf16.mxu0 0
  %6716 = vmatpush1.bf16.xpose.msra.mxu0 0
  %6717 = vmatprep.subr.bf16.mxu0 0
  %6718 = vmatpush1.bf16.xpose.msra.mxu0 0
  %6719 = vmatprep.subr.bf16.mxu0 0
  %6720 = vmatpush1.bf16.xpose.msra.mxu0 0
  %6721 = vmatprep.subr.bf16.mxu0 0
  %6722 = vmatpush1.bf16.xpose.msra.mxu0 0
  %6723 = vmatprep.mubr.bf16.mxu0 0
  %6724 = vmatmul.mubr.bf16.gmra.mrb[0].mxu0 %v6689
  %v6725 = vpop.f32.mrb[0].mxu0
  %v6726 = vadd.f32 0.0, %v6725
  %v6727 = vpop.f32.mrb[0].mxu0
  %v6728 = vpop.f32.mrb[0].mxu0
  %v6729 = vpop.f32.mrb[0].mxu0
  %6730 = vdwg.mxu0
  %v6731 = vsel %vm229, %v6726, -inf
  %6732 = vmax.xlane.f32.xlu0 %v6731
  %v6733 = vpop.xlane.xlu0 %6732
  %v6734 = vsub.f32 %v6726, %v6733
  %v6735 = vmul.f32 %v6734, 1.442695
  %v6736 = vpow.pop %v6735
  %v6737 = vsel %vm229, %v6736, 0.0
  %6738 = vadd.xlane.f32.xlu0 %v6737
  %v6739 = vpop.xlane.xlu0 %6738
  %v6740 = vrcp.pop %v6739
  %v6741 = vmul.f32 %v6736, %v6740
  %v6742 = vpack.c.bf16 %v6741, %v6741
  %v6744 = vsel %vm229, %v6742, 0
  %6746 = vmatprep.subr.bf16.mxu0 0
  %6747 = vmatpush1.bf16.msra.mxu0 %v4482
  %6748 = vmatprep.subr.bf16.mxu0 0
  %6749 = vmatpush1.bf16.msra.mxu0 0
  %6750 = vmatprep.subr.bf16.mxu0 0
  %6751 = vmatpush1.bf16.msra.mxu0 0
  %6752 = vmatprep.subr.bf16.mxu0 0
  %6753 = vmatpush1.bf16.msra.mxu0 0
  %6754 = vmatprep.subr.bf16.mxu0 0
  %6755 = vmatpush1.bf16.msra.mxu0 0
  %6756 = vmatprep.subr.bf16.mxu0 0
  %6757 = vmatpush1.bf16.msra.mxu0 0
  %6758 = vmatprep.subr.bf16.mxu0 0
  %6759 = vmatpush1.bf16.msra.mxu0 0
  %6760 = vmatprep.subr.bf16.mxu0 0
  %6761 = vmatpush1.bf16.msra.mxu0 0
  %6762 = vmatprep.subr.bf16.mxu0 0
  %6763 = vmatpush1.bf16.msra.mxu0 0
  %6764 = vmatprep.subr.bf16.mxu0 0
  %6765 = vmatpush1.bf16.msra.mxu0 0
  %6766 = vmatprep.subr.bf16.mxu0 0
  %6767 = vmatpush1.bf16.msra.mxu0 0
  %6768 = vmatprep.subr.bf16.mxu0 0
  %6769 = vmatpush1.bf16.msra.mxu0 0
  %6770 = vmatprep.subr.bf16.mxu0 0
  %6771 = vmatpush1.bf16.msra.mxu0 0
  %6772 = vmatprep.subr.bf16.mxu0 0
  %6773 = vmatpush1.bf16.msra.mxu0 0
  %6774 = vmatprep.subr.bf16.mxu0 0
  %6775 = vmatpush1.bf16.msra.mxu0 0
  %6776 = vmatprep.subr.bf16.mxu0 0
  %6777 = vmatpush1.bf16.msra.mxu0 0
  %6778 = vmatprep.mubr.bf16.mxu0 0
  %6779 = vmatmul.mubr.bf16.gmra.mrb[0].mxu0 %v6744
  %v6780 = vpop.f32.mrb[0].mxu0
  %v6781 = vadd.f32 0.0, %v6780
  %v6782 = vpop.f32.mrb[0].mxu0
  %v6783 = vpop.f32.mrb[0].mxu0
  %v6784 = vpop.f32.mrb[0].mxu0
  %6785 = vdwg.mxu0
  %6786 = vrot.lane.b32.xlu0 %v6586, 112
  %v6787 = vpop.permute.xlu0 %6786
  %v6789 = vsel %vm181, %v6787, 0
  %6791 = vmatprep.subr.bf16.mxu0 0
  %6792 = vmatpush1.bf16.xpose.msra.mxu0 %v4535
  %6793 = vmatprep.subr.bf16.mxu0 0
  %6794 = vmatpush1.bf16.xpose.msra.mxu0 0
  %6795 = vmatprep.subr.bf16.mxu0 0
  %6796 = vmatpush1.bf16.xpose.msra.mxu0 0
  %6797 = vmatprep.subr.bf16.mxu0 0
  %6798 = vmatpush1.bf16.xpose.msra.mxu0 0
  %6799 = vmatprep.subr.bf16.mxu0 0
  %6800 = vmatpush1.bf16.xpose.msra.mxu0 0
  %6801 = vmatprep.subr.bf16.mxu0 0
  %6802 = vmatpush1.bf16.xpose.msra.mxu0 0
  %6803 = vmatprep.subr.bf16.mxu0 0
  %6804 = vmatpush1.bf16.xpose.msra.mxu0 0
  %6805 = vmatprep.subr.bf16.mxu0 0
  %6806 = vmatpush1.bf16.xpose.msra.mxu0 0
  %6807 = vmatprep.subr.bf16.mxu0 0
  %6808 = vmatpush1.bf16.xpose.msra.mxu0 0
  %6809 = vmatprep.subr.bf16.mxu0 0
  %6810 = vmatpush1.bf16.xpose.msra.mxu0 0
  %6811 = vmatprep.subr.bf16.mxu0 0
  %6812 = vmatpush1.bf16.xpose.msra.mxu0 0
  %6813 = vmatprep.subr.bf16.mxu0 0
  %6814 = vmatpush1.bf16.xpose.msra.mxu0 0
  %6815 = vmatprep.subr.bf16.mxu0 0
  %6816 = vmatpush1.bf16.xpose.msra.mxu0 0
  %6817 = vmatprep.subr.bf16.mxu0 0
  %6818 = vmatpush1.bf16.xpose.msra.mxu0 0
  %6819 = vmatprep.subr.bf16.mxu0 0
  %6820 = vmatpush1.bf16.xpose.msra.mxu0 0
  %6821 = vmatprep.subr.bf16.mxu0 0
  %6822 = vmatpush1.bf16.xpose.msra.mxu0 0
  %6823 = vmatprep.mubr.bf16.mxu0 0
  %6824 = vmatmul.mubr.bf16.gmra.mrb[0].mxu0 %v6789
  %v6825 = vpop.f32.mrb[0].mxu0
  %v6826 = vadd.f32 0.0, %v6825
  %v6827 = vpop.f32.mrb[0].mxu0
  %v6828 = vpop.f32.mrb[0].mxu0
  %v6829 = vpop.f32.mrb[0].mxu0
  %6830 = vdwg.mxu0
  %v6831 = vsel %vm229, %v6826, -inf
  %6832 = vmax.xlane.f32.xlu0 %v6831
  %v6833 = vpop.xlane.xlu0 %6832
  %v6834 = vsub.f32 %v6826, %v6833
  %v6835 = vmul.f32 %v6834, 1.442695
  %v6836 = vpow.pop %v6835
  %v6837 = vsel %vm229, %v6836, 0.0
  %6838 = vadd.xlane.f32.xlu0 %v6837
  %v6839 = vpop.xlane.xlu0 %6838
  %v6840 = vrcp.pop %v6839
  %v6841 = vmul.f32 %v6836, %v6840
  %v6842 = vpack.c.bf16 %v6841, %v6841
  %v6844 = vsel %vm229, %v6842, 0
  %6846 = vmatprep.subr.bf16.mxu0 0
  %6847 = vmatpush1.bf16.msra.mxu0 %v4590
  %6848 = vmatprep.subr.bf16.mxu0 0
  %6849 = vmatpush1.bf16.msra.mxu0 0
  %6850 = vmatprep.subr.bf16.mxu0 0
  %6851 = vmatpush1.bf16.msra.mxu0 0
  %6852 = vmatprep.subr.bf16.mxu0 0
  %6853 = vmatpush1.bf16.msra.mxu0 0
  %6854 = vmatprep.subr.bf16.mxu0 0
  %6855 = vmatpush1.bf16.msra.mxu0 0
  %6856 = vmatprep.subr.bf16.mxu0 0
  %6857 = vmatpush1.bf16.msra.mxu0 0
  %6858 = vmatprep.subr.bf16.mxu0 0
  %6859 = vmatpush1.bf16.msra.mxu0 0
  %6860 = vmatprep.subr.bf16.mxu0 0
  %6861 = vmatpush1.bf16.msra.mxu0 0
  %6862 = vmatprep.subr.bf16.mxu0 0
  %6863 = vmatpush1.bf16.msra.mxu0 0
  %6864 = vmatprep.subr.bf16.mxu0 0
  %6865 = vmatpush1.bf16.msra.mxu0 0
  %6866 = vmatprep.subr.bf16.mxu0 0
  %6867 = vmatpush1.bf16.msra.mxu0 0
  %6868 = vmatprep.subr.bf16.mxu0 0
  %6869 = vmatpush1.bf16.msra.mxu0 0
  %6870 = vmatprep.subr.bf16.mxu0 0
  %6871 = vmatpush1.bf16.msra.mxu0 0
  %6872 = vmatprep.subr.bf16.mxu0 0
  %6873 = vmatpush1.bf16.msra.mxu0 0
  %6874 = vmatprep.subr.bf16.mxu0 0
  %6875 = vmatpush1.bf16.msra.mxu0 0
  %6876 = vmatprep.subr.bf16.mxu0 0
  %6877 = vmatpush1.bf16.msra.mxu0 0
  %6878 = vmatprep.mubr.bf16.mxu0 0
  %6879 = vmatmul.mubr.bf16.gmra.mrb[0].mxu0 %v6844
  %v6880 = vpop.f32.mrb[0].mxu0
  %v6881 = vadd.f32 0.0, %v6880
  %v6882 = vpop.f32.mrb[0].mxu0
  %v6883 = vpop.f32.mrb[0].mxu0
  %v6884 = vpop.f32.mrb[0].mxu0
  %6885 = vdwg.mxu0
  %6886 = vrot.lane.b32.xlu0 %v6586, 104
  %v6887 = vpop.permute.xlu0 %6886
  %v6889 = vsel %vm181, %v6887, 0
  %6891 = vmatprep.subr.bf16.mxu0 0
  %6892 = vmatpush1.bf16.xpose.msra.mxu0 %v4643
  %6893 = vmatprep.subr.bf16.mxu0 0
  %6894 = vmatpush1.bf16.xpose.msra.mxu0 0
  %6895 = vmatprep.subr.bf16.mxu0 0
  %6896 = vmatpush1.bf16.xpose.msra.mxu0 0
  %6897 = vmatprep.subr.bf16.mxu0 0
  %6898 = vmatpush1.bf16.xpose.msra.mxu0 0
  %6899 = vmatprep.subr.bf16.mxu0 0
  %6900 = vmatpush1.bf16.xpose.msra.mxu0 0
  %6901 = vmatprep.subr.bf16.mxu0 0
  %6902 = vmatpush1.bf16.xpose.msra.mxu0 0
  %6903 = vmatprep.subr.bf16.mxu0 0
  %6904 = vmatpush1.bf16.xpose.msra.mxu0 0
  %6905 = vmatprep.subr.bf16.mxu0 0
  %6906 = vmatpush1.bf16.xpose.msra.mxu0 0
  %6907 = vmatprep.subr.bf16.mxu0 0
  %6908 = vmatpush1.bf16.xpose.msra.mxu0 0
  %6909 = vmatprep.subr.bf16.mxu0 0
  %6910 = vmatpush1.bf16.xpose.msra.mxu0 0
  %6911 = vmatprep.subr.bf16.mxu0 0
  %6912 = vmatpush1.bf16.xpose.msra.mxu0 0
  %6913 = vmatprep.subr.bf16.mxu0 0
  %6914 = vmatpush1.bf16.xpose.msra.mxu0 0
  %6915 = vmatprep.subr.bf16.mxu0 0
  %6916 = vmatpush1.bf16.xpose.msra.mxu0 0
  %6917 = vmatprep.subr.bf16.mxu0 0
  %6918 = vmatpush1.bf16.xpose.msra.mxu0 0
  %6919 = vmatprep.subr.bf16.mxu0 0
  %6920 = vmatpush1.bf16.xpose.msra.mxu0 0
  %6921 = vmatprep.subr.bf16.mxu0 0
  %6922 = vmatpush1.bf16.xpose.msra.mxu0 0
  %6923 = vmatprep.mubr.bf16.mxu0 0
  %6924 = vmatmul.mubr.bf16.gmra.mrb[0].mxu0 %v6889
  %v6925 = vpop.f32.mrb[0].mxu0
  %v6926 = vadd.f32 0.0, %v6925
  %v6927 = vpop.f32.mrb[0].mxu0
  %v6928 = vpop.f32.mrb[0].mxu0
  %v6929 = vpop.f32.mrb[0].mxu0
  %6930 = vdwg.mxu0
  %v6931 = vsel %vm229, %v6926, -inf
  %6932 = vmax.xlane.f32.xlu0 %v6931
  %v6933 = vpop.xlane.xlu0 %6932
  %v6934 = vsub.f32 %v6926, %v6933
  %v6935 = vmul.f32 %v6934, 1.442695
  %v6936 = vpow.pop %v6935
  %v6937 = vsel %vm229, %v6936, 0.0
  %6938 = vadd.xlane.f32.xlu0 %v6937
  %v6939 = vpop.xlane.xlu0 %6938
  %v6940 = vrcp.pop %v6939
  %v6941 = vmul.f32 %v6936, %v6940
  %v6942 = vpack.c.bf16 %v6941, %v6941
  %v6944 = vsel %vm229, %v6942, 0
  %6946 = vmatprep.subr.bf16.mxu0 0
  %6947 = vmatpush1.bf16.msra.mxu0 %v4698
  %6948 = vmatprep.subr.bf16.mxu0 0
  %6949 = vmatpush1.bf16.msra.mxu0 0
  %6950 = vmatprep.subr.bf16.mxu0 0
  %6951 = vmatpush1.bf16.msra.mxu0 0
  %6952 = vmatprep.subr.bf16.mxu0 0
  %6953 = vmatpush1.bf16.msra.mxu0 0
  %6954 = vmatprep.subr.bf16.mxu0 0
  %6955 = vmatpush1.bf16.msra.mxu0 0
  %6956 = vmatprep.subr.bf16.mxu0 0
  %6957 = vmatpush1.bf16.msra.mxu0 0
  %6958 = vmatprep.subr.bf16.mxu0 0
  %6959 = vmatpush1.bf16.msra.mxu0 0
  %6960 = vmatprep.subr.bf16.mxu0 0
  %6961 = vmatpush1.bf16.msra.mxu0 0
  %6962 = vmatprep.subr.bf16.mxu0 0
  %6963 = vmatpush1.bf16.msra.mxu0 0
  %6964 = vmatprep.subr.bf16.mxu0 0
  %6965 = vmatpush1.bf16.msra.mxu0 0
  %6966 = vmatprep.subr.bf16.mxu0 0
  %6967 = vmatpush1.bf16.msra.mxu0 0
  %6968 = vmatprep.subr.bf16.mxu0 0
  %6969 = vmatpush1.bf16.msra.mxu0 0
  %6970 = vmatprep.subr.bf16.mxu0 0
  %6971 = vmatpush1.bf16.msra.mxu0 0
  %6972 = vmatprep.subr.bf16.mxu0 0
  %6973 = vmatpush1.bf16.msra.mxu0 0
  %6974 = vmatprep.subr.bf16.mxu0 0
  %6975 = vmatpush1.bf16.msra.mxu0 0
  %6976 = vmatprep.subr.bf16.mxu0 0
  %6977 = vmatpush1.bf16.msra.mxu0 0
  %6978 = vmatprep.mubr.bf16.mxu0 0
  %6979 = vmatmul.mubr.bf16.gmra.mrb[0].mxu0 %v6944
  %v6980 = vpop.f32.mrb[0].mxu0
  %v6981 = vadd.f32 0.0, %v6980
  %v6982 = vpop.f32.mrb[0].mxu0
  %v6983 = vpop.f32.mrb[0].mxu0
  %v6984 = vpop.f32.mrb[0].mxu0
  %6985 = vdwg.mxu0
  %6987 = vrot.lane.b32.xlu0 %v6781, 8
  %v6988 = vpop.permute.xlu0 %6987
  %6991 = vrot.lane.b32.xlu0 %v6881, 16
  %v6992 = vpop.permute.xlu0 %6991
  %6995 = vrot.lane.b32.xlu0 %v6981, 24
  %v6996 = vpop.permute.xlu0 %6995
  %v6998 = vsel %vm181, %v6680, %v6988
  %v6999 = vsel %vm229, %v6998, %v6992
  %v7000 = vsel %vm692, %v6999, %v6996
  %v7001 = vrot.slane %v6586, 4
  %v7003 = vsel %vm181, %v7001, 0
  %7005 = vmatprep.subr.bf16.mxu0 0
  %7006 = vmatpush1.bf16.xpose.msra.mxu0 %v4763
  %7007 = vmatprep.subr.bf16.mxu0 0
  %7008 = vmatpush1.bf16.xpose.msra.mxu0 0
  %7009 = vmatprep.subr.bf16.mxu0 0
  %7010 = vmatpush1.bf16.xpose.msra.mxu0 0
  %7011 = vmatprep.subr.bf16.mxu0 0
  %7012 = vmatpush1.bf16.xpose.msra.mxu0 0
  %7013 = vmatprep.subr.bf16.mxu0 0
  %7014 = vmatpush1.bf16.xpose.msra.mxu0 0
  %7015 = vmatprep.subr.bf16.mxu0 0
  %7016 = vmatpush1.bf16.xpose.msra.mxu0 0
  %7017 = vmatprep.subr.bf16.mxu0 0
  %7018 = vmatpush1.bf16.xpose.msra.mxu0 0
  %7019 = vmatprep.subr.bf16.mxu0 0
  %7020 = vmatpush1.bf16.xpose.msra.mxu0 0
  %7021 = vmatprep.subr.bf16.mxu0 0
  %7022 = vmatpush1.bf16.xpose.msra.mxu0 0
  %7023 = vmatprep.subr.bf16.mxu0 0
  %7024 = vmatpush1.bf16.xpose.msra.mxu0 0
  %7025 = vmatprep.subr.bf16.mxu0 0
  %7026 = vmatpush1.bf16.xpose.msra.mxu0 0
  %7027 = vmatprep.subr.bf16.mxu0 0
  %7028 = vmatpush1.bf16.xpose.msra.mxu0 0
  %7029 = vmatprep.subr.bf16.mxu0 0
  %7030 = vmatpush1.bf16.xpose.msra.mxu0 0
  %7031 = vmatprep.subr.bf16.mxu0 0
  %7032 = vmatpush1.bf16.xpose.msra.mxu0 0
  %7033 = vmatprep.subr.bf16.mxu0 0
  %7034 = vmatpush1.bf16.xpose.msra.mxu0 0
  %7035 = vmatprep.subr.bf16.mxu0 0
  %7036 = vmatpush1.bf16.xpose.msra.mxu0 0
  %7037 = vmatprep.mubr.bf16.mxu0 0
  %7038 = vmatmul.mubr.bf16.gmra.mrb[0].mxu0 %v7003
  %v7039 = vpop.f32.mrb[0].mxu0
  %v7040 = vadd.f32 0.0, %v7039
  %v7041 = vpop.f32.mrb[0].mxu0
  %v7042 = vpop.f32.mrb[0].mxu0
  %v7043 = vpop.f32.mrb[0].mxu0
  %7044 = vdwg.mxu0
  %v7045 = vsel %vm229, %v7040, -inf
  %7046 = vmax.xlane.f32.xlu0 %v7045
  %v7047 = vpop.xlane.xlu0 %7046
  %v7048 = vsub.f32 %v7040, %v7047
  %v7049 = vmul.f32 %v7048, 1.442695
  %v7050 = vpow.pop %v7049
  %v7051 = vsel %vm229, %v7050, 0.0
  %7052 = vadd.xlane.f32.xlu0 %v7051
  %v7053 = vpop.xlane.xlu0 %7052
  %v7054 = vrcp.pop %v7053
  %v7055 = vmul.f32 %v7050, %v7054
  %v7056 = vpack.c.bf16 %v7055, %v7055
  %v7058 = vsel %vm229, %v7056, 0
  %7060 = vmatprep.subr.bf16.mxu0 0
  %7061 = vmatpush1.bf16.msra.mxu0 %v4819
  %7062 = vmatprep.subr.bf16.mxu0 0
  %7063 = vmatpush1.bf16.msra.mxu0 0
  %7064 = vmatprep.subr.bf16.mxu0 0
  %7065 = vmatpush1.bf16.msra.mxu0 0
  %7066 = vmatprep.subr.bf16.mxu0 0
  %7067 = vmatpush1.bf16.msra.mxu0 0
  %7068 = vmatprep.subr.bf16.mxu0 0
  %7069 = vmatpush1.bf16.msra.mxu0 0
  %7070 = vmatprep.subr.bf16.mxu0 0
  %7071 = vmatpush1.bf16.msra.mxu0 0
  %7072 = vmatprep.subr.bf16.mxu0 0
  %7073 = vmatpush1.bf16.msra.mxu0 0
  %7074 = vmatprep.subr.bf16.mxu0 0
  %7075 = vmatpush1.bf16.msra.mxu0 0
  %7076 = vmatprep.subr.bf16.mxu0 0
  %7077 = vmatpush1.bf16.msra.mxu0 0
  %7078 = vmatprep.subr.bf16.mxu0 0
  %7079 = vmatpush1.bf16.msra.mxu0 0
  %7080 = vmatprep.subr.bf16.mxu0 0
  %7081 = vmatpush1.bf16.msra.mxu0 0
  %7082 = vmatprep.subr.bf16.mxu0 0
  %7083 = vmatpush1.bf16.msra.mxu0 0
  %7084 = vmatprep.subr.bf16.mxu0 0
  %7085 = vmatpush1.bf16.msra.mxu0 0
  %7086 = vmatprep.subr.bf16.mxu0 0
  %7087 = vmatpush1.bf16.msra.mxu0 0
  %7088 = vmatprep.subr.bf16.mxu0 0
  %7089 = vmatpush1.bf16.msra.mxu0 0
  %7090 = vmatprep.subr.bf16.mxu0 0
  %7091 = vmatpush1.bf16.msra.mxu0 0
  %7092 = vmatprep.mubr.bf16.mxu0 0
  %7093 = vmatmul.mubr.bf16.gmra.mrb[0].mxu0 %v7058
  %v7094 = vpop.f32.mrb[0].mxu0
  %v7095 = vadd.f32 0.0, %v7094
  %v7096 = vpop.f32.mrb[0].mxu0
  %v7097 = vpop.f32.mrb[0].mxu0
  %v7098 = vpop.f32.mrb[0].mxu0
  %7099 = vdwg.mxu0
  %7100 = vrot.lane.b32.xlu0 %v7001, 120
  %v7101 = vpop.permute.xlu0 %7100
  %v7103 = vsel %vm181, %v7101, 0
  %7105 = vmatprep.subr.bf16.mxu0 0
  %7106 = vmatpush1.bf16.xpose.msra.mxu0 %v4872
  %7107 = vmatprep.subr.bf16.mxu0 0
  %7108 = vmatpush1.bf16.xpose.msra.mxu0 0
  %7109 = vmatprep.subr.bf16.mxu0 0
  %7110 = vmatpush1.bf16.xpose.msra.mxu0 0
  %7111 = vmatprep.subr.bf16.mxu0 0
  %7112 = vmatpush1.bf16.xpose.msra.mxu0 0
  %7113 = vmatprep.subr.bf16.mxu0 0
  %7114 = vmatpush1.bf16.xpose.msra.mxu0 0
  %7115 = vmatprep.subr.bf16.mxu0 0
  %7116 = vmatpush1.bf16.xpose.msra.mxu0 0
  %7117 = vmatprep.subr.bf16.mxu0 0
  %7118 = vmatpush1.bf16.xpose.msra.mxu0 0
  %7119 = vmatprep.subr.bf16.mxu0 0
  %7120 = vmatpush1.bf16.xpose.msra.mxu0 0
  %7121 = vmatprep.subr.bf16.mxu0 0
  %7122 = vmatpush1.bf16.xpose.msra.mxu0 0
  %7123 = vmatprep.subr.bf16.mxu0 0
  %7124 = vmatpush1.bf16.xpose.msra.mxu0 0
  %7125 = vmatprep.subr.bf16.mxu0 0
  %7126 = vmatpush1.bf16.xpose.msra.mxu0 0
  %7127 = vmatprep.subr.bf16.mxu0 0
  %7128 = vmatpush1.bf16.xpose.msra.mxu0 0
  %7129 = vmatprep.subr.bf16.mxu0 0
  %7130 = vmatpush1.bf16.xpose.msra.mxu0 0
  %7131 = vmatprep.subr.bf16.mxu0 0
  %7132 = vmatpush1.bf16.xpose.msra.mxu0 0
  %7133 = vmatprep.subr.bf16.mxu0 0
  %7134 = vmatpush1.bf16.xpose.msra.mxu0 0
  %7135 = vmatprep.subr.bf16.mxu0 0
  %7136 = vmatpush1.bf16.xpose.msra.mxu0 0
  %7137 = vmatprep.mubr.bf16.mxu0 0
  %7138 = vmatmul.mubr.bf16.gmra.mrb[0].mxu0 %v7103
  %v7139 = vpop.f32.mrb[0].mxu0
  %v7140 = vadd.f32 0.0, %v7139
  %v7141 = vpop.f32.mrb[0].mxu0
  %v7142 = vpop.f32.mrb[0].mxu0
  %v7143 = vpop.f32.mrb[0].mxu0
  %7144 = vdwg.mxu0
  %v7145 = vsel %vm229, %v7140, -inf
  %7146 = vmax.xlane.f32.xlu0 %v7145
  %v7147 = vpop.xlane.xlu0 %7146
  %v7148 = vsub.f32 %v7140, %v7147
  %v7149 = vmul.f32 %v7148, 1.442695
  %v7150 = vpow.pop %v7149
  %v7151 = vsel %vm229, %v7150, 0.0
  %7152 = vadd.xlane.f32.xlu0 %v7151
  %v7153 = vpop.xlane.xlu0 %7152
  %v7154 = vrcp.pop %v7153
  %v7155 = vmul.f32 %v7150, %v7154
  %v7156 = vpack.c.bf16 %v7155, %v7155
  %v7158 = vsel %vm229, %v7156, 0
  %7160 = vmatprep.subr.bf16.mxu0 0
  %7161 = vmatpush1.bf16.msra.mxu0 %v4927
  %7162 = vmatprep.subr.bf16.mxu0 0
  %7163 = vmatpush1.bf16.msra.mxu0 0
  %7164 = vmatprep.subr.bf16.mxu0 0
  %7165 = vmatpush1.bf16.msra.mxu0 0
  %7166 = vmatprep.subr.bf16.mxu0 0
  %7167 = vmatpush1.bf16.msra.mxu0 0
  %7168 = vmatprep.subr.bf16.mxu0 0
  %7169 = vmatpush1.bf16.msra.mxu0 0
  %7170 = vmatprep.subr.bf16.mxu0 0
  %7171 = vmatpush1.bf16.msra.mxu0 0
  %7172 = vmatprep.subr.bf16.mxu0 0
  %7173 = vmatpush1.bf16.msra.mxu0 0
  %7174 = vmatprep.subr.bf16.mxu0 0
  %7175 = vmatpush1.bf16.msra.mxu0 0
  %7176 = vmatprep.subr.bf16.mxu0 0
  %7177 = vmatpush1.bf16.msra.mxu0 0
  %7178 = vmatprep.subr.bf16.mxu0 0
  %7179 = vmatpush1.bf16.msra.mxu0 0
  %7180 = vmatprep.subr.bf16.mxu0 0
  %7181 = vmatpush1.bf16.msra.mxu0 0
  %7182 = vmatprep.subr.bf16.mxu0 0
  %7183 = vmatpush1.bf16.msra.mxu0 0
  %7184 = vmatprep.subr.bf16.mxu0 0
  %7185 = vmatpush1.bf16.msra.mxu0 0
  %7186 = vmatprep.subr.bf16.mxu0 0
  %7187 = vmatpush1.bf16.msra.mxu0 0
  %7188 = vmatprep.subr.bf16.mxu0 0
  %7189 = vmatpush1.bf16.msra.mxu0 0
  %7190 = vmatprep.subr.bf16.mxu0 0
  %7191 = vmatpush1.bf16.msra.mxu0 0
  %7192 = vmatprep.mubr.bf16.mxu0 0
  %7193 = vmatmul.mubr.bf16.gmra.mrb[0].mxu0 %v7158
  %v7194 = vpop.f32.mrb[0].mxu0
  %v7195 = vadd.f32 0.0, %v7194
  %v7196 = vpop.f32.mrb[0].mxu0
  %v7197 = vpop.f32.mrb[0].mxu0
  %v7198 = vpop.f32.mrb[0].mxu0
  %7199 = vdwg.mxu0
  %7200 = vrot.lane.b32.xlu0 %v7001, 112
  %v7201 = vpop.permute.xlu0 %7200
  %v7203 = vsel %vm181, %v7201, 0
  %7205 = vmatprep.subr.bf16.mxu0 0
  %7206 = vmatpush1.bf16.xpose.msra.mxu0 %v4980
  %7207 = vmatprep.subr.bf16.mxu0 0
  %7208 = vmatpush1.bf16.xpose.msra.mxu0 0
  %7209 = vmatprep.subr.bf16.mxu0 0
  %7210 = vmatpush1.bf16.xpose.msra.mxu0 0
  %7211 = vmatprep.subr.bf16.mxu0 0
  %7212 = vmatpush1.bf16.xpose.msra.mxu0 0
  %7213 = vmatprep.subr.bf16.mxu0 0
  %7214 = vmatpush1.bf16.xpose.msra.mxu0 0
  %7215 = vmatprep.subr.bf16.mxu0 0
  %7216 = vmatpush1.bf16.xpose.msra.mxu0 0
  %7217 = vmatprep.subr.bf16.mxu0 0
  %7218 = vmatpush1.bf16.xpose.msra.mxu0 0
  %7219 = vmatprep.subr.bf16.mxu0 0
  %7220 = vmatpush1.bf16.xpose.msra.mxu0 0
  %7221 = vmatprep.subr.bf16.mxu0 0
  %7222 = vmatpush1.bf16.xpose.msra.mxu0 0
  %7223 = vmatprep.subr.bf16.mxu0 0
  %7224 = vmatpush1.bf16.xpose.msra.mxu0 0
  %7225 = vmatprep.subr.bf16.mxu0 0
  %7226 = vmatpush1.bf16.xpose.msra.mxu0 0
  %7227 = vmatprep.subr.bf16.mxu0 0
  %7228 = vmatpush1.bf16.xpose.msra.mxu0 0
  %7229 = vmatprep.subr.bf16.mxu0 0
  %7230 = vmatpush1.bf16.xpose.msra.mxu0 0
  %7231 = vmatprep.subr.bf16.mxu0 0
  %7232 = vmatpush1.bf16.xpose.msra.mxu0 0
  %7233 = vmatprep.subr.bf16.mxu0 0
  %7234 = vmatpush1.bf16.xpose.msra.mxu0 0
  %7235 = vmatprep.subr.bf16.mxu0 0
  %7236 = vmatpush1.bf16.xpose.msra.mxu0 0
  %7237 = vmatprep.mubr.bf16.mxu0 0
  %7238 = vmatmul.mubr.bf16.gmra.mrb[0].mxu0 %v7203
  %v7239 = vpop.f32.mrb[0].mxu0
  %v7240 = vadd.f32 0.0, %v7239
  %v7241 = vpop.f32.mrb[0].mxu0
  %v7242 = vpop.f32.mrb[0].mxu0
  %v7243 = vpop.f32.mrb[0].mxu0
  %7244 = vdwg.mxu0
  %v7245 = vsel %vm229, %v7240, -inf
  %7246 = vmax.xlane.f32.xlu0 %v7245
  %v7247 = vpop.xlane.xlu0 %7246
  %v7248 = vsub.f32 %v7240, %v7247
  %v7249 = vmul.f32 %v7248, 1.442695
  %v7250 = vpow.pop %v7249
  %v7251 = vsel %vm229, %v7250, 0.0
  %7252 = vadd.xlane.f32.xlu0 %v7251
  %v7253 = vpop.xlane.xlu0 %7252
  %v7254 = vrcp.pop %v7253
  %v7255 = vmul.f32 %v7250, %v7254
  %v7256 = vpack.c.bf16 %v7255, %v7255
  %v7258 = vsel %vm229, %v7256, 0
  %7260 = vmatprep.subr.bf16.mxu0 0
  %7261 = vmatpush1.bf16.msra.mxu0 %v5035
  %7262 = vmatprep.subr.bf16.mxu0 0
  %7263 = vmatpush1.bf16.msra.mxu0 0
  %7264 = vmatprep.subr.bf16.mxu0 0
  %7265 = vmatpush1.bf16.msra.mxu0 0
  %7266 = vmatprep.subr.bf16.mxu0 0
  %7267 = vmatpush1.bf16.msra.mxu0 0
  %7268 = vmatprep.subr.bf16.mxu0 0
  %7269 = vmatpush1.bf16.msra.mxu0 0
  %7270 = vmatprep.subr.bf16.mxu0 0
  %7271 = vmatpush1.bf16.msra.mxu0 0
  %7272 = vmatprep.subr.bf16.mxu0 0
  %7273 = vmatpush1.bf16.msra.mxu0 0
  %7274 = vmatprep.subr.bf16.mxu0 0
  %7275 = vmatpush1.bf16.msra.mxu0 0
  %7276 = vmatprep.subr.bf16.mxu0 0
  %7277 = vmatpush1.bf16.msra.mxu0 0
  %7278 = vmatprep.subr.bf16.mxu0 0
  %7279 = vmatpush1.bf16.msra.mxu0 0
  %7280 = vmatprep.subr.bf16.mxu0 0
  %7281 = vmatpush1.bf16.msra.mxu0 0
  %7282 = vmatprep.subr.bf16.mxu0 0
  %7283 = vmatpush1.bf16.msra.mxu0 0
  %7284 = vmatprep.subr.bf16.mxu0 0
  %7285 = vmatpush1.bf16.msra.mxu0 0
  %7286 = vmatprep.subr.bf16.mxu0 0
  %7287 = vmatpush1.bf16.msra.mxu0 0
  %7288 = vmatprep.subr.bf16.mxu0 0
  %7289 = vmatpush1.bf16.msra.mxu0 0
  %7290 = vmatprep.subr.bf16.mxu0 0
  %7291 = vmatpush1.bf16.msra.mxu0 0
  %7292 = vmatprep.mubr.bf16.mxu0 0
  %7293 = vmatmul.mubr.bf16.gmra.mrb[0].mxu0 %v7258
  %v7294 = vpop.f32.mrb[0].mxu0
  %v7295 = vadd.f32 0.0, %v7294
  %v7296 = vpop.f32.mrb[0].mxu0
  %v7297 = vpop.f32.mrb[0].mxu0
  %v7298 = vpop.f32.mrb[0].mxu0
  %7299 = vdwg.mxu0
  %7300 = vrot.lane.b32.xlu0 %v7001, 104
  %v7301 = vpop.permute.xlu0 %7300
  %v7303 = vsel %vm181, %v7301, 0
  %7305 = vmatprep.subr.bf16.mxu0 0
  %7306 = vmatpush1.bf16.xpose.msra.mxu0 %v5088
  %7307 = vmatprep.subr.bf16.mxu0 0
  %7308 = vmatpush1.bf16.xpose.msra.mxu0 0
  %7309 = vmatprep.subr.bf16.mxu0 0
  %7310 = vmatpush1.bf16.xpose.msra.mxu0 0
  %7311 = vmatprep.subr.bf16.mxu0 0
  %7312 = vmatpush1.bf16.xpose.msra.mxu0 0
  %7313 = vmatprep.subr.bf16.mxu0 0
  %7314 = vmatpush1.bf16.xpose.msra.mxu0 0
  %7315 = vmatprep.subr.bf16.mxu0 0
  %7316 = vmatpush1.bf16.xpose.msra.mxu0 0
  %7317 = vmatprep.subr.bf16.mxu0 0
  %7318 = vmatpush1.bf16.xpose.msra.mxu0 0
  %7319 = vmatprep.subr.bf16.mxu0 0
  %7320 = vmatpush1.bf16.xpose.msra.mxu0 0
  %7321 = vmatprep.subr.bf16.mxu0 0
  %7322 = vmatpush1.bf16.xpose.msra.mxu0 0
  %7323 = vmatprep.subr.bf16.mxu0 0
  %7324 = vmatpush1.bf16.xpose.msra.mxu0 0
  %7325 = vmatprep.subr.bf16.mxu0 0
  %7326 = vmatpush1.bf16.xpose.msra.mxu0 0
  %7327 = vmatprep.subr.bf16.mxu0 0
  %7328 = vmatpush1.bf16.xpose.msra.mxu0 0
  %7329 = vmatprep.subr.bf16.mxu0 0
  %7330 = vmatpush1.bf16.xpose.msra.mxu0 0
  %7331 = vmatprep.subr.bf16.mxu0 0
  %7332 = vmatpush1.bf16.xpose.msra.mxu0 0
  %7333 = vmatprep.subr.bf16.mxu0 0
  %7334 = vmatpush1.bf16.xpose.msra.mxu0 0
  %7335 = vmatprep.subr.bf16.mxu0 0
  %7336 = vmatpush1.bf16.xpose.msra.mxu0 0
  %7337 = vmatprep.mubr.bf16.mxu0 0
  %7338 = vmatmul.mubr.bf16.gmra.mrb[0].mxu0 %v7303
  %v7339 = vpop.f32.mrb[0].mxu0
  %v7340 = vadd.f32 0.0, %v7339
  %v7341 = vpop.f32.mrb[0].mxu0
  %v7342 = vpop.f32.mrb[0].mxu0
  %v7343 = vpop.f32.mrb[0].mxu0
  %7344 = vdwg.mxu0
  %v7345 = vsel %vm229, %v7340, -inf
  %7346 = vmax.xlane.f32.xlu0 %v7345
  %v7347 = vpop.xlane.xlu0 %7346
  %v7348 = vsub.f32 %v7340, %v7347
  %v7349 = vmul.f32 %v7348, 1.442695
  %v7350 = vpow.pop %v7349
  %v7351 = vsel %vm229, %v7350, 0.0
  %7352 = vadd.xlane.f32.xlu0 %v7351
  %v7353 = vpop.xlane.xlu0 %7352
  %v7354 = vrcp.pop %v7353
  %v7355 = vmul.f32 %v7350, %v7354
  %v7356 = vpack.c.bf16 %v7355, %v7355
  %v7358 = vsel %vm229, %v7356, 0
  %7360 = vmatprep.subr.bf16.mxu0 0
  %7361 = vmatpush1.bf16.msra.mxu0 %v5143
  %7362 = vmatprep.subr.bf16.mxu0 0
  %7363 = vmatpush1.bf16.msra.mxu0 0
  %7364 = vmatprep.subr.bf16.mxu0 0
  %7365 = vmatpush1.bf16.msra.mxu0 0
  %7366 = vmatprep.subr.bf16.mxu0 0
  %7367 = vmatpush1.bf16.msra.mxu0 0
  %7368 = vmatprep.subr.bf16.mxu0 0
  %7369 = vmatpush1.bf16.msra.mxu0 0
  %7370 = vmatprep.subr.bf16.mxu0 0
  %7371 = vmatpush1.bf16.msra.mxu0 0
  %7372 = vmatprep.subr.bf16.mxu0 0
  %7373 = vmatpush1.bf16.msra.mxu0 0
  %7374 = vmatprep.subr.bf16.mxu0 0
  %7375 = vmatpush1.bf16.msra.mxu0 0
  %7376 = vmatprep.subr.bf16.mxu0 0
  %7377 = vmatpush1.bf16.msra.mxu0 0
  %7378 = vmatprep.subr.bf16.mxu0 0
  %7379 = vmatpush1.bf16.msra.mxu0 0
  %7380 = vmatprep.subr.bf16.mxu0 0
  %7381 = vmatpush1.bf16.msra.mxu0 0
  %7382 = vmatprep.subr.bf16.mxu0 0
  %7383 = vmatpush1.bf16.msra.mxu0 0
  %7384 = vmatprep.subr.bf16.mxu0 0
  %7385 = vmatpush1.bf16.msra.mxu0 0
  %7386 = vmatprep.subr.bf16.mxu0 0
  %7387 = vmatpush1.bf16.msra.mxu0 0
  %7388 = vmatprep.subr.bf16.mxu0 0
  %7389 = vmatpush1.bf16.msra.mxu0 0
  %7390 = vmatprep.subr.bf16.mxu0 0
  %7391 = vmatpush1.bf16.msra.mxu0 0
  %7392 = vmatprep.mubr.bf16.mxu0 0
  %7393 = vmatmul.mubr.bf16.gmra.mrb[0].mxu0 %v7358
  %v7394 = vpop.f32.mrb[0].mxu0
  %v7395 = vadd.f32 0.0, %v7394
  %v7396 = vpop.f32.mrb[0].mxu0
  %v7397 = vpop.f32.mrb[0].mxu0
  %v7398 = vpop.f32.mrb[0].mxu0
  %7399 = vdwg.mxu0
  %7401 = vrot.lane.b32.xlu0 %v7195, 8
  %v7402 = vpop.permute.xlu0 %7401
  %7405 = vrot.lane.b32.xlu0 %v7295, 16
  %v7406 = vpop.permute.xlu0 %7405
  %7409 = vrot.lane.b32.xlu0 %v7395, 24
  %v7410 = vpop.permute.xlu0 %7409
  %v7412 = vsel %vm181, %v7095, %v7402
  %v7413 = vsel %vm229, %v7412, %v7406
  %v7414 = vsel %vm692, %v7413, %v7410
  %v7415 = vpack.c.bf16 %v7414, %v7000
  %v7417 = vsel %vm114, %v7415, 0
  %7419 = vmatprep.subr.bf16.mxu0 0
  %7420 = vmatpush1.bf16.msra.mxu0 %v5221
  %7421 = vmatprep.subr.bf16.mxu0 0
  %7422 = vmatpush1.bf16.msra.mxu0 %v5222
  %7423 = vmatprep.subr.bf16.mxu0 0
  %7424 = vmatpush1.bf16.msra.mxu0 0
  %7425 = vmatprep.subr.bf16.mxu0 0
  %7426 = vmatpush1.bf16.msra.mxu0 0
  %7427 = vmatprep.subr.bf16.mxu0 0
  %7428 = vmatpush1.bf16.msra.mxu0 0
  %7429 = vmatprep.subr.bf16.mxu0 0
  %7430 = vmatpush1.bf16.msra.mxu0 0
  %7431 = vmatprep.subr.bf16.mxu0 0
  %7432 = vmatpush1.bf16.msra.mxu0 0
  %7433 = vmatprep.subr.bf16.mxu0 0
  %7434 = vmatpush1.bf16.msra.mxu0 0
  %7435 = vmatprep.subr.bf16.mxu0 0
  %7436 = vmatpush1.bf16.msra.mxu0 0
  %7437 = vmatprep.subr.bf16.mxu0 0
  %7438 = vmatpush1.bf16.msra.mxu0 0
  %7439 = vmatprep.subr.bf16.mxu0 0
  %7440 = vmatpush1.bf16.msra.mxu0 0
  %7441 = vmatprep.subr.bf16.mxu0 0
  %7442 = vmatpush1.bf16.msra.mxu0 0
  %7443 = vmatprep.subr.bf16.mxu0 0
  %7444 = vmatpush1.bf16.msra.mxu0 0
  %7445 = vmatprep.subr.bf16.mxu0 0
  %7446 = vmatpush1.bf16.msra.mxu0 0
  %7447 = vmatprep.subr.bf16.mxu0 0
  %7448 = vmatpush1.bf16.msra.mxu0 0
  %7449 = vmatprep.subr.bf16.mxu0 0
  %7450 = vmatpush1.bf16.msra.mxu0 0
  %7451 = vmatprep.mubr.bf16.mxu0 0
  %7452 = vmatmul.mubr.bf16.gmra.mrb[0].mxu0 %v7417
  %v7453 = vpop.f32.mrb[0].mxu0
  %v7454 = vadd.f32 %v5212, %v7453
  %v7455 = vpop.f32.mrb[0].mxu0
  %v7456 = vpop.f32.mrb[0].mxu0
  %v7457 = vadd.f32 %v5212, %v7456
  %v7458 = vpop.f32.mrb[0].mxu0
  %7459 = vdwg.mxu0
  %v7460 = vadd.f32 %v6537, %v7454
  %v7461 = vadd.f32 %v6538, %v7457
  %v7462 = vsel %vm114, %v7460, 0.0
  %7463 = vadd.xlane.f32.xlu0 %v7462
  %v7464 = vpop.xlane.xlu0 %7463
  %v7465 = vsel %vm114, %v7461, 0.0
  %7466 = vadd.xlane.f32.xlu0 %v7465
  %v7467 = vpop.xlane.xlu0 %7466
  %v7468 = vmul.f32 %v7464, %v1305
  %v7469 = vmul.f32 %v7467, %v1305
  %v7470 = vsub.f32 %v7460, %v7468
  %v7471 = vsub.f32 %v7461, %v7469
  %v7472 = vmul.f32 %v7470, %v7470
  %v7473 = vmul.f32 %v7471, %v7471
  %v7474 = vsel %vm114, %v7472, 0.0
  %7475 = vadd.xlane.f32.xlu0 %v7474
  %v7476 = vpop.xlane.xlu0 %7475
  %v7477 = vsel %vm114, %v7473, 0.0
  %7478 = vadd.xlane.f32.xlu0 %v7477
  %v7479 = vpop.xlane.xlu0 %7478
  %v7480 = vmul.f32 %v7476, %v1305
  %v7481 = vmul.f32 %v7479, %v1305
  %v7482 = vadd.f32 %v7480, 1e-05
  %v7483 = vadd.f32 %v7481, 1e-05
  %v7484 = vrsqrt.pop %v7482
  %v7485 = vrsqrt.pop %v7483
  %v7486 = vmul.f32 %v7470, %v7484
  %v7487 = vmul.f32 %v7471, %v7485
  %v7488 = vmul.f32 %v7486, %v5302
  %v7489 = vmul.f32 %v7487, %v5302
  %v7490 = vadd.f32 %v7488, %v5308
  %v7491 = vadd.f32 %v7489, %v5308
  %v7492 = vpack.c.bf16 %v7491, %v7490
  %v7494 = vsel %vm114, %v7492, 0
  %7496 = vmatprep.subr.bf16.mxu0 0
  %7497 = vmatpush1.bf16.msra.mxu0 %v5329
  %7498 = vmatprep.subr.bf16.mxu0 0
  %7499 = vmatpush1.bf16.msra.mxu0 %v5330
  %7500 = vmatprep.subr.bf16.mxu0 0
  %7501 = vmatpush1.bf16.msra.mxu0 0
  %7502 = vmatprep.subr.bf16.mxu0 0
  %7503 = vmatpush1.bf16.msra.mxu0 0
  %7504 = vmatprep.subr.bf16.mxu0 0
  %7505 = vmatpush1.bf16.msra.mxu0 0
  %7506 = vmatprep.subr.bf16.mxu0 0
  %7507 = vmatpush1.bf16.msra.mxu0 0
  %7508 = vmatprep.subr.bf16.mxu0 0
  %7509 = vmatpush1.bf16.msra.mxu0 0
  %7510 = vmatprep.subr.bf16.mxu0 0
  %7511 = vmatpush1.bf16.msra.mxu0 0
  %7512 = vmatprep.subr.bf16.mxu0 0
  %7513 = vmatpush1.bf16.msra.mxu0 0
  %7514 = vmatprep.subr.bf16.mxu0 0
  %7515 = vmatpush1.bf16.msra.mxu0 0
  %7516 = vmatprep.subr.bf16.mxu0 0
  %7517 = vmatpush1.bf16.msra.mxu0 0
  %7518 = vmatprep.subr.bf16.mxu0 0
  %7519 = vmatpush1.bf16.msra.mxu0 0
  %7520 = vmatprep.subr.bf16.mxu0 0
  %7521 = vmatpush1.bf16.msra.mxu0 0
  %7522 = vmatprep.subr.bf16.mxu0 0
  %7523 = vmatpush1.bf16.msra.mxu0 0
  %7524 = vmatprep.subr.bf16.mxu0 0
  %7525 = vmatpush1.bf16.msra.mxu0 0
  %7526 = vmatprep.subr.bf16.mxu0 0
  %7527 = vmatpush1.bf16.msra.mxu0 0
  %7528 = vmatprep.mubr.bf16.mxu0 0
  %7529 = vmatmul.mubr.bf16.gmra.mrb[0].mxu0 %v7494
  %v7530 = vpop.f32.mrb[0].mxu0
  %v7531 = vadd.f32 %v5320, %v7530
  %v7532 = vpop.f32.mrb[0].mxu0
  %v7533 = vpop.f32.mrb[0].mxu0
  %v7534 = vadd.f32 %v5320, %v7533
  %v7535 = vpop.f32.mrb[0].mxu0
  %7536 = vdwg.mxu0
  %v7537 = vmax.f32 %v7531, 0.0
  %v7538 = vmax.f32 %v7534, 0.0
  %v7539 = vpack.c.bf16 %v7538, %v7537
  %v7541 = vsel %vm1483, %v7539, 0
  %7543 = vmatprep.subr.bf16.mxu0 0
  %7544 = vmatpush1.bf16.msra.mxu0 %v5409
  %7545 = vmatprep.subr.bf16.mxu0 0
  %7546 = vmatpush1.bf16.msra.mxu0 %v5410
  %7547 = vmatprep.subr.bf16.mxu0 0
  %7548 = vmatpush1.bf16.msra.mxu0 %v5411
  %7549 = vmatprep.subr.bf16.mxu0 0
  %7550 = vmatpush1.bf16.msra.mxu0 %v5412
  %7551 = vmatprep.subr.bf16.mxu0 0
  %7552 = vmatpush1.bf16.msra.mxu0 0
  %7553 = vmatprep.subr.bf16.mxu0 0
  %7554 = vmatpush1.bf16.msra.mxu0 0
  %7555 = vmatprep.subr.bf16.mxu0 0
  %7556 = vmatpush1.bf16.msra.mxu0 0
  %7557 = vmatprep.subr.bf16.mxu0 0
  %7558 = vmatpush1.bf16.msra.mxu0 0
  %7559 = vmatprep.subr.bf16.mxu0 0
  %7560 = vmatpush1.bf16.msra.mxu0 0
  %7561 = vmatprep.subr.bf16.mxu0 0
  %7562 = vmatpush1.bf16.msra.mxu0 0
  %7563 = vmatprep.subr.bf16.mxu0 0
  %7564 = vmatpush1.bf16.msra.mxu0 0
  %7565 = vmatprep.subr.bf16.mxu0 0
  %7566 = vmatpush1.bf16.msra.mxu0 0
  %7567 = vmatprep.subr.bf16.mxu0 0
  %7568 = vmatpush1.bf16.msra.mxu0 0
  %7569 = vmatprep.subr.bf16.mxu0 0
  %7570 = vmatpush1.bf16.msra.mxu0 0
  %7571 = vmatprep.subr.bf16.mxu0 0
  %7572 = vmatpush1.bf16.msra.mxu0 0
  %7573 = vmatprep.subr.bf16.mxu0 0
  %7574 = vmatpush1.bf16.msra.mxu0 0
  %7575 = vmatprep.mubr.bf16.mxu0 0
  %7576 = vmatmul.mubr.bf16.gmra.mrb[0].mxu0 %v7541
  %v7577 = vpop.f32.mrb[0].mxu0
  %v7578 = vadd.f32 %v5392, %v7577
  %v7579 = vpop.f32.mrb[0].mxu0
  %v7580 = vpop.f32.mrb[0].mxu0
  %v7581 = vadd.f32 %v5392, %v7580
  %v7582 = vpop.f32.mrb[0].mxu0
  %7583 = vdwg.mxu0
  %v7584 = vadd.f32 %v7490, %v7578
  %v7585 = vadd.f32 %v7491, %v7581
  %v7586 = vsel %vm114, %v7584, 0.0
  %7587 = vadd.xlane.f32.xlu0 %v7586
  %v7588 = vpop.xlane.xlu0 %7587
  %v7589 = vsel %vm114, %v7585, 0.0
  %7590 = vadd.xlane.f32.xlu0 %v7589
  %v7591 = vpop.xlane.xlu0 %7590
  %v7592 = vmul.f32 %v7588, %v1305
  %v7593 = vmul.f32 %v7591, %v1305
  %v7594 = vsub.f32 %v7584, %v7592
  %v7595 = vsub.f32 %v7585, %v7593
  %v7596 = vmul.f32 %v7594, %v7594
  %v7597 = vmul.f32 %v7595, %v7595
  %v7598 = vsel %vm114, %v7596, 0.0
  %7599 = vadd.xlane.f32.xlu0 %v7598
  %v7600 = vpop.xlane.xlu0 %7599
  %v7601 = vsel %vm114, %v7597, 0.0
  %7602 = vadd.xlane.f32.xlu0 %v7601
  %v7603 = vpop.xlane.xlu0 %7602
  %v7604 = vmul.f32 %v7600, %v1305
  %v7605 = vmul.f32 %v7603, %v1305
  %v7606 = vadd.f32 %v7604, 1e-05
  %v7607 = vadd.f32 %v7605, 1e-05
  %v7608 = vrsqrt.pop %v7606
  %v7609 = vrsqrt.pop %v7607
  %v7610 = vmul.f32 %v7594, %v7608
  %v7611 = vmul.f32 %v7595, %v7609
  %v7612 = vmul.f32 %v7610, %v5494
  %v7613 = vmul.f32 %v7611, %v5494
  %v7614 = vadd.f32 %v7612, %v5500
  %v7615 = vadd.f32 %v7613, %v5500
  %v7616 = vld [vmem:[%s2 + $0x37] sm:$0x1]
  %v7617 = vld [vmem:[%s2 + $0x38] sm:$0x1]
  %v7618 = vsel %vm114, %v7614, 0.0
  %7619 = vadd.xlane.f32.xlu0 %v7618
  %v7620 = vpop.xlane.xlu0 %7619
  %v7621 = vsel %vm114, %v7615, 0.0
  %7622 = vadd.xlane.f32.xlu0 %v7621
  %v7623 = vpop.xlane.xlu0 %7622
  %v7624 = vmul.f32 %v7620, %v1305
  %v7625 = vmul.f32 %v7623, %v1305
  %v7626 = vsub.f32 %v7614, %v7624
  %v7627 = vsub.f32 %v7615, %v7625
  %v7628 = vmul.f32 %v7626, %v7626
  %v7629 = vmul.f32 %v7627, %v7627
  %v7630 = vsel %vm114, %v7628, 0.0
  %7631 = vadd.xlane.f32.xlu0 %v7630
  %v7632 = vpop.xlane.xlu0 %7631
  %v7633 = vsel %vm114, %v7629, 0.0
  %7634 = vadd.xlane.f32.xlu0 %v7633
  %v7635 = vpop.xlane.xlu0 %7634
  %v7636 = vmul.f32 %v7632, %v1305
  %v7637 = vmul.f32 %v7635, %v1305
  %v7638 = vadd.f32 %v7636, 1e-05
  %v7639 = vadd.f32 %v7637, 1e-05
  %v7640 = vrsqrt.pop %v7638
  %v7641 = vrsqrt.pop %v7639
  %v7642 = vmul.f32 %v7626, %v7640
  %v7643 = vmul.f32 %v7627, %v7641
  %v7644 = vlaneseq
  %v7645 = vshrl.u32 %v7644, 7
  %v7646 = vsub.s32 0, %v7645
  %v7647 = vrot.slane %v7616, %v7646
  %v7648 = vmul.f32 %v7642, %v7647
  %v7649 = vmul.f32 %v7643, %v7647
  %v7650 = vlaneseq
  %v7651 = vshrl.u32 %v7650, 7
  %v7652 = vsub.s32 0, %v7651
  %v7653 = vrot.slane %v7617, %v7652
  %v7654 = vadd.f32 %v7648, %v7653
  %v7655 = vadd.f32 %v7649, %v7653
  %v7656 = vld [vmem:[%s1 + $0xc0] sm:$0xf]
  %v7657 = vld [vmem:[%s1 + $0xc4] sm:$0xf]
  %v7658 = vld [vmem:[%s1 + $0xc8] sm:$0xf]
  %v7659 = vld [vmem:[%s1 + $0xcc] sm:$0xf]
  %v7660 = vpack.c.bf16 %v7655, %v7654
  %v7661 = vld [vmem:[%s2 + $0x20] sm:$0x1]
  %v7662 = vlaneseq
  %v7663 = vshrl.u32 %v7662, 7
  %v7664 = vsub.s32 0, %v7663
  %v7665 = vrot.slane %v7661, %v7664
  %v7670 = vunpack.c.l.b16 %v7656
  %v7671 = vunpack.c.l.b16 %v7657
  %v7672 = vunpack.c.l.b16 %v7658
  %v7673 = vunpack.c.l.b16 %v7659
  %v7674 = vpack.c.b16 %v7671, %v7670
  %v7675 = vpack.c.b16 %v7673, %v7672
  %v7679 = vsel %vm114, %v7660, 0
  %7681 = vmatprep.subr.bf16.mxu0 0
  %7682 = vmatpush1.bf16.msra.mxu0 %v7674
  %7683 = vmatprep.subr.bf16.mxu0 0
  %7684 = vmatpush1.bf16.msra.mxu0 %v7675
  %7685 = vmatprep.subr.bf16.mxu0 0
  %7686 = vmatpush1.bf16.msra.mxu0 0
  %7687 = vmatprep.subr.bf16.mxu0 0
  %7688 = vmatpush1.bf16.msra.mxu0 0
  %7689 = vmatprep.subr.bf16.mxu0 0
  %7690 = vmatpush1.bf16.msra.mxu0 0
  %7691 = vmatprep.subr.bf16.mxu0 0
  %7692 = vmatpush1.bf16.msra.mxu0 0
  %7693 = vmatprep.subr.bf16.mxu0 0
  %7694 = vmatpush1.bf16.msra.mxu0 0
  %7695 = vmatprep.subr.bf16.mxu0 0
  %7696 = vmatpush1.bf16.msra.mxu0 0
  %7697 = vmatprep.subr.bf16.mxu0 0
  %7698 = vmatpush1.bf16.msra.mxu0 0
  %7699 = vmatprep.subr.bf16.mxu0 0
  %7700 = vmatpush1.bf16.msra.mxu0 0
  %7701 = vmatprep.subr.bf16.mxu0 0
  %7702 = vmatpush1.bf16.msra.mxu0 0
  %7703 = vmatprep.subr.bf16.mxu0 0
  %7704 = vmatpush1.bf16.msra.mxu0 0
  %7705 = vmatprep.subr.bf16.mxu0 0
  %7706 = vmatpush1.bf16.msra.mxu0 0
  %7707 = vmatprep.subr.bf16.mxu0 0
  %7708 = vmatpush1.bf16.msra.mxu0 0
  %7709 = vmatprep.subr.bf16.mxu0 0
  %7710 = vmatpush1.bf16.msra.mxu0 0
  %7711 = vmatprep.subr.bf16.mxu0 0
  %7712 = vmatpush1.bf16.msra.mxu0 0
  %7713 = vmatprep.mubr.bf16.mxu0 0
  %7714 = vmatmul.mubr.bf16.gmra.mrb[0].mxu0 %v7679
  %v7715 = vpop.f32.mrb[0].mxu0
  %v7716 = vadd.f32 %v7665, %v7715
  %v7717 = vpop.f32.mrb[0].mxu0
  %v7718 = vpop.f32.mrb[0].mxu0
  %v7719 = vadd.f32 %v7665, %v7718
  %v7720 = vpop.f32.mrb[0].mxu0
  %7721 = vdwg.mxu0
  %vm7722 = vcmask 31744
  %7723 = vst.msk [vmem:[%s3] sm:$0xff] %vm7722, %v7716
  %7724 = vst.msk [vmem:[%s3 + $0x8] sm:$0xff] %vm7722, %v7719
  // Predicated region
  $region14: #{transformer_forward.1} parent=0 // pred_check
    _
  $region15: #{transformer_forward.1} parent=0 // pred_check_branch
    %7726 = sbr.rel (0) target = $region17
  $region16: #{transformer_forward.1} parent=0 // pred_region
    _
  $region17: #{transformer_forward.1} parent=0 // pred_fallthru
    _
  // Predicated region
  $region18: #{transformer_forward.1} parent=0 // pred_check
    _
  $region19: #{transformer_forward.1} parent=0 // pred_check_branch
    %7728 = sbr.rel (0) target = $region21
  $region20: #{transformer_forward.1} parent=0 // pred_region
    _
  $region21: #{transformer_forward.1} parent=0 // pred_fallthru
    _

</llo_original>
